<compile_context>
chip_gen: v5e
topology: v5e:2x2
jax: 0.10.0
libtpu: 0.0.40
codegen_flags: <defaults>
</compile_context>

<pallas_src>
import jax
import jax.numpy as jnp
from jax import lax
from jax.experimental import pallas as pl
from jax.experimental.pallas import tpu as pltpu
from jax.scipy.special import erf as _erf_ref

_LN_EPS = 1e-5  # torch.nn.LayerNorm default


# ----------------------------- kernel helpers --------------------------------
def _layer_norm(x, gamma, beta):
    mu = jnp.mean(x, axis=-1, keepdims=True)
    xc = x - mu
    var = jnp.mean(xc * xc, axis=-1, keepdims=True)
    return xc * jax.lax.rsqrt(var + _LN_EPS) * gamma + beta


def _erf_f32(x):
    # Abramowitz & Stegun 7.1.26 rational approximation (max abs err ~1.5e-7).
    # TODO(synk): lax.erf has no guaranteed Mosaic lowering; this stands in for
    # the exact erf used by ESM's gelu.
    a1, a2, a3, a4, a5 = (0.254829592, -0.284496736, 1.421413741,
                          -1.453152027, 1.061405429)
    p = 0.3275911
    sgn = jnp.where(x < 0.0, -1.0, 1.0)
    ax = jnp.abs(x)
    t = pl.reciprocal(1.0 + p * ax, approx=True)          # EUP
    poly = ((((a5 * t + a4) * t + a3) * t + a2) * t + a1) * t
    return sgn * (1.0 - poly * jnp.exp(-ax * ax))


def _gelu_exact(x):
    # ESM-style exact GELU: x * 0.5 * (1 + erf(x / sqrt(2)))
    return 0.5 * x * (1.0 + _erf_f32(x * (2.0 ** -0.5)))


# --------------------------------- kernel -------------------------------------
def _encoder_block_kernel(
        # inputs
        x_q_ref, x_kv_ref, rope_q_ref, rope_k_ref,
        ln1_g_ref, ln1_b_ref,
        wq_ref, bq_ref, wkv_ref, bkv_ref, wo_ref, bo_ref,
        ln2_g_ref, ln2_b_ref, w1_ref, b1_ref, w2_ref, b2_ref,
        # outputs
        out_ref,
        # scratch
        q_scr, k_cache, v_cache, m_scr, l_scr, acc_scr, o_slab):
    f32 = jnp.float32
    bf16 = jnp.bfloat16

    num_heads, tq, head_dim = q_scr.shape
    tk = x_kv_ref.shape[1]
    d_model = x_q_ref.shape[2]
    half = head_dim // 2
    scale = head_dim ** -0.5

    qi = pl.program_id(1)
    ki = pl.program_id(2)
    nk = pl.num_programs(2)

    def rope(t, cos_f, sin_sf):
        # Non-interleaved rotate-half via XLU roll (positive axis!); the
        # rotate sign is folded into the sin table on the host.
        return t * cos_f + pltpu.roll(t, half, axis=1) * sin_sf

    # ---- first KV step of each query tile: RoPE'd Q + reset flash state -----
    @pl.when(ki == 0)
    def _():
        hq = _layer_norm(x_q_ref[0], ln1_g_ref[...], ln1_b_ref[...]).astype(bf16)
        q_full = jnp.dot(hq, wq_ref[...], preferred_element_type=f32) + bq_ref[...]
        rq = rope_q_ref[...]
        cos_q = rq[:, :head_dim]
        sin_q = rq[:, head_dim:]
        for h in range(num_heads):
            qh = q_full[:, h * head_dim:(h + 1) * head_dim] * scale
            q_scr[h] = rope(qh, cos_q, sin_q).astype(bf16)
        m_scr[...] = jnp.full(m_scr.shape, -jnp.inf, f32)
        l_scr[...] = jnp.zeros(l_scr.shape, f32)
        acc_scr[...] = jnp.zeros(acc_scr.shape, f32)

    # ---- first query tile only: project this KV tile once, cache in VMEM ----
    @pl.when(qi == 0)
    def _():
        hkv = _layer_norm(x_kv_ref[0], ln1_g_ref[...], ln1_b_ref[...]).astype(bf16)
        # Fused K||V projection: one (TK, D) @ (D, 2D) MXU pass.
        kv_full = (jnp.dot(hkv, wkv_ref[...], preferred_element_type=f32)
                   + bkv_ref[...])
        rk = rope_k_ref[...]
        cos_k = rk[:, :head_dim]
        sin_k = rk[:, head_dim:]
        row0 = pl.multiple_of(ki * tk, tk)
        for h in range(num_heads):
            kh = rope(kv_full[:, h * head_dim:(h + 1) * head_dim], cos_k, sin_k)
            vh = kv_full[:, d_model + h * head_dim:d_model + (h + 1) * head_dim]
            k_cache[h, pl.ds(row0, tk), :] = kh.astype(bf16)
            v_cache[h, pl.ds(row0, tk), :] = vh.astype(bf16)

    # ---- every (q, k) step: online-softmax update against cached K/V --------
    row0 = pl.multiple_of(ki * tk, tk)
    # TODO(synk): for num_heads >> 4 switch this static unroll to a rolled
    # lax.fori_loop (or stage s/p through VMEM) to bound the live vreg set.
    for h in range(num_heads):
        kh = k_cache[h, pl.ds(row0, tk), :]                       # (TK, hd) bf16
        vh = v_cache[h, pl.ds(row0, tk), :]                       # (TK, hd) bf16
        qh = q_scr[h]                                             # (TQ, hd) bf16
        s = lax.dot_general(qh, kh, (((1,), (1,)), ((), ())),
                            preferred_element_type=f32)           # (TQ, TK)
        m_prev = m_scr[h]
        m_new = jnp.maximum(m_prev, jnp.max(s, axis=-1, keepdims=True))
        alpha = jnp.exp(m_prev - m_new)
        p = jnp.exp(s - m_new)
        l_scr[h] = alpha * l_scr[h] + jnp.sum(p, axis=-1, keepdims=True)
        acc_scr[h] = alpha * acc_scr[h] + jnp.dot(
            p.astype(bf16), vh, preferred_element_type=f32)
        m_scr[h] = m_new

    # ---- last KV step: out_proj + residual + LN2 + exact-GELU MLP -----------
    @pl.when(ki == nk - 1)
    def _():
        for h in range(num_heads):
            inv_l = pl.reciprocal(l_scr[h], approx=True)          # EUP
            o_slab[:, h * head_dim:(h + 1) * head_dim] = (
                acc_scr[h] * inv_l).astype(bf16)
        # Single full-contraction out-projection against the un-split Wo.
        attn = (jnp.dot(o_slab[...], wo_ref[...], preferred_element_type=f32)
                + bo_ref[...])
        x1 = x_q_ref[0] + attn                                    # residual 1
        h2 = _layer_norm(x1, ln2_g_ref[...], ln2_b_ref[...]).astype(bf16)
        u = jnp.dot(h2, w1_ref[...], preferred_element_type=f32) + b1_ref[...]
        g = _gelu_exact(u).astype(bf16)
        ff = jnp.dot(g, w2_ref[...], preferred_element_type=f32) + b2_ref[...]
        out_ref[0] = x1 + ff                                      # residual 2


# ------------------------------- host wrapper ---------------------------------
def rotary_tables(seqlen, head_dim, base=10000.0):
    # FlashRotaryEmbedding(dim=head_dim, base=1e4, interleaved=False,
    #                      pos_idx_in_fp32=True): tables built in fp32.
    inv_freq = 1.0 / (base ** (jnp.arange(0, head_dim, 2, dtype=jnp.float32)
                               / head_dim))
    t = jnp.arange(seqlen, dtype=jnp.float32)
    freqs = jnp.outer(t, inv_freq)                        # (L, head_dim // 2)
    cos_f = jnp.concatenate([jnp.cos(freqs)] * 2, axis=-1)     # (L, head_dim)
    sin_f = jnp.concatenate([jnp.sin(freqs)] * 2, axis=-1)
    return cos_f, sin_f


def _default_tile():
    # 256x256 MXUs on v6e/v7x want 256-wide attention tiles; <=v5 (128x128
    # MXUs) is already saturated at 128.
    try:
        kind = jax.devices()[0].device_kind.lower()
    except Exception:
        return 128
    if any(v in kind for v in ("v2", "v3", "v4", "v5")):
        return 128
    return 256


def _vmem_budget_bytes():
    cap = None
    try:
        cap = int(getattr(pltpu.get_tpu_info(), "vmem_capacity_bytes", 0)) or None
    except Exception:
        cap = None
    if cap is None:
        try:
            kind = jax.devices()[0].device_kind.lower()
        except Exception:
            kind = ""
        cap = (64 << 20) if "v7" in kind else (128 << 20)
    # Leave ~25% headroom for compiler temporaries / pipeline bookkeeping
    # (v7x: ~48 MiB of 64; v5e/v6e: ~96 MiB of 128).
    return (cap * 3) // 4


def flash_mha_encoder_block(x, params, num_heads, *, tq=None, tk=None):
    B, L, D = x.shape
    assert D % num_heads == 0
    hd = D // num_heads
    assert hd % 2 == 0
    F = params["w1"].shape[1]

    tile = _default_tile()
    tq = min(tq or tile, L)
    tk = min(tk or tile, L)
    assert L % tq == 0 and L % tk == 0, "seq len must be divisible by tiles"
    nq, nk = L // tq, L // tk

    bf16 = jnp.bfloat16

    # RoPE tables; rotate-half sign folded into sin, cos||sin merged into one
    # operand per side (halves the per-step table DMAs).
    cos_f, sin_f = rotary_tables(L, hd)
    sign = jnp.concatenate([-jnp.ones((hd // 2,), jnp.float32),
                            jnp.ones((hd // 2,), jnp.float32)])
    rope_tab = jnp.concatenate([cos_f, sin_f * sign[None, :]], axis=-1)

    wq = params["wq"].astype(bf16)
    wkv = jnp.concatenate([params["wk"], params["wv"]], axis=-1).astype(bf16)
    bkv = jnp.concatenate([params["bk"], params["bv"]], axis=-1)
    wo = params["wo"].astype(bf16)
    w1 = params["w1"].astype(bf16)
    w2 = params["w2"].astype(bf16)

    operands = (
        x, x,                               # query-tile view, kv-tile view
        rope_tab, rope_tab,                 # RoPE tables (q side, kv side)
        params["ln1_g"], params["ln1_b"],
        wq, params["bq"], wkv, bkv, wo, params["bo"],
        params["ln2_g"], params["ln2_b"],
        w1, params["b1"], w2, params["b2"],
    )

    def _kv_block(q, k):
        # For q > 0 K/V come from the in-VMEM cache, so pin the kv-side block
        # index; Pallas elides the DMA while the index is unchanged, cutting
        # x_kv HBM reads from nq*nk blocks to ~nq + nk.
        return jnp.where(q == 0, k, 0)

    def const_spec(a):   # whole (small) array resident; constant index map.
        zeros = (0,) * a.ndim
        return pl.BlockSpec(a.shape, lambda b, q, k, z=zeros: z)
    # TODO(synk): on v7x, mark the constant weight specs with
    # pipeline_mode=pl.Buffered(1) to single-buffer them once confirmed.

    in_specs = [
        pl.BlockSpec((1, tq, D), lambda b, q, k: (b, q, 0)),              # x (q rows)
        pl.BlockSpec((1, tk, D), lambda b, q, k: (b, _kv_block(q, k), 0)),  # x (kv rows)
        pl.BlockSpec((tq, 2 * hd), lambda b, q, k: (q, 0)),               # rope (q)
        pl.BlockSpec((tk, 2 * hd), lambda b, q, k: (_kv_block(q, k), 0)),   # rope (kv)
    ] + [const_spec(a) for a in operands[4:]]

    scratch_shapes = [
        pltpu.VMEM((num_heads, tq, hd), bf16),         # RoPE'd scaled Q (q tile)
        pltpu.VMEM((num_heads, L, hd), bf16),          # K cache, whole sequence
        pltpu.VMEM((num_heads, L, hd), bf16),          # V cache, whole sequence
        pltpu.VMEM((num_heads, tq, 1), jnp.float32),   # running max
        pltpu.VMEM((num_heads, tq, 1), jnp.float32),   # running sum
        pltpu.VMEM((num_heads, tq, hd), jnp.float32),  # running output acc
        pltpu.VMEM((tq, D), bf16),                     # head-concat slab (out_proj)
    ]
    # TODO(synk): the whole-sequence K/V cache costs 4*L*D bytes of VMEM; for
    # very long L on v7x (64 MiB) fall back to re-projecting K/V per q tile.

    def _nbytes(a):
        return int(a.size) * a.dtype.itemsize

    block_bytes = 2 * (tq * D * 4 + tk * D * 4 + tq * 2 * hd * 4
                       + tk * 2 * hd * 4 + tq * D * 4)
    param_bytes = 2 * sum(_nbytes(a) for a in operands[4:])
    scratch_bytes = (num_heads * tq * hd * (2 + 4)
                     + 2 * num_heads * L * hd * 2
                     + 2 * num_heads * tq * 128 * 4
                     + tq * D * 2)
    temp_bytes = 4 * tq * max(tk, F, 2 * D) * 4
    resident = block_bytes + param_bytes + scratch_bytes + temp_bytes
    vmem_limit = int(min(max(2 * resident, 32 << 20), _vmem_budget_bytes()))

    # Advisory cost estimate for XLA's scheduler around this fused call.
    flops = int(B * L * (8 * D * D + 4 * L * D + 4 * D * F))
    transcendentals = int(B * (num_heads * L * L + 2 * L * F))
    bytes_accessed = int(B * L * D * 4                     # x (query stream)
                         + B * (nq + nk) * tk * D * 4      # x (kv stream)
                         + B * L * D * 4                   # output
                         + sum(_nbytes(a) for a in operands[2:]))

    return pl.pallas_call(
        _encoder_block_kernel,
        out_shape=jax.ShapeDtypeStruct((B, L, D), jnp.float32),
        grid_spec=pltpu.PrefetchScalarGridSpec(
            num_scalar_prefetch=0,
            grid=(B, nq, nk),
            in_specs=in_specs,
            out_specs=pl.BlockSpec((1, tq, D), lambda b, q, k: (b, q, 0)),
            scratch_shapes=scratch_shapes,
        ),
        compiler_params=pltpu.CompilerParams(
            # The q axis carries the K/V cache (filled at q==0), so it must be
            # "arbitrary"; only the batch axis is megacore-parallel.
            dimension_semantics=("parallel", "arbitrary", "arbitrary"),
            vmem_limit_bytes=vmem_limit,
        ),
        cost_estimate=pl.CostEstimate(flops=flops,
                                      transcendentals=transcendentals,
                                      bytes_accessed=bytes_accessed),
    )(*operands)


# ------------------------- deterministic parameter init -----------------------
def init_params(key, embed_dim, ffn_dim):
    # Linear weights stored pre-transposed as (in, out) so the kernel computes
    # y = x @ W + b  (== torch's x @ W.T + b for W_torch = W.T).
    ks = jax.random.split(key, 16)
    s = 0.05

    def w(k, shape):
        return s * jax.random.normal(k, shape, jnp.float32)

    return dict(
        ln1_g=1.0 + 0.1 * jax.random.normal(ks[0], (1, embed_dim), jnp.float32),
        ln1_b=0.1 * jax.random.normal(ks[1], (1, embed_dim), jnp.float32),
        wq=w(ks[2], (embed_dim, embed_dim)), bq=w(ks[3], (1, embed_dim)),
        wk=w(ks[4], (embed_dim, embed_dim)), bk=w(ks[5], (1, embed_dim)),
        wv=w(ks[6], (embed_dim, embed_dim)), bv=w(ks[7], (1, embed_dim)),
        wo=w(ks[8], (embed_dim, embed_dim)), bo=w(ks[9], (1, embed_dim)),
        ln2_g=1.0 + 0.1 * jax.random.normal(ks[10], (1, embed_dim), jnp.float32),
        ln2_b=0.1 * jax.random.normal(ks[11], (1, embed_dim), jnp.float32),
        w1=w(ks[12], (embed_dim, ffn_dim)), b1=w(ks[13], (1, ffn_dim)),
        w2=w(ks[14], (ffn_dim, embed_dim)), b2=w(ks[15], (1, embed_dim)),
    )


# ------------------------------ pure-JAX reference ----------------------------
def reference_forward(x, params, num_heads, cos_f, sin_f):
    # Mirrors the kernel's mixed precision: bf16 matmul operands with f32
    # accumulation; LayerNorm / softmax statistics / GELU in f32.
    B, L, D = x.shape
    hd = D // num_heads
    bf16 = jnp.bfloat16
    f32 = jnp.float32

    def bdot(a, bm):
        return jnp.dot(a.astype(bf16), bm.astype(bf16),
                       preferred_element_type=f32)

    h = _layer_norm(x, params["ln1_g"], params["ln1_b"])
    q = bdot(h, params["wq"]) + params["bq"]
    k = bdot(h, params["wk"]) + params["bk"]
    v = bdot(h, params["wv"]) + params["bv"]
    q = q * hd ** (-0.5)
    q = q.reshape(B, L, num_heads, hd)
    k = k.reshape(B, L, num_heads, hd)
    v = v.reshape(B, L, num_heads, hd)
    cf = cos_f[None, :, None, :]
    sf = sin_f[None, :, None, :]

    def rope(t):
        rot = jnp.concatenate([-t[..., hd // 2:], t[..., :hd // 2]], axis=-1)
        return t * cf + rot * sf

    q = rope(q).astype(bf16)
    k = rope(k).astype(bf16)
    s = jnp.einsum("blnh,bmnh->bnlm", q, k, preferred_element_type=f32)
    p = jax.nn.softmax(s, axis=-1)
    o = jnp.einsum("bnlm,bmnh->blnh", p.astype(bf16), v.astype(bf16),
                   preferred_element_type=f32).reshape(B, L, D)
    o = bdot(o, params["wo"]) + params["bo"]
    x1 = x + o
    h2 = _layer_norm(x1, params["ln2_g"], params["ln2_b"])
    u = bdot(h2, params["w1"]) + params["b1"]
    g1 = 0.5 * u * (1.0 + _erf_ref(u * (2.0 ** -0.5)))
    ff = bdot(g1, params["w2"]) + params["b2"]
    return x1 + ff


# ----------------------------------- main --------------------------------------
if __name__ == "__main__":
    # Lane/sublane-aligned smoke-test config that exercises the tiled path
    # (2 query tiles x 2 kv tiles: flash recurrence + KV-cache reuse across q).
    B, L, D, H, F = 2, 256, 256, 2, 512
    key = jax.random.PRNGKey(0)
    kx, kp = jax.random.split(key)
    x = jax.random.normal(kx, (B, L, D), jnp.float32)
    params = init_params(kp, D, F)

    out = flash_mha_encoder_block(x, params, H, tq=128, tk=128)
    out = jax.block_until_ready(out)

    cos_f, sin_f = rotary_tables(L, D // H)
    ref = reference_forward(x, params, H, cos_f, sin_f)
    assert out.shape == (B, L, D)
    max_err = float(jnp.max(jnp.abs(out - ref)))
    # Tolerance covers bf16 operand quantization at tile-local softmax scale,
    # approx-reciprocal (EUP) and the A&S erf approximation.
    assert max_err < 2e-2, f"mismatch vs reference: max abs err {max_err}"

    print("KERNEL_OK")
</pallas_src>

<mosaic_0001>
module attributes {stable_mosaic.version = 11 : i64} {
  func.func @_encoder_block_kernel(%arg0: i32, %arg1: i32, %arg2: i32, %arg3: memref<1x128x256xf32, #tpu.memory_space<vmem>>, %arg4: memref<1x128x256xf32, #tpu.memory_space<vmem>>, %arg5: memref<128x256xf32, #tpu.memory_space<vmem>>, %arg6: memref<128x256xf32, #tpu.memory_space<vmem>>, %arg7: memref<1x256xf32, #tpu.memory_space<vmem>>, %arg8: memref<1x256xf32, #tpu.memory_space<vmem>>, %arg9: memref<256x256xbf16, #tpu.memory_space<vmem>>, %arg10: memref<1x256xf32, #tpu.memory_space<vmem>>, %arg11: memref<256x512xbf16, #tpu.memory_space<vmem>>, %arg12: memref<1x512xf32, #tpu.memory_space<vmem>>, %arg13: memref<256x256xbf16, #tpu.memory_space<vmem>>, %arg14: memref<1x256xf32, #tpu.memory_space<vmem>>, %arg15: memref<1x256xf32, #tpu.memory_space<vmem>>, %arg16: memref<1x256xf32, #tpu.memory_space<vmem>>, %arg17: memref<256x512xbf16, #tpu.memory_space<vmem>>, %arg18: memref<1x512xf32, #tpu.memory_space<vmem>>, %arg19: memref<512x256xbf16, #tpu.memory_space<vmem>>, %arg20: memref<1x256xf32, #tpu.memory_space<vmem>>, %arg21: memref<1x128x256xf32, #tpu.memory_space<vmem>>, %arg22: memref<2x128x128xbf16, #tpu.memory_space<vmem>>, %arg23: memref<2x256x128xbf16, #tpu.memory_space<vmem>>, %arg24: memref<2x256x128xbf16, #tpu.memory_space<vmem>>, %arg25: memref<2x128x1xf32, #tpu.memory_space<vmem>>, %arg26: memref<2x128x1xf32, #tpu.memory_space<vmem>>, %arg27: memref<2x128x128xf32, #tpu.memory_space<vmem>>, %arg28: memref<128x256xbf16, #tpu.memory_space<vmem>>) attributes {dimension_semantics = [#tpu.dimension_semantics<parallel>, #tpu.dimension_semantics<arbitrary>, #tpu.dimension_semantics<arbitrary>], iteration_bounds = array<i64: 2, 2, 2>, scalar_prefetch = 0 : i64, scratch_operands = 7 : i64, tpu.core_type = #tpu.core_type<tc>, window_params = [{transform_indices = @transform_0, window_bounds = array<i64: 1, 128, 256>}, {transform_indices = @transform_1, window_bounds = array<i64: 1, 128, 256>}, {transform_indices = @transform_2, window_bounds = array<i64: 128, 256>}, {transform_indices = @transform_3, window_bounds = array<i64: 128, 256>}, {pipeline_mode = #tpu.pipeline_mode<synchronous>, transform_indices = @transform_4, window_bounds = array<i64: 1, 256>}, {pipeline_mode = #tpu.pipeline_mode<synchronous>, transform_indices = @transform_5, window_bounds = array<i64: 1, 256>}, {pipeline_mode = #tpu.pipeline_mode<synchronous>, transform_indices = @transform_6, window_bounds = array<i64: 256, 256>}, {pipeline_mode = #tpu.pipeline_mode<synchronous>, transform_indices = @transform_7, window_bounds = array<i64: 1, 256>}, {pipeline_mode = #tpu.pipeline_mode<synchronous>, transform_indices = @transform_8, window_bounds = array<i64: 256, 512>}, {pipeline_mode = #tpu.pipeline_mode<synchronous>, transform_indices = @transform_9, window_bounds = array<i64: 1, 512>}, {pipeline_mode = #tpu.pipeline_mode<synchronous>, transform_indices = @transform_10, window_bounds = array<i64: 256, 256>}, {pipeline_mode = #tpu.pipeline_mode<synchronous>, transform_indices = @transform_11, window_bounds = array<i64: 1, 256>}, {pipeline_mode = #tpu.pipeline_mode<synchronous>, transform_indices = @transform_12, window_bounds = array<i64: 1, 256>}, {pipeline_mode = #tpu.pipeline_mode<synchronous>, transform_indices = @transform_13, window_bounds = array<i64: 1, 256>}, {pipeline_mode = #tpu.pipeline_mode<synchronous>, transform_indices = @transform_14, window_bounds = array<i64: 256, 512>}, {pipeline_mode = #tpu.pipeline_mode<synchronous>, transform_indices = @transform_15, window_bounds = array<i64: 1, 512>}, {pipeline_mode = #tpu.pipeline_mode<synchronous>, transform_indices = @transform_16, window_bounds = array<i64: 512, 256>}, {pipeline_mode = #tpu.pipeline_mode<synchronous>, transform_indices = @transform_17, window_bounds = array<i64: 1, 256>}, {transform_indices = @transform_18, window_bounds = array<i64: 1, 128, 256>}]} {
    %c0_i32 = arith.constant 0 : i32
    %0 = arith.cmpi eq, %arg2, %c0_i32 : i32
    %1 = arith.extui %0 : i1 to i32
    %c0_i32_0 = arith.constant 0 : i32
    %2 = arith.cmpi ne, %1, %c0_i32_0 : i32
    scf.if %2 {
      %c0_59 = arith.constant 0 : index
      %c0_60 = arith.constant 0 : index
      %c0_61 = arith.constant 0 : index
      %93 = vector.load %arg3[%c0_59, %c0_60, %c0_61] : memref<1x128x256xf32, #tpu.memory_space<vmem>>, vector<1x128x256xf32>
      %94 = vector.shape_cast %93 : vector<1x128x256xf32> to vector<128x256xf32>
      %c0_62 = arith.constant 0 : index
      %c0_63 = arith.constant 0 : index
      %95 = vector.load %arg7[%c0_62, %c0_63] : memref<1x256xf32, #tpu.memory_space<vmem>>, vector<1x256xf32>
      %c0_64 = arith.constant 0 : index
      %c0_65 = arith.constant 0 : index
      %96 = vector.load %arg8[%c0_64, %c0_65] : memref<1x256xf32, #tpu.memory_space<vmem>>, vector<1x256xf32>
      %cst_66 = arith.constant dense<0.000000e+00> : vector<128xf32>
      %97 = vector.multi_reduction <add>, %94, %cst_66 [1] : vector<128x256xf32> to vector<128xf32>
      %98 = vector.shape_cast %97 : vector<128xf32> to vector<128x1xf32>
      %cst_67 = arith.constant 2.560000e+02 : f32
      %99 = vector.broadcast %cst_67 : f32 to vector<128x1xf32>
      %100 = arith.divf %98, %99 : vector<128x1xf32>
      %101 = vector.broadcast %100 : vector<128x1xf32> to vector<128x256xf32>
      %102 = arith.subf %94, %101 : vector<128x256xf32>
      %103 = arith.mulf %102, %102 : vector<128x256xf32>
      %cst_68 = arith.constant dense<0.000000e+00> : vector<128xf32>
      %104 = vector.multi_reduction <add>, %103, %cst_68 [1] : vector<128x256xf32> to vector<128xf32>
      %105 = vector.shape_cast %104 : vector<128xf32> to vector<128x1xf32>
      %cst_69 = arith.constant 2.560000e+02 : f32
      %106 = vector.broadcast %cst_69 : f32 to vector<128x1xf32>
      %107 = arith.divf %105, %106 : vector<128x1xf32>
      %cst_70 = arith.constant 9.99999974E-6 : f32
      %108 = vector.broadcast %cst_70 : f32 to vector<128x1xf32>
      %109 = arith.addf %107, %108 : vector<128x1xf32>
      %110 = math.rsqrt %109 : vector<128x1xf32>
      %111 = vector.broadcast %110 : vector<128x1xf32> to vector<128x256xf32>
      %112 = arith.mulf %102, %111 : vector<128x256xf32>
      %113 = vector.broadcast %95 : vector<1x256xf32> to vector<128x256xf32>
      %114 = arith.mulf %112, %113 : vector<128x256xf32>
      %115 = vector.broadcast %96 : vector<1x256xf32> to vector<128x256xf32>
      %116 = arith.addf %114, %115 : vector<128x256xf32>
      %117 = arith.truncf %116 : vector<128x256xf32> to vector<128x256xbf16>
      %c0_71 = arith.constant 0 : index
      %c0_72 = arith.constant 0 : index
      %118 = vector.load %arg9[%c0_71, %c0_72] : memref<256x256xbf16, #tpu.memory_space<vmem>>, vector<256x256xbf16>
      %cst_73 = arith.constant dense<0.000000e+00> : vector<128x256xf32>
      %119 = tpu.matmul %117, %118, %cst_73 {dimension_numbers = #tpu.dot_dimension_numbers<[1], [0], [0], [1], [0, 0, 1, 1], [], []>} : vector<128x256xbf16>, vector<256x256xbf16>, vector<128x256xf32> -> vector<128x256xf32>
      %c0_74 = arith.constant 0 : index
      %c0_75 = arith.constant 0 : index
      %120 = vector.load %arg10[%c0_74, %c0_75] : memref<1x256xf32, #tpu.memory_space<vmem>>, vector<1x256xf32>
      %121 = vector.broadcast %120 : vector<1x256xf32> to vector<128x256xf32>
      %122 = arith.addf %119, %121 : vector<128x256xf32>
      %c0_76 = arith.constant 0 : index
      %c0_77 = arith.constant 0 : index
      %123 = vector.load %arg5[%c0_76, %c0_77] : memref<128x256xf32, #tpu.memory_space<vmem>>, vector<128x256xf32>
      %124 = vector.extract_strided_slice %123 {offsets = [0, 0], sizes = [128, 128], strides = [1, 1]} : vector<128x256xf32> to vector<128x128xf32>
      %125 = vector.extract_strided_slice %123 {offsets = [0, 128], sizes = [128, 128], strides = [1, 1]} : vector<128x256xf32> to vector<128x128xf32>
      %126 = vector.extract_strided_slice %122 {offsets = [0, 0], sizes = [128, 128], strides = [1, 1]} : vector<128x256xf32> to vector<128x128xf32>
      %cst_78 = arith.constant 0.0883883461 : f32
      %127 = vector.broadcast %cst_78 : f32 to vector<128x128xf32>
      %128 = arith.mulf %126, %127 : vector<128x128xf32>
      %129 = arith.mulf %128, %124 : vector<128x128xf32>
      %c64_i32 = arith.constant 64 : i32
      %130 = tpu.dynamic_rotate %128 by %c64_i32 dim 1 : vector<128x128xf32>, i32 -> vector<128x128xf32>
      %131 = arith.mulf %130, %125 : vector<128x128xf32>
      %132 = arith.addf %129, %131 : vector<128x128xf32>
      %133 = arith.truncf %132 : vector<128x128xf32> to vector<128x128xbf16>
      %c0_79 = arith.constant 0 : index
      %c0_80 = arith.constant 0 : index
      %c0_81 = arith.constant 0 : index
      %134 = vector.load %arg22[%c0_79, %c0_80, %c0_81] : memref<2x128x128xbf16, #tpu.memory_space<vmem>>, vector<1x128x128xbf16>
      %135 = vector.shape_cast %134 : vector<1x128x128xbf16> to vector<128x128xbf16>
      %136 = vector.shape_cast %133 : vector<128x128xbf16> to vector<1x128x128xbf16>
      tpu.vector_store %arg22[%c0_79, %c0_80, %c0_81], %136 {strides = array<i32>} : memref<2x128x128xbf16, #tpu.memory_space<vmem>>, vector<1x128x128xbf16>,
      %137 = vector.extract_strided_slice %122 {offsets = [0, 128], sizes = [128, 128], strides = [1, 1]} : vector<128x256xf32> to vector<128x128xf32>
      %cst_82 = arith.constant 0.0883883461 : f32
      %138 = vector.broadcast %cst_82 : f32 to vector<128x128xf32>
      %139 = arith.mulf %137, %138 : vector<128x128xf32>
      %140 = arith.mulf %139, %124 : vector<128x128xf32>
      %c64_i32_83 = arith.constant 64 : i32
      %141 = tpu.dynamic_rotate %139 by %c64_i32_83 dim 1 : vector<128x128xf32>, i32 -> vector<128x128xf32>
      %142 = arith.mulf %141, %125 : vector<128x128xf32>
      %143 = arith.addf %140, %142 : vector<128x128xf32>
      %144 = arith.truncf %143 : vector<128x128xf32> to vector<128x128xbf16>
      %c1_84 = arith.constant 1 : index
      %c0_85 = arith.constant 0 : index
      %c0_86 = arith.constant 0 : index
      %145 = vector.load %arg22[%c1_84, %c0_85, %c0_86] : memref<2x128x128xbf16, #tpu.memory_space<vmem>>, vector<1x128x128xbf16>
      %146 = vector.shape_cast %145 : vector<1x128x128xbf16> to vector<128x128xbf16>
      %147 = vector.shape_cast %144 : vector<128x128xbf16> to vector<1x128x128xbf16>
      tpu.vector_store %arg22[%c1_84, %c0_85, %c0_86], %147 {strides = array<i32>} : memref<2x128x128xbf16, #tpu.memory_space<vmem>>, vector<1x128x128xbf16>,
      %cst_87 = arith.constant 0xFF800000 : f32
      %148 = vector.broadcast %cst_87 : f32 to vector<2x128x1xf32>
      %c0_88 = arith.constant 0 : index
      %c0_89 = arith.constant 0 : index
      %c0_90 = arith.constant 0 : index
      %149 = vector.load %arg25[%c0_88, %c0_89, %c0_90] : memref<2x128x1xf32, #tpu.memory_space<vmem>>, vector<2x128x1xf32>
      tpu.vector_store %arg25[%c0_88, %c0_89, %c0_90], %148 {strides = array<i32>} : memref<2x128x1xf32, #tpu.memory_space<vmem>>, vector<2x128x1xf32>,
      %cst_91 = arith.constant 0.000000e+00 : f32
      %150 = vector.broadcast %cst_91 : f32 to vector<2x128x1xf32>
      %c0_92 = arith.constant 0 : index
      %c0_93 = arith.constant 0 : index
      %c0_94 = arith.constant 0 : index
      %151 = vector.load %arg26[%c0_92, %c0_93, %c0_94] : memref<2x128x1xf32, #tpu.memory_space<vmem>>, vector<2x128x1xf32>
      tpu.vector_store %arg26[%c0_92, %c0_93, %c0_94], %150 {strides = array<i32>} : memref<2x128x1xf32, #tpu.memory_space<vmem>>, vector<2x128x1xf32>,
      %cst_95 = arith.constant 0.000000e+00 : f32
      %152 = vector.broadcast %cst_95 : f32 to vector<2x128x128xf32>
      %c0_96 = arith.constant 0 : index
      %c0_97 = arith.constant 0 : index
      %c0_98 = arith.constant 0 : index
      %153 = vector.load %arg27[%c0_96, %c0_97, %c0_98] : memref<2x128x128xf32, #tpu.memory_space<vmem>>, vector<2x128x128xf32>
      tpu.vector_store %arg27[%c0_96, %c0_97, %c0_98], %152 {strides = array<i32>} : memref<2x128x128xf32, #tpu.memory_space<vmem>>, vector<2x128x128xf32>,
    } else {
    }
    %c0_i32_1 = arith.constant 0 : i32
    %3 = arith.cmpi eq, %arg1, %c0_i32_1 : i32
    %4 = arith.extui %3 : i1 to i32
    %c0_i32_2 = arith.constant 0 : i32
    %5 = arith.cmpi ne, %4, %c0_i32_2 : i32
    scf.if %5 {
      %c0_59 = arith.constant 0 : index
      %c0_60 = arith.constant 0 : index
      %c0_61 = arith.constant 0 : index
      %93 = vector.load %arg4[%c0_59, %c0_60, %c0_61] : memref<1x128x256xf32, #tpu.memory_space<vmem>>, vector<1x128x256xf32>
      %94 = vector.shape_cast %93 : vector<1x128x256xf32> to vector<128x256xf32>
      %c0_62 = arith.constant 0 : index
      %c0_63 = arith.constant 0 : index
      %95 = vector.load %arg7[%c0_62, %c0_63] : memref<1x256xf32, #tpu.memory_space<vmem>>, vector<1x256xf32>
      %c0_64 = arith.constant 0 : index
      %c0_65 = arith.constant 0 : index
      %96 = vector.load %arg8[%c0_64, %c0_65] : memref<1x256xf32, #tpu.memory_space<vmem>>, vector<1x256xf32>
      %cst_66 = arith.constant dense<0.000000e+00> : vector<128xf32>
      %97 = vector.multi_reduction <add>, %94, %cst_66 [1] : vector<128x256xf32> to vector<128xf32>
      %98 = vector.shape_cast %97 : vector<128xf32> to vector<128x1xf32>
      %cst_67 = arith.constant 2.560000e+02 : f32
      %99 = vector.broadcast %cst_67 : f32 to vector<128x1xf32>
      %100 = arith.divf %98, %99 : vector<128x1xf32>
      %101 = vector.broadcast %100 : vector<128x1xf32> to vector<128x256xf32>
      %102 = arith.subf %94, %101 : vector<128x256xf32>
      %103 = arith.mulf %102, %102 : vector<128x256xf32>
      %cst_68 = arith.constant dense<0.000000e+00> : vector<128xf32>
      %104 = vector.multi_reduction <add>, %103, %cst_68 [1] : vector<128x256xf32> to vector<128xf32>
      %105 = vector.shape_cast %104 : vector<128xf32> to vector<128x1xf32>
      %cst_69 = arith.constant 2.560000e+02 : f32
      %106 = vector.broadcast %cst_69 : f32 to vector<128x1xf32>
      %107 = arith.divf %105, %106 : vector<128x1xf32>
      %cst_70 = arith.constant 9.99999974E-6 : f32
      %108 = vector.broadcast %cst_70 : f32 to vector<128x1xf32>
      %109 = arith.addf %107, %108 : vector<128x1xf32>
      %110 = math.rsqrt %109 : vector<128x1xf32>
      %111 = vector.broadcast %110 : vector<128x1xf32> to vector<128x256xf32>
      %112 = arith.mulf %102, %111 : vector<128x256xf32>
      %113 = vector.broadcast %95 : vector<1x256xf32> to vector<128x256xf32>
      %114 = arith.mulf %112, %113 : vector<128x256xf32>
      %115 = vector.broadcast %96 : vector<1x256xf32> to vector<128x256xf32>
      %116 = arith.addf %114, %115 : vector<128x256xf32>
      %117 = arith.truncf %116 : vector<128x256xf32> to vector<128x256xbf16>
      %c0_71 = arith.constant 0 : index
      %c0_72 = arith.constant 0 : index
      %118 = vector.load %arg11[%c0_71, %c0_72] : memref<256x512xbf16, #tpu.memory_space<vmem>>, vector<256x512xbf16>
      %cst_73 = arith.constant dense<0.000000e+00> : vector<128x512xf32>
      %119 = tpu.matmul %117, %118, %cst_73 {dimension_numbers = #tpu.dot_dimension_numbers<[1], [0], [0], [1], [0, 0, 1, 1], [], []>} : vector<128x256xbf16>, vector<256x512xbf16>, vector<128x512xf32> -> vector<128x512xf32>
      %c0_74 = arith.constant 0 : index
      %c0_75 = arith.constant 0 : index
      %120 = vector.load %arg12[%c0_74, %c0_75] : memref<1x512xf32, #tpu.memory_space<vmem>>, vector<1x512xf32>
      %121 = vector.broadcast %120 : vector<1x512xf32> to vector<128x512xf32>
      %122 = arith.addf %119, %121 : vector<128x512xf32>
      %c0_76 = arith.constant 0 : index
      %c0_77 = arith.constant 0 : index
      %123 = vector.load %arg6[%c0_76, %c0_77] : memref<128x256xf32, #tpu.memory_space<vmem>>, vector<128x256xf32>
      %124 = vector.extract_strided_slice %123 {offsets = [0, 0], sizes = [128, 128], strides = [1, 1]} : vector<128x256xf32> to vector<128x128xf32>
      %125 = vector.extract_strided_slice %123 {offsets = [0, 128], sizes = [128, 128], strides = [1, 1]} : vector<128x256xf32> to vector<128x128xf32>
      %c128_i32_78 = arith.constant 128 : i32
      %126 = arith.muli %arg2, %c128_i32_78 : i32
      %127 = tpu.assume_multiple %126, 128 : i32
      %128 = vector.extract_strided_slice %122 {offsets = [0, 0], sizes = [128, 128], strides = [1, 1]} : vector<128x512xf32> to vector<128x128xf32>
      %129 = arith.mulf %128, %124 : vector<128x128xf32>
      %c64_i32 = arith.constant 64 : i32
      %130 = tpu.dynamic_rotate %128 by %c64_i32 dim 1 : vector<128x128xf32>, i32 -> vector<128x128xf32>
      %131 = arith.mulf %130, %125 : vector<128x128xf32>
      %132 = arith.addf %129, %131 : vector<128x128xf32>
      %133 = vector.extract_strided_slice %122 {offsets = [0, 256], sizes = [128, 128], strides = [1, 1]} : vector<128x512xf32> to vector<128x128xf32>
      %134 = arith.truncf %132 : vector<128x128xf32> to vector<128x128xbf16>
      %c0_79 = arith.constant 0 : index
      %135 = arith.index_cast %127 : i32 to index
      %c0_80 = arith.constant 0 : index
      %136 = vector.load %arg23[%c0_79, %135, %c0_80] : memref<2x256x128xbf16, #tpu.memory_space<vmem>>, vector<1x128x128xbf16>
      %137 = vector.shape_cast %136 : vector<1x128x128xbf16> to vector<128x128xbf16>
      %138 = vector.shape_cast %134 : vector<128x128xbf16> to vector<1x128x128xbf16>
      tpu.vector_store %arg23[%c0_79, %135, %c0_80], %138 {strides = array<i32>} : memref<2x256x128xbf16, #tpu.memory_space<vmem>>, vector<1x128x128xbf16>,
      %139 = arith.truncf %133 : vector<128x128xf32> to vector<128x128xbf16>
      %c0_81 = arith.constant 0 : index
      %140 = arith.index_cast %127 : i32 to index
      %c0_82 = arith.constant 0 : index
      %141 = vector.load %arg24[%c0_81, %140, %c0_82] : memref<2x256x128xbf16, #tpu.memory_space<vmem>>, vector<1x128x128xbf16>
      %142 = vector.shape_cast %141 : vector<1x128x128xbf16> to vector<128x128xbf16>
      %143 = vector.shape_cast %139 : vector<128x128xbf16> to vector<1x128x128xbf16>
      tpu.vector_store %arg24[%c0_81, %140, %c0_82], %143 {strides = array<i32>} : memref<2x256x128xbf16, #tpu.memory_space<vmem>>, vector<1x128x128xbf16>,
      %144 = vector.extract_strided_slice %122 {offsets = [0, 128], sizes = [128, 128], strides = [1, 1]} : vector<128x512xf32> to vector<128x128xf32>
      %145 = arith.mulf %144, %124 : vector<128x128xf32>
      %c64_i32_83 = arith.constant 64 : i32
      %146 = tpu.dynamic_rotate %144 by %c64_i32_83 dim 1 : vector<128x128xf32>, i32 -> vector<128x128xf32>
      %147 = arith.mulf %146, %125 : vector<128x128xf32>
      %148 = arith.addf %145, %147 : vector<128x128xf32>
      %149 = vector.extract_strided_slice %122 {offsets = [0, 384], sizes = [128, 128], strides = [1, 1]} : vector<128x512xf32> to vector<128x128xf32>
      %150 = arith.truncf %148 : vector<128x128xf32> to vector<128x128xbf16>
      %c1_84 = arith.constant 1 : index
      %151 = arith.index_cast %127 : i32 to index
      %c0_85 = arith.constant 0 : index
      %152 = vector.load %arg23[%c1_84, %151, %c0_85] : memref<2x256x128xbf16, #tpu.memory_space<vmem>>, vector<1x128x128xbf16>
      %153 = vector.shape_cast %152 : vector<1x128x128xbf16> to vector<128x128xbf16>
      %154 = vector.shape_cast %150 : vector<128x128xbf16> to vector<1x128x128xbf16>
      tpu.vector_store %arg23[%c1_84, %151, %c0_85], %154 {strides = array<i32>} : memref<2x256x128xbf16, #tpu.memory_space<vmem>>, vector<1x128x128xbf16>,
      %155 = arith.truncf %149 : vector<128x128xf32> to vector<128x128xbf16>
      %c1_86 = arith.constant 1 : index
      %156 = arith.index_cast %127 : i32 to index
      %c0_87 = arith.constant 0 : index
      %157 = vector.load %arg24[%c1_86, %156, %c0_87] : memref<2x256x128xbf16, #tpu.memory_space<vmem>>, vector<1x128x128xbf16>
      %158 = vector.shape_cast %157 : vector<1x128x128xbf16> to vector<128x128xbf16>
      %159 = vector.shape_cast %155 : vector<128x128xbf16> to vector<1x128x128xbf16>
      tpu.vector_store %arg24[%c1_86, %156, %c0_87], %159 {strides = array<i32>} : memref<2x256x128xbf16, #tpu.memory_space<vmem>>, vector<1x128x128xbf16>,
    } else {
    }
    %c128_i32 = arith.constant 128 : i32
    %6 = arith.muli %arg2, %c128_i32 : i32
    %7 = tpu.assume_multiple %6, 128 : i32
    %c0 = arith.constant 0 : index
    %8 = arith.index_cast %7 : i32 to index
    %c0_3 = arith.constant 0 : index
    %9 = vector.load %arg23[%c0, %8, %c0_3] : memref<2x256x128xbf16, #tpu.memory_space<vmem>>, vector<1x128x128xbf16>
    %10 = vector.shape_cast %9 : vector<1x128x128xbf16> to vector<128x128xbf16>
    %c0_4 = arith.constant 0 : index
    %11 = arith.index_cast %7 : i32 to index
    %c0_5 = arith.constant 0 : index
    %12 = vector.load %arg24[%c0_4, %11, %c0_5] : memref<2x256x128xbf16, #tpu.memory_space<vmem>>, vector<1x128x128xbf16>
    %13 = vector.shape_cast %12 : vector<1x128x128xbf16> to vector<128x128xbf16>
    %c0_6 = arith.constant 0 : index
    %c0_7 = arith.constant 0 : index
    %c0_8 = arith.constant 0 : index
    %14 = vector.load %arg22[%c0_6, %c0_7, %c0_8] : memref<2x128x128xbf16, #tpu.memory_space<vmem>>, vector<1x128x128xbf16>
    %15 = vector.shape_cast %14 : vector<1x128x128xbf16> to vector<128x128xbf16>
    %cst = arith.constant dense<0.000000e+00> : vector<128x128xf32>
    %16 = tpu.matmul %15, %10, %cst {dimension_numbers = #tpu.dot_dimension_numbers<[1], [1], [0], [0], [0, 0, 1, 0], [], []>} : vector<128x128xbf16>, vector<128x128xbf16>, vector<128x128xf32> -> vector<128x128xf32>
    %c0_9 = arith.constant 0 : index
    %c0_10 = arith.constant 0 : index
    %c0_11 = arith.constant 0 : index
    %17 = vector.load %arg25[%c0_9, %c0_10, %c0_11] : memref<2x128x1xf32, #tpu.memory_space<vmem>>, vector<1x128x1xf32>
    %18 = vector.shape_cast %17 : vector<1x128x1xf32> to vector<128x1xf32>
    %cst_12 = arith.constant dense<0xFF800000> : vector<128xf32>
    %19 = vector.multi_reduction <maximumf>, %16, %cst_12 [1] : vector<128x128xf32> to vector<128xf32>
    %20 = vector.shape_cast %19 : vector<128xf32> to vector<128x1xf32>
    %21 = arith.maximumf %18, %20 : vector<128x1xf32>
    %22 = arith.subf %18, %21 : vector<128x1xf32>
    %23 = math.exp %22 : vector<128x1xf32>
    %24 = vector.broadcast %21 : vector<128x1xf32> to vector<128x128xf32>
    %25 = arith.subf %16, %24 : vector<128x128xf32>
    %26 = math.exp %25 : vector<128x128xf32>
    %c0_13 = arith.constant 0 : index
    %c0_14 = arith.constant 0 : index
    %c0_15 = arith.constant 0 : index
    %27 = vector.load %arg26[%c0_13, %c0_14, %c0_15] : memref<2x128x1xf32, #tpu.memory_space<vmem>>, vector<1x128x1xf32>
    %28 = vector.shape_cast %27 : vector<1x128x1xf32> to vector<128x1xf32>
    %29 = arith.mulf %23, %28 : vector<128x1xf32>
    %cst_16 = arith.constant dense<0.000000e+00> : vector<128xf32>
    %30 = vector.multi_reduction <add>, %26, %cst_16 [1] : vector<128x128xf32> to vector<128xf32>
    %31 = vector.shape_cast %30 : vector<128xf32> to vector<128x1xf32>
    %32 = arith.addf %29, %31 : vector<128x1xf32>
    %c0_17 = arith.constant 0 : index
    %c0_18 = arith.constant 0 : index
    %c0_19 = arith.constant 0 : index
    %33 = vector.load %arg26[%c0_17, %c0_18, %c0_19] : memref<2x128x1xf32, #tpu.memory_space<vmem>>, vector<1x128x1xf32>
    %34 = vector.shape_cast %33 : vector<1x128x1xf32> to vector<128x1xf32>
    %35 = vector.shape_cast %32 : vector<128x1xf32> to vector<1x128x1xf32>
    tpu.vector_store %arg26[%c0_17, %c0_18, %c0_19], %35 {strides = array<i32>} : memref<2x128x1xf32, #tpu.memory_space<vmem>>, vector<1x128x1xf32>,
    %c0_20 = arith.constant 0 : index
    %c0_21 = arith.constant 0 : index
    %c0_22 = arith.constant 0 : index
    %36 = vector.load %arg27[%c0_20, %c0_21, %c0_22] : memref<2x128x128xf32, #tpu.memory_space<vmem>>, vector<1x128x128xf32>
    %37 = vector.shape_cast %36 : vector<1x128x128xf32> to vector<128x128xf32>
    %38 = vector.broadcast %23 : vector<128x1xf32> to vector<128x128xf32>
    %39 = arith.mulf %38, %37 : vector<128x128xf32>
    %40 = arith.truncf %26 : vector<128x128xf32> to vector<128x128xbf16>
    %cst_23 = arith.constant dense<0.000000e+00> : vector<128x128xf32>
    %41 = tpu.matmul %40, %13, %cst_23 {dimension_numbers = #tpu.dot_dimension_numbers<[1], [0], [0], [1], [0, 0, 1, 1], [], []>} : vector<128x128xbf16>, vector<128x128xbf16>, vector<128x128xf32> -> vector<128x128xf32>
    %42 = arith.addf %39, %41 : vector<128x128xf32>
    %c0_24 = arith.constant 0 : index
    %c0_25 = arith.constant 0 : index
    %c0_26 = arith.constant 0 : index
    %43 = vector.load %arg27[%c0_24, %c0_25, %c0_26] : memref<2x128x128xf32, #tpu.memory_space<vmem>>, vector<1x128x128xf32>
    %44 = vector.shape_cast %43 : vector<1x128x128xf32> to vector<128x128xf32>
    %45 = vector.shape_cast %42 : vector<128x128xf32> to vector<1x128x128xf32>
    tpu.vector_store %arg27[%c0_24, %c0_25, %c0_26], %45 {strides = array<i32>} : memref<2x128x128xf32, #tpu.memory_space<vmem>>, vector<1x128x128xf32>,
    %c0_27 = arith.constant 0 : index
    %c0_28 = arith.constant 0 : index
    %c0_29 = arith.constant 0 : index
    %46 = vector.load %arg25[%c0_27, %c0_28, %c0_29] : memref<2x128x1xf32, #tpu.memory_space<vmem>>, vector<1x128x1xf32>
    %47 = vector.shape_cast %46 : vector<1x128x1xf32> to vector<128x1xf32>
    %48 = vector.shape_cast %21 : vector<128x1xf32> to vector<1x128x1xf32>
    tpu.vector_store %arg25[%c0_27, %c0_28, %c0_29], %48 {strides = array<i32>} : memref<2x128x1xf32, #tpu.memory_space<vmem>>, vector<1x128x1xf32>,
    %c1 = arith.constant 1 : index
    %49 = arith.index_cast %7 : i32 to index
    %c0_30 = arith.constant 0 : index
    %50 = vector.load %arg23[%c1, %49, %c0_30] : memref<2x256x128xbf16, #tpu.memory_space<vmem>>, vector<1x128x128xbf16>
    %51 = vector.shape_cast %50 : vector<1x128x128xbf16> to vector<128x128xbf16>
    %c1_31 = arith.constant 1 : index
    %52 = arith.index_cast %7 : i32 to index
    %c0_32 = arith.constant 0 : index
    %53 = vector.load %arg24[%c1_31, %52, %c0_32] : memref<2x256x128xbf16, #tpu.memory_space<vmem>>, vector<1x128x128xbf16>
    %54 = vector.shape_cast %53 : vector<1x128x128xbf16> to vector<128x128xbf16>
    %c1_33 = arith.constant 1 : index
    %c0_34 = arith.constant 0 : index
    %c0_35 = arith.constant 0 : index
    %55 = vector.load %arg22[%c1_33, %c0_34, %c0_35] : memref<2x128x128xbf16, #tpu.memory_space<vmem>>, vector<1x128x128xbf16>
    %56 = vector.shape_cast %55 : vector<1x128x128xbf16> to vector<128x128xbf16>
    %cst_36 = arith.constant dense<0.000000e+00> : vector<128x128xf32>
    %57 = tpu.matmul %56, %51, %cst_36 {dimension_numbers = #tpu.dot_dimension_numbers<[1], [1], [0], [0], [0, 0, 1, 0], [], []>} : vector<128x128xbf16>, vector<128x128xbf16>, vector<128x128xf32> -> vector<128x128xf32>
    %c1_37 = arith.constant 1 : index
    %c0_38 = arith.constant 0 : index
    %c0_39 = arith.constant 0 : index
    %58 = vector.load %arg25[%c1_37, %c0_38, %c0_39] : memref<2x128x1xf32, #tpu.memory_space<vmem>>, vector<1x128x1xf32>
    %59 = vector.shape_cast %58 : vector<1x128x1xf32> to vector<128x1xf32>
    %cst_40 = arith.constant dense<0xFF800000> : vector<128xf32>
    %60 = vector.multi_reduction <maximumf>, %57, %cst_40 [1] : vector<128x128xf32> to vector<128xf32>
    %61 = vector.shape_cast %60 : vector<128xf32> to vector<128x1xf32>
    %62 = arith.maximumf %59, %61 : vector<128x1xf32>
    %63 = arith.subf %59, %62 : vector<128x1xf32>
    %64 = math.exp %63 : vector<128x1xf32>
    %65 = vector.broadcast %62 : vector<128x1xf32> to vector<128x128xf32>
    %66 = arith.subf %57, %65 : vector<128x128xf32>
    %67 = math.exp %66 : vector<128x128xf32>
    %c1_41 = arith.constant 1 : index
    %c0_42 = arith.constant 0 : index
    %c0_43 = arith.constant 0 : index
    %68 = vector.load %arg26[%c1_41, %c0_42, %c0_43] : memref<2x128x1xf32, #tpu.memory_space<vmem>>, vector<1x128x1xf32>
    %69 = vector.shape_cast %68 : vector<1x128x1xf32> to vector<128x1xf32>
    %70 = arith.mulf %64, %69 : vector<128x1xf32>
    %cst_44 = arith.constant dense<0.000000e+00> : vector<128xf32>
    %71 = vector.multi_reduction <add>, %67, %cst_44 [1] : vector<128x128xf32> to vector<128xf32>
    %72 = vector.shape_cast %71 : vector<128xf32> to vector<128x1xf32>
    %73 = arith.addf %70, %72 : vector<128x1xf32>
    %c1_45 = arith.constant 1 : index
    %c0_46 = arith.constant 0 : index
    %c0_47 = arith.constant 0 : index
    %74 = vector.load %arg26[%c1_45, %c0_46, %c0_47] : memref<2x128x1xf32, #tpu.memory_space<vmem>>, vector<1x128x1xf32>
    %75 = vector.shape_cast %74 : vector<1x128x1xf32> to vector<128x1xf32>
    %76 = vector.shape_cast %73 : vector<128x1xf32> to vector<1x128x1xf32>
    tpu.vector_store %arg26[%c1_45, %c0_46, %c0_47], %76 {strides = array<i32>} : memref<2x128x1xf32, #tpu.memory_space<vmem>>, vector<1x128x1xf32>,
    %c1_48 = arith.constant 1 : index
    %c0_49 = arith.constant 0 : index
    %c0_50 = arith.constant 0 : index
    %77 = vector.load %arg27[%c1_48, %c0_49, %c0_50] : memref<2x128x128xf32, #tpu.memory_space<vmem>>, vector<1x128x128xf32>
    %78 = vector.shape_cast %77 : vector<1x128x128xf32> to vector<128x128xf32>
    %79 = vector.broadcast %64 : vector<128x1xf32> to vector<128x128xf32>
    %80 = arith.mulf %79, %78 : vector<128x128xf32>
    %81 = arith.truncf %67 : vector<128x128xf32> to vector<128x128xbf16>
    %cst_51 = arith.constant dense<0.000000e+00> : vector<128x128xf32>
    %82 = tpu.matmul %81, %54, %cst_51 {dimension_numbers = #tpu.dot_dimension_numbers<[1], [0], [0], [1], [0, 0, 1, 1], [], []>} : vector<128x128xbf16>, vector<128x128xbf16>, vector<128x128xf32> -> vector<128x128xf32>
    %83 = arith.addf %80, %82 : vector<128x128xf32>
    %c1_52 = arith.constant 1 : index
    %c0_53 = arith.constant 0 : index
    %c0_54 = arith.constant 0 : index
    %84 = vector.load %arg27[%c1_52, %c0_53, %c0_54] : memref<2x128x128xf32, #tpu.memory_space<vmem>>, vector<1x128x128xf32>
    %85 = vector.shape_cast %84 : vector<1x128x128xf32> to vector<128x128xf32>
    %86 = vector.shape_cast %83 : vector<128x128xf32> to vector<1x128x128xf32>
    tpu.vector_store %arg27[%c1_52, %c0_53, %c0_54], %86 {strides = array<i32>} : memref<2x128x128xf32, #tpu.memory_space<vmem>>, vector<1x128x128xf32>,
    %c1_55 = arith.constant 1 : index
    %c0_56 = arith.constant 0 : index
    %c0_57 = arith.constant 0 : index
    %87 = vector.load %arg25[%c1_55, %c0_56, %c0_57] : memref<2x128x1xf32, #tpu.memory_space<vmem>>, vector<1x128x1xf32>
    %88 = vector.shape_cast %87 : vector<1x128x1xf32> to vector<128x1xf32>
    %89 = vector.shape_cast %62 : vector<128x1xf32> to vector<1x128x1xf32>
    tpu.vector_store %arg25[%c1_55, %c0_56, %c0_57], %89 {strides = array<i32>} : memref<2x128x1xf32, #tpu.memory_space<vmem>>, vector<1x128x1xf32>,
    %c1_i32 = arith.constant 1 : i32
    %90 = arith.cmpi eq, %arg2, %c1_i32 : i32
    %91 = arith.extui %90 : i1 to i32
    %c0_i32_58 = arith.constant 0 : i32
    %92 = arith.cmpi ne, %91, %c0_i32_58 : i32
    scf.if %92 {
      %c0_59 = arith.constant 0 : index
      %c0_60 = arith.constant 0 : index
      %c0_61 = arith.constant 0 : index
      %93 = vector.load %arg26[%c0_59, %c0_60, %c0_61] : memref<2x128x1xf32, #tpu.memory_space<vmem>>, vector<1x128x1xf32>
      %94 = vector.shape_cast %93 : vector<1x128x1xf32> to vector<128x1xf32>
      %95 = tpu.reciprocal %94 {approx = true} : vector<128x1xf32> -> vector<128x1xf32>
      %c0_62 = arith.constant 0 : index
      %c0_63 = arith.constant 0 : index
      %c0_64 = arith.constant 0 : index
      %96 = vector.load %arg27[%c0_62, %c0_63, %c0_64] : memref<2x128x128xf32, #tpu.memory_space<vmem>>, vector<1x128x128xf32>
      %97 = vector.shape_cast %96 : vector<1x128x128xf32> to vector<128x128xf32>
      %98 = vector.broadcast %95 : vector<128x1xf32> to vector<128x128xf32>
      %99 = arith.mulf %97, %98 : vector<128x128xf32>
      %100 = arith.truncf %99 : vector<128x128xf32> to vector<128x128xbf16>
      %c0_65 = arith.constant 0 : index
      %c0_66 = arith.constant 0 : index
      %101 = vector.load %arg28[%c0_65, %c0_66] : memref<128x256xbf16, #tpu.memory_space<vmem>>, vector<128x128xbf16>
      tpu.vector_store %arg28[%c0_65, %c0_66], %100 {strides = array<i32>} : memref<128x256xbf16, #tpu.memory_space<vmem>>, vector<128x128xbf16>,
      %c1_67 = arith.constant 1 : index
      %c0_68 = arith.constant 0 : index
      %c0_69 = arith.constant 0 : index
      %102 = vector.load %arg26[%c1_67, %c0_68, %c0_69] : memref<2x128x1xf32, #tpu.memory_space<vmem>>, vector<1x128x1xf32>
      %103 = vector.shape_cast %102 : vector<1x128x1xf32> to vector<128x1xf32>
      %104 = tpu.reciprocal %103 {approx = true} : vector<128x1xf32> -> vector<128x1xf32>
      %c1_70 = arith.constant 1 : index
      %c0_71 = arith.constant 0 : index
      %c0_72 = arith.constant 0 : index
      %105 = vector.load %arg27[%c1_70, %c0_71, %c0_72] : memref<2x128x128xf32, #tpu.memory_space<vmem>>, vector<1x128x128xf32>
      %106 = vector.shape_cast %105 : vector<1x128x128xf32> to vector<128x128xf32>
      %107 = vector.broadcast %104 : vector<128x1xf32> to vector<128x128xf32>
      %108 = arith.mulf %106, %107 : vector<128x128xf32>
      %109 = arith.truncf %108 : vector<128x128xf32> to vector<128x128xbf16>
      %c0_73 = arith.constant 0 : index
      %c128 = arith.constant 128 : index
      %110 = vector.load %arg28[%c0_73, %c128] : memref<128x256xbf16, #tpu.memory_space<vmem>>, vector<128x128xbf16>
      tpu.vector_store %arg28[%c0_73, %c128], %109 {strides = array<i32>} : memref<128x256xbf16, #tpu.memory_space<vmem>>, vector<128x128xbf16>,
      %c0_74 = arith.constant 0 : index
      %c0_75 = arith.constant 0 : index
      %111 = vector.load %arg28[%c0_74, %c0_75] : memref<128x256xbf16, #tpu.memory_space<vmem>>, vector<128x256xbf16>
      %c0_76 = arith.constant 0 : index
      %c0_77 = arith.constant 0 : index
      %112 = vector.load %arg13[%c0_76, %c0_77] : memref<256x256xbf16, #tpu.memory_space<vmem>>, vector<256x256xbf16>
      %cst_78 = arith.constant dense<0.000000e+00> : vector<128x256xf32>
      %113 = tpu.matmul %111, %112, %cst_78 {dimension_numbers = #tpu.dot_dimension_numbers<[1], [0], [0], [1], [0, 0, 1, 1], [], []>} : vector<128x256xbf16>, vector<256x256xbf16>, vector<128x256xf32> -> vector<128x256xf32>
      %c0_79 = arith.constant 0 : index
      %c0_80 = arith.constant 0 : index
      %114 = vector.load %arg14[%c0_79, %c0_80] : memref<1x256xf32, #tpu.memory_space<vmem>>, vector<1x256xf32>
      %115 = vector.broadcast %114 : vector<1x256xf32> to vector<128x256xf32>
      %116 = arith.addf %113, %115 : vector<128x256xf32>
      %c0_81 = arith.constant 0 : index
      %c0_82 = arith.constant 0 : index
      %c0_83 = arith.constant 0 : index
      %117 = vector.load %arg3[%c0_81, %c0_82, %c0_83] : memref<1x128x256xf32, #tpu.memory_space<vmem>>, vector<1x128x256xf32>
      %118 = vector.shape_cast %117 : vector<1x128x256xf32> to vector<128x256xf32>
      %119 = arith.addf %118, %116 : vector<128x256xf32>
      %c0_84 = arith.constant 0 : index
      %c0_85 = arith.constant 0 : index
      %120 = vector.load %arg15[%c0_84, %c0_85] : memref<1x256xf32, #tpu.memory_space<vmem>>, vector<1x256xf32>
      %c0_86 = arith.constant 0 : index
      %c0_87 = arith.constant 0 : index
      %121 = vector.load %arg16[%c0_86, %c0_87] : memref<1x256xf32, #tpu.memory_space<vmem>>, vector<1x256xf32>
      %cst_88 = arith.constant dense<0.000000e+00> : vector<128xf32>
      %122 = vector.multi_reduction <add>, %119, %cst_88 [1] : vector<128x256xf32> to vector<128xf32>
      %123 = vector.shape_cast %122 : vector<128xf32> to vector<128x1xf32>
      %cst_89 = arith.constant 2.560000e+02 : f32
      %124 = vector.broadcast %cst_89 : f32 to vector<128x1xf32>
      %125 = arith.divf %123, %124 : vector<128x1xf32>
      %126 = vector.broadcast %125 : vector<128x1xf32> to vector<128x256xf32>
      %127 = arith.subf %119, %126 : vector<128x256xf32>
      %128 = arith.mulf %127, %127 : vector<128x256xf32>
      %cst_90 = arith.constant dense<0.000000e+00> : vector<128xf32>
      %129 = vector.multi_reduction <add>, %128, %cst_90 [1] : vector<128x256xf32> to vector<128xf32>
      %130 = vector.shape_cast %129 : vector<128xf32> to vector<128x1xf32>
      %cst_91 = arith.constant 2.560000e+02 : f32
      %131 = vector.broadcast %cst_91 : f32 to vector<128x1xf32>
      %132 = arith.divf %130, %131 : vector<128x1xf32>
      %cst_92 = arith.constant 9.99999974E-6 : f32
      %133 = vector.broadcast %cst_92 : f32 to vector<128x1xf32>
      %134 = arith.addf %132, %133 : vector<128x1xf32>
      %135 = math.rsqrt %134 : vector<128x1xf32>
      %136 = vector.broadcast %135 : vector<128x1xf32> to vector<128x256xf32>
      %137 = arith.mulf %127, %136 : vector<128x256xf32>
      %138 = vector.broadcast %120 : vector<1x256xf32> to vector<128x256xf32>
      %139 = arith.mulf %137, %138 : vector<128x256xf32>
      %140 = vector.broadcast %121 : vector<1x256xf32> to vector<128x256xf32>
      %141 = arith.addf %139, %140 : vector<128x256xf32>
      %142 = arith.truncf %141 : vector<128x256xf32> to vector<128x256xbf16>
      %c0_93 = arith.constant 0 : index
      %c0_94 = arith.constant 0 : index
      %143 = vector.load %arg17[%c0_93, %c0_94] : memref<256x512xbf16, #tpu.memory_space<vmem>>, vector<256x512xbf16>
      %cst_95 = arith.constant dense<0.000000e+00> : vector<128x512xf32>
      %144 = tpu.matmul %142, %143, %cst_95 {dimension_numbers = #tpu.dot_dimension_numbers<[1], [0], [0], [1], [0, 0, 1, 1], [], []>} : vector<128x256xbf16>, vector<256x512xbf16>, vector<128x512xf32> -> vector<128x512xf32>
      %c0_96 = arith.constant 0 : index
      %c0_97 = arith.constant 0 : index
      %145 = vector.load %arg18[%c0_96, %c0_97] : memref<1x512xf32, #tpu.memory_space<vmem>>, vector<1x512xf32>
      %146 = vector.broadcast %145 : vector<1x512xf32> to vector<128x512xf32>
      %147 = arith.addf %144, %146 : vector<128x512xf32>
      %cst_98 = arith.constant 5.000000e-01 : f32
      %148 = vector.broadcast %cst_98 : f32 to vector<128x512xf32>
      %149 = arith.mulf %148, %147 : vector<128x512xf32>
      %cst_99 = arith.constant 0.707106769 : f32
      %150 = vector.broadcast %cst_99 : f32 to vector<128x512xf32>
      %151 = arith.mulf %147, %150 : vector<128x512xf32>
      %cst_100 = arith.constant 0.000000e+00 : f32
      %152 = vector.broadcast %cst_100 : f32 to vector<128x512xf32>
      %153 = arith.cmpf olt, %151, %152 : vector<128x512xf32>
      %cst_101 = arith.constant -1.000000e+00 : f32
      %cst_102 = arith.constant 1.000000e+00 : f32
      %154 = vector.broadcast %cst_101 : f32 to vector<128x512xf32>
      %155 = vector.broadcast %cst_102 : f32 to vector<128x512xf32>
      %156 = arith.select %153, %154, %155 : vector<128x512xi1>, vector<128x512xf32>
      %157 = math.absf %151 : vector<128x512xf32>
      %cst_103 = arith.constant 0.327591091 : f32
      %158 = vector.broadcast %cst_103 : f32 to vector<128x512xf32>
      %159 = arith.mulf %158, %157 : vector<128x512xf32>
      %cst_104 = arith.constant 1.000000e+00 : f32
      %160 = vector.broadcast %cst_104 : f32 to vector<128x512xf32>
      %161 = arith.addf %160, %159 : vector<128x512xf32>
      %162 = tpu.reciprocal %161 {approx = true} : vector<128x512xf32> -> vector<128x512xf32>
      %cst_105 = arith.constant 1.06140542 : f32
      %163 = vector.broadcast %cst_105 : f32 to vector<128x512xf32>
      %164 = arith.mulf %163, %162 : vector<128x512xf32>
      %cst_106 = arith.constant -1.45315206 : f32
      %165 = vector.broadcast %cst_106 : f32 to vector<128x512xf32>
      %166 = arith.addf %164, %165 : vector<128x512xf32>
      %167 = arith.mulf %166, %162 : vector<128x512xf32>
      %cst_107 = arith.constant 1.42141378 : f32
      %168 = vector.broadcast %cst_107 : f32 to vector<128x512xf32>
      %169 = arith.addf %167, %168 : vector<128x512xf32>
      %170 = arith.mulf %169, %162 : vector<128x512xf32>
      %cst_108 = arith.constant -0.284496725 : f32
      %171 = vector.broadcast %cst_108 : f32 to vector<128x512xf32>
      %172 = arith.addf %170, %171 : vector<128x512xf32>
      %173 = arith.mulf %172, %162 : vector<128x512xf32>
      %cst_109 = arith.constant 0.254829586 : f32
      %174 = vector.broadcast %cst_109 : f32 to vector<128x512xf32>
      %175 = arith.addf %173, %174 : vector<128x512xf32>
      %176 = arith.mulf %175, %162 : vector<128x512xf32>
      %cst_110 = arith.constant 0.000000e+00 : f32
      %177 = vector.broadcast %cst_110 : f32 to vector<128x512xf32>
      %178 = arith.subf %177, %157 : vector<128x512xf32>
      %179 = arith.mulf %178, %157 : vector<128x512xf32>
      %180 = math.exp %179 : vector<128x512xf32>
      %181 = arith.mulf %176, %180 : vector<128x512xf32>
      %cst_111 = arith.constant 1.000000e+00 : f32
      %182 = vector.broadcast %cst_111 : f32 to vector<128x512xf32>
      %183 = arith.subf %182, %181 : vector<128x512xf32>
      %184 = arith.mulf %156, %183 : vector<128x512xf32>
      %cst_112 = arith.constant 1.000000e+00 : f32
      %185 = vector.broadcast %cst_112 : f32 to vector<128x512xf32>
      %186 = arith.addf %185, %184 : vector<128x512xf32>
      %187 = arith.mulf %149, %186 : vector<128x512xf32>
      %188 = arith.truncf %187 : vector<128x512xf32> to vector<128x512xbf16>
      %c0_113 = arith.constant 0 : index
      %c0_114 = arith.constant 0 : index
      %189 = vector.load %arg19[%c0_113, %c0_114] : memref<512x256xbf16, #tpu.memory_space<vmem>>, vector<512x256xbf16>
      %cst_115 = arith.constant dense<0.000000e+00> : vector<128x256xf32>
      %190 = tpu.matmul %188, %189, %cst_115 {dimension_numbers = #tpu.dot_dimension_numbers<[1], [0], [0], [1], [0, 0, 1, 1], [], []>} : vector<128x512xbf16>, vector<512x256xbf16>, vector<128x256xf32> -> vector<128x256xf32>
      %c0_116 = arith.constant 0 : index
      %c0_117 = arith.constant 0 : index
      %191 = vector.load %arg20[%c0_116, %c0_117] : memref<1x256xf32, #tpu.memory_space<vmem>>, vector<1x256xf32>
      %192 = vector.broadcast %191 : vector<1x256xf32> to vector<128x256xf32>
      %193 = arith.addf %190, %192 : vector<128x256xf32>
      %194 = arith.addf %119, %193 : vector<128x256xf32>
      %c0_118 = arith.constant 0 : index
      %c0_119 = arith.constant 0 : index
      %c0_120 = arith.constant 0 : index
      %195 = vector.load %arg21[%c0_118, %c0_119, %c0_120] : memref<1x128x256xf32, #tpu.memory_space<vmem>>, vector<1x128x256xf32>
      %196 = vector.shape_cast %195 : vector<1x128x256xf32> to vector<128x256xf32>
      %197 = vector.shape_cast %194 : vector<128x256xf32> to vector<1x128x256xf32>
      tpu.vector_store %arg21[%c0_118, %c0_119, %c0_120], %197 {strides = array<i32>} : memref<1x128x256xf32, #tpu.memory_space<vmem>>, vector<1x128x256xf32>,
    } else {
    }
    return
  }
  func.func @transform_0(%arg0: i32, %arg1: i32, %arg2: i32) -> (i32, i32, i32) {
    %c0_i32 = arith.constant 0 : i32
    %c0_i32_0 = arith.constant 0 : i32
    return %arg0, %arg1, %c0_i32 : i32, i32, i32
  }
  func.func @transform_1(%arg0: i32, %arg1: i32, %arg2: i32) -> (i32, i32, i32) {
    %c0_i32 = arith.constant 0 : i32
    %0 = arith.cmpi eq, %arg1, %c0_i32 : i32
    %c0_i32_0 = arith.constant 0 : i32
    %1 = arith.select %0, %arg2, %c0_i32_0 : i32
    %c0_i32_1 = arith.constant 0 : i32
    %c0_i32_2 = arith.constant 0 : i32
    return %arg0, %1, %c0_i32_1 : i32, i32, i32
  }
  func.func @transform_2(%arg0: i32, %arg1: i32, %arg2: i32) -> (i32, i32) {
    %c0_i32 = arith.constant 0 : i32
    %c0_i32_0 = arith.constant 0 : i32
    return %arg1, %c0_i32 : i32, i32
  }
  func.func @transform_3(%arg0: i32, %arg1: i32, %arg2: i32) -> (i32, i32) {
    %c0_i32 = arith.constant 0 : i32
    %0 = arith.cmpi eq, %arg1, %c0_i32 : i32
    %c0_i32_0 = arith.constant 0 : i32
    %1 = arith.select %0, %arg2, %c0_i32_0 : i32
    %c0_i32_1 = arith.constant 0 : i32
    %c0_i32_2 = arith.constant 0 : i32
    return %1, %c0_i32_1 : i32, i32
  }
  func.func @transform_4(%arg0: i32, %arg1: i32, %arg2: i32) -> (i32, i32) {
    %c0_i32 = arith.constant 0 : i32
    %c0_i32_0 = arith.constant 0 : i32
    %c0_i32_1 = arith.constant 0 : i32
    return %c0_i32, %c0_i32_0 : i32, i32
  }
  func.func @transform_5(%arg0: i32, %arg1: i32, %arg2: i32) -> (i32, i32) {
    %c0_i32 = arith.constant 0 : i32
    %c0_i32_0 = arith.constant 0 : i32
    %c0_i32_1 = arith.constant 0 : i32
    return %c0_i32, %c0_i32_0 : i32, i32
  }
  func.func @transform_6(%arg0: i32, %arg1: i32, %arg2: i32) -> (i32, i32) {
    %c0_i32 = arith.constant 0 : i32
    %c0_i32_0 = arith.constant 0 : i32
    %c0_i32_1 = arith.constant 0 : i32
    return %c0_i32, %c0_i32_0 : i32, i32
  }
  func.func @transform_7(%arg0: i32, %arg1: i32, %arg2: i32) -> (i32, i32) {
    %c0_i32 = arith.constant 0 : i32
    %c0_i32_0 = arith.constant 0 : i32
    %c0_i32_1 = arith.constant 0 : i32
    return %c0_i32, %c0_i32_0 : i32, i32
  }
  func.func @transform_8(%arg0: i32, %arg1: i32, %arg2: i32) -> (i32, i32) {
    %c0_i32 = arith.constant 0 : i32
    %c0_i32_0 = arith.constant 0 : i32
    %c0_i32_1 = arith.constant 0 : i32
    return %c0_i32, %c0_i32_0 : i32, i32
  }
  func.func @transform_9(%arg0: i32, %arg1: i32, %arg2: i32) -> (i32, i32) {
    %c0_i32 = arith.constant 0 : i32
    %c0_i32_0 = arith.constant 0 : i32
    %c0_i32_1 = arith.constant 0 : i32
    return %c0_i32, %c0_i32_0 : i32, i32
  }
  func.func @transform_10(%arg0: i32, %arg1: i32, %arg2: i32) -> (i32, i32) {
    %c0_i32 = arith.constant 0 : i32
    %c0_i32_0 = arith.constant 0 : i32
    %c0_i32_1 = arith.constant 0 : i32
    return %c0_i32, %c0_i32_0 : i32, i32
  }
  func.func @transform_11(%arg0: i32, %arg1: i32, %arg2: i32) -> (i32, i32) {
    %c0_i32 = arith.constant 0 : i32
    %c0_i32_0 = arith.constant 0 : i32
    %c0_i32_1 = arith.constant 0 : i32
    return %c0_i32, %c0_i32_0 : i32, i32
  }
  func.func @transform_12(%arg0: i32, %arg1: i32, %arg2: i32) -> (i32, i32) {
    %c0_i32 = arith.constant 0 : i32
    %c0_i32_0 = arith.constant 0 : i32
    %c0_i32_1 = arith.constant 0 : i32
    return %c0_i32, %c0_i32_0 : i32, i32
  }
  func.func @transform_13(%arg0: i32, %arg1: i32, %arg2: i32) -> (i32, i32) {
    %c0_i32 = arith.constant 0 : i32
    %c0_i32_0 = arith.constant 0 : i32
    %c0_i32_1 = arith.constant 0 : i32
    return %c0_i32, %c0_i32_0 : i32, i32
  }
  func.func @transform_14(%arg0: i32, %arg1: i32, %arg2: i32) -> (i32, i32) {
    %c0_i32 = arith.constant 0 : i32
    %c0_i32_0 = arith.constant 0 : i32
    %c0_i32_1 = arith.constant 0 : i32
    return %c0_i32, %c0_i32_0 : i32, i32
  }
  func.func @transform_15(%arg0: i32, %arg1: i32, %arg2: i32) -> (i32, i32) {
    %c0_i32 = arith.constant 0 : i32
    %c0_i32_0 = arith.constant 0 : i32
    %c0_i32_1 = arith.constant 0 : i32
    return %c0_i32, %c0_i32_0 : i32, i32
  }
  func.func @transform_16(%arg0: i32, %arg1: i32, %arg2: i32) -> (i32, i32) {
    %c0_i32 = arith.constant 0 : i32
    %c0_i32_0 = arith.constant 0 : i32
    %c0_i32_1 = arith.constant 0 : i32
    return %c0_i32, %c0_i32_0 : i32, i32
  }
  func.func @transform_17(%arg0: i32, %arg1: i32, %arg2: i32) -> (i32, i32) {
    %c0_i32 = arith.constant 0 : i32
    %c0_i32_0 = arith.constant 0 : i32
    %c0_i32_1 = arith.constant 0 : i32
    return %c0_i32, %c0_i32_0 : i32, i32
  }
  func.func @transform_18(%arg0: i32, %arg1: i32, %arg2: i32) -> (i32, i32, i32) {
    %c0_i32 = arith.constant 0 : i32
    %c0_i32_0 = arith.constant 0 : i32
    return %arg0, %arg1, %c0_i32 : i32, i32, i32
  }
}

</mosaic_0001>

<llo_original>
// kernel: tpu_custom_call.1
$region0: #{tpu_custom_call.1}
  #allocation0 [shape = 'u32[]', space=smem, size = 0x4, offset = 0x4, fixed_abs, tag = 'smem constant byte address 0x4 - core index']
  #allocation1 [shape = 'u32[72,128]{1,0:T(1,128)}', space=vmem, size = 0x9000, scoped, tag = 'internal scratch']
  #allocation2 [shape = 'bf16[2,128,128]{2,1,0:T(8,128)(2,1)}', space=vmem, size = 0x10000, scoped, tag = 'scratch operand']
  #allocation3 [shape = 'bf16[2,256,128]{2,1,0:T(8,128)(2,1)}', space=vmem, size = 0x20000, scoped, tag = 'scratch operand']
  #allocation4 [shape = 'bf16[2,256,128]{2,1,0:T(8,128)(2,1)}', space=vmem, size = 0x20000, scoped, tag = 'scratch operand']
  #allocation5 [shape = 'f32[2,128,1]{2,1,0:T(8,128)}', space=vmem, size = 0x20000, scoped, tag = 'scratch operand']
  #allocation6 [shape = 'f32[2,128,1]{2,1,0:T(8,128)}', space=vmem, size = 0x20000, scoped, tag = 'scratch operand']
  #allocation7 [shape = 'f32[2,128,128]{2,1,0:T(8,128)}', space=vmem, size = 0x20000, scoped, tag = 'scratch operand']
  #allocation8 [shape = 'bf16[128,256]{1,0:T(8,128)(2,1)}', space=vmem, size = 0x10000, scoped, tag = 'scratch operand']
  %s0 = inlined_call_operand.hbm [shape: f32[2,256,256], index: 0, kind: input, shape index: {}]
  %s1 = inlined_call_operand.hbm [shape: f32[2,256,256], index: 1, kind: input, shape index: {}]
  %s2 = inlined_call_operand.hbm [shape: f32[256,256], index: 2, kind: input, shape index: {}]
  %s3 = inlined_call_operand.hbm [shape: f32[256,256], index: 3, kind: input, shape index: {}]
  %s4 = inlined_call_operand.hbm [shape: f32[1,256], index: 4, kind: input, shape index: {}]
  %s5 = inlined_call_operand.hbm [shape: f32[1,256], index: 5, kind: input, shape index: {}]
  %s6 = inlined_call_operand.hbm [shape: bf16[256,256], index: 6, kind: input, shape index: {}]
  %s7 = inlined_call_operand.hbm [shape: f32[1,256], index: 7, kind: input, shape index: {}]
  %s8 = inlined_call_operand.hbm [shape: bf16[256,512], index: 8, kind: input, shape index: {}]
  %s9 = inlined_call_operand.vmem [shape: f32[1,512], index: 9, kind: input, shape index: {}]
  %s10 = inlined_call_operand.hbm [shape: bf16[256,256], index: 10, kind: input, shape index: {}]
  %s11 = inlined_call_operand.vmem [shape: f32[1,256], index: 11, kind: input, shape index: {}]
  %s12 = inlined_call_operand.hbm [shape: f32[1,256], index: 12, kind: input, shape index: {}]
  %s13 = inlined_call_operand.vmem [shape: f32[1,256], index: 13, kind: input, shape index: {}]
  %s14 = inlined_call_operand.hbm [shape: bf16[256,512], index: 14, kind: input, shape index: {}]
  %s15 = inlined_call_operand.vmem [shape: f32[1,512], index: 15, kind: input, shape index: {}]
  %s16 = inlined_call_operand.hbm [shape: bf16[512,256], index: 16, kind: input, shape index: {}]
  %s17 = inlined_call_operand.vmem [shape: f32[1,256], index: 17, kind: input, shape index: {}]
  %s18 = inlined_call_operand.hbm [shape: f32[2,256,256], index: 18, kind: output, shape index: {}]
  %s19 = sld [smem:[#allocation0]]
  $region169: #{tpu_custom_call.1} parent=0
    _
  %s21 = ssub.s32 1, %s19
  %s22 = scalar_select 0, %s21, %s19
  $region1: #{tpu_custom_call.1} parent=0
    #allocation9 [shape = 'u8[262144]{0}', space=vmem, size = 0x40000, scoped, tag = 'input window, operand 0']
    #allocation10 [shape = 's32[2]{0}', space=sflag, size = 0x8, scoped, tag = 'scoped memory for tpu_custom_call.1']
    #allocation11 [shape = 's32[2]{0}', space=sflag, size = 0x8, scoped, tag = 'scoped memory for tpu_custom_call.1']
    #allocation12 [shape = 'u8[262144]{0}', space=vmem, size = 0x40000, scoped, tag = 'input window, operand 1']
    #allocation13 [shape = 's32[2]{0}', space=sflag, size = 0x8, scoped, tag = 'scoped memory for tpu_custom_call.1']
    #allocation14 [shape = 'u8[262144]{0}', space=vmem, size = 0x40000, scoped, tag = 'input window, operand 2']
    #allocation15 [shape = 'u8[262144]{0}', space=vmem, size = 0x40000, scoped, tag = 'input window, operand 3']
    #allocation16 [shape = 's32[2]{0}', space=sflag, size = 0x8, scoped, tag = 'scoped memory for tpu_custom_call.1']
    #allocation17 [shape = 'u8[1024]{0}', space=vmem, size = 0x400, scoped, tag = 'input window, operand 4, single buffered']
    #allocation18 [shape = 'u8[1024]{0}', space=vmem, size = 0x400, scoped, tag = 'input window, operand 5, single buffered']
    #allocation19 [shape = 's32[1]{0}', space=sflag, size = 0x4, scoped, tag = 'scoped memory for tpu_custom_call.1']
    #allocation20 [shape = 'u8[131072]{0}', space=vmem, size = 0x20000, scoped, tag = 'input window, operand 6, single buffered']
    #allocation21 [shape = 'u8[1024]{0}', space=vmem, size = 0x400, scoped, tag = 'input window, operand 7, single buffered']
    #allocation22 [shape = 's32[1]{0}', space=sflag, size = 0x4, scoped, tag = 'scoped memory for tpu_custom_call.1']
    #allocation23 [shape = 'u8[262144]{0}', space=vmem, size = 0x40000, scoped, tag = 'input window, operand 8, single buffered']
    #allocation24 [shape = 'u8[131072]{0}', space=vmem, size = 0x20000, scoped, tag = 'input window, operand 10, single buffered']
    #allocation25 [shape = 's32[1]{0}', space=sflag, size = 0x4, scoped, tag = 'scoped memory for tpu_custom_call.1']
    #allocation26 [shape = 'u8[1024]{0}', space=vmem, size = 0x400, scoped, tag = 'input window, operand 12, single buffered']
    #allocation27 [shape = 'u8[262144]{0}', space=vmem, size = 0x40000, scoped, tag = 'input window, operand 14, single buffered']
    #allocation28 [shape = 's32[1]{0}', space=sflag, size = 0x4, scoped, tag = 'scoped memory for tpu_custom_call.1']
    #allocation29 [shape = 'u8[262144]{0}', space=vmem, size = 0x40000, scoped, tag = 'input window, operand 16, single buffered']
    #allocation30 [shape = 'u8[262144]{0}', space=vmem, size = 0x40000, scoped, tag = 'output window, operand 0']
    %23 = vsyncpa [#allocation10], 0
    %s24 = scalar_lea.sflag [#allocation10], 1
    %25 = vsyncpa %s24, 0
    %26 = vsyncpa [#allocation13], 0
    %s27 = scalar_lea.sflag [#allocation13], 1
    %28 = vsyncpa %s27, 0
    %29 = vsyncpa [#allocation16], 0
    %s30 = scalar_lea.sflag [#allocation16], 1
    %31 = vsyncpa %s30, 0
    %32 = vsyncpa [#allocation19], 0
    %33 = vsyncpa [#allocation22], 0
    %34 = vsyncpa [#allocation25], 0
    %35 = vsyncpa [#allocation28], 0
    %36 = vsyncpa [#allocation11], 0
    %s37 = scalar_lea.sflag [#allocation11], 1
    %38 = vsyncpa %s37, 0
    loop: start=0, step=1, limit=10
    $region2: #{tpu_custom_call.1} parent=1 // loop_pre_header
      _
    $region3: #{tpu_custom_call.1} parent=1 // loop_header
      %s40 = sphi 0, %s44
      %p41 = scmp.ge.s32.totalorder %s40, 10
      %s47 = sphi 0, %s66
      %s48 = sphi 0, %s62
      %s49 = sphi 0, %s58
      %s50 = sphi 0, %s47
      %s51 = sphi 0, %s48
      %s52 = sphi 0, %s49
      %s53 = sphi 0, %s50
      %s54 = sphi 0, %s51
      %s55 = sphi 0, %s52
      %s71 = sphi 0, %s73
      %s74 = sphi 0, %s71
      %s75 = sphi 0, %s74
      %s91 = sphi 0, %s75
      %s103 = sphi 0, %s105
      %s106 = sphi 0, %s103
      %s107 = sphi 0, %s106
      %s123 = sphi 0, %s107
      %s129 = sphi 0, %s131
      %s132 = sphi 0, %s129
      %s133 = sphi 0, %s132
      %s149 = sphi 0, %s133
      %s159 = sphi 0, %s161
      %s162 = sphi 0, %s159
      %s163 = sphi 0, %s162
      %s179 = sphi 0, %s163
      %s183 = sphi 0, %s183
      %s185 = sphi 0, %s183
      %s186 = sphi 0, %s185
      %s200 = sphi 0, %s186
      %s204 = sphi 0, %s204
      %s206 = sphi 0, %s204
      %s207 = sphi 0, %s206
      %s221 = sphi 0, %s207
      %s225 = sphi 0, %s225
      %s227 = sphi 0, %s225
      %s228 = sphi 0, %s227
      %s242 = sphi 0, %s228
      %s246 = sphi 0, %s246
      %s248 = sphi 0, %s246
      %s249 = sphi 0, %s248
      %s263 = sphi 0, %s249
      %s267 = sphi 0, %s267
      %s269 = sphi 0, %s267
      %s270 = sphi 0, %s269
      %s284 = sphi 0, %s270
      %s288 = sphi 0, %s288
      %s290 = sphi 0, %s288
      %s291 = sphi 0, %s290
      %s305 = sphi 0, %s291
      %s309 = sphi 0, %s309
      %s311 = sphi 0, %s309
      %s312 = sphi 0, %s311
      %s326 = sphi 0, %s312
      %s330 = sphi 0, %s330
      %s332 = sphi 0, %s330
      %s333 = sphi 0, %s332
      %s347 = sphi 0, %s333
      %s351 = sphi 0, %s351
      %s353 = sphi 0, %s351
      %s354 = sphi 0, %s353
      %s368 = sphi 0, %s354
      %s372 = sphi 0, %s372
      %s374 = sphi 0, %s372
      %s375 = sphi 0, %s374
      %s389 = sphi 0, %s375
      %s393 = sphi 0, %s393
      %s395 = sphi 0, %s393
      %s396 = sphi 0, %s395
      %s410 = sphi 0, %s396
      %s414 = sphi 0, %s414
      %s416 = sphi 0, %s414
      %s417 = sphi 0, %s416
      %s431 = sphi 0, %s417
      %s435 = sphi 0, %s435
      %s437 = sphi 0, %s435
      %s438 = sphi 0, %s437
      %s452 = sphi 0, %s438
      %s456 = sphi 0, %s456
      %s458 = sphi 0, %s456
      %s459 = sphi 0, %s458
      %s473 = sphi 0, %s459
      %s481 = sphi 0, %s483
      %s484 = sphi 0, %s481
      %s485 = sphi 0, %s484
      %s501 = sphi 0, %s485
    $region4: #{tpu_custom_call.1} parent=1 // loop_header_branch
      %43 = sbr.rel (%p41) target = $region8
    $region5: #{tpu_custom_call.1} parent=1 // loop_body
      %s45 = ssub.s32 %s40, 1
      %s46 = ssub.s32 %s40, 2
      %s56 = sadd.s32 1, %s49
      %p57 = scmp.ge.s32.totalorder %s56, 2
      %s58 = scalar_select %p57, 0, %s56
      %s59 = sadd.s32 1, %s48
      %s60 = scalar_select %p57, %s59, %s48
      %p61 = scmp.ge.s32.totalorder %s60, 2
      %s62 = scalar_select %p61, 0, %s60
      %s63 = sadd.s32 1, %s47
      %s64 = scalar_select %p61, %s63, %s47
      %p65 = scmp.ge.s32.totalorder %s64, 2
      %s66 = scalar_select %p65, 0, %s64
      %s67 = ssub.s32 %s47, %s66
      %s68 = ssub.s32 %s48, %s62
      %s69 = sor.u32 %s67, %s68
      %p70 = scmp.eq.s32.totalorder %s69, 0
      %s72 = sadd.s32 %s71, 1
      %s73 = scalar_select %p70, %s71, %s72
      %p76 = pneg %p70
      %p77 = scmp.eq.s32.totalorder %s40, 7
      %p78 = por %p76, %p77
      %p79 = scmp.ne.s32.totalorder %s71, %s74
      %p80 = scmp.eq.s32.totalorder %s40, 0
      %p81 = por %p79, %p80
      %p82 = scmp.ne.s32.totalorder %s71, %s74
      %p83 = scmp.eq.s32.totalorder %s45, 7
      %p84 = por %p82, %p83
      %p85 = scmp.ne.s32.totalorder %s74, %s75
      %p86 = scmp.eq.s32.totalorder %s45, 0
      %p87 = por %p85, %p86
      %p88 = scmp.ne.s32.totalorder %s74, %s75
      %p89 = scmp.eq.s32.totalorder %s46, 7
      %p90 = por %p88, %p89
      %p92 = scmp.ne.s32.totalorder %s75, %s91
      %p93 = scmp.eq.s32.totalorder %s46, 0
      %p94 = por %p92, %p93
      %p95 = scmp.eq.s32.totalorder %s48, 0
      %s96 = scalar_select %p95, %s49, 0
      %p97 = scmp.eq.s32.totalorder %s62, 0
      %s98 = scalar_select %p97, %s58, 0
      %s99 = ssub.s32 %s47, %s66
      %s100 = ssub.s32 %s96, %s98
      %s101 = sor.u32 %s99, %s100
      %p102 = scmp.eq.s32.totalorder %s101, 0
      %s104 = sadd.s32 %s103, 1
      %s105 = scalar_select %p102, %s103, %s104
      %p108 = pneg %p102
      %p109 = scmp.eq.s32.totalorder %s40, 7
      %p110 = por %p108, %p109
      %p111 = scmp.ne.s32.totalorder %s103, %s106
      %p112 = scmp.eq.s32.totalorder %s40, 0
      %p113 = por %p111, %p112
      %p114 = scmp.ne.s32.totalorder %s103, %s106
      %p115 = scmp.eq.s32.totalorder %s45, 7
      %p116 = por %p114, %p115
      %p117 = scmp.ne.s32.totalorder %s106, %s107
      %p118 = scmp.eq.s32.totalorder %s45, 0
      %p119 = por %p117, %p118
      %p120 = scmp.ne.s32.totalorder %s106, %s107
      %p121 = scmp.eq.s32.totalorder %s46, 7
      %p122 = por %p120, %p121
      %p124 = scmp.ne.s32.totalorder %s107, %s123
      %p125 = scmp.eq.s32.totalorder %s46, 0
      %p126 = por %p124, %p125
      %s127 = ssub.s32 %s48, %s62
      %p128 = scmp.eq.s32.totalorder %s127, 0
      %s130 = sadd.s32 %s129, 1
      %s131 = scalar_select %p128, %s129, %s130
      %p134 = pneg %p128
      %p135 = scmp.eq.s32.totalorder %s40, 7
      %p136 = por %p134, %p135
      %p137 = scmp.ne.s32.totalorder %s129, %s132
      %p138 = scmp.eq.s32.totalorder %s40, 0
      %p139 = por %p137, %p138
      %p140 = scmp.ne.s32.totalorder %s129, %s132
      %p141 = scmp.eq.s32.totalorder %s45, 7
      %p142 = por %p140, %p141
      %p143 = scmp.ne.s32.totalorder %s132, %s133
      %p144 = scmp.eq.s32.totalorder %s45, 0
      %p145 = por %p143, %p144
      %p146 = scmp.ne.s32.totalorder %s132, %s133
      %p147 = scmp.eq.s32.totalorder %s46, 7
      %p148 = por %p146, %p147
      %p150 = scmp.ne.s32.totalorder %s133, %s149
      %p151 = scmp.eq.s32.totalorder %s46, 0
      %p152 = por %p150, %p151
      %p153 = scmp.eq.s32.totalorder %s48, 0
      %s154 = scalar_select %p153, %s49, 0
      %p155 = scmp.eq.s32.totalorder %s62, 0
      %s156 = scalar_select %p155, %s58, 0
      %s157 = ssub.s32 %s154, %s156
      %p158 = scmp.eq.s32.totalorder %s157, 0
      %s160 = sadd.s32 %s159, 1
      %s161 = scalar_select %p158, %s159, %s160
      %p164 = pneg %p158
      %p165 = scmp.eq.s32.totalorder %s40, 7
      %p166 = por %p164, %p165
      %p167 = scmp.ne.s32.totalorder %s159, %s162
      %p168 = scmp.eq.s32.totalorder %s40, 0
      %p169 = por %p167, %p168
      %p170 = scmp.ne.s32.totalorder %s159, %s162
      %p171 = scmp.eq.s32.totalorder %s45, 7
      %p172 = por %p170, %p171
      %p173 = scmp.ne.s32.totalorder %s162, %s163
      %p174 = scmp.eq.s32.totalorder %s45, 0
      %p175 = por %p173, %p174
      %p176 = scmp.ne.s32.totalorder %s162, %s163
      %p177 = scmp.eq.s32.totalorder %s46, 7
      %p178 = por %p176, %p177
      %p180 = scmp.ne.s32.totalorder %s163, %s179
      %p181 = scmp.eq.s32.totalorder %s46, 0
      %p182 = por %p180, %p181
      %s184 = sadd.s32 %s183, 1
      %p187 = scmp.eq.s32.totalorder %s40, 7
      %p188 = scmp.ne.s32.totalorder %s183, %s185
      %p189 = scmp.eq.s32.totalorder %s40, 0
      %p190 = por %p188, %p189
      %p191 = scmp.ne.s32.totalorder %s183, %s185
      %p192 = scmp.eq.s32.totalorder %s45, 7
      %p193 = por %p191, %p192
      %p194 = scmp.ne.s32.totalorder %s185, %s186
      %p195 = scmp.eq.s32.totalorder %s45, 0
      %p196 = por %p194, %p195
      %p197 = scmp.ne.s32.totalorder %s185, %s186
      %p198 = scmp.eq.s32.totalorder %s46, 7
      %p199 = por %p197, %p198
      %p201 = scmp.ne.s32.totalorder %s186, %s200
      %p202 = scmp.eq.s32.totalorder %s46, 0
      %p203 = por %p201, %p202
      %s205 = sadd.s32 %s204, 1
      %p208 = scmp.eq.s32.totalorder %s40, 7
      %p209 = scmp.ne.s32.totalorder %s204, %s206
      %p210 = scmp.eq.s32.totalorder %s40, 0
      %p211 = por %p209, %p210
      %p212 = scmp.ne.s32.totalorder %s204, %s206
      %p213 = scmp.eq.s32.totalorder %s45, 7
      %p214 = por %p212, %p213
      %p215 = scmp.ne.s32.totalorder %s206, %s207
      %p216 = scmp.eq.s32.totalorder %s45, 0
      %p217 = por %p215, %p216
      %p218 = scmp.ne.s32.totalorder %s206, %s207
      %p219 = scmp.eq.s32.totalorder %s46, 7
      %p220 = por %p218, %p219
      %p222 = scmp.ne.s32.totalorder %s207, %s221
      %p223 = scmp.eq.s32.totalorder %s46, 0
      %p224 = por %p222, %p223
      %s226 = sadd.s32 %s225, 1
      %p229 = scmp.eq.s32.totalorder %s40, 7
      %p230 = scmp.ne.s32.totalorder %s225, %s227
      %p231 = scmp.eq.s32.totalorder %s40, 0
      %p232 = por %p230, %p231
      %p233 = scmp.ne.s32.totalorder %s225, %s227
      %p234 = scmp.eq.s32.totalorder %s45, 7
      %p235 = por %p233, %p234
      %p236 = scmp.ne.s32.totalorder %s227, %s228
      %p237 = scmp.eq.s32.totalorder %s45, 0
      %p238 = por %p236, %p237
      %p239 = scmp.ne.s32.totalorder %s227, %s228
      %p240 = scmp.eq.s32.totalorder %s46, 7
      %p241 = por %p239, %p240
      %p243 = scmp.ne.s32.totalorder %s228, %s242
      %p244 = scmp.eq.s32.totalorder %s46, 0
      %p245 = por %p243, %p244
      %s247 = sadd.s32 %s246, 1
      %p250 = scmp.eq.s32.totalorder %s40, 7
      %p251 = scmp.ne.s32.totalorder %s246, %s248
      %p252 = scmp.eq.s32.totalorder %s40, 0
      %p253 = por %p251, %p252
      %p254 = scmp.ne.s32.totalorder %s246, %s248
      %p255 = scmp.eq.s32.totalorder %s45, 7
      %p256 = por %p254, %p255
      %p257 = scmp.ne.s32.totalorder %s248, %s249
      %p258 = scmp.eq.s32.totalorder %s45, 0
      %p259 = por %p257, %p258
      %p260 = scmp.ne.s32.totalorder %s248, %s249
      %p261 = scmp.eq.s32.totalorder %s46, 7
      %p262 = por %p260, %p261
      %p264 = scmp.ne.s32.totalorder %s249, %s263
      %p265 = scmp.eq.s32.totalorder %s46, 0
      %p266 = por %p264, %p265
      %s268 = sadd.s32 %s267, 1
      %p271 = scmp.eq.s32.totalorder %s40, 7
      %p272 = scmp.ne.s32.totalorder %s267, %s269
      %p273 = scmp.eq.s32.totalorder %s40, 0
      %p274 = por %p272, %p273
      %p275 = scmp.ne.s32.totalorder %s267, %s269
      %p276 = scmp.eq.s32.totalorder %s45, 7
      %p277 = por %p275, %p276
      %p278 = scmp.ne.s32.totalorder %s269, %s270
      %p279 = scmp.eq.s32.totalorder %s45, 0
      %p280 = por %p278, %p279
      %p281 = scmp.ne.s32.totalorder %s269, %s270
      %p282 = scmp.eq.s32.totalorder %s46, 7
      %p283 = por %p281, %p282
      %p285 = scmp.ne.s32.totalorder %s270, %s284
      %p286 = scmp.eq.s32.totalorder %s46, 0
      %p287 = por %p285, %p286
      %s289 = sadd.s32 %s288, 1
      %p292 = scmp.eq.s32.totalorder %s40, 7
      %p293 = scmp.ne.s32.totalorder %s288, %s290
      %p294 = scmp.eq.s32.totalorder %s40, 0
      %p295 = por %p293, %p294
      %p296 = scmp.ne.s32.totalorder %s288, %s290
      %p297 = scmp.eq.s32.totalorder %s45, 7
      %p298 = por %p296, %p297
      %p299 = scmp.ne.s32.totalorder %s290, %s291
      %p300 = scmp.eq.s32.totalorder %s45, 0
      %p301 = por %p299, %p300
      %p302 = scmp.ne.s32.totalorder %s290, %s291
      %p303 = scmp.eq.s32.totalorder %s46, 7
      %p304 = por %p302, %p303
      %p306 = scmp.ne.s32.totalorder %s291, %s305
      %p307 = scmp.eq.s32.totalorder %s46, 0
      %p308 = por %p306, %p307
      %s310 = sadd.s32 %s309, 1
      %p313 = scmp.eq.s32.totalorder %s40, 7
      %p314 = scmp.ne.s32.totalorder %s309, %s311
      %p315 = scmp.eq.s32.totalorder %s40, 0
      %p316 = por %p314, %p315
      %p317 = scmp.ne.s32.totalorder %s309, %s311
      %p318 = scmp.eq.s32.totalorder %s45, 7
      %p319 = por %p317, %p318
      %p320 = scmp.ne.s32.totalorder %s311, %s312
      %p321 = scmp.eq.s32.totalorder %s45, 0
      %p322 = por %p320, %p321
      %p323 = scmp.ne.s32.totalorder %s311, %s312
      %p324 = scmp.eq.s32.totalorder %s46, 7
      %p325 = por %p323, %p324
      %p327 = scmp.ne.s32.totalorder %s312, %s326
      %p328 = scmp.eq.s32.totalorder %s46, 0
      %p329 = por %p327, %p328
      %s331 = sadd.s32 %s330, 1
      %p334 = scmp.eq.s32.totalorder %s40, 7
      %p335 = scmp.ne.s32.totalorder %s330, %s332
      %p336 = scmp.eq.s32.totalorder %s40, 0
      %p337 = por %p335, %p336
      %p338 = scmp.ne.s32.totalorder %s330, %s332
      %p339 = scmp.eq.s32.totalorder %s45, 7
      %p340 = por %p338, %p339
      %p341 = scmp.ne.s32.totalorder %s332, %s333
      %p342 = scmp.eq.s32.totalorder %s45, 0
      %p343 = por %p341, %p342
      %p344 = scmp.ne.s32.totalorder %s332, %s333
      %p345 = scmp.eq.s32.totalorder %s46, 7
      %p346 = por %p344, %p345
      %p348 = scmp.ne.s32.totalorder %s333, %s347
      %p349 = scmp.eq.s32.totalorder %s46, 0
      %p350 = por %p348, %p349
      %s352 = sadd.s32 %s351, 1
      %p355 = scmp.eq.s32.totalorder %s40, 7
      %p356 = scmp.ne.s32.totalorder %s351, %s353
      %p357 = scmp.eq.s32.totalorder %s40, 0
      %p358 = por %p356, %p357
      %p359 = scmp.ne.s32.totalorder %s351, %s353
      %p360 = scmp.eq.s32.totalorder %s45, 7
      %p361 = por %p359, %p360
      %p362 = scmp.ne.s32.totalorder %s353, %s354
      %p363 = scmp.eq.s32.totalorder %s45, 0
      %p364 = por %p362, %p363
      %p365 = scmp.ne.s32.totalorder %s353, %s354
      %p366 = scmp.eq.s32.totalorder %s46, 7
      %p367 = por %p365, %p366
      %p369 = scmp.ne.s32.totalorder %s354, %s368
      %p370 = scmp.eq.s32.totalorder %s46, 0
      %p371 = por %p369, %p370
      %s373 = sadd.s32 %s372, 1
      %p376 = scmp.eq.s32.totalorder %s40, 7
      %p377 = scmp.ne.s32.totalorder %s372, %s374
      %p378 = scmp.eq.s32.totalorder %s40, 0
      %p379 = por %p377, %p378
      %p380 = scmp.ne.s32.totalorder %s372, %s374
      %p381 = scmp.eq.s32.totalorder %s45, 7
      %p382 = por %p380, %p381
      %p383 = scmp.ne.s32.totalorder %s374, %s375
      %p384 = scmp.eq.s32.totalorder %s45, 0
      %p385 = por %p383, %p384
      %p386 = scmp.ne.s32.totalorder %s374, %s375
      %p387 = scmp.eq.s32.totalorder %s46, 7
      %p388 = por %p386, %p387
      %p390 = scmp.ne.s32.totalorder %s375, %s389
      %p391 = scmp.eq.s32.totalorder %s46, 0
      %p392 = por %p390, %p391
      %s394 = sadd.s32 %s393, 1
      %p397 = scmp.eq.s32.totalorder %s40, 7
      %p398 = scmp.ne.s32.totalorder %s393, %s395
      %p399 = scmp.eq.s32.totalorder %s40, 0
      %p400 = por %p398, %p399
      %p401 = scmp.ne.s32.totalorder %s393, %s395
      %p402 = scmp.eq.s32.totalorder %s45, 7
      %p403 = por %p401, %p402
      %p404 = scmp.ne.s32.totalorder %s395, %s396
      %p405 = scmp.eq.s32.totalorder %s45, 0
      %p406 = por %p404, %p405
      %p407 = scmp.ne.s32.totalorder %s395, %s396
      %p408 = scmp.eq.s32.totalorder %s46, 7
      %p409 = por %p407, %p408
      %p411 = scmp.ne.s32.totalorder %s396, %s410
      %p412 = scmp.eq.s32.totalorder %s46, 0
      %p413 = por %p411, %p412
      %s415 = sadd.s32 %s414, 1
      %p418 = scmp.eq.s32.totalorder %s40, 7
      %p419 = scmp.ne.s32.totalorder %s414, %s416
      %p420 = scmp.eq.s32.totalorder %s40, 0
      %p421 = por %p419, %p420
      %p422 = scmp.ne.s32.totalorder %s414, %s416
      %p423 = scmp.eq.s32.totalorder %s45, 7
      %p424 = por %p422, %p423
      %p425 = scmp.ne.s32.totalorder %s416, %s417
      %p426 = scmp.eq.s32.totalorder %s45, 0
      %p427 = por %p425, %p426
      %p428 = scmp.ne.s32.totalorder %s416, %s417
      %p429 = scmp.eq.s32.totalorder %s46, 7
      %p430 = por %p428, %p429
      %p432 = scmp.ne.s32.totalorder %s417, %s431
      %p433 = scmp.eq.s32.totalorder %s46, 0
      %p434 = por %p432, %p433
      %s436 = sadd.s32 %s435, 1
      %p439 = scmp.eq.s32.totalorder %s40, 7
      %p440 = scmp.ne.s32.totalorder %s435, %s437
      %p441 = scmp.eq.s32.totalorder %s40, 0
      %p442 = por %p440, %p441
      %p443 = scmp.ne.s32.totalorder %s435, %s437
      %p444 = scmp.eq.s32.totalorder %s45, 7
      %p445 = por %p443, %p444
      %p446 = scmp.ne.s32.totalorder %s437, %s438
      %p447 = scmp.eq.s32.totalorder %s45, 0
      %p448 = por %p446, %p447
      %p449 = scmp.ne.s32.totalorder %s437, %s438
      %p450 = scmp.eq.s32.totalorder %s46, 7
      %p451 = por %p449, %p450
      %p453 = scmp.ne.s32.totalorder %s438, %s452
      %p454 = scmp.eq.s32.totalorder %s46, 0
      %p455 = por %p453, %p454
      %s457 = sadd.s32 %s456, 1
      %p460 = scmp.eq.s32.totalorder %s40, 7
      %p461 = scmp.ne.s32.totalorder %s456, %s458
      %p462 = scmp.eq.s32.totalorder %s40, 0
      %p463 = por %p461, %p462
      %p464 = scmp.ne.s32.totalorder %s456, %s458
      %p465 = scmp.eq.s32.totalorder %s45, 7
      %p466 = por %p464, %p465
      %p467 = scmp.ne.s32.totalorder %s458, %s459
      %p468 = scmp.eq.s32.totalorder %s45, 0
      %p469 = por %p467, %p468
      %p470 = scmp.ne.s32.totalorder %s458, %s459
      %p471 = scmp.eq.s32.totalorder %s46, 7
      %p472 = por %p470, %p471
      %p474 = scmp.ne.s32.totalorder %s459, %s473
      %p475 = scmp.eq.s32.totalorder %s46, 0
      %p476 = por %p474, %p475
      %s477 = ssub.s32 %s47, %s66
      %s478 = ssub.s32 %s48, %s62
      %s479 = sor.u32 %s477, %s478
      %p480 = scmp.eq.s32.totalorder %s479, 0
      %s482 = sadd.s32 %s481, 1
      %s483 = scalar_select %p480, %s481, %s482
      %p486 = pneg %p480
      %p487 = scmp.eq.s32.totalorder %s40, 7
      %p488 = por %p486, %p487
      %p489 = scmp.ne.s32.totalorder %s481, %s484
      %p490 = scmp.eq.s32.totalorder %s40, 0
      %p491 = por %p489, %p490
      %p492 = scmp.ne.s32.totalorder %s481, %s484
      %p493 = scmp.eq.s32.totalorder %s45, 7
      %p494 = por %p492, %p493
      %p495 = scmp.ne.s32.totalorder %s484, %s485
      %p496 = scmp.eq.s32.totalorder %s45, 0
      %p497 = por %p495, %p496
      %p498 = scmp.ne.s32.totalorder %s484, %s485
      %p499 = scmp.eq.s32.totalorder %s46, 7
      %p500 = por %p498, %p499
      %p502 = scmp.ne.s32.totalorder %s485, %s501
      %p503 = scmp.eq.s32.totalorder %s46, 0
      %p504 = por %p502, %p503
      %p505 = scmp.le.s32.totalorder 1, %s40
      %p506 = scmp.lt.s32.totalorder %s40, 9
      %p507 = pnand %p505, %p506
      %p508 = pneg %p507
      // Predicated region
      $region9: #{tpu_custom_call.1} parent=5 // pred_check
        _
      $region10: #{tpu_custom_call.1} parent=5 // pred_check_branch
        %510 = sbr.rel (%p507) target = $region12
      $region11: #{tpu_custom_call.1} parent=5 // pred_region
        %s511 = ssub.s32 %s40, 1
        // Predicated region
        $region13: #{tpu_custom_call.1} parent=11 // pred_check
          %p512 = pneg %p196
        $region14: #{tpu_custom_call.1} parent=11 // pred_check_branch
          %514 = sbr.rel (%p512) target = $region16
        $region15: #{tpu_custom_call.1} parent=11 // pred_region
          %516 = vsyncadd [#allocation16], 0
          %s518 = sshll.u32 %s4, 4
          %s519 = int_to_ptr.hbm [resolvable:$true] %s518
          %s520 = sshll.u32 [#allocation17], 4
          %s521 = int_to_ptr.vmem [resolvable:$true] %s520
          %523 = dma.hbm_to_vmem [thread:$0]  %s519, 32, %s521, [#allocation16]
        $region16: #{tpu_custom_call.1} parent=11 // pred_fallthru
          _
        // Predicated region
        $region17: #{tpu_custom_call.1} parent=11 // pred_check
          %p524 = pneg %p217
        $region18: #{tpu_custom_call.1} parent=11 // pred_check_branch
          %526 = sbr.rel (%p524) target = $region20
        $region19: #{tpu_custom_call.1} parent=11 // pred_region
          %528 = vsyncadd [#allocation19], 0
          %s530 = sshll.u32 %s5, 4
          %s531 = int_to_ptr.hbm [resolvable:$true] %s530
          %s532 = sshll.u32 [#allocation18], 4
          %s533 = int_to_ptr.vmem [resolvable:$true] %s532
          %535 = dma.hbm_to_vmem [thread:$0]  %s531, 32, %s533, [#allocation19]
        $region20: #{tpu_custom_call.1} parent=11 // pred_fallthru
          _
        // Predicated region
        $region21: #{tpu_custom_call.1} parent=11 // pred_check
          %p536 = pneg %p238
        $region22: #{tpu_custom_call.1} parent=11 // pred_check_branch
          %538 = sbr.rel (%p536) target = $region24
        $region23: #{tpu_custom_call.1} parent=11 // pred_region
          %540 = vsyncadd [#allocation19], 0
          %s541 = sshll.u32 %s6, 4
          %s542 = int_to_ptr.hbm [resolvable:$true] %s541
          %s543 = sshll.u32 [#allocation20], 4
          %s544 = int_to_ptr.vmem [resolvable:$true] %s543
          %549 = dma.hbm_to_vmem [thread:$0]  %s542, 4096, %s544, [#allocation19], 128, 128, 8
        $region24: #{tpu_custom_call.1} parent=11 // pred_fallthru
          _
        // Predicated region
        $region25: #{tpu_custom_call.1} parent=11 // pred_check
          %p550 = pneg %p259
        $region26: #{tpu_custom_call.1} parent=11 // pred_check_branch
          %552 = sbr.rel (%p550) target = $region28
        $region27: #{tpu_custom_call.1} parent=11 // pred_region
          %554 = vsyncadd [#allocation22], 0
          %s556 = sshll.u32 %s7, 4
          %s557 = int_to_ptr.hbm [resolvable:$true] %s556
          %s558 = sshll.u32 [#allocation21], 4
          %s559 = int_to_ptr.vmem [resolvable:$true] %s558
          %561 = dma.hbm_to_vmem [thread:$0]  %s557, 32, %s559, [#allocation22]
        $region28: #{tpu_custom_call.1} parent=11 // pred_fallthru
          _
        // Predicated region
        $region29: #{tpu_custom_call.1} parent=11 // pred_check
          %p562 = pneg %p280
        $region30: #{tpu_custom_call.1} parent=11 // pred_check_branch
          %564 = sbr.rel (%p562) target = $region32
        $region31: #{tpu_custom_call.1} parent=11 // pred_region
          %566 = vsyncadd [#allocation22], 0
          %s567 = sshll.u32 %s8, 4
          %s568 = int_to_ptr.hbm [resolvable:$true] %s567
          %s569 = sshll.u32 [#allocation23], 4
          %s570 = int_to_ptr.vmem [resolvable:$true] %s569
          %575 = dma.hbm_to_vmem [thread:$0]  %s568, 8192, %s570, [#allocation22], 256, 256, 16
        $region32: #{tpu_custom_call.1} parent=11 // pred_fallthru
          _
        // Predicated region
        $region33: #{tpu_custom_call.1} parent=11 // pred_check
          %p576 = pneg %p301
        $region34: #{tpu_custom_call.1} parent=11 // pred_check_branch
          %578 = sbr.rel (%p576) target = $region36
        $region35: #{tpu_custom_call.1} parent=11 // pred_region
          _
        $region36: #{tpu_custom_call.1} parent=11 // pred_fallthru
          _
        // Predicated region
        $region37: #{tpu_custom_call.1} parent=11 // pred_check
          %p579 = pneg %p322
        $region38: #{tpu_custom_call.1} parent=11 // pred_check_branch
          %581 = sbr.rel (%p579) target = $region40
        $region39: #{tpu_custom_call.1} parent=11 // pred_region
          %583 = vsyncadd [#allocation25], 0
          %s584 = sshll.u32 %s10, 4
          %s585 = int_to_ptr.hbm [resolvable:$true] %s584
          %s586 = sshll.u32 [#allocation24], 4
          %s587 = int_to_ptr.vmem [resolvable:$true] %s586
          %592 = dma.hbm_to_vmem [thread:$0]  %s585, 4096, %s587, [#allocation25], 128, 128, 8
        $region40: #{tpu_custom_call.1} parent=11 // pred_fallthru
          _
        // Predicated region
        $region41: #{tpu_custom_call.1} parent=11 // pred_check
          %p593 = pneg %p343
        $region42: #{tpu_custom_call.1} parent=11 // pred_check_branch
          %595 = sbr.rel (%p593) target = $region44
        $region43: #{tpu_custom_call.1} parent=11 // pred_region
          _
        $region44: #{tpu_custom_call.1} parent=11 // pred_fallthru
          _
        // Predicated region
        $region45: #{tpu_custom_call.1} parent=11 // pred_check
          %p596 = pneg %p364
        $region46: #{tpu_custom_call.1} parent=11 // pred_check_branch
          %598 = sbr.rel (%p596) target = $region48
        $region47: #{tpu_custom_call.1} parent=11 // pred_region
          %600 = vsyncadd [#allocation25], 0
          %s602 = sshll.u32 %s12, 4
          %s603 = int_to_ptr.hbm [resolvable:$true] %s602
          %s604 = sshll.u32 [#allocation26], 4
          %s605 = int_to_ptr.vmem [resolvable:$true] %s604
          %607 = dma.hbm_to_vmem [thread:$0]  %s603, 32, %s605, [#allocation25]
        $region48: #{tpu_custom_call.1} parent=11 // pred_fallthru
          _
        // Predicated region
        $region49: #{tpu_custom_call.1} parent=11 // pred_check
          %p608 = pneg %p385
        $region50: #{tpu_custom_call.1} parent=11 // pred_check_branch
          %610 = sbr.rel (%p608) target = $region52
        $region51: #{tpu_custom_call.1} parent=11 // pred_region
          _
        $region52: #{tpu_custom_call.1} parent=11 // pred_fallthru
          _
        // Predicated region
        $region53: #{tpu_custom_call.1} parent=11 // pred_check
          %p611 = pneg %p406
        $region54: #{tpu_custom_call.1} parent=11 // pred_check_branch
          %613 = sbr.rel (%p611) target = $region56
        $region55: #{tpu_custom_call.1} parent=11 // pred_region
          %615 = vsyncadd [#allocation28], 0
          %s616 = sshll.u32 %s14, 4
          %s617 = int_to_ptr.hbm [resolvable:$true] %s616
          %s618 = sshll.u32 [#allocation27], 4
          %s619 = int_to_ptr.vmem [resolvable:$true] %s618
          %624 = dma.hbm_to_vmem [thread:$0]  %s617, 8192, %s619, [#allocation28], 256, 256, 16
        $region56: #{tpu_custom_call.1} parent=11 // pred_fallthru
          _
        // Predicated region
        $region57: #{tpu_custom_call.1} parent=11 // pred_check
          %p625 = pneg %p427
        $region58: #{tpu_custom_call.1} parent=11 // pred_check_branch
          %627 = sbr.rel (%p625) target = $region60
        $region59: #{tpu_custom_call.1} parent=11 // pred_region
          _
        $region60: #{tpu_custom_call.1} parent=11 // pred_fallthru
          _
        // Predicated region
        $region61: #{tpu_custom_call.1} parent=11 // pred_check
          %p628 = pneg %p448
        $region62: #{tpu_custom_call.1} parent=11 // pred_check_branch
          %630 = sbr.rel (%p628) target = $region64
        $region63: #{tpu_custom_call.1} parent=11 // pred_region
          %632 = vsyncadd [#allocation28], 0
          %s633 = sshll.u32 %s16, 4
          %s634 = int_to_ptr.hbm [resolvable:$true] %s633
          %s635 = sshll.u32 [#allocation29], 4
          %s636 = int_to_ptr.vmem [resolvable:$true] %s635
          %641 = dma.hbm_to_vmem [thread:$0]  %s634, 8192, %s636, [#allocation28], 128, 128, 8
        $region64: #{tpu_custom_call.1} parent=11 // pred_fallthru
          _
        // Predicated region
        $region65: #{tpu_custom_call.1} parent=11 // pred_check
          %p642 = pneg %p469
        $region66: #{tpu_custom_call.1} parent=11 // pred_check_branch
          %644 = sbr.rel (%p642) target = $region68
        $region67: #{tpu_custom_call.1} parent=11 // pred_region
          _
        $region68: #{tpu_custom_call.1} parent=11 // pred_fallthru
          _
      $region12: #{tpu_custom_call.1} parent=5 // pred_fallthru
        _
      %p645 = scmp.lt.s32.totalorder %s40, 8
      // Predicated region
      $region69: #{tpu_custom_call.1} parent=5 // pred_check
        %p646 = pneg %p645
      $region70: #{tpu_custom_call.1} parent=5 // pred_check_branch
        %648 = sbr.rel (%p646) target = $region72
      $region71: #{tpu_custom_call.1} parent=5 // pred_region
        // Predicated region
        $region73: #{tpu_custom_call.1} parent=71 // pred_check
          %p649 = pneg %p81
        $region74: #{tpu_custom_call.1} parent=71 // pred_check_branch
          %651 = sbr.rel (%p649) target = $region76
        $region75: #{tpu_custom_call.1} parent=71 // pred_region
          %s652 = sand.u32 %s71, 1
          %s653 = scalar_lea.sflag [#allocation10], %s652
          %s654 = sand.u32 %s71, 1
          %s655 = smul.addr %s654, 256
          %s656 = scalar_lea.vmem [#allocation9], %s655
          %s657 = smul.u32 16, %s48
          %659 = vsyncadd %s653, 0
          %s660 = smul.addr %s657, 2
          %s661 = smul.addr %s47, 64
          %s662 = sadd.s32 %s660, %s661
          %s663 = smul.addr %s662, 8
          %s664 = scalar_lea.hbm %s0, %s663
          %s665 = sshll.u32 %s664, 4
          %s666 = int_to_ptr.hbm [resolvable:$true] %s665
          %s667 = sshll.u32 %s656, 4
          %s668 = int_to_ptr.vmem [resolvable:$true] %s667
          %673 = dma.hbm_to_vmem [thread:$0]  %s666, 4096, %s668, %s653, 256, 256, 16
        $region76: #{tpu_custom_call.1} parent=71 // pred_fallthru
          _
        // Predicated region
        $region77: #{tpu_custom_call.1} parent=71 // pred_check
          %p674 = pneg %p113
        $region78: #{tpu_custom_call.1} parent=71 // pred_check_branch
          %676 = sbr.rel (%p674) target = $region80
        $region79: #{tpu_custom_call.1} parent=71 // pred_region
          %s677 = sand.u32 %s40, 1
          %s678 = scalar_lea.sflag [#allocation13], %s677
          %s679 = sand.u32 %s103, 1
          %s680 = smul.addr %s679, 256
          %s681 = scalar_lea.vmem [#allocation12], %s680
          %p682 = scmp.eq.s32.totalorder %s48, 0
          %s683 = scalar_select %p682, %s49, 0
          %s684 = smul.u32 16, %s683
          %686 = vsyncadd %s678, 0
          %s687 = smul.addr %s684, 2
          %s688 = smul.addr %s47, 64
          %s689 = sadd.s32 %s687, %s688
          %s690 = smul.addr %s689, 8
          %s691 = scalar_lea.hbm %s1, %s690
          %s692 = sshll.u32 %s691, 4
          %s693 = int_to_ptr.hbm [resolvable:$true] %s692
          %s694 = sshll.u32 %s681, 4
          %s695 = int_to_ptr.vmem [resolvable:$true] %s694
          %700 = dma.hbm_to_vmem [thread:$0]  %s693, 4096, %s695, %s678, 256, 256, 16
        $region80: #{tpu_custom_call.1} parent=71 // pred_fallthru
          _
        // Predicated region
        $region81: #{tpu_custom_call.1} parent=71 // pred_check
          %p701 = pneg %p139
        $region82: #{tpu_custom_call.1} parent=71 // pred_check_branch
          %703 = sbr.rel (%p701) target = $region84
        $region83: #{tpu_custom_call.1} parent=71 // pred_region
          %s704 = sand.u32 %s40, 1
          %s705 = scalar_lea.sflag [#allocation13], %s704
          %s706 = sand.u32 %s129, 1
          %s707 = smul.addr %s706, 256
          %s708 = scalar_lea.vmem [#allocation14], %s707
          %s709 = smul.u32 16, %s48
          %711 = vsyncadd %s705, 0
          %s712 = smul.addr %s709, 2
          %s713 = smul.addr %s712, 8
          %s714 = scalar_lea.hbm %s2, %s713
          %s715 = sshll.u32 %s714, 4
          %s716 = int_to_ptr.hbm [resolvable:$true] %s715
          %s717 = sshll.u32 %s708, 4
          %s718 = int_to_ptr.vmem [resolvable:$true] %s717
          %723 = dma.hbm_to_vmem [thread:$0]  %s716, 4096, %s718, %s705, 256, 256, 16
        $region84: #{tpu_custom_call.1} parent=71 // pred_fallthru
          _
        // Predicated region
        $region85: #{tpu_custom_call.1} parent=71 // pred_check
          %p724 = pneg %p169
        $region86: #{tpu_custom_call.1} parent=71 // pred_check_branch
          %726 = sbr.rel (%p724) target = $region88
        $region87: #{tpu_custom_call.1} parent=71 // pred_region
          %s727 = sand.u32 %s40, 1
          %s728 = scalar_lea.sflag [#allocation16], %s727
          %s729 = sand.u32 %s159, 1
          %s730 = smul.addr %s729, 256
          %s731 = scalar_lea.vmem [#allocation15], %s730
          %p732 = scmp.eq.s32.totalorder %s48, 0
          %s733 = scalar_select %p732, %s49, 0
          %s734 = smul.u32 16, %s733
          %736 = vsyncadd %s728, 0
          %s737 = smul.addr %s734, 2
          %s738 = smul.addr %s737, 8
          %s739 = scalar_lea.hbm %s3, %s738
          %s740 = sshll.u32 %s739, 4
          %s741 = int_to_ptr.hbm [resolvable:$true] %s740
          %s742 = sshll.u32 %s731, 4
          %s743 = int_to_ptr.vmem [resolvable:$true] %s742
          %748 = dma.hbm_to_vmem [thread:$0]  %s741, 4096, %s743, %s728, 256, 256, 16
        $region88: #{tpu_custom_call.1} parent=71 // pred_fallthru
          _
      $region72: #{tpu_custom_call.1} parent=5 // pred_fallthru
        _
      %p749 = scmp.le.s32.totalorder 1, %s40
      %p750 = scmp.lt.s32.totalorder %s40, 9
      %p751 = pnand %p749, %p750
      %p752 = pneg %p751
      // Predicated region
      $region89: #{tpu_custom_call.1} parent=5 // pred_check
        _
      $region90: #{tpu_custom_call.1} parent=5 // pred_check_branch
        %754 = sbr.rel (%p751) target = $region92
      $region91: #{tpu_custom_call.1} parent=5 // pred_region
        %s755 = ssub.s32 %s40, 1
        %s756 = sand.u32 %s74, 1
        %s757 = scalar_lea.sflag [#allocation10], %s756
        %s758 = sand.u32 %s74, 1
        %s759 = smul.addr %s758, 256
        %s760 = scalar_lea.vmem [#allocation9], %s759
        // Predicated region
        $region93: #{tpu_custom_call.1} parent=91 // pred_check
          %p761 = pneg %p87
        $region94: #{tpu_custom_call.1} parent=91 // pred_check_branch
          %763 = sbr.rel (%p761) target = $region96
        $region95: #{tpu_custom_call.1} parent=91 // pred_region
          %765 = dma.done %s757, 4096
        $region96: #{tpu_custom_call.1} parent=91 // pred_fallthru
          _
        %s766 = sand.u32 %s45, 1
        %s767 = scalar_lea.sflag [#allocation13], %s766
        %s768 = sand.u32 %s106, 1
        %s769 = smul.addr %s768, 256
        %s770 = scalar_lea.vmem [#allocation12], %s769
        // Predicated region
        $region97: #{tpu_custom_call.1} parent=91 // pred_check
          %p771 = pneg %p119
        $region98: #{tpu_custom_call.1} parent=91 // pred_check_branch
          %773 = sbr.rel (%p771) target = $region100
        $region99: #{tpu_custom_call.1} parent=91 // pred_region
          %775 = dma.done %s767, 4096
        $region100: #{tpu_custom_call.1} parent=91 // pred_fallthru
          _
        %s776 = sand.u32 %s45, 1
        %s777 = scalar_lea.sflag [#allocation13], %s776
        %s778 = sand.u32 %s132, 1
        %s779 = smul.addr %s778, 256
        %s780 = scalar_lea.vmem [#allocation14], %s779
        // Predicated region
        $region101: #{tpu_custom_call.1} parent=91 // pred_check
          %p781 = pneg %p145
        $region102: #{tpu_custom_call.1} parent=91 // pred_check_branch
          %783 = sbr.rel (%p781) target = $region104
        $region103: #{tpu_custom_call.1} parent=91 // pred_region
          %785 = dma.done %s777, 4096
        $region104: #{tpu_custom_call.1} parent=91 // pred_fallthru
          _
        %s786 = sand.u32 %s45, 1
        %s787 = scalar_lea.sflag [#allocation16], %s786
        %s788 = sand.u32 %s162, 1
        %s789 = smul.addr %s788, 256
        %s790 = scalar_lea.vmem [#allocation15], %s789
        // Predicated region
        $region105: #{tpu_custom_call.1} parent=91 // pred_check
          %p791 = pneg %p175
        $region106: #{tpu_custom_call.1} parent=91 // pred_check_branch
          %793 = sbr.rel (%p791) target = $region108
        $region107: #{tpu_custom_call.1} parent=91 // pred_region
          %795 = dma.done %s787, 4096
        $region108: #{tpu_custom_call.1} parent=91 // pred_fallthru
          _
        // Predicated region
        $region109: #{tpu_custom_call.1} parent=91 // pred_check
          %p796 = pneg %p196
        $region110: #{tpu_custom_call.1} parent=91 // pred_check_branch
          %798 = sbr.rel (%p796) target = $region112
        $region111: #{tpu_custom_call.1} parent=91 // pred_region
          %800 = dma.done [#allocation16], 32
        $region112: #{tpu_custom_call.1} parent=91 // pred_fallthru
          _
        // Predicated region
        $region113: #{tpu_custom_call.1} parent=91 // pred_check
          %p801 = pneg %p217
        $region114: #{tpu_custom_call.1} parent=91 // pred_check_branch
          %803 = sbr.rel (%p801) target = $region116
        $region115: #{tpu_custom_call.1} parent=91 // pred_region
          %805 = dma.done [#allocation19], 32
        $region116: #{tpu_custom_call.1} parent=91 // pred_fallthru
          _
        // Predicated region
        $region117: #{tpu_custom_call.1} parent=91 // pred_check
          %p806 = pneg %p238
        $region118: #{tpu_custom_call.1} parent=91 // pred_check_branch
          %808 = sbr.rel (%p806) target = $region120
        $region119: #{tpu_custom_call.1} parent=91 // pred_region
          %810 = dma.done [#allocation19], 4096
        $region120: #{tpu_custom_call.1} parent=91 // pred_fallthru
          _
        // Predicated region
        $region121: #{tpu_custom_call.1} parent=91 // pred_check
          %p811 = pneg %p259
        $region122: #{tpu_custom_call.1} parent=91 // pred_check_branch
          %813 = sbr.rel (%p811) target = $region124
        $region123: #{tpu_custom_call.1} parent=91 // pred_region
          %815 = dma.done [#allocation22], 32
        $region124: #{tpu_custom_call.1} parent=91 // pred_fallthru
          _
        // Predicated region
        $region125: #{tpu_custom_call.1} parent=91 // pred_check
          %p816 = pneg %p280
        $region126: #{tpu_custom_call.1} parent=91 // pred_check_branch
          %818 = sbr.rel (%p816) target = $region128
        $region127: #{tpu_custom_call.1} parent=91 // pred_region
          %820 = dma.done [#allocation22], 8192
        $region128: #{tpu_custom_call.1} parent=91 // pred_fallthru
          _
        // Predicated region
        $region129: #{tpu_custom_call.1} parent=91 // pred_check
          %p821 = pneg %p322
        $region130: #{tpu_custom_call.1} parent=91 // pred_check_branch
          %823 = sbr.rel (%p821) target = $region132
        $region131: #{tpu_custom_call.1} parent=91 // pred_region
          %825 = dma.done [#allocation25], 4096
        $region132: #{tpu_custom_call.1} parent=91 // pred_fallthru
          _
        // Predicated region
        $region133: #{tpu_custom_call.1} parent=91 // pred_check
          %p826 = pneg %p364
        $region134: #{tpu_custom_call.1} parent=91 // pred_check_branch
          %828 = sbr.rel (%p826) target = $region136
        $region135: #{tpu_custom_call.1} parent=91 // pred_region
          %830 = dma.done [#allocation25], 32
        $region136: #{tpu_custom_call.1} parent=91 // pred_fallthru
          _
        // Predicated region
        $region137: #{tpu_custom_call.1} parent=91 // pred_check
          %p831 = pneg %p406
        $region138: #{tpu_custom_call.1} parent=91 // pred_check_branch
          %833 = sbr.rel (%p831) target = $region140
        $region139: #{tpu_custom_call.1} parent=91 // pred_region
          %835 = dma.done [#allocation28], 8192
        $region140: #{tpu_custom_call.1} parent=91 // pred_fallthru
          _
        // Predicated region
        $region141: #{tpu_custom_call.1} parent=91 // pred_check
          %p836 = pneg %p448
        $region142: #{tpu_custom_call.1} parent=91 // pred_check_branch
          %838 = sbr.rel (%p836) target = $region144
        $region143: #{tpu_custom_call.1} parent=91 // pred_region
          %840 = dma.done [#allocation28], 8192
        $region144: #{tpu_custom_call.1} parent=91 // pred_fallthru
          _
        %s841 = sand.u32 %s74, 1
        %s842 = scalar_lea.sflag [#allocation10], %s841
        %s843 = sand.u32 %s74, 1
        %s844 = smul.addr %s843, 256
        %s845 = scalar_lea.vmem [#allocation9], %s844
        %p846 = pneg %p87
        %p847 = pneg %p84
        %s848 = sand.u32 %s45, 1
        %s849 = scalar_lea.sflag [#allocation13], %s848
        %s850 = sand.u32 %s106, 1
        %s851 = smul.addr %s850, 256
        %s852 = scalar_lea.vmem [#allocation12], %s851
        %p853 = pneg %p119
        %p854 = pneg %p116
        %s855 = sand.u32 %s45, 1
        %s856 = scalar_lea.sflag [#allocation13], %s855
        %s857 = sand.u32 %s132, 1
        %s858 = smul.addr %s857, 256
        %s859 = scalar_lea.vmem [#allocation14], %s858
        %p860 = pneg %p145
        %p861 = pneg %p142
        %s862 = sand.u32 %s45, 1
        %s863 = scalar_lea.sflag [#allocation16], %s862
        %s864 = sand.u32 %s162, 1
        %s865 = smul.addr %s864, 256
        %s866 = scalar_lea.vmem [#allocation15], %s865
        %p867 = pneg %p175
        %p868 = pneg %p172
        %p869 = pneg %p196
        %p870 = pneg %p193
        %p871 = pneg %p217
        %p872 = pneg %p214
        %p873 = pneg %p238
        %p874 = pneg %p235
        %p875 = pneg %p259
        %p876 = pneg %p256
        %p877 = pneg %p280
        %p878 = pneg %p277
        %p879 = pneg %p301
        %p880 = pneg %p298
        %p881 = pneg %p322
        %p882 = pneg %p319
        %p883 = pneg %p343
        %p884 = pneg %p340
        %p885 = pneg %p364
        %p886 = pneg %p361
        %p887 = pneg %p385
        %p888 = pneg %p382
        %p889 = pneg %p406
        %p890 = pneg %p403
        %p891 = pneg %p427
        %p892 = pneg %p424
        %p893 = pneg %p448
        %p894 = pneg %p445
        %p895 = pneg %p469
        %p896 = pneg %p466
        %p897 = pneg %p497
        %p898 = pneg %p494
        %s899 = sand.u32 %s484, 1
        %s900 = scalar_lea.sflag [#allocation11], %s899
        %s901 = sand.u32 %s484, 1
        %s902 = smul.addr %s901, 256
        %s903 = scalar_lea.vmem [#allocation30], %s902
        %s904 = smul.u32 16, %s51
        %p905 = scmp.eq.s32.totalorder %s51, 0
        %s906 = scalar_select %p905, %s52, 0
        %s907 = smul.u32 16, %s906
        %s908 = smul.u32 16, %s51
        %p909 = scmp.eq.s32.totalorder %s51, 0
        %s910 = scalar_select %p909, %s52, 0
        %s911 = smul.u32 16, %s910
        %s912 = smul.u32 16, %s51
        %p913 = scmp.eq.s32.totalorder %s52, 0
        // Predicated region
        $region145: #{tpu_custom_call.1} parent=91 // pred_check
          %p914 = pneg %p913
        $region146: #{tpu_custom_call.1} parent=91 // pred_check_branch
          %916 = sbr.rel (%p914) target = $region148
        $region147: #{tpu_custom_call.1} parent=91 // pred_region
          %v917 = vld [vmem:[%s760] sm:$0xff]
          %v918 = vld [vmem:[%s760 + $0x8] sm:$0xff]
          %v919 = vld [vmem:[%s760 + $0x10] sm:$0xff]
          %v920 = vld [vmem:[%s760 + $0x18] sm:$0xff]
          %v921 = vld [vmem:[%s760 + $0x20] sm:$0xff]
          %v922 = vld [vmem:[%s760 + $0x28] sm:$0xff]
          %v923 = vld [vmem:[%s760 + $0x30] sm:$0xff]
          %v924 = vld [vmem:[%s760 + $0x38] sm:$0xff]
          %v925 = vld [vmem:[%s760 + $0x40] sm:$0xff]
          %v926 = vld [vmem:[%s760 + $0x48] sm:$0xff]
          %v927 = vld [vmem:[%s760 + $0x50] sm:$0xff]
          %v928 = vld [vmem:[%s760 + $0x58] sm:$0xff]
          %v929 = vld [vmem:[%s760 + $0x60] sm:$0xff]
          %v930 = vld [vmem:[%s760 + $0x68] sm:$0xff]
          %v931 = vld [vmem:[%s760 + $0x70] sm:$0xff]
          %v932 = vld [vmem:[%s760 + $0x78] sm:$0xff]
          %v933 = vld [vmem:[%s760 + $0x80] sm:$0xff]
          %v934 = vld [vmem:[%s760 + $0x88] sm:$0xff]
          %v935 = vld [vmem:[%s760 + $0x90] sm:$0xff]
          %v936 = vld [vmem:[%s760 + $0x98] sm:$0xff]
          %v937 = vld [vmem:[%s760 + $0xa0] sm:$0xff]
          %v938 = vld [vmem:[%s760 + $0xa8] sm:$0xff]
          %v939 = vld [vmem:[%s760 + $0xb0] sm:$0xff]
          %v940 = vld [vmem:[%s760 + $0xb8] sm:$0xff]
          %v941 = vld [vmem:[%s760 + $0xc0] sm:$0xff]
          %v942 = vld [vmem:[%s760 + $0xc8] sm:$0xff]
          %v943 = vld [vmem:[%s760 + $0xd0] sm:$0xff]
          %v944 = vld [vmem:[%s760 + $0xd8] sm:$0xff]
          %v945 = vld [vmem:[%s760 + $0xe0] sm:$0xff]
          %v946 = vld [vmem:[%s760 + $0xe8] sm:$0xff]
          %v947 = vld [vmem:[%s760 + $0xf0] sm:$0xff]
          %v948 = vld [vmem:[%s760 + $0xf8] sm:$0xff]
          %v949 = vld [vmem:[#allocation17] sm:$0x3]
          %v950 = vld [vmem:[#allocation18] sm:$0x3]
          %v951 = vadd.f32 %v917, %v918
          %952 = vadd.xlane.f32.xlu0 %v951
          %v953 = vpop.xlane.xlu0 %952
          %v954 = vadd.f32 %v919, %v920
          %955 = vadd.xlane.f32.xlu0 %v954
          %v956 = vpop.xlane.xlu0 %955
          %v957 = vadd.f32 %v921, %v922
          %958 = vadd.xlane.f32.xlu0 %v957
          %v959 = vpop.xlane.xlu0 %958
          %v960 = vadd.f32 %v923, %v924
          %961 = vadd.xlane.f32.xlu0 %v960
          %v962 = vpop.xlane.xlu0 %961
          %v963 = vadd.f32 %v925, %v926
          %964 = vadd.xlane.f32.xlu0 %v963
          %v965 = vpop.xlane.xlu0 %964
          %v966 = vadd.f32 %v927, %v928
          %967 = vadd.xlane.f32.xlu0 %v966
          %v968 = vpop.xlane.xlu0 %967
          %v969 = vadd.f32 %v929, %v930
          %970 = vadd.xlane.f32.xlu0 %v969
          %v971 = vpop.xlane.xlu0 %970
          %v972 = vadd.f32 %v931, %v932
          %973 = vadd.xlane.f32.xlu0 %v972
          %v974 = vpop.xlane.xlu0 %973
          %v975 = vadd.f32 %v933, %v934
          %976 = vadd.xlane.f32.xlu0 %v975
          %v977 = vpop.xlane.xlu0 %976
          %v978 = vadd.f32 %v935, %v936
          %979 = vadd.xlane.f32.xlu0 %v978
          %v980 = vpop.xlane.xlu0 %979
          %v981 = vadd.f32 %v937, %v938
          %982 = vadd.xlane.f32.xlu0 %v981
          %v983 = vpop.xlane.xlu0 %982
          %v984 = vadd.f32 %v939, %v940
          %985 = vadd.xlane.f32.xlu0 %v984
          %v986 = vpop.xlane.xlu0 %985
          %v987 = vadd.f32 %v941, %v942
          %988 = vadd.xlane.f32.xlu0 %v987
          %v989 = vpop.xlane.xlu0 %988
          %v990 = vadd.f32 %v943, %v944
          %991 = vadd.xlane.f32.xlu0 %v990
          %v992 = vpop.xlane.xlu0 %991
          %v993 = vadd.f32 %v945, %v946
          %994 = vadd.xlane.f32.xlu0 %v993
          %v995 = vpop.xlane.xlu0 %994
          %v996 = vadd.f32 %v947, %v948
          %997 = vadd.xlane.f32.xlu0 %v996
          %v998 = vpop.xlane.xlu0 %997
          %v999 = vrcp.pop 256.0
          %v1000 = vmul.f32 256.0, %v999
          %v1001 = vsub.f32 1.0, %v1000
          %v1002 = vmul.f32 %v999, %v1001
          %v1003 = vadd.f32 %v999, %v1002
          %vm1004 = vweird.f32 %v999
          %v1005 = vsel %vm1004, %v999, %v1003
          %v1006 = vmul.f32 %v953, %v1005
          %v1007 = vmul.f32 %v956, %v1005
          %v1008 = vmul.f32 %v959, %v1005
          %v1009 = vmul.f32 %v962, %v1005
          %v1010 = vmul.f32 %v965, %v1005
          %v1011 = vmul.f32 %v968, %v1005
          %v1012 = vmul.f32 %v971, %v1005
          %v1013 = vmul.f32 %v974, %v1005
          %v1014 = vmul.f32 %v977, %v1005
          %v1015 = vmul.f32 %v980, %v1005
          %v1016 = vmul.f32 %v983, %v1005
          %v1017 = vmul.f32 %v986, %v1005
          %v1018 = vmul.f32 %v989, %v1005
          %v1019 = vmul.f32 %v992, %v1005
          %v1020 = vmul.f32 %v995, %v1005
          %v1021 = vmul.f32 %v998, %v1005
          %v1022 = vsub.f32 %v917, %v1006
          %v1023 = vsub.f32 %v918, %v1006
          %v1024 = vsub.f32 %v919, %v1007
          %v1025 = vsub.f32 %v920, %v1007
          %v1026 = vsub.f32 %v921, %v1008
          %v1027 = vsub.f32 %v922, %v1008
          %v1028 = vsub.f32 %v923, %v1009
          %v1029 = vsub.f32 %v924, %v1009
          %v1030 = vsub.f32 %v925, %v1010
          %v1031 = vsub.f32 %v926, %v1010
          %v1032 = vsub.f32 %v927, %v1011
          %v1033 = vsub.f32 %v928, %v1011
          %v1034 = vsub.f32 %v929, %v1012
          %v1035 = vsub.f32 %v930, %v1012
          %v1036 = vsub.f32 %v931, %v1013
          %v1037 = vsub.f32 %v932, %v1013
          %v1038 = vsub.f32 %v933, %v1014
          %v1039 = vsub.f32 %v934, %v1014
          %v1040 = vsub.f32 %v935, %v1015
          %v1041 = vsub.f32 %v936, %v1015
          %v1042 = vsub.f32 %v937, %v1016
          %v1043 = vsub.f32 %v938, %v1016
          %v1044 = vsub.f32 %v939, %v1017
          %v1045 = vsub.f32 %v940, %v1017
          %v1046 = vsub.f32 %v941, %v1018
          %v1047 = vsub.f32 %v942, %v1018
          %v1048 = vsub.f32 %v943, %v1019
          %v1049 = vsub.f32 %v944, %v1019
          %v1050 = vsub.f32 %v945, %v1020
          %v1051 = vsub.f32 %v946, %v1020
          %v1052 = vsub.f32 %v947, %v1021
          %v1053 = vsub.f32 %v948, %v1021
          %v1054 = vmul.f32 %v1022, %v1022
          %v1055 = vmul.f32 %v1023, %v1023
          %v1056 = vmul.f32 %v1024, %v1024
          %v1057 = vmul.f32 %v1025, %v1025
          %v1058 = vmul.f32 %v1026, %v1026
          %v1059 = vmul.f32 %v1027, %v1027
          %v1060 = vmul.f32 %v1028, %v1028
          %v1061 = vmul.f32 %v1029, %v1029
          %v1062 = vmul.f32 %v1030, %v1030
          %v1063 = vmul.f32 %v1031, %v1031
          %v1064 = vmul.f32 %v1032, %v1032
          %v1065 = vmul.f32 %v1033, %v1033
          %v1066 = vmul.f32 %v1034, %v1034
          %v1067 = vmul.f32 %v1035, %v1035
          %v1068 = vmul.f32 %v1036, %v1036
          %v1069 = vmul.f32 %v1037, %v1037
          %v1070 = vmul.f32 %v1038, %v1038
          %v1071 = vmul.f32 %v1039, %v1039
          %v1072 = vmul.f32 %v1040, %v1040
          %v1073 = vmul.f32 %v1041, %v1041
          %v1074 = vmul.f32 %v1042, %v1042
          %v1075 = vmul.f32 %v1043, %v1043
          %v1076 = vmul.f32 %v1044, %v1044
          %v1077 = vmul.f32 %v1045, %v1045
          %v1078 = vmul.f32 %v1046, %v1046
          %v1079 = vmul.f32 %v1047, %v1047
          %v1080 = vmul.f32 %v1048, %v1048
          %v1081 = vmul.f32 %v1049, %v1049
          %v1082 = vmul.f32 %v1050, %v1050
          %v1083 = vmul.f32 %v1051, %v1051
          %v1084 = vmul.f32 %v1052, %v1052
          %v1085 = vmul.f32 %v1053, %v1053
          %v1086 = vadd.f32 %v1054, %v1055
          %1087 = vadd.xlane.f32.xlu0 %v1086
          %v1088 = vpop.xlane.xlu0 %1087
          %v1089 = vadd.f32 %v1056, %v1057
          %1090 = vadd.xlane.f32.xlu0 %v1089
          %v1091 = vpop.xlane.xlu0 %1090
          %v1092 = vadd.f32 %v1058, %v1059
          %1093 = vadd.xlane.f32.xlu0 %v1092
          %v1094 = vpop.xlane.xlu0 %1093
          %v1095 = vadd.f32 %v1060, %v1061
          %1096 = vadd.xlane.f32.xlu0 %v1095
          %v1097 = vpop.xlane.xlu0 %1096
          %v1098 = vadd.f32 %v1062, %v1063
          %1099 = vadd.xlane.f32.xlu0 %v1098
          %v1100 = vpop.xlane.xlu0 %1099
          %v1101 = vadd.f32 %v1064, %v1065
          %1102 = vadd.xlane.f32.xlu0 %v1101
          %v1103 = vpop.xlane.xlu0 %1102
          %v1104 = vadd.f32 %v1066, %v1067
          %1105 = vadd.xlane.f32.xlu0 %v1104
          %v1106 = vpop.xlane.xlu0 %1105
          %v1107 = vadd.f32 %v1068, %v1069
          %1108 = vadd.xlane.f32.xlu0 %v1107
          %v1109 = vpop.xlane.xlu0 %1108
          %v1110 = vadd.f32 %v1070, %v1071
          %1111 = vadd.xlane.f32.xlu0 %v1110
          %v1112 = vpop.xlane.xlu0 %1111
          %v1113 = vadd.f32 %v1072, %v1073
          %1114 = vadd.xlane.f32.xlu0 %v1113
          %v1115 = vpop.xlane.xlu0 %1114
          %v1116 = vadd.f32 %v1074, %v1075
          %1117 = vadd.xlane.f32.xlu0 %v1116
          %v1118 = vpop.xlane.xlu0 %1117
          %v1119 = vadd.f32 %v1076, %v1077
          %1120 = vadd.xlane.f32.xlu0 %v1119
          %v1121 = vpop.xlane.xlu0 %1120
          %v1122 = vadd.f32 %v1078, %v1079
          %1123 = vadd.xlane.f32.xlu0 %v1122
          %v1124 = vpop.xlane.xlu0 %1123
          %v1125 = vadd.f32 %v1080, %v1081
          %1126 = vadd.xlane.f32.xlu0 %v1125
          %v1127 = vpop.xlane.xlu0 %1126
          %v1128 = vadd.f32 %v1082, %v1083
          %1129 = vadd.xlane.f32.xlu0 %v1128
          %v1130 = vpop.xlane.xlu0 %1129
          %v1131 = vadd.f32 %v1084, %v1085
          %1132 = vadd.xlane.f32.xlu0 %v1131
          %v1133 = vpop.xlane.xlu0 %1132
          %v1134 = vmul.f32 %v1088, %v1005
          %v1135 = vmul.f32 %v1091, %v1005
          %v1136 = vmul.f32 %v1094, %v1005
          %v1137 = vmul.f32 %v1097, %v1005
          %v1138 = vmul.f32 %v1100, %v1005
          %v1139 = vmul.f32 %v1103, %v1005
          %v1140 = vmul.f32 %v1106, %v1005
          %v1141 = vmul.f32 %v1109, %v1005
          %v1142 = vmul.f32 %v1112, %v1005
          %v1143 = vmul.f32 %v1115, %v1005
          %v1144 = vmul.f32 %v1118, %v1005
          %v1145 = vmul.f32 %v1121, %v1005
          %v1146 = vmul.f32 %v1124, %v1005
          %v1147 = vmul.f32 %v1127, %v1005
          %v1148 = vmul.f32 %v1130, %v1005
          %v1149 = vmul.f32 %v1133, %v1005
          %v1150 = vadd.f32 %v1134, 1e-05
          %v1151 = vadd.f32 %v1135, 1e-05
          %v1152 = vadd.f32 %v1136, 1e-05
          %v1153 = vadd.f32 %v1137, 1e-05
          %v1154 = vadd.f32 %v1138, 1e-05
          %v1155 = vadd.f32 %v1139, 1e-05
          %v1156 = vadd.f32 %v1140, 1e-05
          %v1157 = vadd.f32 %v1141, 1e-05
          %v1158 = vadd.f32 %v1142, 1e-05
          %v1159 = vadd.f32 %v1143, 1e-05
          %v1160 = vadd.f32 %v1144, 1e-05
          %v1161 = vadd.f32 %v1145, 1e-05
          %v1162 = vadd.f32 %v1146, 1e-05
          %v1163 = vadd.f32 %v1147, 1e-05
          %v1164 = vadd.f32 %v1148, 1e-05
          %v1165 = vadd.f32 %v1149, 1e-05
          %v1166 = vrsqrt.pop %v1150
          %v1167 = vmul.f32 %v1166, %v1150
          %v1168 = vmul.f32 %v1167, %v1166
          %v1169 = vmul.f32 0.5, %v1168
          %v1170 = vsub.f32 1.5, %v1169
          %v1171 = vmul.f32 %v1166, %v1170
          %vm1172 = vweird.f32 %v1150
          %vm1173 = vweird.f32 %v1166
          %vm1174 = vmor %vm1172, %vm1173
          %v1175 = vsel %vm1174, %v1166, %v1171
          %v1176 = vrsqrt.pop %v1151
          %v1177 = vmul.f32 %v1176, %v1151
          %v1178 = vmul.f32 %v1177, %v1176
          %v1179 = vmul.f32 0.5, %v1178
          %v1180 = vsub.f32 1.5, %v1179
          %v1181 = vmul.f32 %v1176, %v1180
          %vm1182 = vweird.f32 %v1151
          %vm1183 = vweird.f32 %v1176
          %vm1184 = vmor %vm1182, %vm1183
          %v1185 = vsel %vm1184, %v1176, %v1181
          %v1186 = vrsqrt.pop %v1152
          %v1187 = vmul.f32 %v1186, %v1152
          %v1188 = vmul.f32 %v1187, %v1186
          %v1189 = vmul.f32 0.5, %v1188
          %v1190 = vsub.f32 1.5, %v1189
          %v1191 = vmul.f32 %v1186, %v1190
          %vm1192 = vweird.f32 %v1152
          %vm1193 = vweird.f32 %v1186
          %vm1194 = vmor %vm1192, %vm1193
          %v1195 = vsel %vm1194, %v1186, %v1191
          %v1196 = vrsqrt.pop %v1153
          %v1197 = vmul.f32 %v1196, %v1153
          %v1198 = vmul.f32 %v1197, %v1196
          %v1199 = vmul.f32 0.5, %v1198
          %v1200 = vsub.f32 1.5, %v1199
          %v1201 = vmul.f32 %v1196, %v1200
          %vm1202 = vweird.f32 %v1153
          %vm1203 = vweird.f32 %v1196
          %vm1204 = vmor %vm1202, %vm1203
          %v1205 = vsel %vm1204, %v1196, %v1201
          %v1206 = vrsqrt.pop %v1154
          %v1207 = vmul.f32 %v1206, %v1154
          %v1208 = vmul.f32 %v1207, %v1206
          %v1209 = vmul.f32 0.5, %v1208
          %v1210 = vsub.f32 1.5, %v1209
          %v1211 = vmul.f32 %v1206, %v1210
          %vm1212 = vweird.f32 %v1154
          %vm1213 = vweird.f32 %v1206
          %vm1214 = vmor %vm1212, %vm1213
          %v1215 = vsel %vm1214, %v1206, %v1211
          %v1216 = vrsqrt.pop %v1155
          %v1217 = vmul.f32 %v1216, %v1155
          %v1218 = vmul.f32 %v1217, %v1216
          %v1219 = vmul.f32 0.5, %v1218
          %v1220 = vsub.f32 1.5, %v1219
          %v1221 = vmul.f32 %v1216, %v1220
          %vm1222 = vweird.f32 %v1155
          %vm1223 = vweird.f32 %v1216
          %vm1224 = vmor %vm1222, %vm1223
          %v1225 = vsel %vm1224, %v1216, %v1221
          %v1226 = vrsqrt.pop %v1156
          %v1227 = vmul.f32 %v1226, %v1156
          %v1228 = vmul.f32 %v1227, %v1226
          %v1229 = vmul.f32 0.5, %v1228
          %v1230 = vsub.f32 1.5, %v1229
          %v1231 = vmul.f32 %v1226, %v1230
          %vm1232 = vweird.f32 %v1156
          %vm1233 = vweird.f32 %v1226
          %vm1234 = vmor %vm1232, %vm1233
          %v1235 = vsel %vm1234, %v1226, %v1231
          %v1236 = vrsqrt.pop %v1157
          %v1237 = vmul.f32 %v1236, %v1157
          %v1238 = vmul.f32 %v1237, %v1236
          %v1239 = vmul.f32 0.5, %v1238
          %v1240 = vsub.f32 1.5, %v1239
          %v1241 = vmul.f32 %v1236, %v1240
          %vm1242 = vweird.f32 %v1157
          %vm1243 = vweird.f32 %v1236
          %vm1244 = vmor %vm1242, %vm1243
          %v1245 = vsel %vm1244, %v1236, %v1241
          %v1246 = vrsqrt.pop %v1158
          %v1247 = vmul.f32 %v1246, %v1158
          %v1248 = vmul.f32 %v1247, %v1246
          %v1249 = vmul.f32 0.5, %v1248
          %v1250 = vsub.f32 1.5, %v1249
          %v1251 = vmul.f32 %v1246, %v1250
          %vm1252 = vweird.f32 %v1158
          %vm1253 = vweird.f32 %v1246
          %vm1254 = vmor %vm1252, %vm1253
          %v1255 = vsel %vm1254, %v1246, %v1251
          %v1256 = vrsqrt.pop %v1159
          %v1257 = vmul.f32 %v1256, %v1159
          %v1258 = vmul.f32 %v1257, %v1256
          %v1259 = vmul.f32 0.5, %v1258
          %v1260 = vsub.f32 1.5, %v1259
          %v1261 = vmul.f32 %v1256, %v1260
          %vm1262 = vweird.f32 %v1159
          %vm1263 = vweird.f32 %v1256
          %vm1264 = vmor %vm1262, %vm1263
          %v1265 = vsel %vm1264, %v1256, %v1261
          %v1266 = vrsqrt.pop %v1160
          %v1267 = vmul.f32 %v1266, %v1160
          %v1268 = vmul.f32 %v1267, %v1266
          %v1269 = vmul.f32 0.5, %v1268
          %v1270 = vsub.f32 1.5, %v1269
          %v1271 = vmul.f32 %v1266, %v1270
          %vm1272 = vweird.f32 %v1160
          %vm1273 = vweird.f32 %v1266
          %vm1274 = vmor %vm1272, %vm1273
          %v1275 = vsel %vm1274, %v1266, %v1271
          %v1276 = vrsqrt.pop %v1161
          %v1277 = vmul.f32 %v1276, %v1161
          %v1278 = vmul.f32 %v1277, %v1276
          %v1279 = vmul.f32 0.5, %v1278
          %v1280 = vsub.f32 1.5, %v1279
          %v1281 = vmul.f32 %v1276, %v1280
          %vm1282 = vweird.f32 %v1161
          %vm1283 = vweird.f32 %v1276
          %vm1284 = vmor %vm1282, %vm1283
          %v1285 = vsel %vm1284, %v1276, %v1281
          %v1286 = vrsqrt.pop %v1162
          %v1287 = vmul.f32 %v1286, %v1162
          %v1288 = vmul.f32 %v1287, %v1286
          %v1289 = vmul.f32 0.5, %v1288
          %v1290 = vsub.f32 1.5, %v1289
          %v1291 = vmul.f32 %v1286, %v1290
          %vm1292 = vweird.f32 %v1162
          %vm1293 = vweird.f32 %v1286
          %vm1294 = vmor %vm1292, %vm1293
          %v1295 = vsel %vm1294, %v1286, %v1291
          %v1296 = vrsqrt.pop %v1163
          %v1297 = vmul.f32 %v1296, %v1163
          %v1298 = vmul.f32 %v1297, %v1296
          %v1299 = vmul.f32 0.5, %v1298
          %v1300 = vsub.f32 1.5, %v1299
          %v1301 = vmul.f32 %v1296, %v1300
          %vm1302 = vweird.f32 %v1163
          %vm1303 = vweird.f32 %v1296
          %vm1304 = vmor %vm1302, %vm1303
          %v1305 = vsel %vm1304, %v1296, %v1301
          %v1306 = vrsqrt.pop %v1164
          %v1307 = vmul.f32 %v1306, %v1164
          %v1308 = vmul.f32 %v1307, %v1306
          %v1309 = vmul.f32 0.5, %v1308
          %v1310 = vsub.f32 1.5, %v1309
          %v1311 = vmul.f32 %v1306, %v1310
          %vm1312 = vweird.f32 %v1164
          %vm1313 = vweird.f32 %v1306
          %vm1314 = vmor %vm1312, %vm1313
          %v1315 = vsel %vm1314, %v1306, %v1311
          %v1316 = vrsqrt.pop %v1165
          %v1317 = vmul.f32 %v1316, %v1165
          %v1318 = vmul.f32 %v1317, %v1316
          %v1319 = vmul.f32 0.5, %v1318
          %v1320 = vsub.f32 1.5, %v1319
          %v1321 = vmul.f32 %v1316, %v1320
          %vm1322 = vweird.f32 %v1165
          %vm1323 = vweird.f32 %v1316
          %vm1324 = vmor %vm1322, %vm1323
          %v1325 = vsel %vm1324, %v1316, %v1321
          %v1326 = vmul.f32 %v1022, %v1175
          %v1327 = vmul.f32 %v1023, %v1175
          %v1328 = vmul.f32 %v1024, %v1185
          %v1329 = vmul.f32 %v1025, %v1185
          %v1330 = vmul.f32 %v1026, %v1195
          %v1331 = vmul.f32 %v1027, %v1195
          %v1332 = vmul.f32 %v1028, %v1205
          %v1333 = vmul.f32 %v1029, %v1205
          %v1334 = vmul.f32 %v1030, %v1215
          %v1335 = vmul.f32 %v1031, %v1215
          %v1336 = vmul.f32 %v1032, %v1225
          %v1337 = vmul.f32 %v1033, %v1225
          %v1338 = vmul.f32 %v1034, %v1235
          %v1339 = vmul.f32 %v1035, %v1235
          %v1340 = vmul.f32 %v1036, %v1245
          %v1341 = vmul.f32 %v1037, %v1245
          %v1342 = vmul.f32 %v1038, %v1255
          %v1343 = vmul.f32 %v1039, %v1255
          %v1344 = vmul.f32 %v1040, %v1265
          %v1345 = vmul.f32 %v1041, %v1265
          %v1346 = vmul.f32 %v1042, %v1275
          %v1347 = vmul.f32 %v1043, %v1275
          %v1348 = vmul.f32 %v1044, %v1285
          %v1349 = vmul.f32 %v1045, %v1285
          %v1350 = vmul.f32 %v1046, %v1295
          %v1351 = vmul.f32 %v1047, %v1295
          %v1352 = vmul.f32 %v1048, %v1305
          %v1353 = vmul.f32 %v1049, %v1305
          %v1354 = vmul.f32 %v1050, %v1315
          %v1355 = vmul.f32 %v1051, %v1315
          %v1356 = vmul.f32 %v1052, %v1325
          %v1357 = vmul.f32 %v1053, %v1325
          %v1359 = vperm.slane %v949, 0
          %v1360 = vperm.slane %v949, 1
          %v1363 = vmul.f32 %v1326, %v1359
          %v1364 = vmul.f32 %v1327, %v1360
          %v1365 = vmul.f32 %v1328, %v1359
          %v1366 = vmul.f32 %v1329, %v1360
          %v1367 = vmul.f32 %v1330, %v1359
          %v1368 = vmul.f32 %v1331, %v1360
          %v1369 = vmul.f32 %v1332, %v1359
          %v1370 = vmul.f32 %v1333, %v1360
          %v1371 = vmul.f32 %v1334, %v1359
          %v1372 = vmul.f32 %v1335, %v1360
          %v1373 = vmul.f32 %v1336, %v1359
          %v1374 = vmul.f32 %v1337, %v1360
          %v1375 = vmul.f32 %v1338, %v1359
          %v1376 = vmul.f32 %v1339, %v1360
          %v1377 = vmul.f32 %v1340, %v1359
          %v1378 = vmul.f32 %v1341, %v1360
          %v1379 = vmul.f32 %v1342, %v1359
          %v1380 = vmul.f32 %v1343, %v1360
          %v1381 = vmul.f32 %v1344, %v1359
          %v1382 = vmul.f32 %v1345, %v1360
          %v1383 = vmul.f32 %v1346, %v1359
          %v1384 = vmul.f32 %v1347, %v1360
          %v1385 = vmul.f32 %v1348, %v1359
          %v1386 = vmul.f32 %v1349, %v1360
          %v1387 = vmul.f32 %v1350, %v1359
          %v1388 = vmul.f32 %v1351, %v1360
          %v1389 = vmul.f32 %v1352, %v1359
          %v1390 = vmul.f32 %v1353, %v1360
          %v1391 = vmul.f32 %v1354, %v1359
          %v1392 = vmul.f32 %v1355, %v1360
          %v1393 = vmul.f32 %v1356, %v1359
          %v1394 = vmul.f32 %v1357, %v1360
          %v1396 = vperm.slane %v950, 0
          %v1397 = vperm.slane %v950, 1
          %v1400 = vadd.f32 %v1363, %v1396
          %v1401 = vadd.f32 %v1364, %v1397
          %v1402 = vadd.f32 %v1365, %v1396
          %v1403 = vadd.f32 %v1366, %v1397
          %v1404 = vadd.f32 %v1367, %v1396
          %v1405 = vadd.f32 %v1368, %v1397
          %v1406 = vadd.f32 %v1369, %v1396
          %v1407 = vadd.f32 %v1370, %v1397
          %v1408 = vadd.f32 %v1371, %v1396
          %v1409 = vadd.f32 %v1372, %v1397
          %v1410 = vadd.f32 %v1373, %v1396
          %v1411 = vadd.f32 %v1374, %v1397
          %v1412 = vadd.f32 %v1375, %v1396
          %v1413 = vadd.f32 %v1376, %v1397
          %v1414 = vadd.f32 %v1377, %v1396
          %v1415 = vadd.f32 %v1378, %v1397
          %v1416 = vadd.f32 %v1379, %v1396
          %v1417 = vadd.f32 %v1380, %v1397
          %v1418 = vadd.f32 %v1381, %v1396
          %v1419 = vadd.f32 %v1382, %v1397
          %v1420 = vadd.f32 %v1383, %v1396
          %v1421 = vadd.f32 %v1384, %v1397
          %v1422 = vadd.f32 %v1385, %v1396
          %v1423 = vadd.f32 %v1386, %v1397
          %v1424 = vadd.f32 %v1387, %v1396
          %v1425 = vadd.f32 %v1388, %v1397
          %v1426 = vadd.f32 %v1389, %v1396
          %v1427 = vadd.f32 %v1390, %v1397
          %v1428 = vadd.f32 %v1391, %v1396
          %v1429 = vadd.f32 %v1392, %v1397
          %v1430 = vadd.f32 %v1393, %v1396
          %v1431 = vadd.f32 %v1394, %v1397
          %v1432 = vpack.c.bf16 %v1402, %v1400
          %v1433 = vpack.c.bf16 %v1403, %v1401
          %v1434 = vpack.c.bf16 %v1406, %v1404
          %v1435 = vpack.c.bf16 %v1407, %v1405
          %v1436 = vpack.c.bf16 %v1410, %v1408
          %v1437 = vpack.c.bf16 %v1411, %v1409
          %v1438 = vpack.c.bf16 %v1414, %v1412
          %v1439 = vpack.c.bf16 %v1415, %v1413
          %v1440 = vpack.c.bf16 %v1418, %v1416
          %v1441 = vpack.c.bf16 %v1419, %v1417
          %v1442 = vpack.c.bf16 %v1422, %v1420
          %v1443 = vpack.c.bf16 %v1423, %v1421
          %v1444 = vpack.c.bf16 %v1426, %v1424
          %v1445 = vpack.c.bf16 %v1427, %v1425
          %v1446 = vpack.c.bf16 %v1430, %v1428
          %v1447 = vpack.c.bf16 %v1431, %v1429
          %v1448 = vld [vmem:[#allocation20] sm:$0xff]
          %v1449 = vld [vmem:[#allocation20 + $0x8] sm:$0xff]
          %v1450 = vld [vmem:[#allocation20 + $0x10] sm:$0xff]
          %v1451 = vld [vmem:[#allocation20 + $0x18] sm:$0xff]
          %v1452 = vld [vmem:[#allocation20 + $0x20] sm:$0xff]
          %v1453 = vld [vmem:[#allocation20 + $0x28] sm:$0xff]
          %v1454 = vld [vmem:[#allocation20 + $0x30] sm:$0xff]
          %v1455 = vld [vmem:[#allocation20 + $0x38] sm:$0xff]
          %v1456 = vld [vmem:[#allocation20 + $0x40] sm:$0xff]
          %v1457 = vld [vmem:[#allocation20 + $0x48] sm:$0xff]
          %v1458 = vld [vmem:[#allocation20 + $0x50] sm:$0xff]
          %v1459 = vld [vmem:[#allocation20 + $0x58] sm:$0xff]
          %v1460 = vld [vmem:[#allocation20 + $0x60] sm:$0xff]
          %v1461 = vld [vmem:[#allocation20 + $0x68] sm:$0xff]
          %v1462 = vld [vmem:[#allocation20 + $0x70] sm:$0xff]
          %v1463 = vld [vmem:[#allocation20 + $0x78] sm:$0xff]
          %v1464 = vld [vmem:[#allocation20 + $0x80] sm:$0xff]
          %v1465 = vld [vmem:[#allocation20 + $0x88] sm:$0xff]
          %v1466 = vld [vmem:[#allocation20 + $0x90] sm:$0xff]
          %v1467 = vld [vmem:[#allocation20 + $0x98] sm:$0xff]
          %v1468 = vld [vmem:[#allocation20 + $0xa0] sm:$0xff]
          %v1469 = vld [vmem:[#allocation20 + $0xa8] sm:$0xff]
          %v1470 = vld [vmem:[#allocation20 + $0xb0] sm:$0xff]
          %v1471 = vld [vmem:[#allocation20 + $0xb8] sm:$0xff]
          %v1472 = vld [vmem:[#allocation20 + $0xc0] sm:$0xff]
          %v1473 = vld [vmem:[#allocation20 + $0xc8] sm:$0xff]
          %v1474 = vld [vmem:[#allocation20 + $0xd0] sm:$0xff]
          %v1475 = vld [vmem:[#allocation20 + $0xd8] sm:$0xff]
          %v1476 = vld [vmem:[#allocation20 + $0xe0] sm:$0xff]
          %v1477 = vld [vmem:[#allocation20 + $0xe8] sm:$0xff]
          %v1478 = vld [vmem:[#allocation20 + $0xf0] sm:$0xff]
          %v1479 = vld [vmem:[#allocation20 + $0xf8] sm:$0xff]
          %v1480 = vld [vmem:[#allocation21] sm:$0x3]
          %v1482 = vperm.slane %v1480, 0
          %v1483 = vperm.slane %v1480, 1
          %v1518 = vunpack.c.l.b16 %v1448
          %v1519 = vunpack.c.h.b16 %v1448
          %v1520 = vunpack.c.l.b16 %v1449
          %v1521 = vunpack.c.h.b16 %v1449
          %v1522 = vunpack.c.l.b16 %v1450
          %v1523 = vunpack.c.h.b16 %v1450
          %v1524 = vunpack.c.l.b16 %v1451
          %v1525 = vunpack.c.h.b16 %v1451
          %v1526 = vunpack.c.l.b16 %v1452
          %v1527 = vunpack.c.h.b16 %v1452
          %v1528 = vunpack.c.l.b16 %v1453
          %v1529 = vunpack.c.h.b16 %v1453
          %v1530 = vunpack.c.l.b16 %v1454
          %v1531 = vunpack.c.h.b16 %v1454
          %v1532 = vunpack.c.l.b16 %v1455
          %v1533 = vunpack.c.h.b16 %v1455
          %v1534 = vunpack.c.l.b16 %v1456
          %v1535 = vunpack.c.h.b16 %v1456
          %v1536 = vunpack.c.l.b16 %v1457
          %v1537 = vunpack.c.h.b16 %v1457
          %v1538 = vunpack.c.l.b16 %v1458
          %v1539 = vunpack.c.h.b16 %v1458
          %v1540 = vunpack.c.l.b16 %v1459
          %v1541 = vunpack.c.h.b16 %v1459
          %v1542 = vunpack.c.l.b16 %v1460
          %v1543 = vunpack.c.h.b16 %v1460
          %v1544 = vunpack.c.l.b16 %v1461
          %v1545 = vunpack.c.h.b16 %v1461
          %v1546 = vunpack.c.l.b16 %v1462
          %v1547 = vunpack.c.h.b16 %v1462
          %v1548 = vunpack.c.l.b16 %v1463
          %v1549 = vunpack.c.h.b16 %v1463
          %v1550 = vunpack.c.l.b16 %v1464
          %v1551 = vunpack.c.h.b16 %v1464
          %v1552 = vunpack.c.l.b16 %v1465
          %v1553 = vunpack.c.h.b16 %v1465
          %v1554 = vunpack.c.l.b16 %v1466
          %v1555 = vunpack.c.h.b16 %v1466
          %v1556 = vunpack.c.l.b16 %v1467
          %v1557 = vunpack.c.h.b16 %v1467
          %v1558 = vunpack.c.l.b16 %v1468
          %v1559 = vunpack.c.h.b16 %v1468
          %v1560 = vunpack.c.l.b16 %v1469
          %v1561 = vunpack.c.h.b16 %v1469
          %v1562 = vunpack.c.l.b16 %v1470
          %v1563 = vunpack.c.h.b16 %v1470
          %v1564 = vunpack.c.l.b16 %v1471
          %v1565 = vunpack.c.h.b16 %v1471
          %v1566 = vunpack.c.l.b16 %v1472
          %v1567 = vunpack.c.h.b16 %v1472
          %v1568 = vunpack.c.l.b16 %v1473
          %v1569 = vunpack.c.h.b16 %v1473
          %v1570 = vunpack.c.l.b16 %v1474
          %v1571 = vunpack.c.h.b16 %v1474
          %v1572 = vunpack.c.l.b16 %v1475
          %v1573 = vunpack.c.h.b16 %v1475
          %v1574 = vunpack.c.l.b16 %v1476
          %v1575 = vunpack.c.h.b16 %v1476
          %v1576 = vunpack.c.l.b16 %v1477
          %v1577 = vunpack.c.h.b16 %v1477
          %v1578 = vunpack.c.l.b16 %v1478
          %v1579 = vunpack.c.h.b16 %v1478
          %v1580 = vunpack.c.l.b16 %v1479
          %v1581 = vunpack.c.h.b16 %v1479
          %v1582 = vpack.c.b16 %v1520, %v1518
          %v1583 = vpack.c.b16 %v1521, %v1519
          %v1584 = vpack.c.b16 %v1524, %v1522
          %v1585 = vpack.c.b16 %v1525, %v1523
          %v1586 = vpack.c.b16 %v1528, %v1526
          %v1587 = vpack.c.b16 %v1529, %v1527
          %v1588 = vpack.c.b16 %v1532, %v1530
          %v1589 = vpack.c.b16 %v1533, %v1531
          %v1590 = vpack.c.b16 %v1536, %v1534
          %v1591 = vpack.c.b16 %v1537, %v1535
          %v1592 = vpack.c.b16 %v1540, %v1538
          %v1593 = vpack.c.b16 %v1541, %v1539
          %v1594 = vpack.c.b16 %v1544, %v1542
          %v1595 = vpack.c.b16 %v1545, %v1543
          %v1596 = vpack.c.b16 %v1548, %v1546
          %v1597 = vpack.c.b16 %v1549, %v1547
          %v1598 = vpack.c.b16 %v1552, %v1550
          %v1599 = vpack.c.b16 %v1553, %v1551
          %v1600 = vpack.c.b16 %v1556, %v1554
          %v1601 = vpack.c.b16 %v1557, %v1555
          %v1602 = vpack.c.b16 %v1560, %v1558
          %v1603 = vpack.c.b16 %v1561, %v1559
          %v1604 = vpack.c.b16 %v1564, %v1562
          %v1605 = vpack.c.b16 %v1565, %v1563
          %v1606 = vpack.c.b16 %v1568, %v1566
          %v1607 = vpack.c.b16 %v1569, %v1567
          %v1608 = vpack.c.b16 %v1572, %v1570
          %v1609 = vpack.c.b16 %v1573, %v1571
          %v1610 = vpack.c.b16 %v1576, %v1574
          %v1611 = vpack.c.b16 %v1577, %v1575
          %v1612 = vpack.c.b16 %v1580, %v1578
          %v1613 = vpack.c.b16 %v1581, %v1579
          %1646 = vmatpush.bf16.msra.mxu0 %v1596
          %1647 = vmatpush.bf16.msra.mxu0 %v1594
          %1648 = vmatpush.bf16.msra.mxu0 %v1592
          %1649 = vmatpush.bf16.msra.mxu0 %v1590
          %1650 = vmatpush.bf16.msra.mxu0 %v1588
          %1651 = vmatpush.bf16.msra.mxu0 %v1586
          %1652 = vmatpush.bf16.msra.mxu0 %v1584
          %1653 = vmatpush.bf16.msra.mxu0 %v1582
          %1654 = vmatmul.bf16.gmra.mxu0 %v1432
          %v1655 = vpop.f32.mrf.mxu0
          %v1656 = vadd.f32 %v1482, %v1655
          %v1657 = vpop.f32.mrf.mxu0
          %v1658 = vadd.f32 %v1482, %v1657
          %1659 = vmatmul.bf16.gmra.mxu0 %v1434
          %v1660 = vpop.f32.mrf.mxu0
          %v1661 = vadd.f32 %v1482, %v1660
          %v1662 = vpop.f32.mrf.mxu0
          %v1663 = vadd.f32 %v1482, %v1662
          %1664 = vmatmul.bf16.gmra.mxu0 %v1436
          %v1665 = vpop.f32.mrf.mxu0
          %v1666 = vadd.f32 %v1482, %v1665
          %v1667 = vpop.f32.mrf.mxu0
          %v1668 = vadd.f32 %v1482, %v1667
          %1669 = vmatmul.bf16.gmra.mxu0 %v1438
          %v1670 = vpop.f32.mrf.mxu0
          %v1671 = vadd.f32 %v1482, %v1670
          %v1672 = vpop.f32.mrf.mxu0
          %v1673 = vadd.f32 %v1482, %v1672
          %1674 = vmatmul.bf16.gmra.mxu0 %v1440
          %v1675 = vpop.f32.mrf.mxu0
          %v1676 = vadd.f32 %v1482, %v1675
          %v1677 = vpop.f32.mrf.mxu0
          %v1678 = vadd.f32 %v1482, %v1677
          %1679 = vmatmul.bf16.gmra.mxu0 %v1442
          %v1680 = vpop.f32.mrf.mxu0
          %v1681 = vadd.f32 %v1482, %v1680
          %v1682 = vpop.f32.mrf.mxu0
          %v1683 = vadd.f32 %v1482, %v1682
          %1684 = vmatmul.bf16.gmra.mxu0 %v1444
          %v1685 = vpop.f32.mrf.mxu0
          %v1686 = vadd.f32 %v1482, %v1685
          %v1687 = vpop.f32.mrf.mxu0
          %v1688 = vadd.f32 %v1482, %v1687
          %1689 = vmatmul.bf16.gmra.mxu0 %v1446
          %v1690 = vpop.f32.mrf.mxu0
          %v1691 = vadd.f32 %v1482, %v1690
          %v1692 = vpop.f32.mrf.mxu0
          %v1693 = vadd.f32 %v1482, %v1692
          %1694 = vdwg.mxu0
          %1695 = vmatpush.bf16.msra.mxu0 %v1612
          %1696 = vmatpush.bf16.msra.mxu0 %v1610
          %1697 = vmatpush.bf16.msra.mxu0 %v1608
          %1698 = vmatpush.bf16.msra.mxu0 %v1606
          %1699 = vmatpush.bf16.msra.mxu0 %v1604
          %1700 = vmatpush.bf16.msra.mxu0 %v1602
          %1701 = vmatpush.bf16.msra.mxu0 %v1600
          %1702 = vmatpush.bf16.msra.mxu0 %v1598
          %1703 = vmatmul.bf16.gmra.mxu0 %v1433
          %v1704 = vpop.f32.mrf.mxu0
          %v1705 = vadd.f32 %v1656, %v1704
          %v1706 = vpop.f32.mrf.mxu0
          %v1707 = vadd.f32 %v1658, %v1706
          %1708 = vmatmul.bf16.gmra.mxu0 %v1435
          %v1709 = vpop.f32.mrf.mxu0
          %v1710 = vadd.f32 %v1661, %v1709
          %v1711 = vpop.f32.mrf.mxu0
          %v1712 = vadd.f32 %v1663, %v1711
          %1713 = vmatmul.bf16.gmra.mxu0 %v1437
          %v1714 = vpop.f32.mrf.mxu0
          %v1715 = vadd.f32 %v1666, %v1714
          %v1716 = vpop.f32.mrf.mxu0
          %v1717 = vadd.f32 %v1668, %v1716
          %1718 = vmatmul.bf16.gmra.mxu0 %v1439
          %v1719 = vpop.f32.mrf.mxu0
          %v1720 = vadd.f32 %v1671, %v1719
          %v1721 = vpop.f32.mrf.mxu0
          %v1722 = vadd.f32 %v1673, %v1721
          %1723 = vmatmul.bf16.gmra.mxu0 %v1441
          %v1724 = vpop.f32.mrf.mxu0
          %v1725 = vadd.f32 %v1676, %v1724
          %v1726 = vpop.f32.mrf.mxu0
          %v1727 = vadd.f32 %v1678, %v1726
          %1728 = vmatmul.bf16.gmra.mxu0 %v1443
          %v1729 = vpop.f32.mrf.mxu0
          %v1730 = vadd.f32 %v1681, %v1729
          %v1731 = vpop.f32.mrf.mxu0
          %v1732 = vadd.f32 %v1683, %v1731
          %1733 = vmatmul.bf16.gmra.mxu0 %v1445
          %v1734 = vpop.f32.mrf.mxu0
          %v1735 = vadd.f32 %v1686, %v1734
          %v1736 = vpop.f32.mrf.mxu0
          %v1737 = vadd.f32 %v1688, %v1736
          %1738 = vmatmul.bf16.gmra.mxu0 %v1447
          %v1739 = vpop.f32.mrf.mxu0
          %v1740 = vadd.f32 %v1691, %v1739
          %v1741 = vpop.f32.mrf.mxu0
          %v1742 = vadd.f32 %v1693, %v1741
          %1743 = vdwg.mxu0
          %1744 = vmatpush.bf16.msra.mxu0 %v1597
          %1745 = vmatpush.bf16.msra.mxu0 %v1595
          %1746 = vmatpush.bf16.msra.mxu0 %v1593
          %1747 = vmatpush.bf16.msra.mxu0 %v1591
          %1748 = vmatpush.bf16.msra.mxu0 %v1589
          %1749 = vmatpush.bf16.msra.mxu0 %v1587
          %1750 = vmatpush.bf16.msra.mxu0 %v1585
          %1751 = vmatpush.bf16.msra.mxu0 %v1583
          %1752 = vmatmul.bf16.gmra.mxu0 %v1432
          %v1753 = vpop.f32.mrf.mxu0
          %v1754 = vadd.f32 %v1483, %v1753
          %v1755 = vpop.f32.mrf.mxu0
          %v1756 = vadd.f32 %v1483, %v1755
          %1757 = vmatmul.bf16.gmra.mxu0 %v1434
          %v1758 = vpop.f32.mrf.mxu0
          %v1759 = vadd.f32 %v1483, %v1758
          %v1760 = vpop.f32.mrf.mxu0
          %v1761 = vadd.f32 %v1483, %v1760
          %1762 = vmatmul.bf16.gmra.mxu0 %v1436
          %v1763 = vpop.f32.mrf.mxu0
          %v1764 = vadd.f32 %v1483, %v1763
          %v1765 = vpop.f32.mrf.mxu0
          %v1766 = vadd.f32 %v1483, %v1765
          %1767 = vmatmul.bf16.gmra.mxu0 %v1438
          %v1768 = vpop.f32.mrf.mxu0
          %v1769 = vadd.f32 %v1483, %v1768
          %v1770 = vpop.f32.mrf.mxu0
          %v1771 = vadd.f32 %v1483, %v1770
          %1772 = vmatmul.bf16.gmra.mxu0 %v1440
          %v1773 = vpop.f32.mrf.mxu0
          %v1774 = vadd.f32 %v1483, %v1773
          %v1775 = vpop.f32.mrf.mxu0
          %v1776 = vadd.f32 %v1483, %v1775
          %1777 = vmatmul.bf16.gmra.mxu0 %v1442
          %v1778 = vpop.f32.mrf.mxu0
          %v1779 = vadd.f32 %v1483, %v1778
          %v1780 = vpop.f32.mrf.mxu0
          %v1781 = vadd.f32 %v1483, %v1780
          %1782 = vmatmul.bf16.gmra.mxu0 %v1444
          %v1783 = vpop.f32.mrf.mxu0
          %v1784 = vadd.f32 %v1483, %v1783
          %v1785 = vpop.f32.mrf.mxu0
          %v1786 = vadd.f32 %v1483, %v1785
          %1787 = vmatmul.bf16.gmra.mxu0 %v1446
          %v1788 = vpop.f32.mrf.mxu0
          %v1789 = vadd.f32 %v1483, %v1788
          %v1790 = vpop.f32.mrf.mxu0
          %v1791 = vadd.f32 %v1483, %v1790
          %1792 = vdwg.mxu0
          %1793 = vmatpush.bf16.msra.mxu0 %v1613
          %1794 = vmatpush.bf16.msra.mxu0 %v1611
          %1795 = vmatpush.bf16.msra.mxu0 %v1609
          %1796 = vmatpush.bf16.msra.mxu0 %v1607
          %1797 = vmatpush.bf16.msra.mxu0 %v1605
          %1798 = vmatpush.bf16.msra.mxu0 %v1603
          %1799 = vmatpush.bf16.msra.mxu0 %v1601
          %1800 = vmatpush.bf16.msra.mxu0 %v1599
          %1801 = vmatmul.bf16.gmra.mxu0 %v1433
          %v1802 = vpop.f32.mrf.mxu0
          %v1803 = vadd.f32 %v1754, %v1802
          %v1804 = vpop.f32.mrf.mxu0
          %v1805 = vadd.f32 %v1756, %v1804
          %1806 = vmatmul.bf16.gmra.mxu0 %v1435
          %v1807 = vpop.f32.mrf.mxu0
          %v1808 = vadd.f32 %v1759, %v1807
          %v1809 = vpop.f32.mrf.mxu0
          %v1810 = vadd.f32 %v1761, %v1809
          %1811 = vmatmul.bf16.gmra.mxu0 %v1437
          %v1812 = vpop.f32.mrf.mxu0
          %v1813 = vadd.f32 %v1764, %v1812
          %v1814 = vpop.f32.mrf.mxu0
          %v1815 = vadd.f32 %v1766, %v1814
          %1816 = vmatmul.bf16.gmra.mxu0 %v1439
          %v1817 = vpop.f32.mrf.mxu0
          %v1818 = vadd.f32 %v1769, %v1817
          %v1819 = vpop.f32.mrf.mxu0
          %v1820 = vadd.f32 %v1771, %v1819
          %1821 = vmatmul.bf16.gmra.mxu0 %v1441
          %v1822 = vpop.f32.mrf.mxu0
          %v1823 = vadd.f32 %v1774, %v1822
          %v1824 = vpop.f32.mrf.mxu0
          %v1825 = vadd.f32 %v1776, %v1824
          %1826 = vmatmul.bf16.gmra.mxu0 %v1443
          %v1827 = vpop.f32.mrf.mxu0
          %v1828 = vadd.f32 %v1779, %v1827
          %v1829 = vpop.f32.mrf.mxu0
          %v1830 = vadd.f32 %v1781, %v1829
          %1831 = vmatmul.bf16.gmra.mxu0 %v1445
          %v1832 = vpop.f32.mrf.mxu0
          %v1833 = vadd.f32 %v1784, %v1832
          %v1834 = vpop.f32.mrf.mxu0
          %v1835 = vadd.f32 %v1786, %v1834
          %1836 = vmatmul.bf16.gmra.mxu0 %v1447
          %v1837 = vpop.f32.mrf.mxu0
          %v1838 = vadd.f32 %v1789, %v1837
          %v1839 = vpop.f32.mrf.mxu0
          %v1840 = vadd.f32 %v1791, %v1839
          %1841 = vdwg.mxu0
          %v1842 = vld [vmem:[%s780] sm:$0xff]
          %v1843 = vld [vmem:[%s780 + $0x8] sm:$0xff]
          %v1844 = vld [vmem:[%s780 + $0x10] sm:$0xff]
          %v1845 = vld [vmem:[%s780 + $0x18] sm:$0xff]
          %v1846 = vld [vmem:[%s780 + $0x20] sm:$0xff]
          %v1847 = vld [vmem:[%s780 + $0x28] sm:$0xff]
          %v1848 = vld [vmem:[%s780 + $0x30] sm:$0xff]
          %v1849 = vld [vmem:[%s780 + $0x38] sm:$0xff]
          %v1850 = vld [vmem:[%s780 + $0x40] sm:$0xff]
          %v1851 = vld [vmem:[%s780 + $0x48] sm:$0xff]
          %v1852 = vld [vmem:[%s780 + $0x50] sm:$0xff]
          %v1853 = vld [vmem:[%s780 + $0x58] sm:$0xff]
          %v1854 = vld [vmem:[%s780 + $0x60] sm:$0xff]
          %v1855 = vld [vmem:[%s780 + $0x68] sm:$0xff]
          %v1856 = vld [vmem:[%s780 + $0x70] sm:$0xff]
          %v1857 = vld [vmem:[%s780 + $0x78] sm:$0xff]
          %v1858 = vld [vmem:[%s780 + $0x80] sm:$0xff]
          %v1859 = vld [vmem:[%s780 + $0x88] sm:$0xff]
          %v1860 = vld [vmem:[%s780 + $0x90] sm:$0xff]
          %v1861 = vld [vmem:[%s780 + $0x98] sm:$0xff]
          %v1862 = vld [vmem:[%s780 + $0xa0] sm:$0xff]
          %v1863 = vld [vmem:[%s780 + $0xa8] sm:$0xff]
          %v1864 = vld [vmem:[%s780 + $0xb0] sm:$0xff]
          %v1865 = vld [vmem:[%s780 + $0xb8] sm:$0xff]
          %v1866 = vld [vmem:[%s780 + $0xc0] sm:$0xff]
          %v1867 = vld [vmem:[%s780 + $0xc8] sm:$0xff]
          %v1868 = vld [vmem:[%s780 + $0xd0] sm:$0xff]
          %v1869 = vld [vmem:[%s780 + $0xd8] sm:$0xff]
          %v1870 = vld [vmem:[%s780 + $0xe0] sm:$0xff]
          %v1871 = vld [vmem:[%s780 + $0xe8] sm:$0xff]
          %v1872 = vld [vmem:[%s780 + $0xf0] sm:$0xff]
          %v1873 = vld [vmem:[%s780 + $0xf8] sm:$0xff]
          %v1874 = vmul.f32 %v1705, 0.088388346
          %v1875 = vmul.f32 %v1707, 0.088388346
          %v1876 = vmul.f32 %v1710, 0.088388346
          %v1877 = vmul.f32 %v1712, 0.088388346
          %v1878 = vmul.f32 %v1715, 0.088388346
          %v1879 = vmul.f32 %v1717, 0.088388346
          %v1880 = vmul.f32 %v1720, 0.088388346
          %v1881 = vmul.f32 %v1722, 0.088388346
          %v1882 = vmul.f32 %v1725, 0.088388346
          %v1883 = vmul.f32 %v1727, 0.088388346
          %v1884 = vmul.f32 %v1730, 0.088388346
          %v1885 = vmul.f32 %v1732, 0.088388346
          %v1886 = vmul.f32 %v1735, 0.088388346
          %v1887 = vmul.f32 %v1737, 0.088388346
          %v1888 = vmul.f32 %v1740, 0.088388346
          %v1889 = vmul.f32 %v1742, 0.088388346
          %v1890 = vmul.f32 %v1874, %v1842
          %v1891 = vmul.f32 %v1875, %v1844
          %v1892 = vmul.f32 %v1876, %v1846
          %v1893 = vmul.f32 %v1877, %v1848
          %v1894 = vmul.f32 %v1878, %v1850
          %v1895 = vmul.f32 %v1879, %v1852
          %v1896 = vmul.f32 %v1880, %v1854
          %v1897 = vmul.f32 %v1881, %v1856
          %v1898 = vmul.f32 %v1882, %v1858
          %v1899 = vmul.f32 %v1883, %v1860
          %v1900 = vmul.f32 %v1884, %v1862
          %v1901 = vmul.f32 %v1885, %v1864
          %v1902 = vmul.f32 %v1886, %v1866
          %v1903 = vmul.f32 %v1887, %v1868
          %v1904 = vmul.f32 %v1888, %v1870
          %v1905 = vmul.f32 %v1889, %v1872
          %1906 = vrot.lane.b32.xlu0 %v1874, 64
          %v1907 = vpop.permute.xlu0 %1906
          %1908 = vrot.lane.b32.xlu0 %v1875, 64
          %v1909 = vpop.permute.xlu0 %1908
          %1910 = vrot.lane.b32.xlu0 %v1876, 64
          %v1911 = vpop.permute.xlu0 %1910
          %1912 = vrot.lane.b32.xlu0 %v1877, 64
          %v1913 = vpop.permute.xlu0 %1912
          %1914 = vrot.lane.b32.xlu0 %v1878, 64
          %v1915 = vpop.permute.xlu0 %1914
          %1916 = vrot.lane.b32.xlu0 %v1879, 64
          %v1917 = vpop.permute.xlu0 %1916
          %1918 = vrot.lane.b32.xlu0 %v1880, 64
          %v1919 = vpop.permute.xlu0 %1918
          %1920 = vrot.lane.b32.xlu0 %v1881, 64
          %v1921 = vpop.permute.xlu0 %1920
          %1922 = vrot.lane.b32.xlu0 %v1882, 64
          %v1923 = vpop.permute.xlu0 %1922
          %1924 = vrot.lane.b32.xlu0 %v1883, 64
          %v1925 = vpop.permute.xlu0 %1924
          %1926 = vrot.lane.b32.xlu0 %v1884, 64
          %v1927 = vpop.permute.xlu0 %1926
          %1928 = vrot.lane.b32.xlu0 %v1885, 64
          %v1929 = vpop.permute.xlu0 %1928
          %1930 = vrot.lane.b32.xlu0 %v1886, 64
          %v1931 = vpop.permute.xlu0 %1930
          %1932 = vrot.lane.b32.xlu0 %v1887, 64
          %v1933 = vpop.permute.xlu0 %1932
          %1934 = vrot.lane.b32.xlu0 %v1888, 64
          %v1935 = vpop.permute.xlu0 %1934
          %1936 = vrot.lane.b32.xlu0 %v1889, 64
          %v1937 = vpop.permute.xlu0 %1936
          %v1938 = vmul.f32 %v1907, %v1843
          %v1939 = vmul.f32 %v1909, %v1845
          %v1940 = vmul.f32 %v1911, %v1847
          %v1941 = vmul.f32 %v1913, %v1849
          %v1942 = vmul.f32 %v1915, %v1851
          %v1943 = vmul.f32 %v1917, %v1853
          %v1944 = vmul.f32 %v1919, %v1855
          %v1945 = vmul.f32 %v1921, %v1857
          %v1946 = vmul.f32 %v1923, %v1859
          %v1947 = vmul.f32 %v1925, %v1861
          %v1948 = vmul.f32 %v1927, %v1863
          %v1949 = vmul.f32 %v1929, %v1865
          %v1950 = vmul.f32 %v1931, %v1867
          %v1951 = vmul.f32 %v1933, %v1869
          %v1952 = vmul.f32 %v1935, %v1871
          %v1953 = vmul.f32 %v1937, %v1873
          %v1954 = vadd.f32 %v1890, %v1938
          %v1955 = vadd.f32 %v1891, %v1939
          %v1956 = vadd.f32 %v1892, %v1940
          %v1957 = vadd.f32 %v1893, %v1941
          %v1958 = vadd.f32 %v1894, %v1942
          %v1959 = vadd.f32 %v1895, %v1943
          %v1960 = vadd.f32 %v1896, %v1944
          %v1961 = vadd.f32 %v1897, %v1945
          %v1962 = vadd.f32 %v1898, %v1946
          %v1963 = vadd.f32 %v1899, %v1947
          %v1964 = vadd.f32 %v1900, %v1948
          %v1965 = vadd.f32 %v1901, %v1949
          %v1966 = vadd.f32 %v1902, %v1950
          %v1967 = vadd.f32 %v1903, %v1951
          %v1968 = vadd.f32 %v1904, %v1952
          %v1969 = vadd.f32 %v1905, %v1953
          %v1970 = vpack.c.bf16 %v1954, %v1954
          %v1971 = vpack.c.bf16 %v1955, %v1955
          %v1972 = vpack.c.bf16 %v1956, %v1956
          %v1973 = vpack.c.bf16 %v1957, %v1957
          %v1974 = vpack.c.bf16 %v1958, %v1958
          %v1975 = vpack.c.bf16 %v1959, %v1959
          %v1976 = vpack.c.bf16 %v1960, %v1960
          %v1977 = vpack.c.bf16 %v1961, %v1961
          %v1978 = vpack.c.bf16 %v1962, %v1962
          %v1979 = vpack.c.bf16 %v1963, %v1963
          %v1980 = vpack.c.bf16 %v1964, %v1964
          %v1981 = vpack.c.bf16 %v1965, %v1965
          %v1982 = vpack.c.bf16 %v1966, %v1966
          %v1983 = vpack.c.bf16 %v1967, %v1967
          %v1984 = vpack.c.bf16 %v1968, %v1968
          %v1985 = vpack.c.bf16 %v1969, %v1969
          %1986 = vst [vmem:[#allocation2] sm:$0xf] %v1970
          %1987 = vst [vmem:[#allocation2 + $0x4] sm:$0xf] %v1971
          %1988 = vst [vmem:[#allocation2 + $0x8] sm:$0xf] %v1972
          %1989 = vst [vmem:[#allocation2 + $0xc] sm:$0xf] %v1973
          %1990 = vst [vmem:[#allocation2 + $0x10] sm:$0xf] %v1974
          %1991 = vst [vmem:[#allocation2 + $0x14] sm:$0xf] %v1975
          %1992 = vst [vmem:[#allocation2 + $0x18] sm:$0xf] %v1976
          %1993 = vst [vmem:[#allocation2 + $0x1c] sm:$0xf] %v1977
          %1994 = vst [vmem:[#allocation2 + $0x20] sm:$0xf] %v1978
          %1995 = vst [vmem:[#allocation2 + $0x24] sm:$0xf] %v1979
          %1996 = vst [vmem:[#allocation2 + $0x28] sm:$0xf] %v1980
          %1997 = vst [vmem:[#allocation2 + $0x2c] sm:$0xf] %v1981
          %1998 = vst [vmem:[#allocation2 + $0x30] sm:$0xf] %v1982
          %1999 = vst [vmem:[#allocation2 + $0x34] sm:$0xf] %v1983
          %2000 = vst [vmem:[#allocation2 + $0x38] sm:$0xf] %v1984
          %2001 = vst [vmem:[#allocation2 + $0x3c] sm:$0xf] %v1985
          %v2002 = vmul.f32 %v1803, 0.088388346
          %v2003 = vmul.f32 %v1805, 0.088388346
          %v2004 = vmul.f32 %v1808, 0.088388346
          %v2005 = vmul.f32 %v1810, 0.088388346
          %v2006 = vmul.f32 %v1813, 0.088388346
          %v2007 = vmul.f32 %v1815, 0.088388346
          %v2008 = vmul.f32 %v1818, 0.088388346
          %v2009 = vmul.f32 %v1820, 0.088388346
          %v2010 = vmul.f32 %v1823, 0.088388346
          %v2011 = vmul.f32 %v1825, 0.088388346
          %v2012 = vmul.f32 %v1828, 0.088388346
          %v2013 = vmul.f32 %v1830, 0.088388346
          %v2014 = vmul.f32 %v1833, 0.088388346
          %v2015 = vmul.f32 %v1835, 0.088388346
          %v2016 = vmul.f32 %v1838, 0.088388346
          %v2017 = vmul.f32 %v1840, 0.088388346
          %v2018 = vmul.f32 %v2002, %v1842
          %v2019 = vmul.f32 %v2003, %v1844
          %v2020 = vmul.f32 %v2004, %v1846
          %v2021 = vmul.f32 %v2005, %v1848
          %v2022 = vmul.f32 %v2006, %v1850
          %v2023 = vmul.f32 %v2007, %v1852
          %v2024 = vmul.f32 %v2008, %v1854
          %v2025 = vmul.f32 %v2009, %v1856
          %v2026 = vmul.f32 %v2010, %v1858
          %v2027 = vmul.f32 %v2011, %v1860
          %v2028 = vmul.f32 %v2012, %v1862
          %v2029 = vmul.f32 %v2013, %v1864
          %v2030 = vmul.f32 %v2014, %v1866
          %v2031 = vmul.f32 %v2015, %v1868
          %v2032 = vmul.f32 %v2016, %v1870
          %v2033 = vmul.f32 %v2017, %v1872
          %2034 = vrot.lane.b32.xlu0 %v2002, 64
          %v2035 = vpop.permute.xlu0 %2034
          %2036 = vrot.lane.b32.xlu0 %v2003, 64
          %v2037 = vpop.permute.xlu0 %2036
          %2038 = vrot.lane.b32.xlu0 %v2004, 64
          %v2039 = vpop.permute.xlu0 %2038
          %2040 = vrot.lane.b32.xlu0 %v2005, 64
          %v2041 = vpop.permute.xlu0 %2040
          %2042 = vrot.lane.b32.xlu0 %v2006, 64
          %v2043 = vpop.permute.xlu0 %2042
          %2044 = vrot.lane.b32.xlu0 %v2007, 64
          %v2045 = vpop.permute.xlu0 %2044
          %2046 = vrot.lane.b32.xlu0 %v2008, 64
          %v2047 = vpop.permute.xlu0 %2046
          %2048 = vrot.lane.b32.xlu0 %v2009, 64
          %v2049 = vpop.permute.xlu0 %2048
          %2050 = vrot.lane.b32.xlu0 %v2010, 64
          %v2051 = vpop.permute.xlu0 %2050
          %2052 = vrot.lane.b32.xlu0 %v2011, 64
          %v2053 = vpop.permute.xlu0 %2052
          %2054 = vrot.lane.b32.xlu0 %v2012, 64
          %v2055 = vpop.permute.xlu0 %2054
          %2056 = vrot.lane.b32.xlu0 %v2013, 64
          %v2057 = vpop.permute.xlu0 %2056
          %2058 = vrot.lane.b32.xlu0 %v2014, 64
          %v2059 = vpop.permute.xlu0 %2058
          %2060 = vrot.lane.b32.xlu0 %v2015, 64
          %v2061 = vpop.permute.xlu0 %2060
          %2062 = vrot.lane.b32.xlu0 %v2016, 64
          %v2063 = vpop.permute.xlu0 %2062
          %2064 = vrot.lane.b32.xlu0 %v2017, 64
          %v2065 = vpop.permute.xlu0 %2064
          %v2066 = vmul.f32 %v2035, %v1843
          %v2067 = vmul.f32 %v2037, %v1845
          %v2068 = vmul.f32 %v2039, %v1847
          %v2069 = vmul.f32 %v2041, %v1849
          %v2070 = vmul.f32 %v2043, %v1851
          %v2071 = vmul.f32 %v2045, %v1853
          %v2072 = vmul.f32 %v2047, %v1855
          %v2073 = vmul.f32 %v2049, %v1857
          %v2074 = vmul.f32 %v2051, %v1859
          %v2075 = vmul.f32 %v2053, %v1861
          %v2076 = vmul.f32 %v2055, %v1863
          %v2077 = vmul.f32 %v2057, %v1865
          %v2078 = vmul.f32 %v2059, %v1867
          %v2079 = vmul.f32 %v2061, %v1869
          %v2080 = vmul.f32 %v2063, %v1871
          %v2081 = vmul.f32 %v2065, %v1873
          %v2082 = vadd.f32 %v2018, %v2066
          %v2083 = vadd.f32 %v2019, %v2067
          %v2084 = vadd.f32 %v2020, %v2068
          %v2085 = vadd.f32 %v2021, %v2069
          %v2086 = vadd.f32 %v2022, %v2070
          %v2087 = vadd.f32 %v2023, %v2071
          %v2088 = vadd.f32 %v2024, %v2072
          %v2089 = vadd.f32 %v2025, %v2073
          %v2090 = vadd.f32 %v2026, %v2074
          %v2091 = vadd.f32 %v2027, %v2075
          %v2092 = vadd.f32 %v2028, %v2076
          %v2093 = vadd.f32 %v2029, %v2077
          %v2094 = vadd.f32 %v2030, %v2078
          %v2095 = vadd.f32 %v2031, %v2079
          %v2096 = vadd.f32 %v2032, %v2080
          %v2097 = vadd.f32 %v2033, %v2081
          %v2098 = vpack.c.bf16 %v2082, %v2082
          %v2099 = vpack.c.bf16 %v2083, %v2083
          %v2100 = vpack.c.bf16 %v2084, %v2084
          %v2101 = vpack.c.bf16 %v2085, %v2085
          %v2102 = vpack.c.bf16 %v2086, %v2086
          %v2103 = vpack.c.bf16 %v2087, %v2087
          %v2104 = vpack.c.bf16 %v2088, %v2088
          %v2105 = vpack.c.bf16 %v2089, %v2089
          %v2106 = vpack.c.bf16 %v2090, %v2090
          %v2107 = vpack.c.bf16 %v2091, %v2091
          %v2108 = vpack.c.bf16 %v2092, %v2092
          %v2109 = vpack.c.bf16 %v2093, %v2093
          %v2110 = vpack.c.bf16 %v2094, %v2094
          %v2111 = vpack.c.bf16 %v2095, %v2095
          %v2112 = vpack.c.bf16 %v2096, %v2096
          %v2113 = vpack.c.bf16 %v2097, %v2097
          %s2114 = scalar_lea.vmem [#allocation2], 64
          %2115 = vst [vmem:[%s2114] sm:$0xf] %v2098
          %2116 = vst [vmem:[%s2114 + $0x4] sm:$0xf] %v2099
          %2117 = vst [vmem:[%s2114 + $0x8] sm:$0xf] %v2100
          %2118 = vst [vmem:[%s2114 + $0xc] sm:$0xf] %v2101
          %2119 = vst [vmem:[%s2114 + $0x10] sm:$0xf] %v2102
          %2120 = vst [vmem:[%s2114 + $0x14] sm:$0xf] %v2103
          %2121 = vst [vmem:[%s2114 + $0x18] sm:$0xf] %v2104
          %2122 = vst [vmem:[%s2114 + $0x1c] sm:$0xf] %v2105
          %2123 = vst [vmem:[%s2114 + $0x20] sm:$0xf] %v2106
          %2124 = vst [vmem:[%s2114 + $0x24] sm:$0xf] %v2107
          %2125 = vst [vmem:[%s2114 + $0x28] sm:$0xf] %v2108
          %2126 = vst [vmem:[%s2114 + $0x2c] sm:$0xf] %v2109
          %2127 = vst [vmem:[%s2114 + $0x30] sm:$0xf] %v2110
          %2128 = vst [vmem:[%s2114 + $0x34] sm:$0xf] %v2111
          %2129 = vst [vmem:[%s2114 + $0x38] sm:$0xf] %v2112
          %2130 = vst [vmem:[%s2114 + $0x3c] sm:$0xf] %v2113
          %vm2131 = vcmask 7168
          %2132 = vst.msk [vmem:[#allocation5] sm:$0xff] %vm2131, -inf
          %2133 = vst.msk [vmem:[#allocation5 + $0x8] sm:$0xff] %vm2131, -inf
          %2134 = vst.msk [vmem:[#allocation5 + $0x10] sm:$0xff] %vm2131, -inf
          %2135 = vst.msk [vmem:[#allocation5 + $0x18] sm:$0xff] %vm2131, -inf
          %2136 = vst.msk [vmem:[#allocation5 + $0x20] sm:$0xff] %vm2131, -inf
          %2137 = vst.msk [vmem:[#allocation5 + $0x28] sm:$0xff] %vm2131, -inf
          %2138 = vst.msk [vmem:[#allocation5 + $0x30] sm:$0xff] %vm2131, -inf
          %2139 = vst.msk [vmem:[#allocation5 + $0x38] sm:$0xff] %vm2131, -inf
          %2140 = vst.msk [vmem:[#allocation5 + $0x40] sm:$0xff] %vm2131, -inf
          %2141 = vst.msk [vmem:[#allocation5 + $0x48] sm:$0xff] %vm2131, -inf
          %2142 = vst.msk [vmem:[#allocation5 + $0x50] sm:$0xff] %vm2131, -inf
          %2143 = vst.msk [vmem:[#allocation5 + $0x58] sm:$0xff] %vm2131, -inf
          %2144 = vst.msk [vmem:[#allocation5 + $0x60] sm:$0xff] %vm2131, -inf
          %2145 = vst.msk [vmem:[#allocation5 + $0x68] sm:$0xff] %vm2131, -inf
          %2146 = vst.msk [vmem:[#allocation5 + $0x70] sm:$0xff] %vm2131, -inf
          %2147 = vst.msk [vmem:[#allocation5 + $0x78] sm:$0xff] %vm2131, -inf
          %2148 = vst.msk [vmem:[#allocation5 + $0x80] sm:$0xff] %vm2131, -inf
          %2149 = vst.msk [vmem:[#allocation5 + $0x88] sm:$0xff] %vm2131, -inf
          %2150 = vst.msk [vmem:[#allocation5 + $0x90] sm:$0xff] %vm2131, -inf
          %2151 = vst.msk [vmem:[#allocation5 + $0x98] sm:$0xff] %vm2131, -inf
          %2152 = vst.msk [vmem:[#allocation5 + $0xa0] sm:$0xff] %vm2131, -inf
          %2153 = vst.msk [vmem:[#allocation5 + $0xa8] sm:$0xff] %vm2131, -inf
          %2154 = vst.msk [vmem:[#allocation5 + $0xb0] sm:$0xff] %vm2131, -inf
          %2155 = vst.msk [vmem:[#allocation5 + $0xb8] sm:$0xff] %vm2131, -inf
          %2156 = vst.msk [vmem:[#allocation5 + $0xc0] sm:$0xff] %vm2131, -inf
          %2157 = vst.msk [vmem:[#allocation5 + $0xc8] sm:$0xff] %vm2131, -inf
          %2158 = vst.msk [vmem:[#allocation5 + $0xd0] sm:$0xff] %vm2131, -inf
          %2159 = vst.msk [vmem:[#allocation5 + $0xd8] sm:$0xff] %vm2131, -inf
          %2160 = vst.msk [vmem:[#allocation5 + $0xe0] sm:$0xff] %vm2131, -inf
          %2161 = vst.msk [vmem:[#allocation5 + $0xe8] sm:$0xff] %vm2131, -inf
          %2162 = vst.msk [vmem:[#allocation5 + $0xf0] sm:$0xff] %vm2131, -inf
          %2163 = vst.msk [vmem:[#allocation5 + $0xf8] sm:$0xff] %vm2131, -inf
          %2164 = vst.msk [vmem:[#allocation6] sm:$0xff] %vm2131, 0.0
          %2165 = vst.msk [vmem:[#allocation6 + $0x8] sm:$0xff] %vm2131, 0.0
          %2166 = vst.msk [vmem:[#allocation6 + $0x10] sm:$0xff] %vm2131, 0.0
          %2167 = vst.msk [vmem:[#allocation6 + $0x18] sm:$0xff] %vm2131, 0.0
          %2168 = vst.msk [vmem:[#allocation6 + $0x20] sm:$0xff] %vm2131, 0.0
          %2169 = vst.msk [vmem:[#allocation6 + $0x28] sm:$0xff] %vm2131, 0.0
          %2170 = vst.msk [vmem:[#allocation6 + $0x30] sm:$0xff] %vm2131, 0.0
          %2171 = vst.msk [vmem:[#allocation6 + $0x38] sm:$0xff] %vm2131, 0.0
          %2172 = vst.msk [vmem:[#allocation6 + $0x40] sm:$0xff] %vm2131, 0.0
          %2173 = vst.msk [vmem:[#allocation6 + $0x48] sm:$0xff] %vm2131, 0.0
          %2174 = vst.msk [vmem:[#allocation6 + $0x50] sm:$0xff] %vm2131, 0.0
          %2175 = vst.msk [vmem:[#allocation6 + $0x58] sm:$0xff] %vm2131, 0.0
          %2176 = vst.msk [vmem:[#allocation6 + $0x60] sm:$0xff] %vm2131, 0.0
          %2177 = vst.msk [vmem:[#allocation6 + $0x68] sm:$0xff] %vm2131, 0.0
          %2178 = vst.msk [vmem:[#allocation6 + $0x70] sm:$0xff] %vm2131, 0.0
          %2179 = vst.msk [vmem:[#allocation6 + $0x78] sm:$0xff] %vm2131, 0.0
          %2180 = vst.msk [vmem:[#allocation6 + $0x80] sm:$0xff] %vm2131, 0.0
          %2181 = vst.msk [vmem:[#allocation6 + $0x88] sm:$0xff] %vm2131, 0.0
          %2182 = vst.msk [vmem:[#allocation6 + $0x90] sm:$0xff] %vm2131, 0.0
          %2183 = vst.msk [vmem:[#allocation6 + $0x98] sm:$0xff] %vm2131, 0.0
          %2184 = vst.msk [vmem:[#allocation6 + $0xa0] sm:$0xff] %vm2131, 0.0
          %2185 = vst.msk [vmem:[#allocation6 + $0xa8] sm:$0xff] %vm2131, 0.0
          %2186 = vst.msk [vmem:[#allocation6 + $0xb0] sm:$0xff] %vm2131, 0.0
          %2187 = vst.msk [vmem:[#allocation6 + $0xb8] sm:$0xff] %vm2131, 0.0
          %2188 = vst.msk [vmem:[#allocation6 + $0xc0] sm:$0xff] %vm2131, 0.0
          %2189 = vst.msk [vmem:[#allocation6 + $0xc8] sm:$0xff] %vm2131, 0.0
          %2190 = vst.msk [vmem:[#allocation6 + $0xd0] sm:$0xff] %vm2131, 0.0
          %2191 = vst.msk [vmem:[#allocation6 + $0xd8] sm:$0xff] %vm2131, 0.0
          %2192 = vst.msk [vmem:[#allocation6 + $0xe0] sm:$0xff] %vm2131, 0.0
          %2193 = vst.msk [vmem:[#allocation6 + $0xe8] sm:$0xff] %vm2131, 0.0
          %2194 = vst.msk [vmem:[#allocation6 + $0xf0] sm:$0xff] %vm2131, 0.0
          %2195 = vst.msk [vmem:[#allocation6 + $0xf8] sm:$0xff] %vm2131, 0.0
          %2196 = vst [vmem:[#allocation7] sm:$0xff] 0.0
          %2197 = vst [vmem:[#allocation7 + $0x8] sm:$0xff] 0.0
          %2198 = vst [vmem:[#allocation7 + $0x10] sm:$0xff] 0.0
          %2199 = vst [vmem:[#allocation7 + $0x18] sm:$0xff] 0.0
          %2200 = vst [vmem:[#allocation7 + $0x20] sm:$0xff] 0.0
          %2201 = vst [vmem:[#allocation7 + $0x28] sm:$0xff] 0.0
          %2202 = vst [vmem:[#allocation7 + $0x30] sm:$0xff] 0.0
          %2203 = vst [vmem:[#allocation7 + $0x38] sm:$0xff] 0.0
          %2204 = vst [vmem:[#allocation7 + $0x40] sm:$0xff] 0.0
          %2205 = vst [vmem:[#allocation7 + $0x48] sm:$0xff] 0.0
          %2206 = vst [vmem:[#allocation7 + $0x50] sm:$0xff] 0.0
          %2207 = vst [vmem:[#allocation7 + $0x58] sm:$0xff] 0.0
          %2208 = vst [vmem:[#allocation7 + $0x60] sm:$0xff] 0.0
          %2209 = vst [vmem:[#allocation7 + $0x68] sm:$0xff] 0.0
          %2210 = vst [vmem:[#allocation7 + $0x70] sm:$0xff] 0.0
          %2211 = vst [vmem:[#allocation7 + $0x78] sm:$0xff] 0.0
          %2212 = vst [vmem:[#allocation7 + $0x80] sm:$0xff] 0.0
          %2213 = vst [vmem:[#allocation7 + $0x88] sm:$0xff] 0.0
          %2214 = vst [vmem:[#allocation7 + $0x90] sm:$0xff] 0.0
          %2215 = vst [vmem:[#allocation7 + $0x98] sm:$0xff] 0.0
          %2216 = vst [vmem:[#allocation7 + $0xa0] sm:$0xff] 0.0
          %2217 = vst [vmem:[#allocation7 + $0xa8] sm:$0xff] 0.0
          %2218 = vst [vmem:[#allocation7 + $0xb0] sm:$0xff] 0.0
          %2219 = vst [vmem:[#allocation7 + $0xb8] sm:$0xff] 0.0
          %2220 = vst [vmem:[#allocation7 + $0xc0] sm:$0xff] 0.0
          %2221 = vst [vmem:[#allocation7 + $0xc8] sm:$0xff] 0.0
          %2222 = vst [vmem:[#allocation7 + $0xd0] sm:$0xff] 0.0
          %2223 = vst [vmem:[#allocation7 + $0xd8] sm:$0xff] 0.0
          %2224 = vst [vmem:[#allocation7 + $0xe0] sm:$0xff] 0.0
          %2225 = vst [vmem:[#allocation7 + $0xe8] sm:$0xff] 0.0
          %2226 = vst [vmem:[#allocation7 + $0xf0] sm:$0xff] 0.0
          %2227 = vst [vmem:[#allocation7 + $0xf8] sm:$0xff] 0.0
        $region148: #{tpu_custom_call.1} parent=91 // pred_fallthru
          _
        %p2228 = scmp.eq.s32.totalorder %s51, 0
        // Predicated region
        $region149: #{tpu_custom_call.1} parent=91 // pred_check
          %p2229 = pneg %p2228
        $region150: #{tpu_custom_call.1} parent=91 // pred_check_branch
          %2231 = sbr.rel (%p2229) target = $region152
        $region151: #{tpu_custom_call.1} parent=91 // pred_region
          %v2232 = vld [vmem:[%s770] sm:$0xff]
          %v2233 = vld [vmem:[%s770 + $0x8] sm:$0xff]
          %v2234 = vld [vmem:[%s770 + $0x10] sm:$0xff]
          %v2235 = vld [vmem:[%s770 + $0x18] sm:$0xff]
          %v2236 = vld [vmem:[%s770 + $0x20] sm:$0xff]
          %v2237 = vld [vmem:[%s770 + $0x28] sm:$0xff]
          %v2238 = vld [vmem:[%s770 + $0x30] sm:$0xff]
          %v2239 = vld [vmem:[%s770 + $0x38] sm:$0xff]
          %v2240 = vld [vmem:[%s770 + $0x40] sm:$0xff]
          %v2241 = vld [vmem:[%s770 + $0x48] sm:$0xff]
          %v2242 = vld [vmem:[%s770 + $0x50] sm:$0xff]
          %v2243 = vld [vmem:[%s770 + $0x58] sm:$0xff]
          %v2244 = vld [vmem:[%s770 + $0x60] sm:$0xff]
          %v2245 = vld [vmem:[%s770 + $0x68] sm:$0xff]
          %v2246 = vld [vmem:[%s770 + $0x70] sm:$0xff]
          %v2247 = vld [vmem:[%s770 + $0x78] sm:$0xff]
          %v2248 = vld [vmem:[%s770 + $0x80] sm:$0xff]
          %v2249 = vld [vmem:[%s770 + $0x88] sm:$0xff]
          %v2250 = vld [vmem:[%s770 + $0x90] sm:$0xff]
          %v2251 = vld [vmem:[%s770 + $0x98] sm:$0xff]
          %v2252 = vld [vmem:[%s770 + $0xa0] sm:$0xff]
          %v2253 = vld [vmem:[%s770 + $0xa8] sm:$0xff]
          %v2254 = vld [vmem:[%s770 + $0xb0] sm:$0xff]
          %v2255 = vld [vmem:[%s770 + $0xb8] sm:$0xff]
          %v2256 = vld [vmem:[%s770 + $0xc0] sm:$0xff]
          %v2257 = vld [vmem:[%s770 + $0xc8] sm:$0xff]
          %v2258 = vld [vmem:[%s770 + $0xd0] sm:$0xff]
          %v2259 = vld [vmem:[%s770 + $0xd8] sm:$0xff]
          %v2260 = vld [vmem:[%s770 + $0xe0] sm:$0xff]
          %v2261 = vld [vmem:[%s770 + $0xe8] sm:$0xff]
          %v2262 = vld [vmem:[%s770 + $0xf0] sm:$0xff]
          %v2263 = vld [vmem:[%s770 + $0xf8] sm:$0xff]
          %v2264 = vld [vmem:[#allocation17] sm:$0x3]
          %v2265 = vld [vmem:[#allocation18] sm:$0x3]
          %v2266 = vadd.f32 %v2232, %v2233
          %2267 = vadd.xlane.f32.xlu0 %v2266
          %v2268 = vpop.xlane.xlu0 %2267
          %v2269 = vadd.f32 %v2234, %v2235
          %2270 = vadd.xlane.f32.xlu0 %v2269
          %v2271 = vpop.xlane.xlu0 %2270
          %v2272 = vadd.f32 %v2236, %v2237
          %2273 = vadd.xlane.f32.xlu0 %v2272
          %v2274 = vpop.xlane.xlu0 %2273
          %v2275 = vadd.f32 %v2238, %v2239
          %2276 = vadd.xlane.f32.xlu0 %v2275
          %v2277 = vpop.xlane.xlu0 %2276
          %v2278 = vadd.f32 %v2240, %v2241
          %2279 = vadd.xlane.f32.xlu0 %v2278
          %v2280 = vpop.xlane.xlu0 %2279
          %v2281 = vadd.f32 %v2242, %v2243
          %2282 = vadd.xlane.f32.xlu0 %v2281
          %v2283 = vpop.xlane.xlu0 %2282
          %v2284 = vadd.f32 %v2244, %v2245
          %2285 = vadd.xlane.f32.xlu0 %v2284
          %v2286 = vpop.xlane.xlu0 %2285
          %v2287 = vadd.f32 %v2246, %v2247
          %2288 = vadd.xlane.f32.xlu0 %v2287
          %v2289 = vpop.xlane.xlu0 %2288
          %v2290 = vadd.f32 %v2248, %v2249
          %2291 = vadd.xlane.f32.xlu0 %v2290
          %v2292 = vpop.xlane.xlu0 %2291
          %v2293 = vadd.f32 %v2250, %v2251
          %2294 = vadd.xlane.f32.xlu0 %v2293
          %v2295 = vpop.xlane.xlu0 %2294
          %v2296 = vadd.f32 %v2252, %v2253
          %2297 = vadd.xlane.f32.xlu0 %v2296
          %v2298 = vpop.xlane.xlu0 %2297
          %v2299 = vadd.f32 %v2254, %v2255
          %2300 = vadd.xlane.f32.xlu0 %v2299
          %v2301 = vpop.xlane.xlu0 %2300
          %v2302 = vadd.f32 %v2256, %v2257
          %2303 = vadd.xlane.f32.xlu0 %v2302
          %v2304 = vpop.xlane.xlu0 %2303
          %v2305 = vadd.f32 %v2258, %v2259
          %2306 = vadd.xlane.f32.xlu0 %v2305
          %v2307 = vpop.xlane.xlu0 %2306
          %v2308 = vadd.f32 %v2260, %v2261
          %2309 = vadd.xlane.f32.xlu0 %v2308
          %v2310 = vpop.xlane.xlu0 %2309
          %v2311 = vadd.f32 %v2262, %v2263
          %2312 = vadd.xlane.f32.xlu0 %v2311
          %v2313 = vpop.xlane.xlu0 %2312
          %v2314 = vrcp.pop 256.0
          %v2315 = vmul.f32 256.0, %v2314
          %v2316 = vsub.f32 1.0, %v2315
          %v2317 = vmul.f32 %v2314, %v2316
          %v2318 = vadd.f32 %v2314, %v2317
          %vm2319 = vweird.f32 %v2314
          %v2320 = vsel %vm2319, %v2314, %v2318
          %v2321 = vmul.f32 %v2268, %v2320
          %v2322 = vmul.f32 %v2271, %v2320
          %v2323 = vmul.f32 %v2274, %v2320
          %v2324 = vmul.f32 %v2277, %v2320
          %v2325 = vmul.f32 %v2280, %v2320
          %v2326 = vmul.f32 %v2283, %v2320
          %v2327 = vmul.f32 %v2286, %v2320
          %v2328 = vmul.f32 %v2289, %v2320
          %v2329 = vmul.f32 %v2292, %v2320
          %v2330 = vmul.f32 %v2295, %v2320
          %v2331 = vmul.f32 %v2298, %v2320
          %v2332 = vmul.f32 %v2301, %v2320
          %v2333 = vmul.f32 %v2304, %v2320
          %v2334 = vmul.f32 %v2307, %v2320
          %v2335 = vmul.f32 %v2310, %v2320
          %v2336 = vmul.f32 %v2313, %v2320
          %v2337 = vsub.f32 %v2232, %v2321
          %v2338 = vsub.f32 %v2233, %v2321
          %v2339 = vsub.f32 %v2234, %v2322
          %v2340 = vsub.f32 %v2235, %v2322
          %v2341 = vsub.f32 %v2236, %v2323
          %v2342 = vsub.f32 %v2237, %v2323
          %v2343 = vsub.f32 %v2238, %v2324
          %v2344 = vsub.f32 %v2239, %v2324
          %v2345 = vsub.f32 %v2240, %v2325
          %v2346 = vsub.f32 %v2241, %v2325
          %v2347 = vsub.f32 %v2242, %v2326
          %v2348 = vsub.f32 %v2243, %v2326
          %v2349 = vsub.f32 %v2244, %v2327
          %v2350 = vsub.f32 %v2245, %v2327
          %v2351 = vsub.f32 %v2246, %v2328
          %v2352 = vsub.f32 %v2247, %v2328
          %v2353 = vsub.f32 %v2248, %v2329
          %v2354 = vsub.f32 %v2249, %v2329
          %v2355 = vsub.f32 %v2250, %v2330
          %v2356 = vsub.f32 %v2251, %v2330
          %v2357 = vsub.f32 %v2252, %v2331
          %v2358 = vsub.f32 %v2253, %v2331
          %v2359 = vsub.f32 %v2254, %v2332
          %v2360 = vsub.f32 %v2255, %v2332
          %v2361 = vsub.f32 %v2256, %v2333
          %v2362 = vsub.f32 %v2257, %v2333
          %v2363 = vsub.f32 %v2258, %v2334
          %v2364 = vsub.f32 %v2259, %v2334
          %v2365 = vsub.f32 %v2260, %v2335
          %v2366 = vsub.f32 %v2261, %v2335
          %v2367 = vsub.f32 %v2262, %v2336
          %v2368 = vsub.f32 %v2263, %v2336
          %v2369 = vmul.f32 %v2337, %v2337
          %v2370 = vmul.f32 %v2338, %v2338
          %v2371 = vmul.f32 %v2339, %v2339
          %v2372 = vmul.f32 %v2340, %v2340
          %v2373 = vmul.f32 %v2341, %v2341
          %v2374 = vmul.f32 %v2342, %v2342
          %v2375 = vmul.f32 %v2343, %v2343
          %v2376 = vmul.f32 %v2344, %v2344
          %v2377 = vmul.f32 %v2345, %v2345
          %v2378 = vmul.f32 %v2346, %v2346
          %v2379 = vmul.f32 %v2347, %v2347
          %v2380 = vmul.f32 %v2348, %v2348
          %v2381 = vmul.f32 %v2349, %v2349
          %v2382 = vmul.f32 %v2350, %v2350
          %v2383 = vmul.f32 %v2351, %v2351
          %v2384 = vmul.f32 %v2352, %v2352
          %v2385 = vmul.f32 %v2353, %v2353
          %v2386 = vmul.f32 %v2354, %v2354
          %v2387 = vmul.f32 %v2355, %v2355
          %v2388 = vmul.f32 %v2356, %v2356
          %v2389 = vmul.f32 %v2357, %v2357
          %v2390 = vmul.f32 %v2358, %v2358
          %v2391 = vmul.f32 %v2359, %v2359
          %v2392 = vmul.f32 %v2360, %v2360
          %v2393 = vmul.f32 %v2361, %v2361
          %v2394 = vmul.f32 %v2362, %v2362
          %v2395 = vmul.f32 %v2363, %v2363
          %v2396 = vmul.f32 %v2364, %v2364
          %v2397 = vmul.f32 %v2365, %v2365
          %v2398 = vmul.f32 %v2366, %v2366
          %v2399 = vmul.f32 %v2367, %v2367
          %v2400 = vmul.f32 %v2368, %v2368
          %v2401 = vadd.f32 %v2369, %v2370
          %2402 = vadd.xlane.f32.xlu0 %v2401
          %v2403 = vpop.xlane.xlu0 %2402
          %v2404 = vadd.f32 %v2371, %v2372
          %2405 = vadd.xlane.f32.xlu0 %v2404
          %v2406 = vpop.xlane.xlu0 %2405
          %v2407 = vadd.f32 %v2373, %v2374
          %2408 = vadd.xlane.f32.xlu0 %v2407
          %v2409 = vpop.xlane.xlu0 %2408
          %v2410 = vadd.f32 %v2375, %v2376
          %2411 = vadd.xlane.f32.xlu0 %v2410
          %v2412 = vpop.xlane.xlu0 %2411
          %v2413 = vadd.f32 %v2377, %v2378
          %2414 = vadd.xlane.f32.xlu0 %v2413
          %v2415 = vpop.xlane.xlu0 %2414
          %v2416 = vadd.f32 %v2379, %v2380
          %2417 = vadd.xlane.f32.xlu0 %v2416
          %v2418 = vpop.xlane.xlu0 %2417
          %v2419 = vadd.f32 %v2381, %v2382
          %2420 = vadd.xlane.f32.xlu0 %v2419
          %v2421 = vpop.xlane.xlu0 %2420
          %v2422 = vadd.f32 %v2383, %v2384
          %2423 = vadd.xlane.f32.xlu0 %v2422
          %v2424 = vpop.xlane.xlu0 %2423
          %v2425 = vadd.f32 %v2385, %v2386
          %2426 = vadd.xlane.f32.xlu0 %v2425
          %v2427 = vpop.xlane.xlu0 %2426
          %v2428 = vadd.f32 %v2387, %v2388
          %2429 = vadd.xlane.f32.xlu0 %v2428
          %v2430 = vpop.xlane.xlu0 %2429
          %v2431 = vadd.f32 %v2389, %v2390
          %2432 = vadd.xlane.f32.xlu0 %v2431
          %v2433 = vpop.xlane.xlu0 %2432
          %v2434 = vadd.f32 %v2391, %v2392
          %2435 = vadd.xlane.f32.xlu0 %v2434
          %v2436 = vpop.xlane.xlu0 %2435
          %v2437 = vadd.f32 %v2393, %v2394
          %2438 = vadd.xlane.f32.xlu0 %v2437
          %v2439 = vpop.xlane.xlu0 %2438
          %v2440 = vadd.f32 %v2395, %v2396
          %2441 = vadd.xlane.f32.xlu0 %v2440
          %v2442 = vpop.xlane.xlu0 %2441
          %v2443 = vadd.f32 %v2397, %v2398
          %2444 = vadd.xlane.f32.xlu0 %v2443
          %v2445 = vpop.xlane.xlu0 %2444
          %v2446 = vadd.f32 %v2399, %v2400
          %2447 = vadd.xlane.f32.xlu0 %v2446
          %v2448 = vpop.xlane.xlu0 %2447
          %v2449 = vmul.f32 %v2403, %v2320
          %v2450 = vmul.f32 %v2406, %v2320
          %v2451 = vmul.f32 %v2409, %v2320
          %v2452 = vmul.f32 %v2412, %v2320
          %v2453 = vmul.f32 %v2415, %v2320
          %v2454 = vmul.f32 %v2418, %v2320
          %v2455 = vmul.f32 %v2421, %v2320
          %v2456 = vmul.f32 %v2424, %v2320
          %v2457 = vmul.f32 %v2427, %v2320
          %v2458 = vmul.f32 %v2430, %v2320
          %v2459 = vmul.f32 %v2433, %v2320
          %v2460 = vmul.f32 %v2436, %v2320
          %v2461 = vmul.f32 %v2439, %v2320
          %v2462 = vmul.f32 %v2442, %v2320
          %v2463 = vmul.f32 %v2445, %v2320
          %v2464 = vmul.f32 %v2448, %v2320
          %v2465 = vadd.f32 %v2449, 1e-05
          %v2466 = vadd.f32 %v2450, 1e-05
          %v2467 = vadd.f32 %v2451, 1e-05
          %v2468 = vadd.f32 %v2452, 1e-05
          %v2469 = vadd.f32 %v2453, 1e-05
          %v2470 = vadd.f32 %v2454, 1e-05
          %v2471 = vadd.f32 %v2455, 1e-05
          %v2472 = vadd.f32 %v2456, 1e-05
          %v2473 = vadd.f32 %v2457, 1e-05
          %v2474 = vadd.f32 %v2458, 1e-05
          %v2475 = vadd.f32 %v2459, 1e-05
          %v2476 = vadd.f32 %v2460, 1e-05
          %v2477 = vadd.f32 %v2461, 1e-05
          %v2478 = vadd.f32 %v2462, 1e-05
          %v2479 = vadd.f32 %v2463, 1e-05
          %v2480 = vadd.f32 %v2464, 1e-05
          %v2481 = vrsqrt.pop %v2465
          %v2482 = vmul.f32 %v2481, %v2465
          %v2483 = vmul.f32 %v2482, %v2481
          %v2484 = vmul.f32 0.5, %v2483
          %v2485 = vsub.f32 1.5, %v2484
          %v2486 = vmul.f32 %v2481, %v2485
          %vm2487 = vweird.f32 %v2465
          %vm2488 = vweird.f32 %v2481
          %vm2489 = vmor %vm2487, %vm2488
          %v2490 = vsel %vm2489, %v2481, %v2486
          %v2491 = vrsqrt.pop %v2466
          %v2492 = vmul.f32 %v2491, %v2466
          %v2493 = vmul.f32 %v2492, %v2491
          %v2494 = vmul.f32 0.5, %v2493
          %v2495 = vsub.f32 1.5, %v2494
          %v2496 = vmul.f32 %v2491, %v2495
          %vm2497 = vweird.f32 %v2466
          %vm2498 = vweird.f32 %v2491
          %vm2499 = vmor %vm2497, %vm2498
          %v2500 = vsel %vm2499, %v2491, %v2496
          %v2501 = vrsqrt.pop %v2467
          %v2502 = vmul.f32 %v2501, %v2467
          %v2503 = vmul.f32 %v2502, %v2501
          %v2504 = vmul.f32 0.5, %v2503
          %v2505 = vsub.f32 1.5, %v2504
          %v2506 = vmul.f32 %v2501, %v2505
          %vm2507 = vweird.f32 %v2467
          %vm2508 = vweird.f32 %v2501
          %vm2509 = vmor %vm2507, %vm2508
          %v2510 = vsel %vm2509, %v2501, %v2506
          %v2511 = vrsqrt.pop %v2468
          %v2512 = vmul.f32 %v2511, %v2468
          %v2513 = vmul.f32 %v2512, %v2511
          %v2514 = vmul.f32 0.5, %v2513
          %v2515 = vsub.f32 1.5, %v2514
          %v2516 = vmul.f32 %v2511, %v2515
          %vm2517 = vweird.f32 %v2468
          %vm2518 = vweird.f32 %v2511
          %vm2519 = vmor %vm2517, %vm2518
          %v2520 = vsel %vm2519, %v2511, %v2516
          %v2521 = vrsqrt.pop %v2469
          %v2522 = vmul.f32 %v2521, %v2469
          %v2523 = vmul.f32 %v2522, %v2521
          %v2524 = vmul.f32 0.5, %v2523
          %v2525 = vsub.f32 1.5, %v2524
          %v2526 = vmul.f32 %v2521, %v2525
          %vm2527 = vweird.f32 %v2469
          %vm2528 = vweird.f32 %v2521
          %vm2529 = vmor %vm2527, %vm2528
          %v2530 = vsel %vm2529, %v2521, %v2526
          %v2531 = vrsqrt.pop %v2470
          %v2532 = vmul.f32 %v2531, %v2470
          %v2533 = vmul.f32 %v2532, %v2531
          %v2534 = vmul.f32 0.5, %v2533
          %v2535 = vsub.f32 1.5, %v2534
          %v2536 = vmul.f32 %v2531, %v2535
          %vm2537 = vweird.f32 %v2470
          %vm2538 = vweird.f32 %v2531
          %vm2539 = vmor %vm2537, %vm2538
          %v2540 = vsel %vm2539, %v2531, %v2536
          %v2541 = vrsqrt.pop %v2471
          %v2542 = vmul.f32 %v2541, %v2471
          %v2543 = vmul.f32 %v2542, %v2541
          %v2544 = vmul.f32 0.5, %v2543
          %v2545 = vsub.f32 1.5, %v2544
          %v2546 = vmul.f32 %v2541, %v2545
          %vm2547 = vweird.f32 %v2471
          %vm2548 = vweird.f32 %v2541
          %vm2549 = vmor %vm2547, %vm2548
          %v2550 = vsel %vm2549, %v2541, %v2546
          %v2551 = vrsqrt.pop %v2472
          %v2552 = vmul.f32 %v2551, %v2472
          %v2553 = vmul.f32 %v2552, %v2551
          %v2554 = vmul.f32 0.5, %v2553
          %v2555 = vsub.f32 1.5, %v2554
          %v2556 = vmul.f32 %v2551, %v2555
          %vm2557 = vweird.f32 %v2472
          %vm2558 = vweird.f32 %v2551
          %vm2559 = vmor %vm2557, %vm2558
          %v2560 = vsel %vm2559, %v2551, %v2556
          %v2561 = vrsqrt.pop %v2473
          %v2562 = vmul.f32 %v2561, %v2473
          %v2563 = vmul.f32 %v2562, %v2561
          %v2564 = vmul.f32 0.5, %v2563
          %v2565 = vsub.f32 1.5, %v2564
          %v2566 = vmul.f32 %v2561, %v2565
          %vm2567 = vweird.f32 %v2473
          %vm2568 = vweird.f32 %v2561
          %vm2569 = vmor %vm2567, %vm2568
          %v2570 = vsel %vm2569, %v2561, %v2566
          %v2571 = vrsqrt.pop %v2474
          %v2572 = vmul.f32 %v2571, %v2474
          %v2573 = vmul.f32 %v2572, %v2571
          %v2574 = vmul.f32 0.5, %v2573
          %v2575 = vsub.f32 1.5, %v2574
          %v2576 = vmul.f32 %v2571, %v2575
          %vm2577 = vweird.f32 %v2474
          %vm2578 = vweird.f32 %v2571
          %vm2579 = vmor %vm2577, %vm2578
          %v2580 = vsel %vm2579, %v2571, %v2576
          %v2581 = vrsqrt.pop %v2475
          %v2582 = vmul.f32 %v2581, %v2475
          %v2583 = vmul.f32 %v2582, %v2581
          %v2584 = vmul.f32 0.5, %v2583
          %v2585 = vsub.f32 1.5, %v2584
          %v2586 = vmul.f32 %v2581, %v2585
          %vm2587 = vweird.f32 %v2475
          %vm2588 = vweird.f32 %v2581
          %vm2589 = vmor %vm2587, %vm2588
          %v2590 = vsel %vm2589, %v2581, %v2586
          %v2591 = vrsqrt.pop %v2476
          %v2592 = vmul.f32 %v2591, %v2476
          %v2593 = vmul.f32 %v2592, %v2591
          %v2594 = vmul.f32 0.5, %v2593
          %v2595 = vsub.f32 1.5, %v2594
          %v2596 = vmul.f32 %v2591, %v2595
          %vm2597 = vweird.f32 %v2476
          %vm2598 = vweird.f32 %v2591
          %vm2599 = vmor %vm2597, %vm2598
          %v2600 = vsel %vm2599, %v2591, %v2596
          %v2601 = vrsqrt.pop %v2477
          %v2602 = vmul.f32 %v2601, %v2477
          %v2603 = vmul.f32 %v2602, %v2601
          %v2604 = vmul.f32 0.5, %v2603
          %v2605 = vsub.f32 1.5, %v2604
          %v2606 = vmul.f32 %v2601, %v2605
          %vm2607 = vweird.f32 %v2477
          %vm2608 = vweird.f32 %v2601
          %vm2609 = vmor %vm2607, %vm2608
          %v2610 = vsel %vm2609, %v2601, %v2606
          %v2611 = vrsqrt.pop %v2478
          %v2612 = vmul.f32 %v2611, %v2478
          %v2613 = vmul.f32 %v2612, %v2611
          %v2614 = vmul.f32 0.5, %v2613
          %v2615 = vsub.f32 1.5, %v2614
          %v2616 = vmul.f32 %v2611, %v2615
          %vm2617 = vweird.f32 %v2478
          %vm2618 = vweird.f32 %v2611
          %vm2619 = vmor %vm2617, %vm2618
          %v2620 = vsel %vm2619, %v2611, %v2616
          %v2621 = vrsqrt.pop %v2479
          %v2622 = vmul.f32 %v2621, %v2479
          %v2623 = vmul.f32 %v2622, %v2621
          %v2624 = vmul.f32 0.5, %v2623
          %v2625 = vsub.f32 1.5, %v2624
          %v2626 = vmul.f32 %v2621, %v2625
          %vm2627 = vweird.f32 %v2479
          %vm2628 = vweird.f32 %v2621
          %vm2629 = vmor %vm2627, %vm2628
          %v2630 = vsel %vm2629, %v2621, %v2626
          %v2631 = vrsqrt.pop %v2480
          %v2632 = vmul.f32 %v2631, %v2480
          %v2633 = vmul.f32 %v2632, %v2631
          %v2634 = vmul.f32 0.5, %v2633
          %v2635 = vsub.f32 1.5, %v2634
          %v2636 = vmul.f32 %v2631, %v2635
          %vm2637 = vweird.f32 %v2480
          %vm2638 = vweird.f32 %v2631
          %vm2639 = vmor %vm2637, %vm2638
          %v2640 = vsel %vm2639, %v2631, %v2636
          %v2641 = vmul.f32 %v2337, %v2490
          %v2642 = vmul.f32 %v2338, %v2490
          %v2643 = vmul.f32 %v2339, %v2500
          %v2644 = vmul.f32 %v2340, %v2500
          %v2645 = vmul.f32 %v2341, %v2510
          %v2646 = vmul.f32 %v2342, %v2510
          %v2647 = vmul.f32 %v2343, %v2520
          %v2648 = vmul.f32 %v2344, %v2520
          %v2649 = vmul.f32 %v2345, %v2530
          %v2650 = vmul.f32 %v2346, %v2530
          %v2651 = vmul.f32 %v2347, %v2540
          %v2652 = vmul.f32 %v2348, %v2540
          %v2653 = vmul.f32 %v2349, %v2550
          %v2654 = vmul.f32 %v2350, %v2550
          %v2655 = vmul.f32 %v2351, %v2560
          %v2656 = vmul.f32 %v2352, %v2560
          %v2657 = vmul.f32 %v2353, %v2570
          %v2658 = vmul.f32 %v2354, %v2570
          %v2659 = vmul.f32 %v2355, %v2580
          %v2660 = vmul.f32 %v2356, %v2580
          %v2661 = vmul.f32 %v2357, %v2590
          %v2662 = vmul.f32 %v2358, %v2590
          %v2663 = vmul.f32 %v2359, %v2600
          %v2664 = vmul.f32 %v2360, %v2600
          %v2665 = vmul.f32 %v2361, %v2610
          %v2666 = vmul.f32 %v2362, %v2610
          %v2667 = vmul.f32 %v2363, %v2620
          %v2668 = vmul.f32 %v2364, %v2620
          %v2669 = vmul.f32 %v2365, %v2630
          %v2670 = vmul.f32 %v2366, %v2630
          %v2671 = vmul.f32 %v2367, %v2640
          %v2672 = vmul.f32 %v2368, %v2640
          %v2674 = vperm.slane %v2264, 0
          %v2675 = vperm.slane %v2264, 1
          %v2678 = vmul.f32 %v2641, %v2674
          %v2679 = vmul.f32 %v2642, %v2675
          %v2680 = vmul.f32 %v2643, %v2674
          %v2681 = vmul.f32 %v2644, %v2675
          %v2682 = vmul.f32 %v2645, %v2674
          %v2683 = vmul.f32 %v2646, %v2675
          %v2684 = vmul.f32 %v2647, %v2674
          %v2685 = vmul.f32 %v2648, %v2675
          %v2686 = vmul.f32 %v2649, %v2674
          %v2687 = vmul.f32 %v2650, %v2675
          %v2688 = vmul.f32 %v2651, %v2674
          %v2689 = vmul.f32 %v2652, %v2675
          %v2690 = vmul.f32 %v2653, %v2674
          %v2691 = vmul.f32 %v2654, %v2675
          %v2692 = vmul.f32 %v2655, %v2674
          %v2693 = vmul.f32 %v2656, %v2675
          %v2694 = vmul.f32 %v2657, %v2674
          %v2695 = vmul.f32 %v2658, %v2675
          %v2696 = vmul.f32 %v2659, %v2674
          %v2697 = vmul.f32 %v2660, %v2675
          %v2698 = vmul.f32 %v2661, %v2674
          %v2699 = vmul.f32 %v2662, %v2675
          %v2700 = vmul.f32 %v2663, %v2674
          %v2701 = vmul.f32 %v2664, %v2675
          %v2702 = vmul.f32 %v2665, %v2674
          %v2703 = vmul.f32 %v2666, %v2675
          %v2704 = vmul.f32 %v2667, %v2674
          %v2705 = vmul.f32 %v2668, %v2675
          %v2706 = vmul.f32 %v2669, %v2674
          %v2707 = vmul.f32 %v2670, %v2675
          %v2708 = vmul.f32 %v2671, %v2674
          %v2709 = vmul.f32 %v2672, %v2675
          %v2711 = vperm.slane %v2265, 0
          %v2712 = vperm.slane %v2265, 1
          %v2715 = vadd.f32 %v2678, %v2711
          %v2716 = vadd.f32 %v2679, %v2712
          %v2717 = vadd.f32 %v2680, %v2711
          %v2718 = vadd.f32 %v2681, %v2712
          %v2719 = vadd.f32 %v2682, %v2711
          %v2720 = vadd.f32 %v2683, %v2712
          %v2721 = vadd.f32 %v2684, %v2711
          %v2722 = vadd.f32 %v2685, %v2712
          %v2723 = vadd.f32 %v2686, %v2711
          %v2724 = vadd.f32 %v2687, %v2712
          %v2725 = vadd.f32 %v2688, %v2711
          %v2726 = vadd.f32 %v2689, %v2712
          %v2727 = vadd.f32 %v2690, %v2711
          %v2728 = vadd.f32 %v2691, %v2712
          %v2729 = vadd.f32 %v2692, %v2711
          %v2730 = vadd.f32 %v2693, %v2712
          %v2731 = vadd.f32 %v2694, %v2711
          %v2732 = vadd.f32 %v2695, %v2712
          %v2733 = vadd.f32 %v2696, %v2711
          %v2734 = vadd.f32 %v2697, %v2712
          %v2735 = vadd.f32 %v2698, %v2711
          %v2736 = vadd.f32 %v2699, %v2712
          %v2737 = vadd.f32 %v2700, %v2711
          %v2738 = vadd.f32 %v2701, %v2712
          %v2739 = vadd.f32 %v2702, %v2711
          %v2740 = vadd.f32 %v2703, %v2712
          %v2741 = vadd.f32 %v2704, %v2711
          %v2742 = vadd.f32 %v2705, %v2712
          %v2743 = vadd.f32 %v2706, %v2711
          %v2744 = vadd.f32 %v2707, %v2712
          %v2745 = vadd.f32 %v2708, %v2711
          %v2746 = vadd.f32 %v2709, %v2712
          %v2747 = vpack.c.bf16 %v2717, %v2715
          %v2748 = vpack.c.bf16 %v2718, %v2716
          %v2749 = vpack.c.bf16 %v2721, %v2719
          %v2750 = vpack.c.bf16 %v2722, %v2720
          %v2751 = vpack.c.bf16 %v2725, %v2723
          %v2752 = vpack.c.bf16 %v2726, %v2724
          %v2753 = vpack.c.bf16 %v2729, %v2727
          %v2754 = vpack.c.bf16 %v2730, %v2728
          %v2755 = vpack.c.bf16 %v2733, %v2731
          %v2756 = vpack.c.bf16 %v2734, %v2732
          %v2757 = vpack.c.bf16 %v2737, %v2735
          %v2758 = vpack.c.bf16 %v2738, %v2736
          %v2759 = vpack.c.bf16 %v2741, %v2739
          %v2760 = vpack.c.bf16 %v2742, %v2740
          %v2761 = vpack.c.bf16 %v2745, %v2743
          %v2762 = vpack.c.bf16 %v2746, %v2744
          %v2763 = vld [vmem:[#allocation23] sm:$0xff]
          %v2764 = vld [vmem:[#allocation23 + $0x8] sm:$0xff]
          %v2765 = vld [vmem:[#allocation23 + $0x10] sm:$0xff]
          %v2766 = vld [vmem:[#allocation23 + $0x18] sm:$0xff]
          %v2767 = vld [vmem:[#allocation23 + $0x20] sm:$0xff]
          %v2768 = vld [vmem:[#allocation23 + $0x28] sm:$0xff]
          %v2769 = vld [vmem:[#allocation23 + $0x30] sm:$0xff]
          %v2770 = vld [vmem:[#allocation23 + $0x38] sm:$0xff]
          %v2771 = vld [vmem:[#allocation23 + $0x40] sm:$0xff]
          %v2772 = vld [vmem:[#allocation23 + $0x48] sm:$0xff]
          %v2773 = vld [vmem:[#allocation23 + $0x50] sm:$0xff]
          %v2774 = vld [vmem:[#allocation23 + $0x58] sm:$0xff]
          %v2775 = vld [vmem:[#allocation23 + $0x60] sm:$0xff]
          %v2776 = vld [vmem:[#allocation23 + $0x68] sm:$0xff]
          %v2777 = vld [vmem:[#allocation23 + $0x70] sm:$0xff]
          %v2778 = vld [vmem:[#allocation23 + $0x78] sm:$0xff]
          %v2779 = vld [vmem:[#allocation23 + $0x80] sm:$0xff]
          %v2780 = vld [vmem:[#allocation23 + $0x88] sm:$0xff]
          %v2781 = vld [vmem:[#allocation23 + $0x90] sm:$0xff]
          %v2782 = vld [vmem:[#allocation23 + $0x98] sm:$0xff]
          %v2783 = vld [vmem:[#allocation23 + $0xa0] sm:$0xff]
          %v2784 = vld [vmem:[#allocation23 + $0xa8] sm:$0xff]
          %v2785 = vld [vmem:[#allocation23 + $0xb0] sm:$0xff]
          %v2786 = vld [vmem:[#allocation23 + $0xb8] sm:$0xff]
          %v2787 = vld [vmem:[#allocation23 + $0xc0] sm:$0xff]
          %v2788 = vld [vmem:[#allocation23 + $0xc8] sm:$0xff]
          %v2789 = vld [vmem:[#allocation23 + $0xd0] sm:$0xff]
          %v2790 = vld [vmem:[#allocation23 + $0xd8] sm:$0xff]
          %v2791 = vld [vmem:[#allocation23 + $0xe0] sm:$0xff]
          %v2792 = vld [vmem:[#allocation23 + $0xe8] sm:$0xff]
          %v2793 = vld [vmem:[#allocation23 + $0xf0] sm:$0xff]
          %v2794 = vld [vmem:[#allocation23 + $0xf8] sm:$0xff]
          %v2795 = vld [vmem:[#allocation23 + $0x100] sm:$0xff]
          %v2796 = vld [vmem:[#allocation23 + $0x108] sm:$0xff]
          %v2797 = vld [vmem:[#allocation23 + $0x110] sm:$0xff]
          %v2798 = vld [vmem:[#allocation23 + $0x118] sm:$0xff]
          %v2799 = vld [vmem:[#allocation23 + $0x120] sm:$0xff]
          %v2800 = vld [vmem:[#allocation23 + $0x128] sm:$0xff]
          %v2801 = vld [vmem:[#allocation23 + $0x130] sm:$0xff]
          %v2802 = vld [vmem:[#allocation23 + $0x138] sm:$0xff]
          %v2803 = vld [vmem:[#allocation23 + $0x140] sm:$0xff]
          %v2804 = vld [vmem:[#allocation23 + $0x148] sm:$0xff]
          %v2805 = vld [vmem:[#allocation23 + $0x150] sm:$0xff]
          %v2806 = vld [vmem:[#allocation23 + $0x158] sm:$0xff]
          %v2807 = vld [vmem:[#allocation23 + $0x160] sm:$0xff]
          %v2808 = vld [vmem:[#allocation23 + $0x168] sm:$0xff]
          %v2809 = vld [vmem:[#allocation23 + $0x170] sm:$0xff]
          %v2810 = vld [vmem:[#allocation23 + $0x178] sm:$0xff]
          %v2811 = vld [vmem:[#allocation23 + $0x180] sm:$0xff]
          %v2812 = vld [vmem:[#allocation23 + $0x188] sm:$0xff]
          %v2813 = vld [vmem:[#allocation23 + $0x190] sm:$0xff]
          %v2814 = vld [vmem:[#allocation23 + $0x198] sm:$0xff]
          %v2815 = vld [vmem:[#allocation23 + $0x1a0] sm:$0xff]
          %v2816 = vld [vmem:[#allocation23 + $0x1a8] sm:$0xff]
          %v2817 = vld [vmem:[#allocation23 + $0x1b0] sm:$0xff]
          %v2818 = vld [vmem:[#allocation23 + $0x1b8] sm:$0xff]
          %v2819 = vld [vmem:[#allocation23 + $0x1c0] sm:$0xff]
          %v2820 = vld [vmem:[#allocation23 + $0x1c8] sm:$0xff]
          %v2821 = vld [vmem:[#allocation23 + $0x1d0] sm:$0xff]
          %v2822 = vld [vmem:[#allocation23 + $0x1d8] sm:$0xff]
          %v2823 = vld [vmem:[#allocation23 + $0x1e0] sm:$0xff]
          %v2824 = vld [vmem:[#allocation23 + $0x1e8] sm:$0xff]
          %v2825 = vld [vmem:[#allocation23 + $0x1f0] sm:$0xff]
          %v2826 = vld [vmem:[#allocation23 + $0x1f8] sm:$0xff]
          %v2827 = vld [vmem:[%s9] sm:$0xf]
          %v2829 = vperm.slane %v2827, 0
          %v2830 = vperm.slane %v2827, 1
          %v2831 = vperm.slane %v2827, 2
          %v2832 = vperm.slane %v2827, 3
          %v2901 = vunpack.c.l.b16 %v2763
          %v2902 = vunpack.c.h.b16 %v2763
          %v2903 = vunpack.c.l.b16 %v2764
          %v2904 = vunpack.c.h.b16 %v2764
          %v2905 = vunpack.c.l.b16 %v2765
          %v2906 = vunpack.c.h.b16 %v2765
          %v2907 = vunpack.c.l.b16 %v2766
          %v2908 = vunpack.c.h.b16 %v2766
          %v2909 = vunpack.c.l.b16 %v2767
          %v2910 = vunpack.c.h.b16 %v2767
          %v2911 = vunpack.c.l.b16 %v2768
          %v2912 = vunpack.c.h.b16 %v2768
          %v2913 = vunpack.c.l.b16 %v2769
          %v2914 = vunpack.c.h.b16 %v2769
          %v2915 = vunpack.c.l.b16 %v2770
          %v2916 = vunpack.c.h.b16 %v2770
          %v2917 = vunpack.c.l.b16 %v2771
          %v2918 = vunpack.c.h.b16 %v2771
          %v2919 = vunpack.c.l.b16 %v2772
          %v2920 = vunpack.c.h.b16 %v2772
          %v2921 = vunpack.c.l.b16 %v2773
          %v2922 = vunpack.c.h.b16 %v2773
          %v2923 = vunpack.c.l.b16 %v2774
          %v2924 = vunpack.c.h.b16 %v2774
          %v2925 = vunpack.c.l.b16 %v2775
          %v2926 = vunpack.c.h.b16 %v2775
          %v2927 = vunpack.c.l.b16 %v2776
          %v2928 = vunpack.c.h.b16 %v2776
          %v2929 = vunpack.c.l.b16 %v2777
          %v2930 = vunpack.c.h.b16 %v2777
          %v2931 = vunpack.c.l.b16 %v2778
          %v2932 = vunpack.c.h.b16 %v2778
          %v2933 = vunpack.c.l.b16 %v2779
          %v2934 = vunpack.c.h.b16 %v2779
          %v2935 = vunpack.c.l.b16 %v2780
          %v2936 = vunpack.c.h.b16 %v2780
          %v2937 = vunpack.c.l.b16 %v2781
          %v2938 = vunpack.c.h.b16 %v2781
          %v2939 = vunpack.c.l.b16 %v2782
          %v2940 = vunpack.c.h.b16 %v2782
          %v2941 = vunpack.c.l.b16 %v2783
          %v2942 = vunpack.c.h.b16 %v2783
          %v2943 = vunpack.c.l.b16 %v2784
          %v2944 = vunpack.c.h.b16 %v2784
          %v2945 = vunpack.c.l.b16 %v2785
          %v2946 = vunpack.c.h.b16 %v2785
          %v2947 = vunpack.c.l.b16 %v2786
          %v2948 = vunpack.c.h.b16 %v2786
          %v2949 = vunpack.c.l.b16 %v2787
          %v2950 = vunpack.c.h.b16 %v2787
          %v2951 = vunpack.c.l.b16 %v2788
          %v2952 = vunpack.c.h.b16 %v2788
          %v2953 = vunpack.c.l.b16 %v2789
          %v2954 = vunpack.c.h.b16 %v2789
          %v2955 = vunpack.c.l.b16 %v2790
          %v2956 = vunpack.c.h.b16 %v2790
          %v2957 = vunpack.c.l.b16 %v2791
          %v2958 = vunpack.c.h.b16 %v2791
          %v2959 = vunpack.c.l.b16 %v2792
          %v2960 = vunpack.c.h.b16 %v2792
          %v2961 = vunpack.c.l.b16 %v2793
          %v2962 = vunpack.c.h.b16 %v2793
          %v2963 = vunpack.c.l.b16 %v2794
          %v2964 = vunpack.c.h.b16 %v2794
          %v2965 = vunpack.c.l.b16 %v2795
          %v2966 = vunpack.c.h.b16 %v2795
          %v2967 = vunpack.c.l.b16 %v2796
          %v2968 = vunpack.c.h.b16 %v2796
          %v2969 = vunpack.c.l.b16 %v2797
          %v2970 = vunpack.c.h.b16 %v2797
          %v2971 = vunpack.c.l.b16 %v2798
          %v2972 = vunpack.c.h.b16 %v2798
          %v2973 = vunpack.c.l.b16 %v2799
          %v2974 = vunpack.c.h.b16 %v2799
          %v2975 = vunpack.c.l.b16 %v2800
          %v2976 = vunpack.c.h.b16 %v2800
          %v2977 = vunpack.c.l.b16 %v2801
          %v2978 = vunpack.c.h.b16 %v2801
          %v2979 = vunpack.c.l.b16 %v2802
          %v2980 = vunpack.c.h.b16 %v2802
          %v2981 = vunpack.c.l.b16 %v2803
          %v2982 = vunpack.c.h.b16 %v2803
          %v2983 = vunpack.c.l.b16 %v2804
          %v2984 = vunpack.c.h.b16 %v2804
          %v2985 = vunpack.c.l.b16 %v2805
          %v2986 = vunpack.c.h.b16 %v2805
          %v2987 = vunpack.c.l.b16 %v2806
          %v2988 = vunpack.c.h.b16 %v2806
          %v2989 = vunpack.c.l.b16 %v2807
          %v2990 = vunpack.c.h.b16 %v2807
          %v2991 = vunpack.c.l.b16 %v2808
          %v2992 = vunpack.c.h.b16 %v2808
          %v2993 = vunpack.c.l.b16 %v2809
          %v2994 = vunpack.c.h.b16 %v2809
          %v2995 = vunpack.c.l.b16 %v2810
          %v2996 = vunpack.c.h.b16 %v2810
          %v2997 = vunpack.c.l.b16 %v2811
          %v2998 = vunpack.c.h.b16 %v2811
          %v2999 = vunpack.c.l.b16 %v2812
          %v3000 = vunpack.c.h.b16 %v2812
          %v3001 = vunpack.c.l.b16 %v2813
          %v3002 = vunpack.c.h.b16 %v2813
          %v3003 = vunpack.c.l.b16 %v2814
          %v3004 = vunpack.c.h.b16 %v2814
          %v3005 = vunpack.c.l.b16 %v2815
          %v3006 = vunpack.c.h.b16 %v2815
          %v3007 = vunpack.c.l.b16 %v2816
          %v3008 = vunpack.c.h.b16 %v2816
          %v3009 = vunpack.c.l.b16 %v2817
          %v3010 = vunpack.c.h.b16 %v2817
          %v3011 = vunpack.c.l.b16 %v2818
          %v3012 = vunpack.c.h.b16 %v2818
          %v3013 = vunpack.c.l.b16 %v2819
          %v3014 = vunpack.c.h.b16 %v2819
          %v3015 = vunpack.c.l.b16 %v2820
          %v3016 = vunpack.c.h.b16 %v2820
          %v3017 = vunpack.c.l.b16 %v2821
          %v3018 = vunpack.c.h.b16 %v2821
          %v3019 = vunpack.c.l.b16 %v2822
          %v3020 = vunpack.c.h.b16 %v2822
          %v3021 = vunpack.c.l.b16 %v2823
          %v3022 = vunpack.c.h.b16 %v2823
          %v3023 = vunpack.c.l.b16 %v2824
          %v3024 = vunpack.c.h.b16 %v2824
          %v3025 = vunpack.c.l.b16 %v2825
          %v3026 = vunpack.c.h.b16 %v2825
          %v3027 = vunpack.c.l.b16 %v2826
          %v3028 = vunpack.c.h.b16 %v2826
          %v3029 = vpack.c.b16 %v2905, %v2901
          %v3030 = vpack.c.b16 %v2906, %v2902
          %v3031 = vpack.c.b16 %v2907, %v2903
          %v3032 = vpack.c.b16 %v2908, %v2904
          %v3033 = vpack.c.b16 %v2913, %v2909
          %v3034 = vpack.c.b16 %v2914, %v2910
          %v3035 = vpack.c.b16 %v2915, %v2911
          %v3036 = vpack.c.b16 %v2916, %v2912
          %v3037 = vpack.c.b16 %v2921, %v2917
          %v3038 = vpack.c.b16 %v2922, %v2918
          %v3039 = vpack.c.b16 %v2923, %v2919
          %v3040 = vpack.c.b16 %v2924, %v2920
          %v3041 = vpack.c.b16 %v2929, %v2925
          %v3042 = vpack.c.b16 %v2930, %v2926
          %v3043 = vpack.c.b16 %v2931, %v2927
          %v3044 = vpack.c.b16 %v2932, %v2928
          %v3045 = vpack.c.b16 %v2937, %v2933
          %v3046 = vpack.c.b16 %v2938, %v2934
          %v3047 = vpack.c.b16 %v2939, %v2935
          %v3048 = vpack.c.b16 %v2940, %v2936
          %v3049 = vpack.c.b16 %v2945, %v2941
          %v3050 = vpack.c.b16 %v2946, %v2942
          %v3051 = vpack.c.b16 %v2947, %v2943
          %v3052 = vpack.c.b16 %v2948, %v2944
          %v3053 = vpack.c.b16 %v2953, %v2949
          %v3054 = vpack.c.b16 %v2954, %v2950
          %v3055 = vpack.c.b16 %v2955, %v2951
          %v3056 = vpack.c.b16 %v2956, %v2952
          %v3057 = vpack.c.b16 %v2961, %v2957
          %v3058 = vpack.c.b16 %v2962, %v2958
          %v3059 = vpack.c.b16 %v2963, %v2959
          %v3060 = vpack.c.b16 %v2964, %v2960
          %v3061 = vpack.c.b16 %v2969, %v2965
          %v3062 = vpack.c.b16 %v2970, %v2966
          %v3063 = vpack.c.b16 %v2971, %v2967
          %v3064 = vpack.c.b16 %v2972, %v2968
          %v3065 = vpack.c.b16 %v2977, %v2973
          %v3066 = vpack.c.b16 %v2978, %v2974
          %v3067 = vpack.c.b16 %v2979, %v2975
          %v3068 = vpack.c.b16 %v2980, %v2976
          %v3069 = vpack.c.b16 %v2985, %v2981
          %v3070 = vpack.c.b16 %v2986, %v2982
          %v3071 = vpack.c.b16 %v2987, %v2983
          %v3072 = vpack.c.b16 %v2988, %v2984
          %v3073 = vpack.c.b16 %v2993, %v2989
          %v3074 = vpack.c.b16 %v2994, %v2990
          %v3075 = vpack.c.b16 %v2995, %v2991
          %v3076 = vpack.c.b16 %v2996, %v2992
          %v3077 = vpack.c.b16 %v3001, %v2997
          %v3078 = vpack.c.b16 %v3002, %v2998
          %v3079 = vpack.c.b16 %v3003, %v2999
          %v3080 = vpack.c.b16 %v3004, %v3000
          %v3081 = vpack.c.b16 %v3009, %v3005
          %v3082 = vpack.c.b16 %v3010, %v3006
          %v3083 = vpack.c.b16 %v3011, %v3007
          %v3084 = vpack.c.b16 %v3012, %v3008
          %v3085 = vpack.c.b16 %v3017, %v3013
          %v3086 = vpack.c.b16 %v3018, %v3014
          %v3087 = vpack.c.b16 %v3019, %v3015
          %v3088 = vpack.c.b16 %v3020, %v3016
          %v3089 = vpack.c.b16 %v3025, %v3021
          %v3090 = vpack.c.b16 %v3026, %v3022
          %v3091 = vpack.c.b16 %v3027, %v3023
          %v3092 = vpack.c.b16 %v3028, %v3024
          %3157 = vmatpush.bf16.msra.mxu0 %v3057
          %3158 = vmatpush.bf16.msra.mxu0 %v3053
          %3159 = vmatpush.bf16.msra.mxu0 %v3049
          %3160 = vmatpush.bf16.msra.mxu0 %v3045
          %3161 = vmatpush.bf16.msra.mxu0 %v3041
          %3162 = vmatpush.bf16.msra.mxu0 %v3037
          %3163 = vmatpush.bf16.msra.mxu0 %v3033
          %3164 = vmatpush.bf16.msra.mxu0 %v3029
          %3165 = vmatmul.bf16.gmra.mxu0 %v2747
          %v3166 = vpop.f32.mrf.mxu0
          %v3167 = vadd.f32 %v2829, %v3166
          %v3168 = vpop.f32.mrf.mxu0
          %v3169 = vadd.f32 %v2829, %v3168
          %3170 = vmatmul.bf16.gmra.mxu0 %v2749
          %v3171 = vpop.f32.mrf.mxu0
          %v3172 = vadd.f32 %v2829, %v3171
          %v3173 = vpop.f32.mrf.mxu0
          %v3174 = vadd.f32 %v2829, %v3173
          %3175 = vmatmul.bf16.gmra.mxu0 %v2751
          %v3176 = vpop.f32.mrf.mxu0
          %v3177 = vadd.f32 %v2829, %v3176
          %v3178 = vpop.f32.mrf.mxu0
          %v3179 = vadd.f32 %v2829, %v3178
          %3180 = vmatmul.bf16.gmra.mxu0 %v2753
          %v3181 = vpop.f32.mrf.mxu0
          %v3182 = vadd.f32 %v2829, %v3181
          %v3183 = vpop.f32.mrf.mxu0
          %v3184 = vadd.f32 %v2829, %v3183
          %3185 = vmatmul.bf16.gmra.mxu0 %v2755
          %v3186 = vpop.f32.mrf.mxu0
          %v3187 = vadd.f32 %v2829, %v3186
          %v3188 = vpop.f32.mrf.mxu0
          %v3189 = vadd.f32 %v2829, %v3188
          %3190 = vmatmul.bf16.gmra.mxu0 %v2757
          %v3191 = vpop.f32.mrf.mxu0
          %v3192 = vadd.f32 %v2829, %v3191
          %v3193 = vpop.f32.mrf.mxu0
          %v3194 = vadd.f32 %v2829, %v3193
          %3195 = vmatmul.bf16.gmra.mxu0 %v2759
          %v3196 = vpop.f32.mrf.mxu0
          %v3197 = vadd.f32 %v2829, %v3196
          %v3198 = vpop.f32.mrf.mxu0
          %v3199 = vadd.f32 %v2829, %v3198
          %3200 = vmatmul.bf16.gmra.mxu0 %v2761
          %v3201 = vpop.f32.mrf.mxu0
          %v3202 = vadd.f32 %v2829, %v3201
          %v3203 = vpop.f32.mrf.mxu0
          %v3204 = vadd.f32 %v2829, %v3203
          %3205 = vdwg.mxu0
          %3206 = vmatpush.bf16.msra.mxu0 %v3089
          %3207 = vmatpush.bf16.msra.mxu0 %v3085
          %3208 = vmatpush.bf16.msra.mxu0 %v3081
          %3209 = vmatpush.bf16.msra.mxu0 %v3077
          %3210 = vmatpush.bf16.msra.mxu0 %v3073
          %3211 = vmatpush.bf16.msra.mxu0 %v3069
          %3212 = vmatpush.bf16.msra.mxu0 %v3065
          %3213 = vmatpush.bf16.msra.mxu0 %v3061
          %3214 = vmatmul.bf16.gmra.mxu0 %v2748
          %v3215 = vpop.f32.mrf.mxu0
          %v3216 = vadd.f32 %v3167, %v3215
          %v3217 = vpop.f32.mrf.mxu0
          %v3218 = vadd.f32 %v3169, %v3217
          %3219 = vmatmul.bf16.gmra.mxu0 %v2750
          %v3220 = vpop.f32.mrf.mxu0
          %v3221 = vadd.f32 %v3172, %v3220
          %v3222 = vpop.f32.mrf.mxu0
          %v3223 = vadd.f32 %v3174, %v3222
          %3224 = vmatmul.bf16.gmra.mxu0 %v2752
          %v3225 = vpop.f32.mrf.mxu0
          %v3226 = vadd.f32 %v3177, %v3225
          %v3227 = vpop.f32.mrf.mxu0
          %v3228 = vadd.f32 %v3179, %v3227
          %3229 = vmatmul.bf16.gmra.mxu0 %v2754
          %v3230 = vpop.f32.mrf.mxu0
          %v3231 = vadd.f32 %v3182, %v3230
          %v3232 = vpop.f32.mrf.mxu0
          %v3233 = vadd.f32 %v3184, %v3232
          %3234 = vmatmul.bf16.gmra.mxu0 %v2756
          %v3235 = vpop.f32.mrf.mxu0
          %v3236 = vadd.f32 %v3187, %v3235
          %v3237 = vpop.f32.mrf.mxu0
          %v3238 = vadd.f32 %v3189, %v3237
          %3239 = vmatmul.bf16.gmra.mxu0 %v2758
          %v3240 = vpop.f32.mrf.mxu0
          %v3241 = vadd.f32 %v3192, %v3240
          %v3242 = vpop.f32.mrf.mxu0
          %v3243 = vadd.f32 %v3194, %v3242
          %3244 = vmatmul.bf16.gmra.mxu0 %v2760
          %v3245 = vpop.f32.mrf.mxu0
          %v3246 = vadd.f32 %v3197, %v3245
          %v3247 = vpop.f32.mrf.mxu0
          %v3248 = vadd.f32 %v3199, %v3247
          %3249 = vmatmul.bf16.gmra.mxu0 %v2762
          %v3250 = vpop.f32.mrf.mxu0
          %v3251 = vadd.f32 %v3202, %v3250
          %v3252 = vpop.f32.mrf.mxu0
          %v3253 = vadd.f32 %v3204, %v3252
          %3254 = vdwg.mxu0
          %3255 = vmatpush.bf16.msra.mxu0 %v3058
          %3256 = vmatpush.bf16.msra.mxu0 %v3054
          %3257 = vmatpush.bf16.msra.mxu0 %v3050
          %3258 = vmatpush.bf16.msra.mxu0 %v3046
          %3259 = vmatpush.bf16.msra.mxu0 %v3042
          %3260 = vmatpush.bf16.msra.mxu0 %v3038
          %3261 = vmatpush.bf16.msra.mxu0 %v3034
          %3262 = vmatpush.bf16.msra.mxu0 %v3030
          %3263 = vmatmul.bf16.gmra.mxu0 %v2747
          %v3264 = vpop.f32.mrf.mxu0
          %v3265 = vadd.f32 %v2830, %v3264
          %v3266 = vpop.f32.mrf.mxu0
          %v3267 = vadd.f32 %v2830, %v3266
          %3268 = vmatmul.bf16.gmra.mxu0 %v2749
          %v3269 = vpop.f32.mrf.mxu0
          %v3270 = vadd.f32 %v2830, %v3269
          %v3271 = vpop.f32.mrf.mxu0
          %v3272 = vadd.f32 %v2830, %v3271
          %3273 = vmatmul.bf16.gmra.mxu0 %v2751
          %v3274 = vpop.f32.mrf.mxu0
          %v3275 = vadd.f32 %v2830, %v3274
          %v3276 = vpop.f32.mrf.mxu0
          %v3277 = vadd.f32 %v2830, %v3276
          %3278 = vmatmul.bf16.gmra.mxu0 %v2753
          %v3279 = vpop.f32.mrf.mxu0
          %v3280 = vadd.f32 %v2830, %v3279
          %v3281 = vpop.f32.mrf.mxu0
          %v3282 = vadd.f32 %v2830, %v3281
          %3283 = vmatmul.bf16.gmra.mxu0 %v2755
          %v3284 = vpop.f32.mrf.mxu0
          %v3285 = vadd.f32 %v2830, %v3284
          %v3286 = vpop.f32.mrf.mxu0
          %v3287 = vadd.f32 %v2830, %v3286
          %3288 = vmatmul.bf16.gmra.mxu0 %v2757
          %v3289 = vpop.f32.mrf.mxu0
          %v3290 = vadd.f32 %v2830, %v3289
          %v3291 = vpop.f32.mrf.mxu0
          %v3292 = vadd.f32 %v2830, %v3291
          %3293 = vmatmul.bf16.gmra.mxu0 %v2759
          %v3294 = vpop.f32.mrf.mxu0
          %v3295 = vadd.f32 %v2830, %v3294
          %v3296 = vpop.f32.mrf.mxu0
          %v3297 = vadd.f32 %v2830, %v3296
          %3298 = vmatmul.bf16.gmra.mxu0 %v2761
          %v3299 = vpop.f32.mrf.mxu0
          %v3300 = vadd.f32 %v2830, %v3299
          %v3301 = vpop.f32.mrf.mxu0
          %v3302 = vadd.f32 %v2830, %v3301
          %3303 = vdwg.mxu0
          %3304 = vmatpush.bf16.msra.mxu0 %v3090
          %3305 = vmatpush.bf16.msra.mxu0 %v3086
          %3306 = vmatpush.bf16.msra.mxu0 %v3082
          %3307 = vmatpush.bf16.msra.mxu0 %v3078
          %3308 = vmatpush.bf16.msra.mxu0 %v3074
          %3309 = vmatpush.bf16.msra.mxu0 %v3070
          %3310 = vmatpush.bf16.msra.mxu0 %v3066
          %3311 = vmatpush.bf16.msra.mxu0 %v3062
          %3312 = vmatmul.bf16.gmra.mxu0 %v2748
          %v3313 = vpop.f32.mrf.mxu0
          %v3314 = vadd.f32 %v3265, %v3313
          %v3315 = vpop.f32.mrf.mxu0
          %v3316 = vadd.f32 %v3267, %v3315
          %3317 = vmatmul.bf16.gmra.mxu0 %v2750
          %v3318 = vpop.f32.mrf.mxu0
          %v3319 = vadd.f32 %v3270, %v3318
          %v3320 = vpop.f32.mrf.mxu0
          %v3321 = vadd.f32 %v3272, %v3320
          %3322 = vmatmul.bf16.gmra.mxu0 %v2752
          %v3323 = vpop.f32.mrf.mxu0
          %v3324 = vadd.f32 %v3275, %v3323
          %v3325 = vpop.f32.mrf.mxu0
          %v3326 = vadd.f32 %v3277, %v3325
          %3327 = vmatmul.bf16.gmra.mxu0 %v2754
          %v3328 = vpop.f32.mrf.mxu0
          %v3329 = vadd.f32 %v3280, %v3328
          %v3330 = vpop.f32.mrf.mxu0
          %v3331 = vadd.f32 %v3282, %v3330
          %3332 = vmatmul.bf16.gmra.mxu0 %v2756
          %v3333 = vpop.f32.mrf.mxu0
          %v3334 = vadd.f32 %v3285, %v3333
          %v3335 = vpop.f32.mrf.mxu0
          %v3336 = vadd.f32 %v3287, %v3335
          %3337 = vmatmul.bf16.gmra.mxu0 %v2758
          %v3338 = vpop.f32.mrf.mxu0
          %v3339 = vadd.f32 %v3290, %v3338
          %v3340 = vpop.f32.mrf.mxu0
          %v3341 = vadd.f32 %v3292, %v3340
          %3342 = vmatmul.bf16.gmra.mxu0 %v2760
          %v3343 = vpop.f32.mrf.mxu0
          %v3344 = vadd.f32 %v3295, %v3343
          %v3345 = vpop.f32.mrf.mxu0
          %v3346 = vadd.f32 %v3297, %v3345
          %3347 = vmatmul.bf16.gmra.mxu0 %v2762
          %v3348 = vpop.f32.mrf.mxu0
          %v3349 = vadd.f32 %v3300, %v3348
          %v3350 = vpop.f32.mrf.mxu0
          %v3351 = vadd.f32 %v3302, %v3350
          %3352 = vdwg.mxu0
          %3353 = vmatpush.bf16.msra.mxu0 %v3059
          %3354 = vmatpush.bf16.msra.mxu0 %v3055
          %3355 = vmatpush.bf16.msra.mxu0 %v3051
          %3356 = vmatpush.bf16.msra.mxu0 %v3047
          %3357 = vmatpush.bf16.msra.mxu0 %v3043
          %3358 = vmatpush.bf16.msra.mxu0 %v3039
          %3359 = vmatpush.bf16.msra.mxu0 %v3035
          %3360 = vmatpush.bf16.msra.mxu0 %v3031
          %3361 = vmatmul.bf16.gmra.mxu0 %v2747
          %v3362 = vpop.f32.mrf.mxu0
          %v3363 = vadd.f32 %v2831, %v3362
          %v3364 = vpop.f32.mrf.mxu0
          %v3365 = vadd.f32 %v2831, %v3364
          %3366 = vmatmul.bf16.gmra.mxu0 %v2749
          %v3367 = vpop.f32.mrf.mxu0
          %v3368 = vadd.f32 %v2831, %v3367
          %v3369 = vpop.f32.mrf.mxu0
          %v3370 = vadd.f32 %v2831, %v3369
          %3371 = vmatmul.bf16.gmra.mxu0 %v2751
          %v3372 = vpop.f32.mrf.mxu0
          %v3373 = vadd.f32 %v2831, %v3372
          %v3374 = vpop.f32.mrf.mxu0
          %v3375 = vadd.f32 %v2831, %v3374
          %3376 = vmatmul.bf16.gmra.mxu0 %v2753
          %v3377 = vpop.f32.mrf.mxu0
          %v3378 = vadd.f32 %v2831, %v3377
          %v3379 = vpop.f32.mrf.mxu0
          %v3380 = vadd.f32 %v2831, %v3379
          %3381 = vmatmul.bf16.gmra.mxu0 %v2755
          %v3382 = vpop.f32.mrf.mxu0
          %v3383 = vadd.f32 %v2831, %v3382
          %v3384 = vpop.f32.mrf.mxu0
          %v3385 = vadd.f32 %v2831, %v3384
          %3386 = vmatmul.bf16.gmra.mxu0 %v2757
          %v3387 = vpop.f32.mrf.mxu0
          %v3388 = vadd.f32 %v2831, %v3387
          %v3389 = vpop.f32.mrf.mxu0
          %v3390 = vadd.f32 %v2831, %v3389
          %3391 = vmatmul.bf16.gmra.mxu0 %v2759
          %v3392 = vpop.f32.mrf.mxu0
          %v3393 = vadd.f32 %v2831, %v3392
          %v3394 = vpop.f32.mrf.mxu0
          %v3395 = vadd.f32 %v2831, %v3394
          %3396 = vmatmul.bf16.gmra.mxu0 %v2761
          %v3397 = vpop.f32.mrf.mxu0
          %v3398 = vadd.f32 %v2831, %v3397
          %v3399 = vpop.f32.mrf.mxu0
          %v3400 = vadd.f32 %v2831, %v3399
          %3401 = vdwg.mxu0
          %3402 = vmatpush.bf16.msra.mxu0 %v3091
          %3403 = vmatpush.bf16.msra.mxu0 %v3087
          %3404 = vmatpush.bf16.msra.mxu0 %v3083
          %3405 = vmatpush.bf16.msra.mxu0 %v3079
          %3406 = vmatpush.bf16.msra.mxu0 %v3075
          %3407 = vmatpush.bf16.msra.mxu0 %v3071
          %3408 = vmatpush.bf16.msra.mxu0 %v3067
          %3409 = vmatpush.bf16.msra.mxu0 %v3063
          %3410 = vmatmul.bf16.gmra.mxu0 %v2748
          %v3411 = vpop.f32.mrf.mxu0
          %v3412 = vadd.f32 %v3363, %v3411
          %v3413 = vpop.f32.mrf.mxu0
          %v3414 = vadd.f32 %v3365, %v3413
          %3415 = vmatmul.bf16.gmra.mxu0 %v2750
          %v3416 = vpop.f32.mrf.mxu0
          %v3417 = vadd.f32 %v3368, %v3416
          %v3418 = vpop.f32.mrf.mxu0
          %v3419 = vadd.f32 %v3370, %v3418
          %3420 = vmatmul.bf16.gmra.mxu0 %v2752
          %v3421 = vpop.f32.mrf.mxu0
          %v3422 = vadd.f32 %v3373, %v3421
          %v3423 = vpop.f32.mrf.mxu0
          %v3424 = vadd.f32 %v3375, %v3423
          %3425 = vmatmul.bf16.gmra.mxu0 %v2754
          %v3426 = vpop.f32.mrf.mxu0
          %v3427 = vadd.f32 %v3378, %v3426
          %v3428 = vpop.f32.mrf.mxu0
          %v3429 = vadd.f32 %v3380, %v3428
          %3430 = vmatmul.bf16.gmra.mxu0 %v2756
          %v3431 = vpop.f32.mrf.mxu0
          %v3432 = vadd.f32 %v3383, %v3431
          %v3433 = vpop.f32.mrf.mxu0
          %v3434 = vadd.f32 %v3385, %v3433
          %3435 = vmatmul.bf16.gmra.mxu0 %v2758
          %v3436 = vpop.f32.mrf.mxu0
          %v3437 = vadd.f32 %v3388, %v3436
          %v3438 = vpop.f32.mrf.mxu0
          %v3439 = vadd.f32 %v3390, %v3438
          %3440 = vmatmul.bf16.gmra.mxu0 %v2760
          %v3441 = vpop.f32.mrf.mxu0
          %v3442 = vadd.f32 %v3393, %v3441
          %v3443 = vpop.f32.mrf.mxu0
          %v3444 = vadd.f32 %v3395, %v3443
          %3445 = vmatmul.bf16.gmra.mxu0 %v2762
          %v3446 = vpop.f32.mrf.mxu0
          %v3447 = vadd.f32 %v3398, %v3446
          %v3448 = vpop.f32.mrf.mxu0
          %v3449 = vadd.f32 %v3400, %v3448
          %3450 = vdwg.mxu0
          %3451 = vmatpush.bf16.msra.mxu0 %v3060
          %3452 = vmatpush.bf16.msra.mxu0 %v3056
          %3453 = vmatpush.bf16.msra.mxu0 %v3052
          %3454 = vmatpush.bf16.msra.mxu0 %v3048
          %3455 = vmatpush.bf16.msra.mxu0 %v3044
          %3456 = vmatpush.bf16.msra.mxu0 %v3040
          %3457 = vmatpush.bf16.msra.mxu0 %v3036
          %3458 = vmatpush.bf16.msra.mxu0 %v3032
          %3459 = vmatmul.bf16.gmra.mxu0 %v2747
          %v3460 = vpop.f32.mrf.mxu0
          %v3461 = vadd.f32 %v2832, %v3460
          %v3462 = vpop.f32.mrf.mxu0
          %v3463 = vadd.f32 %v2832, %v3462
          %3464 = vmatmul.bf16.gmra.mxu0 %v2749
          %v3465 = vpop.f32.mrf.mxu0
          %v3466 = vadd.f32 %v2832, %v3465
          %v3467 = vpop.f32.mrf.mxu0
          %v3468 = vadd.f32 %v2832, %v3467
          %3469 = vmatmul.bf16.gmra.mxu0 %v2751
          %v3470 = vpop.f32.mrf.mxu0
          %v3471 = vadd.f32 %v2832, %v3470
          %v3472 = vpop.f32.mrf.mxu0
          %v3473 = vadd.f32 %v2832, %v3472
          %3474 = vmatmul.bf16.gmra.mxu0 %v2753
          %v3475 = vpop.f32.mrf.mxu0
          %v3476 = vadd.f32 %v2832, %v3475
          %v3477 = vpop.f32.mrf.mxu0
          %v3478 = vadd.f32 %v2832, %v3477
          %3479 = vmatmul.bf16.gmra.mxu0 %v2755
          %v3480 = vpop.f32.mrf.mxu0
          %v3481 = vadd.f32 %v2832, %v3480
          %v3482 = vpop.f32.mrf.mxu0
          %v3483 = vadd.f32 %v2832, %v3482
          %3484 = vmatmul.bf16.gmra.mxu0 %v2757
          %v3485 = vpop.f32.mrf.mxu0
          %v3486 = vadd.f32 %v2832, %v3485
          %v3487 = vpop.f32.mrf.mxu0
          %v3488 = vadd.f32 %v2832, %v3487
          %3489 = vmatmul.bf16.gmra.mxu0 %v2759
          %v3490 = vpop.f32.mrf.mxu0
          %v3491 = vadd.f32 %v2832, %v3490
          %v3492 = vpop.f32.mrf.mxu0
          %v3493 = vadd.f32 %v2832, %v3492
          %3494 = vmatmul.bf16.gmra.mxu0 %v2761
          %v3495 = vpop.f32.mrf.mxu0
          %v3496 = vadd.f32 %v2832, %v3495
          %v3497 = vpop.f32.mrf.mxu0
          %v3498 = vadd.f32 %v2832, %v3497
          %3499 = vdwg.mxu0
          %3500 = vmatpush.bf16.msra.mxu0 %v3092
          %3501 = vmatpush.bf16.msra.mxu0 %v3088
          %3502 = vmatpush.bf16.msra.mxu0 %v3084
          %3503 = vmatpush.bf16.msra.mxu0 %v3080
          %3504 = vmatpush.bf16.msra.mxu0 %v3076
          %3505 = vmatpush.bf16.msra.mxu0 %v3072
          %3506 = vmatpush.bf16.msra.mxu0 %v3068
          %3507 = vmatpush.bf16.msra.mxu0 %v3064
          %3508 = vmatmul.bf16.gmra.mxu0 %v2748
          %v3509 = vpop.f32.mrf.mxu0
          %v3510 = vadd.f32 %v3461, %v3509
          %v3511 = vpop.f32.mrf.mxu0
          %v3512 = vadd.f32 %v3463, %v3511
          %3513 = vmatmul.bf16.gmra.mxu0 %v2750
          %v3514 = vpop.f32.mrf.mxu0
          %v3515 = vadd.f32 %v3466, %v3514
          %v3516 = vpop.f32.mrf.mxu0
          %v3517 = vadd.f32 %v3468, %v3516
          %3518 = vmatmul.bf16.gmra.mxu0 %v2752
          %v3519 = vpop.f32.mrf.mxu0
          %v3520 = vadd.f32 %v3471, %v3519
          %v3521 = vpop.f32.mrf.mxu0
          %v3522 = vadd.f32 %v3473, %v3521
          %3523 = vmatmul.bf16.gmra.mxu0 %v2754
          %v3524 = vpop.f32.mrf.mxu0
          %v3525 = vadd.f32 %v3476, %v3524
          %v3526 = vpop.f32.mrf.mxu0
          %v3527 = vadd.f32 %v3478, %v3526
          %3528 = vmatmul.bf16.gmra.mxu0 %v2756
          %v3529 = vpop.f32.mrf.mxu0
          %v3530 = vadd.f32 %v3481, %v3529
          %v3531 = vpop.f32.mrf.mxu0
          %v3532 = vadd.f32 %v3483, %v3531
          %3533 = vmatmul.bf16.gmra.mxu0 %v2758
          %v3534 = vpop.f32.mrf.mxu0
          %v3535 = vadd.f32 %v3486, %v3534
          %v3536 = vpop.f32.mrf.mxu0
          %v3537 = vadd.f32 %v3488, %v3536
          %3538 = vmatmul.bf16.gmra.mxu0 %v2760
          %v3539 = vpop.f32.mrf.mxu0
          %v3540 = vadd.f32 %v3491, %v3539
          %v3541 = vpop.f32.mrf.mxu0
          %v3542 = vadd.f32 %v3493, %v3541
          %3543 = vmatmul.bf16.gmra.mxu0 %v2762
          %v3544 = vpop.f32.mrf.mxu0
          %v3545 = vadd.f32 %v3496, %v3544
          %v3546 = vpop.f32.mrf.mxu0
          %v3547 = vadd.f32 %v3498, %v3546
          %3548 = vdwg.mxu0
          %v3549 = vld [vmem:[%s790] sm:$0xff]
          %v3550 = vld [vmem:[%s790 + $0x8] sm:$0xff]
          %v3551 = vld [vmem:[%s790 + $0x10] sm:$0xff]
          %v3552 = vld [vmem:[%s790 + $0x18] sm:$0xff]
          %v3553 = vld [vmem:[%s790 + $0x20] sm:$0xff]
          %v3554 = vld [vmem:[%s790 + $0x28] sm:$0xff]
          %v3555 = vld [vmem:[%s790 + $0x30] sm:$0xff]
          %v3556 = vld [vmem:[%s790 + $0x38] sm:$0xff]
          %v3557 = vld [vmem:[%s790 + $0x40] sm:$0xff]
          %v3558 = vld [vmem:[%s790 + $0x48] sm:$0xff]
          %v3559 = vld [vmem:[%s790 + $0x50] sm:$0xff]
          %v3560 = vld [vmem:[%s790 + $0x58] sm:$0xff]
          %v3561 = vld [vmem:[%s790 + $0x60] sm:$0xff]
          %v3562 = vld [vmem:[%s790 + $0x68] sm:$0xff]
          %v3563 = vld [vmem:[%s790 + $0x70] sm:$0xff]
          %v3564 = vld [vmem:[%s790 + $0x78] sm:$0xff]
          %v3565 = vld [vmem:[%s790 + $0x80] sm:$0xff]
          %v3566 = vld [vmem:[%s790 + $0x88] sm:$0xff]
          %v3567 = vld [vmem:[%s790 + $0x90] sm:$0xff]
          %v3568 = vld [vmem:[%s790 + $0x98] sm:$0xff]
          %v3569 = vld [vmem:[%s790 + $0xa0] sm:$0xff]
          %v3570 = vld [vmem:[%s790 + $0xa8] sm:$0xff]
          %v3571 = vld [vmem:[%s790 + $0xb0] sm:$0xff]
          %v3572 = vld [vmem:[%s790 + $0xb8] sm:$0xff]
          %v3573 = vld [vmem:[%s790 + $0xc0] sm:$0xff]
          %v3574 = vld [vmem:[%s790 + $0xc8] sm:$0xff]
          %v3575 = vld [vmem:[%s790 + $0xd0] sm:$0xff]
          %v3576 = vld [vmem:[%s790 + $0xd8] sm:$0xff]
          %v3577 = vld [vmem:[%s790 + $0xe0] sm:$0xff]
          %v3578 = vld [vmem:[%s790 + $0xe8] sm:$0xff]
          %v3579 = vld [vmem:[%s790 + $0xf0] sm:$0xff]
          %v3580 = vld [vmem:[%s790 + $0xf8] sm:$0xff]
          %s3581 = smul.u32 %s52, 128
          %v3582 = vmul.f32 %v3216, %v3549
          %v3583 = vmul.f32 %v3218, %v3551
          %v3584 = vmul.f32 %v3221, %v3553
          %v3585 = vmul.f32 %v3223, %v3555
          %v3586 = vmul.f32 %v3226, %v3557
          %v3587 = vmul.f32 %v3228, %v3559
          %v3588 = vmul.f32 %v3231, %v3561
          %v3589 = vmul.f32 %v3233, %v3563
          %v3590 = vmul.f32 %v3236, %v3565
          %v3591 = vmul.f32 %v3238, %v3567
          %v3592 = vmul.f32 %v3241, %v3569
          %v3593 = vmul.f32 %v3243, %v3571
          %v3594 = vmul.f32 %v3246, %v3573
          %v3595 = vmul.f32 %v3248, %v3575
          %v3596 = vmul.f32 %v3251, %v3577
          %v3597 = vmul.f32 %v3253, %v3579
          %3598 = vrot.lane.b32.xlu0 %v3216, 64
          %v3599 = vpop.permute.xlu0 %3598
          %3600 = vrot.lane.b32.xlu0 %v3218, 64
          %v3601 = vpop.permute.xlu0 %3600
          %3602 = vrot.lane.b32.xlu0 %v3221, 64
          %v3603 = vpop.permute.xlu0 %3602
          %3604 = vrot.lane.b32.xlu0 %v3223, 64
          %v3605 = vpop.permute.xlu0 %3604
          %3606 = vrot.lane.b32.xlu0 %v3226, 64
          %v3607 = vpop.permute.xlu0 %3606
          %3608 = vrot.lane.b32.xlu0 %v3228, 64
          %v3609 = vpop.permute.xlu0 %3608
          %3610 = vrot.lane.b32.xlu0 %v3231, 64
          %v3611 = vpop.permute.xlu0 %3610
          %3612 = vrot.lane.b32.xlu0 %v3233, 64
          %v3613 = vpop.permute.xlu0 %3612
          %3614 = vrot.lane.b32.xlu0 %v3236, 64
          %v3615 = vpop.permute.xlu0 %3614
          %3616 = vrot.lane.b32.xlu0 %v3238, 64
          %v3617 = vpop.permute.xlu0 %3616
          %3618 = vrot.lane.b32.xlu0 %v3241, 64
          %v3619 = vpop.permute.xlu0 %3618
          %3620 = vrot.lane.b32.xlu0 %v3243, 64
          %v3621 = vpop.permute.xlu0 %3620
          %3622 = vrot.lane.b32.xlu0 %v3246, 64
          %v3623 = vpop.permute.xlu0 %3622
          %3624 = vrot.lane.b32.xlu0 %v3248, 64
          %v3625 = vpop.permute.xlu0 %3624
          %3626 = vrot.lane.b32.xlu0 %v3251, 64
          %v3627 = vpop.permute.xlu0 %3626
          %3628 = vrot.lane.b32.xlu0 %v3253, 64
          %v3629 = vpop.permute.xlu0 %3628
          %v3630 = vmul.f32 %v3599, %v3550
          %v3631 = vmul.f32 %v3601, %v3552
          %v3632 = vmul.f32 %v3603, %v3554
          %v3633 = vmul.f32 %v3605, %v3556
          %v3634 = vmul.f32 %v3607, %v3558
          %v3635 = vmul.f32 %v3609, %v3560
          %v3636 = vmul.f32 %v3611, %v3562
          %v3637 = vmul.f32 %v3613, %v3564
          %v3638 = vmul.f32 %v3615, %v3566
          %v3639 = vmul.f32 %v3617, %v3568
          %v3640 = vmul.f32 %v3619, %v3570
          %v3641 = vmul.f32 %v3621, %v3572
          %v3642 = vmul.f32 %v3623, %v3574
          %v3643 = vmul.f32 %v3625, %v3576
          %v3644 = vmul.f32 %v3627, %v3578
          %v3645 = vmul.f32 %v3629, %v3580
          %v3646 = vadd.f32 %v3582, %v3630
          %v3647 = vadd.f32 %v3583, %v3631
          %v3648 = vadd.f32 %v3584, %v3632
          %v3649 = vadd.f32 %v3585, %v3633
          %v3650 = vadd.f32 %v3586, %v3634
          %v3651 = vadd.f32 %v3587, %v3635
          %v3652 = vadd.f32 %v3588, %v3636
          %v3653 = vadd.f32 %v3589, %v3637
          %v3654 = vadd.f32 %v3590, %v3638
          %v3655 = vadd.f32 %v3591, %v3639
          %v3656 = vadd.f32 %v3592, %v3640
          %v3657 = vadd.f32 %v3593, %v3641
          %v3658 = vadd.f32 %v3594, %v3642
          %v3659 = vadd.f32 %v3595, %v3643
          %v3660 = vadd.f32 %v3596, %v3644
          %v3661 = vadd.f32 %v3597, %v3645
          %v3662 = vpack.c.bf16 %v3646, %v3646
          %v3663 = vpack.c.bf16 %v3647, %v3647
          %v3664 = vpack.c.bf16 %v3648, %v3648
          %v3665 = vpack.c.bf16 %v3649, %v3649
          %v3666 = vpack.c.bf16 %v3650, %v3650
          %v3667 = vpack.c.bf16 %v3651, %v3651
          %v3668 = vpack.c.bf16 %v3652, %v3652
          %v3669 = vpack.c.bf16 %v3653, %v3653
          %v3670 = vpack.c.bf16 %v3654, %v3654
          %v3671 = vpack.c.bf16 %v3655, %v3655
          %v3672 = vpack.c.bf16 %v3656, %v3656
          %v3673 = vpack.c.bf16 %v3657, %v3657
          %v3674 = vpack.c.bf16 %v3658, %v3658
          %v3675 = vpack.c.bf16 %v3659, %v3659
          %v3676 = vpack.c.bf16 %v3660, %v3660
          %v3677 = vpack.c.bf16 %v3661, %v3661
          %s3678 = sshra.s32 %s3581, 3
          %s3679 = sand.u32 %s3581, 7
          %s3680 = smul.addr %s3678, 4
          %s3681 = scalar_lea.vmem [#allocation3], %s3680
          %3682 = vst [vmem:[%s3681] sm:$0xf] %v3662
          %3683 = vst [vmem:[%s3681 + $0x4] sm:$0xf] %v3663
          %3684 = vst [vmem:[%s3681 + $0x8] sm:$0xf] %v3664
          %3685 = vst [vmem:[%s3681 + $0xc] sm:$0xf] %v3665
          %3686 = vst [vmem:[%s3681 + $0x10] sm:$0xf] %v3666
          %3687 = vst [vmem:[%s3681 + $0x14] sm:$0xf] %v3667
          %3688 = vst [vmem:[%s3681 + $0x18] sm:$0xf] %v3668
          %3689 = vst [vmem:[%s3681 + $0x1c] sm:$0xf] %v3669
          %3690 = vst [vmem:[%s3681 + $0x20] sm:$0xf] %v3670
          %3691 = vst [vmem:[%s3681 + $0x24] sm:$0xf] %v3671
          %3692 = vst [vmem:[%s3681 + $0x28] sm:$0xf] %v3672
          %3693 = vst [vmem:[%s3681 + $0x2c] sm:$0xf] %v3673
          %3694 = vst [vmem:[%s3681 + $0x30] sm:$0xf] %v3674
          %3695 = vst [vmem:[%s3681 + $0x34] sm:$0xf] %v3675
          %3696 = vst [vmem:[%s3681 + $0x38] sm:$0xf] %v3676
          %3697 = vst [vmem:[%s3681 + $0x3c] sm:$0xf] %v3677
          %v3698 = vpack.c.bf16 %v3412, %v3412
          %v3699 = vpack.c.bf16 %v3414, %v3414
          %v3700 = vpack.c.bf16 %v3417, %v3417
          %v3701 = vpack.c.bf16 %v3419, %v3419
          %v3702 = vpack.c.bf16 %v3422, %v3422
          %v3703 = vpack.c.bf16 %v3424, %v3424
          %v3704 = vpack.c.bf16 %v3427, %v3427
          %v3705 = vpack.c.bf16 %v3429, %v3429
          %v3706 = vpack.c.bf16 %v3432, %v3432
          %v3707 = vpack.c.bf16 %v3434, %v3434
          %v3708 = vpack.c.bf16 %v3437, %v3437
          %v3709 = vpack.c.bf16 %v3439, %v3439
          %v3710 = vpack.c.bf16 %v3442, %v3442
          %v3711 = vpack.c.bf16 %v3444, %v3444
          %v3712 = vpack.c.bf16 %v3447, %v3447
          %v3713 = vpack.c.bf16 %v3449, %v3449
          %s3714 = smul.addr %s3678, 4
          %s3715 = scalar_lea.vmem [#allocation4], %s3714
          %3716 = vst [vmem:[%s3715] sm:$0xf] %v3698
          %3717 = vst [vmem:[%s3715 + $0x4] sm:$0xf] %v3699
          %3718 = vst [vmem:[%s3715 + $0x8] sm:$0xf] %v3700
          %3719 = vst [vmem:[%s3715 + $0xc] sm:$0xf] %v3701
          %3720 = vst [vmem:[%s3715 + $0x10] sm:$0xf] %v3702
          %3721 = vst [vmem:[%s3715 + $0x14] sm:$0xf] %v3703
          %3722 = vst [vmem:[%s3715 + $0x18] sm:$0xf] %v3704
          %3723 = vst [vmem:[%s3715 + $0x1c] sm:$0xf] %v3705
          %3724 = vst [vmem:[%s3715 + $0x20] sm:$0xf] %v3706
          %3725 = vst [vmem:[%s3715 + $0x24] sm:$0xf] %v3707
          %3726 = vst [vmem:[%s3715 + $0x28] sm:$0xf] %v3708
          %3727 = vst [vmem:[%s3715 + $0x2c] sm:$0xf] %v3709
          %3728 = vst [vmem:[%s3715 + $0x30] sm:$0xf] %v3710
          %3729 = vst [vmem:[%s3715 + $0x34] sm:$0xf] %v3711
          %3730 = vst [vmem:[%s3715 + $0x38] sm:$0xf] %v3712
          %3731 = vst [vmem:[%s3715 + $0x3c] sm:$0xf] %v3713
          %v3732 = vmul.f32 %v3314, %v3549
          %v3733 = vmul.f32 %v3316, %v3551
          %v3734 = vmul.f32 %v3319, %v3553
          %v3735 = vmul.f32 %v3321, %v3555
          %v3736 = vmul.f32 %v3324, %v3557
          %v3737 = vmul.f32 %v3326, %v3559
          %v3738 = vmul.f32 %v3329, %v3561
          %v3739 = vmul.f32 %v3331, %v3563
          %v3740 = vmul.f32 %v3334, %v3565
          %v3741 = vmul.f32 %v3336, %v3567
          %v3742 = vmul.f32 %v3339, %v3569
          %v3743 = vmul.f32 %v3341, %v3571
          %v3744 = vmul.f32 %v3344, %v3573
          %v3745 = vmul.f32 %v3346, %v3575
          %v3746 = vmul.f32 %v3349, %v3577
          %v3747 = vmul.f32 %v3351, %v3579
          %3748 = vrot.lane.b32.xlu0 %v3314, 64
          %v3749 = vpop.permute.xlu0 %3748
          %3750 = vrot.lane.b32.xlu0 %v3316, 64
          %v3751 = vpop.permute.xlu0 %3750
          %3752 = vrot.lane.b32.xlu0 %v3319, 64
          %v3753 = vpop.permute.xlu0 %3752
          %3754 = vrot.lane.b32.xlu0 %v3321, 64
          %v3755 = vpop.permute.xlu0 %3754
          %3756 = vrot.lane.b32.xlu0 %v3324, 64
          %v3757 = vpop.permute.xlu0 %3756
          %3758 = vrot.lane.b32.xlu0 %v3326, 64
          %v3759 = vpop.permute.xlu0 %3758
          %3760 = vrot.lane.b32.xlu0 %v3329, 64
          %v3761 = vpop.permute.xlu0 %3760
          %3762 = vrot.lane.b32.xlu0 %v3331, 64
          %v3763 = vpop.permute.xlu0 %3762
          %3764 = vrot.lane.b32.xlu0 %v3334, 64
          %v3765 = vpop.permute.xlu0 %3764
          %3766 = vrot.lane.b32.xlu0 %v3336, 64
          %v3767 = vpop.permute.xlu0 %3766
          %3768 = vrot.lane.b32.xlu0 %v3339, 64
          %v3769 = vpop.permute.xlu0 %3768
          %3770 = vrot.lane.b32.xlu0 %v3341, 64
          %v3771 = vpop.permute.xlu0 %3770
          %3772 = vrot.lane.b32.xlu0 %v3344, 64
          %v3773 = vpop.permute.xlu0 %3772
          %3774 = vrot.lane.b32.xlu0 %v3346, 64
          %v3775 = vpop.permute.xlu0 %3774
          %3776 = vrot.lane.b32.xlu0 %v3349, 64
          %v3777 = vpop.permute.xlu0 %3776
          %3778 = vrot.lane.b32.xlu0 %v3351, 64
          %v3779 = vpop.permute.xlu0 %3778
          %v3780 = vmul.f32 %v3749, %v3550
          %v3781 = vmul.f32 %v3751, %v3552
          %v3782 = vmul.f32 %v3753, %v3554
          %v3783 = vmul.f32 %v3755, %v3556
          %v3784 = vmul.f32 %v3757, %v3558
          %v3785 = vmul.f32 %v3759, %v3560
          %v3786 = vmul.f32 %v3761, %v3562
          %v3787 = vmul.f32 %v3763, %v3564
          %v3788 = vmul.f32 %v3765, %v3566
          %v3789 = vmul.f32 %v3767, %v3568
          %v3790 = vmul.f32 %v3769, %v3570
          %v3791 = vmul.f32 %v3771, %v3572
          %v3792 = vmul.f32 %v3773, %v3574
          %v3793 = vmul.f32 %v3775, %v3576
          %v3794 = vmul.f32 %v3777, %v3578
          %v3795 = vmul.f32 %v3779, %v3580
          %v3796 = vadd.f32 %v3732, %v3780
          %v3797 = vadd.f32 %v3733, %v3781
          %v3798 = vadd.f32 %v3734, %v3782
          %v3799 = vadd.f32 %v3735, %v3783
          %v3800 = vadd.f32 %v3736, %v3784
          %v3801 = vadd.f32 %v3737, %v3785
          %v3802 = vadd.f32 %v3738, %v3786
          %v3803 = vadd.f32 %v3739, %v3787
          %v3804 = vadd.f32 %v3740, %v3788
          %v3805 = vadd.f32 %v3741, %v3789
          %v3806 = vadd.f32 %v3742, %v3790
          %v3807 = vadd.f32 %v3743, %v3791
          %v3808 = vadd.f32 %v3744, %v3792
          %v3809 = vadd.f32 %v3745, %v3793
          %v3810 = vadd.f32 %v3746, %v3794
          %v3811 = vadd.f32 %v3747, %v3795
          %v3812 = vpack.c.bf16 %v3796, %v3796
          %v3813 = vpack.c.bf16 %v3797, %v3797
          %v3814 = vpack.c.bf16 %v3798, %v3798
          %v3815 = vpack.c.bf16 %v3799, %v3799
          %v3816 = vpack.c.bf16 %v3800, %v3800
          %v3817 = vpack.c.bf16 %v3801, %v3801
          %v3818 = vpack.c.bf16 %v3802, %v3802
          %v3819 = vpack.c.bf16 %v3803, %v3803
          %v3820 = vpack.c.bf16 %v3804, %v3804
          %v3821 = vpack.c.bf16 %v3805, %v3805
          %v3822 = vpack.c.bf16 %v3806, %v3806
          %v3823 = vpack.c.bf16 %v3807, %v3807
          %v3824 = vpack.c.bf16 %v3808, %v3808
          %v3825 = vpack.c.bf16 %v3809, %v3809
          %v3826 = vpack.c.bf16 %v3810, %v3810
          %v3827 = vpack.c.bf16 %v3811, %v3811
          %s3828 = sadd.s32 %s3678, 32
          %s3829 = smul.addr %s3828, 4
          %s3830 = scalar_lea.vmem [#allocation3], %s3829
          %3831 = vst [vmem:[%s3830] sm:$0xf] %v3812
          %3832 = vst [vmem:[%s3830 + $0x4] sm:$0xf] %v3813
          %3833 = vst [vmem:[%s3830 + $0x8] sm:$0xf] %v3814
          %3834 = vst [vmem:[%s3830 + $0xc] sm:$0xf] %v3815
          %3835 = vst [vmem:[%s3830 + $0x10] sm:$0xf] %v3816
          %3836 = vst [vmem:[%s3830 + $0x14] sm:$0xf] %v3817
          %3837 = vst [vmem:[%s3830 + $0x18] sm:$0xf] %v3818
          %3838 = vst [vmem:[%s3830 + $0x1c] sm:$0xf] %v3819
          %3839 = vst [vmem:[%s3830 + $0x20] sm:$0xf] %v3820
          %3840 = vst [vmem:[%s3830 + $0x24] sm:$0xf] %v3821
          %3841 = vst [vmem:[%s3830 + $0x28] sm:$0xf] %v3822
          %3842 = vst [vmem:[%s3830 + $0x2c] sm:$0xf] %v3823
          %3843 = vst [vmem:[%s3830 + $0x30] sm:$0xf] %v3824
          %3844 = vst [vmem:[%s3830 + $0x34] sm:$0xf] %v3825
          %3845 = vst [vmem:[%s3830 + $0x38] sm:$0xf] %v3826
          %3846 = vst [vmem:[%s3830 + $0x3c] sm:$0xf] %v3827
          %v3847 = vpack.c.bf16 %v3510, %v3510
          %v3848 = vpack.c.bf16 %v3512, %v3512
          %v3849 = vpack.c.bf16 %v3515, %v3515
          %v3850 = vpack.c.bf16 %v3517, %v3517
          %v3851 = vpack.c.bf16 %v3520, %v3520
          %v3852 = vpack.c.bf16 %v3522, %v3522
          %v3853 = vpack.c.bf16 %v3525, %v3525
          %v3854 = vpack.c.bf16 %v3527, %v3527
          %v3855 = vpack.c.bf16 %v3530, %v3530
          %v3856 = vpack.c.bf16 %v3532, %v3532
          %v3857 = vpack.c.bf16 %v3535, %v3535
          %v3858 = vpack.c.bf16 %v3537, %v3537
          %v3859 = vpack.c.bf16 %v3540, %v3540
          %v3860 = vpack.c.bf16 %v3542, %v3542
          %v3861 = vpack.c.bf16 %v3545, %v3545
          %v3862 = vpack.c.bf16 %v3547, %v3547
          %s3863 = smul.addr %s3828, 4
          %s3864 = scalar_lea.vmem [#allocation4], %s3863
          %3865 = vst [vmem:[%s3864] sm:$0xf] %v3847
          %3866 = vst [vmem:[%s3864 + $0x4] sm:$0xf] %v3848
          %3867 = vst [vmem:[%s3864 + $0x8] sm:$0xf] %v3849
          %3868 = vst [vmem:[%s3864 + $0xc] sm:$0xf] %v3850
          %3869 = vst [vmem:[%s3864 + $0x10] sm:$0xf] %v3851
          %3870 = vst [vmem:[%s3864 + $0x14] sm:$0xf] %v3852
          %3871 = vst [vmem:[%s3864 + $0x18] sm:$0xf] %v3853
          %3872 = vst [vmem:[%s3864 + $0x1c] sm:$0xf] %v3854
          %3873 = vst [vmem:[%s3864 + $0x20] sm:$0xf] %v3855
          %3874 = vst [vmem:[%s3864 + $0x24] sm:$0xf] %v3856
          %3875 = vst [vmem:[%s3864 + $0x28] sm:$0xf] %v3857
          %3876 = vst [vmem:[%s3864 + $0x2c] sm:$0xf] %v3858
          %3877 = vst [vmem:[%s3864 + $0x30] sm:$0xf] %v3859
          %3878 = vst [vmem:[%s3864 + $0x34] sm:$0xf] %v3860
          %3879 = vst [vmem:[%s3864 + $0x38] sm:$0xf] %v3861
          %3880 = vst [vmem:[%s3864 + $0x3c] sm:$0xf] %v3862
        $region152: #{tpu_custom_call.1} parent=91 // pred_fallthru
          _
        %s3881 = smul.u32 %s52, 128
        %s3882 = sshra.s32 %s3881, 3
        %s3883 = sand.u32 %s3881, 7
        %s3884 = smul.addr %s3882, 4
        %s3885 = scalar_lea.vmem [#allocation3], %s3884
        %v3886 = vld [vmem:[%s3885] sm:$0xf]
        %v3887 = vld [vmem:[%s3885 + $0x4] sm:$0xf]
        %v3888 = vld [vmem:[%s3885 + $0x8] sm:$0xf]
        %v3889 = vld [vmem:[%s3885 + $0xc] sm:$0xf]
        %v3890 = vld [vmem:[%s3885 + $0x10] sm:$0xf]
        %v3891 = vld [vmem:[%s3885 + $0x14] sm:$0xf]
        %v3892 = vld [vmem:[%s3885 + $0x18] sm:$0xf]
        %v3893 = vld [vmem:[%s3885 + $0x1c] sm:$0xf]
        %v3894 = vld [vmem:[%s3885 + $0x20] sm:$0xf]
        %v3895 = vld [vmem:[%s3885 + $0x24] sm:$0xf]
        %v3896 = vld [vmem:[%s3885 + $0x28] sm:$0xf]
        %v3897 = vld [vmem:[%s3885 + $0x2c] sm:$0xf]
        %v3898 = vld [vmem:[%s3885 + $0x30] sm:$0xf]
        %v3899 = vld [vmem:[%s3885 + $0x34] sm:$0xf]
        %v3900 = vld [vmem:[%s3885 + $0x38] sm:$0xf]
        %v3901 = vld [vmem:[%s3885 + $0x3c] sm:$0xf]
        %s3902 = smul.addr %s3882, 4
        %s3903 = scalar_lea.vmem [#allocation4], %s3902
        %v3904 = vld [vmem:[%s3903] sm:$0xf]
        %v3905 = vld [vmem:[%s3903 + $0x4] sm:$0xf]
        %v3906 = vld [vmem:[%s3903 + $0x8] sm:$0xf]
        %v3907 = vld [vmem:[%s3903 + $0xc] sm:$0xf]
        %v3908 = vld [vmem:[%s3903 + $0x10] sm:$0xf]
        %v3909 = vld [vmem:[%s3903 + $0x14] sm:$0xf]
        %v3910 = vld [vmem:[%s3903 + $0x18] sm:$0xf]
        %v3911 = vld [vmem:[%s3903 + $0x1c] sm:$0xf]
        %v3912 = vld [vmem:[%s3903 + $0x20] sm:$0xf]
        %v3913 = vld [vmem:[%s3903 + $0x24] sm:$0xf]
        %v3914 = vld [vmem:[%s3903 + $0x28] sm:$0xf]
        %v3915 = vld [vmem:[%s3903 + $0x2c] sm:$0xf]
        %v3916 = vld [vmem:[%s3903 + $0x30] sm:$0xf]
        %v3917 = vld [vmem:[%s3903 + $0x34] sm:$0xf]
        %v3918 = vld [vmem:[%s3903 + $0x38] sm:$0xf]
        %v3919 = vld [vmem:[%s3903 + $0x3c] sm:$0xf]
        %v3920 = vld [vmem:[#allocation2] sm:$0xf]
        %v3921 = vld [vmem:[#allocation2 + $0x4] sm:$0xf]
        %v3922 = vld [vmem:[#allocation2 + $0x8] sm:$0xf]
        %v3923 = vld [vmem:[#allocation2 + $0xc] sm:$0xf]
        %v3924 = vld [vmem:[#allocation2 + $0x10] sm:$0xf]
        %v3925 = vld [vmem:[#allocation2 + $0x14] sm:$0xf]
        %v3926 = vld [vmem:[#allocation2 + $0x18] sm:$0xf]
        %v3927 = vld [vmem:[#allocation2 + $0x1c] sm:$0xf]
        %v3928 = vld [vmem:[#allocation2 + $0x20] sm:$0xf]
        %v3929 = vld [vmem:[#allocation2 + $0x24] sm:$0xf]
        %v3930 = vld [vmem:[#allocation2 + $0x28] sm:$0xf]
        %v3931 = vld [vmem:[#allocation2 + $0x2c] sm:$0xf]
        %v3932 = vld [vmem:[#allocation2 + $0x30] sm:$0xf]
        %v3933 = vld [vmem:[#allocation2 + $0x34] sm:$0xf]
        %v3934 = vld [vmem:[#allocation2 + $0x38] sm:$0xf]
        %v3935 = vld [vmem:[#allocation2 + $0x3c] sm:$0xf]
        %v3952 = vunpack.c.l.b16 %v3920
        %v3953 = vunpack.c.l.b16 %v3921
        %v3954 = vunpack.c.l.b16 %v3922
        %v3955 = vunpack.c.l.b16 %v3923
        %v3956 = vunpack.c.l.b16 %v3924
        %v3957 = vunpack.c.l.b16 %v3925
        %v3958 = vunpack.c.l.b16 %v3926
        %v3959 = vunpack.c.l.b16 %v3927
        %v3960 = vunpack.c.l.b16 %v3928
        %v3961 = vunpack.c.l.b16 %v3929
        %v3962 = vunpack.c.l.b16 %v3930
        %v3963 = vunpack.c.l.b16 %v3931
        %v3964 = vunpack.c.l.b16 %v3932
        %v3965 = vunpack.c.l.b16 %v3933
        %v3966 = vunpack.c.l.b16 %v3934
        %v3967 = vunpack.c.l.b16 %v3935
        %v3968 = vpack.c.b16 %v3953, %v3952
        %v3969 = vpack.c.b16 %v3955, %v3954
        %v3970 = vpack.c.b16 %v3957, %v3956
        %v3971 = vpack.c.b16 %v3959, %v3958
        %v3972 = vpack.c.b16 %v3961, %v3960
        %v3973 = vpack.c.b16 %v3963, %v3962
        %v3974 = vpack.c.b16 %v3965, %v3964
        %v3975 = vpack.c.b16 %v3967, %v3966
        %v4000 = vunpack.c.l.b16 %v3886
        %v4001 = vunpack.c.l.b16 %v3887
        %v4002 = vunpack.c.l.b16 %v3888
        %v4003 = vunpack.c.l.b16 %v3889
        %v4004 = vunpack.c.l.b16 %v3890
        %v4005 = vunpack.c.l.b16 %v3891
        %v4006 = vunpack.c.l.b16 %v3892
        %v4007 = vunpack.c.l.b16 %v3893
        %v4008 = vunpack.c.l.b16 %v3894
        %v4009 = vunpack.c.l.b16 %v3895
        %v4010 = vunpack.c.l.b16 %v3896
        %v4011 = vunpack.c.l.b16 %v3897
        %v4012 = vunpack.c.l.b16 %v3898
        %v4013 = vunpack.c.l.b16 %v3899
        %v4014 = vunpack.c.l.b16 %v3900
        %v4015 = vunpack.c.l.b16 %v3901
        %v4016 = vpack.c.b16 %v4001, %v4000
        %v4017 = vpack.c.b16 %v4003, %v4002
        %v4018 = vpack.c.b16 %v4005, %v4004
        %v4019 = vpack.c.b16 %v4007, %v4006
        %v4020 = vpack.c.b16 %v4009, %v4008
        %v4021 = vpack.c.b16 %v4011, %v4010
        %v4022 = vpack.c.b16 %v4013, %v4012
        %v4023 = vpack.c.b16 %v4015, %v4014
        %4032 = vmatpush.bf16.xpose.msra.mxu0 %v4023
        %4033 = vmatpush.bf16.xpose.msra.mxu0 %v4022
        %4034 = vmatpush.bf16.xpose.msra.mxu0 %v4021
        %4035 = vmatpush.bf16.xpose.msra.mxu0 %v4020
        %4036 = vmatpush.bf16.xpose.msra.mxu0 %v4019
        %4037 = vmatpush.bf16.xpose.msra.mxu0 %v4018
        %4038 = vmatpush.bf16.xpose.msra.mxu0 %v4017
        %4039 = vmatpush.bf16.xpose.msra.mxu0 %v4016
        %4040 = vmatmul.bf16.gmra.mxu0 %v3968
        %v4041 = vpop.f32.mrf.mxu0
        %v4042 = vadd.f32 0.0, %v4041
        %v4043 = vpop.f32.mrf.mxu0
        %v4044 = vadd.f32 0.0, %v4043
        %4045 = vmatmul.bf16.gmra.mxu0 %v3969
        %v4046 = vpop.f32.mrf.mxu0
        %v4047 = vadd.f32 0.0, %v4046
        %v4048 = vpop.f32.mrf.mxu0
        %v4049 = vadd.f32 0.0, %v4048
        %4050 = vmatmul.bf16.gmra.mxu0 %v3970
        %v4051 = vpop.f32.mrf.mxu0
        %v4052 = vadd.f32 0.0, %v4051
        %v4053 = vpop.f32.mrf.mxu0
        %v4054 = vadd.f32 0.0, %v4053
        %4055 = vmatmul.bf16.gmra.mxu0 %v3971
        %v4056 = vpop.f32.mrf.mxu0
        %v4057 = vadd.f32 0.0, %v4056
        %v4058 = vpop.f32.mrf.mxu0
        %v4059 = vadd.f32 0.0, %v4058
        %4060 = vmatmul.bf16.gmra.mxu0 %v3972
        %v4061 = vpop.f32.mrf.mxu0
        %v4062 = vadd.f32 0.0, %v4061
        %v4063 = vpop.f32.mrf.mxu0
        %v4064 = vadd.f32 0.0, %v4063
        %4065 = vmatmul.bf16.gmra.mxu0 %v3973
        %v4066 = vpop.f32.mrf.mxu0
        %v4067 = vadd.f32 0.0, %v4066
        %v4068 = vpop.f32.mrf.mxu0
        %v4069 = vadd.f32 0.0, %v4068
        %4070 = vmatmul.bf16.gmra.mxu0 %v3974
        %v4071 = vpop.f32.mrf.mxu0
        %v4072 = vadd.f32 0.0, %v4071
        %v4073 = vpop.f32.mrf.mxu0
        %v4074 = vadd.f32 0.0, %v4073
        %4075 = vmatmul.bf16.gmra.mxu0 %v3975
        %v4076 = vpop.f32.mrf.mxu0
        %v4077 = vadd.f32 0.0, %v4076
        %v4078 = vpop.f32.mrf.mxu0
        %v4079 = vadd.f32 0.0, %v4078
        %4080 = vdwg.mxu0
        %v4081 = vld [vmem:[#allocation5] sm:$0xff]
        %v4082 = vld [vmem:[#allocation5 + $0x8] sm:$0xff]
        %v4083 = vld [vmem:[#allocation5 + $0x10] sm:$0xff]
        %v4084 = vld [vmem:[#allocation5 + $0x18] sm:$0xff]
        %v4085 = vld [vmem:[#allocation5 + $0x20] sm:$0xff]
        %v4086 = vld [vmem:[#allocation5 + $0x28] sm:$0xff]
        %v4087 = vld [vmem:[#allocation5 + $0x30] sm:$0xff]
        %v4088 = vld [vmem:[#allocation5 + $0x38] sm:$0xff]
        %v4089 = vld [vmem:[#allocation5 + $0x40] sm:$0xff]
        %v4090 = vld [vmem:[#allocation5 + $0x48] sm:$0xff]
        %v4091 = vld [vmem:[#allocation5 + $0x50] sm:$0xff]
        %v4092 = vld [vmem:[#allocation5 + $0x58] sm:$0xff]
        %v4093 = vld [vmem:[#allocation5 + $0x60] sm:$0xff]
        %v4094 = vld [vmem:[#allocation5 + $0x68] sm:$0xff]
        %v4095 = vld [vmem:[#allocation5 + $0x70] sm:$0xff]
        %v4096 = vld [vmem:[#allocation5 + $0x78] sm:$0xff]
        %4097 = vmax.xlane.f32.xlu0 %v4042
        %v4098 = vpop.xlane.xlu0 %4097
        %4099 = vmax.xlane.f32.xlu0 %v4044
        %v4100 = vpop.xlane.xlu0 %4099
        %4101 = vmax.xlane.f32.xlu0 %v4047
        %v4102 = vpop.xlane.xlu0 %4101
        %4103 = vmax.xlane.f32.xlu0 %v4049
        %v4104 = vpop.xlane.xlu0 %4103
        %4105 = vmax.xlane.f32.xlu0 %v4052
        %v4106 = vpop.xlane.xlu0 %4105
        %4107 = vmax.xlane.f32.xlu0 %v4054
        %v4108 = vpop.xlane.xlu0 %4107
        %4109 = vmax.xlane.f32.xlu0 %v4057
        %v4110 = vpop.xlane.xlu0 %4109
        %4111 = vmax.xlane.f32.xlu0 %v4059
        %v4112 = vpop.xlane.xlu0 %4111
        %4113 = vmax.xlane.f32.xlu0 %v4062
        %v4114 = vpop.xlane.xlu0 %4113
        %4115 = vmax.xlane.f32.xlu0 %v4064
        %v4116 = vpop.xlane.xlu0 %4115
        %4117 = vmax.xlane.f32.xlu0 %v4067
        %v4118 = vpop.xlane.xlu0 %4117
        %4119 = vmax.xlane.f32.xlu0 %v4069
        %v4120 = vpop.xlane.xlu0 %4119
        %4121 = vmax.xlane.f32.xlu0 %v4072
        %v4122 = vpop.xlane.xlu0 %4121
        %4123 = vmax.xlane.f32.xlu0 %v4074
        %v4124 = vpop.xlane.xlu0 %4123
        %4125 = vmax.xlane.f32.xlu0 %v4077
        %v4126 = vpop.xlane.xlu0 %4125
        %4127 = vmax.xlane.f32.xlu0 %v4079
        %v4128 = vpop.xlane.xlu0 %4127
        %v4129 = vmax.f32 %v4081, %v4098
        %v4130 = vmax.f32 %v4082, %v4100
        %v4131 = vmax.f32 %v4083, %v4102
        %v4132 = vmax.f32 %v4084, %v4104
        %v4133 = vmax.f32 %v4085, %v4106
        %v4134 = vmax.f32 %v4086, %v4108
        %v4135 = vmax.f32 %v4087, %v4110
        %v4136 = vmax.f32 %v4088, %v4112
        %v4137 = vmax.f32 %v4089, %v4114
        %v4138 = vmax.f32 %v4090, %v4116
        %v4139 = vmax.f32 %v4091, %v4118
        %v4140 = vmax.f32 %v4092, %v4120
        %v4141 = vmax.f32 %v4093, %v4122
        %v4142 = vmax.f32 %v4094, %v4124
        %v4143 = vmax.f32 %v4095, %v4126
        %v4144 = vmax.f32 %v4096, %v4128
        %v4145 = vsub.f32 %v4081, %v4129
        %v4146 = vsub.f32 %v4082, %v4130
        %v4147 = vsub.f32 %v4083, %v4131
        %v4148 = vsub.f32 %v4084, %v4132
        %v4149 = vsub.f32 %v4085, %v4133
        %v4150 = vsub.f32 %v4086, %v4134
        %v4151 = vsub.f32 %v4087, %v4135
        %v4152 = vsub.f32 %v4088, %v4136
        %v4153 = vsub.f32 %v4089, %v4137
        %v4154 = vsub.f32 %v4090, %v4138
        %v4155 = vsub.f32 %v4091, %v4139
        %v4156 = vsub.f32 %v4092, %v4140
        %v4157 = vsub.f32 %v4093, %v4141
        %v4158 = vsub.f32 %v4094, %v4142
        %v4159 = vsub.f32 %v4095, %v4143
        %v4160 = vsub.f32 %v4096, %v4144
        %v4161 = vmul.f32 %v4145, 1.442695
        %v4162 = vpow.pop %v4161
        %v4163 = vmul.f32 %v4146, 1.442695
        %v4164 = vpow.pop %v4163
        %v4165 = vmul.f32 %v4147, 1.442695
        %v4166 = vpow.pop %v4165
        %v4167 = vmul.f32 %v4148, 1.442695
        %v4168 = vpow.pop %v4167
        %v4169 = vmul.f32 %v4149, 1.442695
        %v4170 = vpow.pop %v4169
        %v4171 = vmul.f32 %v4150, 1.442695
        %v4172 = vpow.pop %v4171
        %v4173 = vmul.f32 %v4151, 1.442695
        %v4174 = vpow.pop %v4173
        %v4175 = vmul.f32 %v4152, 1.442695
        %v4176 = vpow.pop %v4175
        %v4177 = vmul.f32 %v4153, 1.442695
        %v4178 = vpow.pop %v4177
        %v4179 = vmul.f32 %v4154, 1.442695
        %v4180 = vpow.pop %v4179
        %v4181 = vmul.f32 %v4155, 1.442695
        %v4182 = vpow.pop %v4181
        %v4183 = vmul.f32 %v4156, 1.442695
        %v4184 = vpow.pop %v4183
        %v4185 = vmul.f32 %v4157, 1.442695
        %v4186 = vpow.pop %v4185
        %v4187 = vmul.f32 %v4158, 1.442695
        %v4188 = vpow.pop %v4187
        %v4189 = vmul.f32 %v4159, 1.442695
        %v4190 = vpow.pop %v4189
        %v4191 = vmul.f32 %v4160, 1.442695
        %v4192 = vpow.pop %v4191
        %4194 = vset.pattern.permute.xlu0 0
        %4195 = vperm.xlu0 %4194, %v4129
        %v4196 = vpop.permute.xlu0 %4195
        %4199 = vset.pattern.permute.xlu0 0
        %4200 = vperm.xlu0 %4199, %v4130
        %v4201 = vpop.permute.xlu0 %4200
        %4204 = vset.pattern.permute.xlu0 0
        %4205 = vperm.xlu0 %4204, %v4131
        %v4206 = vpop.permute.xlu0 %4205
        %4209 = vset.pattern.permute.xlu0 0
        %4210 = vperm.xlu0 %4209, %v4132
        %v4211 = vpop.permute.xlu0 %4210
        %4214 = vset.pattern.permute.xlu0 0
        %4215 = vperm.xlu0 %4214, %v4133
        %v4216 = vpop.permute.xlu0 %4215
        %4219 = vset.pattern.permute.xlu0 0
        %4220 = vperm.xlu0 %4219, %v4134
        %v4221 = vpop.permute.xlu0 %4220
        %4224 = vset.pattern.permute.xlu0 0
        %4225 = vperm.xlu0 %4224, %v4135
        %v4226 = vpop.permute.xlu0 %4225
        %4229 = vset.pattern.permute.xlu0 0
        %4230 = vperm.xlu0 %4229, %v4136
        %v4231 = vpop.permute.xlu0 %4230
        %4234 = vset.pattern.permute.xlu0 0
        %4235 = vperm.xlu0 %4234, %v4137
        %v4236 = vpop.permute.xlu0 %4235
        %4239 = vset.pattern.permute.xlu0 0
        %4240 = vperm.xlu0 %4239, %v4138
        %v4241 = vpop.permute.xlu0 %4240
        %4244 = vset.pattern.permute.xlu0 0
        %4245 = vperm.xlu0 %4244, %v4139
        %v4246 = vpop.permute.xlu0 %4245
        %4249 = vset.pattern.permute.xlu0 0
        %4250 = vperm.xlu0 %4249, %v4140
        %v4251 = vpop.permute.xlu0 %4250
        %4254 = vset.pattern.permute.xlu0 0
        %4255 = vperm.xlu0 %4254, %v4141
        %v4256 = vpop.permute.xlu0 %4255
        %4259 = vset.pattern.permute.xlu0 0
        %4260 = vperm.xlu0 %4259, %v4142
        %v4261 = vpop.permute.xlu0 %4260
        %4264 = vset.pattern.permute.xlu0 0
        %4265 = vperm.xlu0 %4264, %v4143
        %v4266 = vpop.permute.xlu0 %4265
        %4269 = vset.pattern.permute.xlu0 0
        %4270 = vperm.xlu0 %4269, %v4144
        %v4271 = vpop.permute.xlu0 %4270
        %v4273 = vsub.f32 %v4042, %v4196
        %v4274 = vsub.f32 %v4044, %v4201
        %v4275 = vsub.f32 %v4047, %v4206
        %v4276 = vsub.f32 %v4049, %v4211
        %v4277 = vsub.f32 %v4052, %v4216
        %v4278 = vsub.f32 %v4054, %v4221
        %v4279 = vsub.f32 %v4057, %v4226
        %v4280 = vsub.f32 %v4059, %v4231
        %v4281 = vsub.f32 %v4062, %v4236
        %v4282 = vsub.f32 %v4064, %v4241
        %v4283 = vsub.f32 %v4067, %v4246
        %v4284 = vsub.f32 %v4069, %v4251
        %v4285 = vsub.f32 %v4072, %v4256
        %v4286 = vsub.f32 %v4074, %v4261
        %v4287 = vsub.f32 %v4077, %v4266
        %v4288 = vsub.f32 %v4079, %v4271
        %v4289 = vmul.f32 %v4273, 1.442695
        %v4290 = vpow.pop %v4289
        %v4291 = vmul.f32 %v4274, 1.442695
        %v4292 = vpow.pop %v4291
        %v4293 = vmul.f32 %v4275, 1.442695
        %v4294 = vpow.pop %v4293
        %v4295 = vmul.f32 %v4276, 1.442695
        %v4296 = vpow.pop %v4295
        %v4297 = vmul.f32 %v4277, 1.442695
        %v4298 = vpow.pop %v4297
        %v4299 = vmul.f32 %v4278, 1.442695
        %v4300 = vpow.pop %v4299
        %v4301 = vmul.f32 %v4279, 1.442695
        %v4302 = vpow.pop %v4301
        %v4303 = vmul.f32 %v4280, 1.442695
        %v4304 = vpow.pop %v4303
        %v4305 = vmul.f32 %v4281, 1.442695
        %v4306 = vpow.pop %v4305
        %v4307 = vmul.f32 %v4282, 1.442695
        %v4308 = vpow.pop %v4307
        %v4309 = vmul.f32 %v4283, 1.442695
        %v4310 = vpow.pop %v4309
        %v4311 = vmul.f32 %v4284, 1.442695
        %v4312 = vpow.pop %v4311
        %v4313 = vmul.f32 %v4285, 1.442695
        %v4314 = vpow.pop %v4313
        %v4315 = vmul.f32 %v4286, 1.442695
        %v4316 = vpow.pop %v4315
        %v4317 = vmul.f32 %v4287, 1.442695
        %v4318 = vpow.pop %v4317
        %v4319 = vmul.f32 %v4288, 1.442695
        %v4320 = vpow.pop %v4319
        %v4321 = vld [vmem:[#allocation6] sm:$0xff]
        %v4322 = vld [vmem:[#allocation6 + $0x8] sm:$0xff]
        %v4323 = vld [vmem:[#allocation6 + $0x10] sm:$0xff]
        %v4324 = vld [vmem:[#allocation6 + $0x18] sm:$0xff]
        %v4325 = vld [vmem:[#allocation6 + $0x20] sm:$0xff]
        %v4326 = vld [vmem:[#allocation6 + $0x28] sm:$0xff]
        %v4327 = vld [vmem:[#allocation6 + $0x30] sm:$0xff]
        %v4328 = vld [vmem:[#allocation6 + $0x38] sm:$0xff]
        %v4329 = vld [vmem:[#allocation6 + $0x40] sm:$0xff]
        %v4330 = vld [vmem:[#allocation6 + $0x48] sm:$0xff]
        %v4331 = vld [vmem:[#allocation6 + $0x50] sm:$0xff]
        %v4332 = vld [vmem:[#allocation6 + $0x58] sm:$0xff]
        %v4333 = vld [vmem:[#allocation6 + $0x60] sm:$0xff]
        %v4334 = vld [vmem:[#allocation6 + $0x68] sm:$0xff]
        %v4335 = vld [vmem:[#allocation6 + $0x70] sm:$0xff]
        %v4336 = vld [vmem:[#allocation6 + $0x78] sm:$0xff]
        %v4337 = vmul.f32 %v4162, %v4321
        %v4338 = vmul.f32 %v4164, %v4322
        %v4339 = vmul.f32 %v4166, %v4323
        %v4340 = vmul.f32 %v4168, %v4324
        %v4341 = vmul.f32 %v4170, %v4325
        %v4342 = vmul.f32 %v4172, %v4326
        %v4343 = vmul.f32 %v4174, %v4327
        %v4344 = vmul.f32 %v4176, %v4328
        %v4345 = vmul.f32 %v4178, %v4329
        %v4346 = vmul.f32 %v4180, %v4330
        %v4347 = vmul.f32 %v4182, %v4331
        %v4348 = vmul.f32 %v4184, %v4332
        %v4349 = vmul.f32 %v4186, %v4333
        %v4350 = vmul.f32 %v4188, %v4334
        %v4351 = vmul.f32 %v4190, %v4335
        %v4352 = vmul.f32 %v4192, %v4336
        %4353 = vadd.xlane.f32.xlu0 %v4290
        %v4354 = vpop.xlane.xlu0 %4353
        %4355 = vadd.xlane.f32.xlu0 %v4292
        %v4356 = vpop.xlane.xlu0 %4355
        %4357 = vadd.xlane.f32.xlu0 %v4294
        %v4358 = vpop.xlane.xlu0 %4357
        %4359 = vadd.xlane.f32.xlu0 %v4296
        %v4360 = vpop.xlane.xlu0 %4359
        %4361 = vadd.xlane.f32.xlu0 %v4298
        %v4362 = vpop.xlane.xlu0 %4361
        %4363 = vadd.xlane.f32.xlu0 %v4300
        %v4364 = vpop.xlane.xlu0 %4363
        %4365 = vadd.xlane.f32.xlu0 %v4302
        %v4366 = vpop.xlane.xlu0 %4365
        %4367 = vadd.xlane.f32.xlu0 %v4304
        %v4368 = vpop.xlane.xlu0 %4367
        %4369 = vadd.xlane.f32.xlu0 %v4306
        %v4370 = vpop.xlane.xlu0 %4369
        %4371 = vadd.xlane.f32.xlu0 %v4308
        %v4372 = vpop.xlane.xlu0 %4371
        %4373 = vadd.xlane.f32.xlu0 %v4310
        %v4374 = vpop.xlane.xlu0 %4373
        %4375 = vadd.xlane.f32.xlu0 %v4312
        %v4376 = vpop.xlane.xlu0 %4375
        %4377 = vadd.xlane.f32.xlu0 %v4314
        %v4378 = vpop.xlane.xlu0 %4377
        %4379 = vadd.xlane.f32.xlu0 %v4316
        %v4380 = vpop.xlane.xlu0 %4379
        %4381 = vadd.xlane.f32.xlu0 %v4318
        %v4382 = vpop.xlane.xlu0 %4381
        %4383 = vadd.xlane.f32.xlu0 %v4320
        %v4384 = vpop.xlane.xlu0 %4383
        %v4385 = vadd.f32 %v4337, %v4354
        %v4386 = vadd.f32 %v4338, %v4356
        %v4387 = vadd.f32 %v4339, %v4358
        %v4388 = vadd.f32 %v4340, %v4360
        %v4389 = vadd.f32 %v4341, %v4362
        %v4390 = vadd.f32 %v4342, %v4364
        %v4391 = vadd.f32 %v4343, %v4366
        %v4392 = vadd.f32 %v4344, %v4368
        %v4393 = vadd.f32 %v4345, %v4370
        %v4394 = vadd.f32 %v4346, %v4372
        %v4395 = vadd.f32 %v4347, %v4374
        %v4396 = vadd.f32 %v4348, %v4376
        %v4397 = vadd.f32 %v4349, %v4378
        %v4398 = vadd.f32 %v4350, %v4380
        %v4399 = vadd.f32 %v4351, %v4382
        %v4400 = vadd.f32 %v4352, %v4384
        %vm4401 = vcmask 7168
        %4402 = vst.msk [vmem:[#allocation6] sm:$0xff] %vm4401, %v4385
        %4403 = vst.msk [vmem:[#allocation6 + $0x8] sm:$0xff] %vm4401, %v4386
        %4404 = vst.msk [vmem:[#allocation6 + $0x10] sm:$0xff] %vm4401, %v4387
        %4405 = vst.msk [vmem:[#allocation6 + $0x18] sm:$0xff] %vm4401, %v4388
        %4406 = vst.msk [vmem:[#allocation6 + $0x20] sm:$0xff] %vm4401, %v4389
        %4407 = vst.msk [vmem:[#allocation6 + $0x28] sm:$0xff] %vm4401, %v4390
        %4408 = vst.msk [vmem:[#allocation6 + $0x30] sm:$0xff] %vm4401, %v4391
        %4409 = vst.msk [vmem:[#allocation6 + $0x38] sm:$0xff] %vm4401, %v4392
        %4410 = vst.msk [vmem:[#allocation6 + $0x40] sm:$0xff] %vm4401, %v4393
        %4411 = vst.msk [vmem:[#allocation6 + $0x48] sm:$0xff] %vm4401, %v4394
        %4412 = vst.msk [vmem:[#allocation6 + $0x50] sm:$0xff] %vm4401, %v4395
        %4413 = vst.msk [vmem:[#allocation6 + $0x58] sm:$0xff] %vm4401, %v4396
        %4414 = vst.msk [vmem:[#allocation6 + $0x60] sm:$0xff] %vm4401, %v4397
        %4415 = vst.msk [vmem:[#allocation6 + $0x68] sm:$0xff] %vm4401, %v4398
        %4416 = vst.msk [vmem:[#allocation6 + $0x70] sm:$0xff] %vm4401, %v4399
        %4417 = vst.msk [vmem:[#allocation6 + $0x78] sm:$0xff] %vm4401, %v4400
        %v4418 = vld [vmem:[#allocation7] sm:$0xff]
        %v4419 = vld [vmem:[#allocation7 + $0x8] sm:$0xff]
        %v4420 = vld [vmem:[#allocation7 + $0x10] sm:$0xff]
        %v4421 = vld [vmem:[#allocation7 + $0x18] sm:$0xff]
        %v4422 = vld [vmem:[#allocation7 + $0x20] sm:$0xff]
        %v4423 = vld [vmem:[#allocation7 + $0x28] sm:$0xff]
        %v4424 = vld [vmem:[#allocation7 + $0x30] sm:$0xff]
        %v4425 = vld [vmem:[#allocation7 + $0x38] sm:$0xff]
        %v4426 = vld [vmem:[#allocation7 + $0x40] sm:$0xff]
        %v4427 = vld [vmem:[#allocation7 + $0x48] sm:$0xff]
        %v4428 = vld [vmem:[#allocation7 + $0x50] sm:$0xff]
        %v4429 = vld [vmem:[#allocation7 + $0x58] sm:$0xff]
        %v4430 = vld [vmem:[#allocation7 + $0x60] sm:$0xff]
        %v4431 = vld [vmem:[#allocation7 + $0x68] sm:$0xff]
        %v4432 = vld [vmem:[#allocation7 + $0x70] sm:$0xff]
        %v4433 = vld [vmem:[#allocation7 + $0x78] sm:$0xff]
        %4435 = vset.pattern.permute.xlu0 0
        %4436 = vperm.xlu0 %4435, %v4162
        %v4437 = vpop.permute.xlu0 %4436
        %4440 = vset.pattern.permute.xlu0 0
        %4441 = vperm.xlu0 %4440, %v4164
        %v4442 = vpop.permute.xlu0 %4441
        %4445 = vset.pattern.permute.xlu0 0
        %4446 = vperm.xlu0 %4445, %v4166
        %v4447 = vpop.permute.xlu0 %4446
        %4450 = vset.pattern.permute.xlu0 0
        %4451 = vperm.xlu0 %4450, %v4168
        %v4452 = vpop.permute.xlu0 %4451
        %4455 = vset.pattern.permute.xlu0 0
        %4456 = vperm.xlu0 %4455, %v4170
        %v4457 = vpop.permute.xlu0 %4456
        %4460 = vset.pattern.permute.xlu0 0
        %4461 = vperm.xlu0 %4460, %v4172
        %v4462 = vpop.permute.xlu0 %4461
        %4465 = vset.pattern.permute.xlu0 0
        %4466 = vperm.xlu0 %4465, %v4174
        %v4467 = vpop.permute.xlu0 %4466
        %4470 = vset.pattern.permute.xlu0 0
        %4471 = vperm.xlu0 %4470, %v4176
        %v4472 = vpop.permute.xlu0 %4471
        %4475 = vset.pattern.permute.xlu0 0
        %4476 = vperm.xlu0 %4475, %v4178
        %v4477 = vpop.permute.xlu0 %4476
        %4480 = vset.pattern.permute.xlu0 0
        %4481 = vperm.xlu0 %4480, %v4180
        %v4482 = vpop.permute.xlu0 %4481
        %4485 = vset.pattern.permute.xlu0 0
        %4486 = vperm.xlu0 %4485, %v4182
        %v4487 = vpop.permute.xlu0 %4486
        %4490 = vset.pattern.permute.xlu0 0
        %4491 = vperm.xlu0 %4490, %v4184
        %v4492 = vpop.permute.xlu0 %4491
        %4495 = vset.pattern.permute.xlu0 0
        %4496 = vperm.xlu0 %4495, %v4186
        %v4497 = vpop.permute.xlu0 %4496
        %4500 = vset.pattern.permute.xlu0 0
        %4501 = vperm.xlu0 %4500, %v4188
        %v4502 = vpop.permute.xlu0 %4501
        %4505 = vset.pattern.permute.xlu0 0
        %4506 = vperm.xlu0 %4505, %v4190
        %v4507 = vpop.permute.xlu0 %4506
        %4510 = vset.pattern.permute.xlu0 0
        %4511 = vperm.xlu0 %4510, %v4192
        %v4512 = vpop.permute.xlu0 %4511
        %v4514 = vmul.f32 %v4437, %v4418
        %v4515 = vmul.f32 %v4442, %v4419
        %v4516 = vmul.f32 %v4447, %v4420
        %v4517 = vmul.f32 %v4452, %v4421
        %v4518 = vmul.f32 %v4457, %v4422
        %v4519 = vmul.f32 %v4462, %v4423
        %v4520 = vmul.f32 %v4467, %v4424
        %v4521 = vmul.f32 %v4472, %v4425
        %v4522 = vmul.f32 %v4477, %v4426
        %v4523 = vmul.f32 %v4482, %v4427
        %v4524 = vmul.f32 %v4487, %v4428
        %v4525 = vmul.f32 %v4492, %v4429
        %v4526 = vmul.f32 %v4497, %v4430
        %v4527 = vmul.f32 %v4502, %v4431
        %v4528 = vmul.f32 %v4507, %v4432
        %v4529 = vmul.f32 %v4512, %v4433
        %v4530 = vpack.c.bf16 %v4292, %v4290
        %v4531 = vpack.c.bf16 %v4296, %v4294
        %v4532 = vpack.c.bf16 %v4300, %v4298
        %v4533 = vpack.c.bf16 %v4304, %v4302
        %v4534 = vpack.c.bf16 %v4308, %v4306
        %v4535 = vpack.c.bf16 %v4312, %v4310
        %v4536 = vpack.c.bf16 %v4316, %v4314
        %v4537 = vpack.c.bf16 %v4320, %v4318
        %v4554 = vunpack.c.l.b16 %v3904
        %v4555 = vunpack.c.l.b16 %v3905
        %v4556 = vunpack.c.l.b16 %v3906
        %v4557 = vunpack.c.l.b16 %v3907
        %v4558 = vunpack.c.l.b16 %v3908
        %v4559 = vunpack.c.l.b16 %v3909
        %v4560 = vunpack.c.l.b16 %v3910
        %v4561 = vunpack.c.l.b16 %v3911
        %v4562 = vunpack.c.l.b16 %v3912
        %v4563 = vunpack.c.l.b16 %v3913
        %v4564 = vunpack.c.l.b16 %v3914
        %v4565 = vunpack.c.l.b16 %v3915
        %v4566 = vunpack.c.l.b16 %v3916
        %v4567 = vunpack.c.l.b16 %v3917
        %v4568 = vunpack.c.l.b16 %v3918
        %v4569 = vunpack.c.l.b16 %v3919
        %v4570 = vpack.c.b16 %v4555, %v4554
        %v4571 = vpack.c.b16 %v4557, %v4556
        %v4572 = vpack.c.b16 %v4559, %v4558
        %v4573 = vpack.c.b16 %v4561, %v4560
        %v4574 = vpack.c.b16 %v4563, %v4562
        %v4575 = vpack.c.b16 %v4565, %v4564
        %v4576 = vpack.c.b16 %v4567, %v4566
        %v4577 = vpack.c.b16 %v4569, %v4568
        %4586 = vmatpush.bf16.msra.mxu0 %v4577
        %4587 = vmatpush.bf16.msra.mxu0 %v4576
        %4588 = vmatpush.bf16.msra.mxu0 %v4575
        %4589 = vmatpush.bf16.msra.mxu0 %v4574
        %4590 = vmatpush.bf16.msra.mxu0 %v4573
        %4591 = vmatpush.bf16.msra.mxu0 %v4572
        %4592 = vmatpush.bf16.msra.mxu0 %v4571
        %4593 = vmatpush.bf16.msra.mxu0 %v4570
        %4594 = vmatmul.bf16.gmra.mxu0 %v4530
        %v4595 = vpop.f32.mrf.mxu0
        %v4596 = vadd.f32 0.0, %v4595
        %v4597 = vpop.f32.mrf.mxu0
        %v4598 = vadd.f32 0.0, %v4597
        %4599 = vmatmul.bf16.gmra.mxu0 %v4531
        %v4600 = vpop.f32.mrf.mxu0
        %v4601 = vadd.f32 0.0, %v4600
        %v4602 = vpop.f32.mrf.mxu0
        %v4603 = vadd.f32 0.0, %v4602
        %4604 = vmatmul.bf16.gmra.mxu0 %v4532
        %v4605 = vpop.f32.mrf.mxu0
        %v4606 = vadd.f32 0.0, %v4605
        %v4607 = vpop.f32.mrf.mxu0
        %v4608 = vadd.f32 0.0, %v4607
        %4609 = vmatmul.bf16.gmra.mxu0 %v4533
        %v4610 = vpop.f32.mrf.mxu0
        %v4611 = vadd.f32 0.0, %v4610
        %v4612 = vpop.f32.mrf.mxu0
        %v4613 = vadd.f32 0.0, %v4612
        %4614 = vmatmul.bf16.gmra.mxu0 %v4534
        %v4615 = vpop.f32.mrf.mxu0
        %v4616 = vadd.f32 0.0, %v4615
        %v4617 = vpop.f32.mrf.mxu0
        %v4618 = vadd.f32 0.0, %v4617
        %4619 = vmatmul.bf16.gmra.mxu0 %v4535
        %v4620 = vpop.f32.mrf.mxu0
        %v4621 = vadd.f32 0.0, %v4620
        %v4622 = vpop.f32.mrf.mxu0
        %v4623 = vadd.f32 0.0, %v4622
        %4624 = vmatmul.bf16.gmra.mxu0 %v4536
        %v4625 = vpop.f32.mrf.mxu0
        %v4626 = vadd.f32 0.0, %v4625
        %v4627 = vpop.f32.mrf.mxu0
        %v4628 = vadd.f32 0.0, %v4627
        %4629 = vmatmul.bf16.gmra.mxu0 %v4537
        %v4630 = vpop.f32.mrf.mxu0
        %v4631 = vadd.f32 0.0, %v4630
        %v4632 = vpop.f32.mrf.mxu0
        %v4633 = vadd.f32 0.0, %v4632
        %4634 = vdwg.mxu0
        %v4635 = vadd.f32 %v4514, %v4596
        %v4636 = vadd.f32 %v4515, %v4598
        %v4637 = vadd.f32 %v4516, %v4601
        %v4638 = vadd.f32 %v4517, %v4603
        %v4639 = vadd.f32 %v4518, %v4606
        %v4640 = vadd.f32 %v4519, %v4608
        %v4641 = vadd.f32 %v4520, %v4611
        %v4642 = vadd.f32 %v4521, %v4613
        %v4643 = vadd.f32 %v4522, %v4616
        %v4644 = vadd.f32 %v4523, %v4618
        %v4645 = vadd.f32 %v4524, %v4621
        %v4646 = vadd.f32 %v4525, %v4623
        %v4647 = vadd.f32 %v4526, %v4626
        %v4648 = vadd.f32 %v4527, %v4628
        %v4649 = vadd.f32 %v4528, %v4631
        %v4650 = vadd.f32 %v4529, %v4633
        %4651 = vst [vmem:[#allocation7] sm:$0xff] %v4635
        %4652 = vst [vmem:[#allocation7 + $0x8] sm:$0xff] %v4636
        %4653 = vst [vmem:[#allocation7 + $0x10] sm:$0xff] %v4637
        %4654 = vst [vmem:[#allocation7 + $0x18] sm:$0xff] %v4638
        %4655 = vst [vmem:[#allocation7 + $0x20] sm:$0xff] %v4639
        %4656 = vst [vmem:[#allocation7 + $0x28] sm:$0xff] %v4640
        %4657 = vst [vmem:[#allocation7 + $0x30] sm:$0xff] %v4641
        %4658 = vst [vmem:[#allocation7 + $0x38] sm:$0xff] %v4642
        %4659 = vst [vmem:[#allocation7 + $0x40] sm:$0xff] %v4643
        %4660 = vst [vmem:[#allocation7 + $0x48] sm:$0xff] %v4644
        %4661 = vst [vmem:[#allocation7 + $0x50] sm:$0xff] %v4645
        %4662 = vst [vmem:[#allocation7 + $0x58] sm:$0xff] %v4646
        %4663 = vst [vmem:[#allocation7 + $0x60] sm:$0xff] %v4647
        %4664 = vst [vmem:[#allocation7 + $0x68] sm:$0xff] %v4648
        %4665 = vst [vmem:[#allocation7 + $0x70] sm:$0xff] %v4649
        %4666 = vst [vmem:[#allocation7 + $0x78] sm:$0xff] %v4650
        %4667 = vst.msk [vmem:[#allocation5] sm:$0xff] %vm4401, %v4129
        %4668 = vst.msk [vmem:[#allocation5 + $0x8] sm:$0xff] %vm4401, %v4130
        %4669 = vst.msk [vmem:[#allocation5 + $0x10] sm:$0xff] %vm4401, %v4131
        %4670 = vst.msk [vmem:[#allocation5 + $0x18] sm:$0xff] %vm4401, %v4132
        %4671 = vst.msk [vmem:[#allocation5 + $0x20] sm:$0xff] %vm4401, %v4133
        %4672 = vst.msk [vmem:[#allocation5 + $0x28] sm:$0xff] %vm4401, %v4134
        %4673 = vst.msk [vmem:[#allocation5 + $0x30] sm:$0xff] %vm4401, %v4135
        %4674 = vst.msk [vmem:[#allocation5 + $0x38] sm:$0xff] %vm4401, %v4136
        %4675 = vst.msk [vmem:[#allocation5 + $0x40] sm:$0xff] %vm4401, %v4137
        %4676 = vst.msk [vmem:[#allocation5 + $0x48] sm:$0xff] %vm4401, %v4138
        %4677 = vst.msk [vmem:[#allocation5 + $0x50] sm:$0xff] %vm4401, %v4139
        %4678 = vst.msk [vmem:[#allocation5 + $0x58] sm:$0xff] %vm4401, %v4140
        %4679 = vst.msk [vmem:[#allocation5 + $0x60] sm:$0xff] %vm4401, %v4141
        %4680 = vst.msk [vmem:[#allocation5 + $0x68] sm:$0xff] %vm4401, %v4142
        %4681 = vst.msk [vmem:[#allocation5 + $0x70] sm:$0xff] %vm4401, %v4143
        %4682 = vst.msk [vmem:[#allocation5 + $0x78] sm:$0xff] %vm4401, %v4144
        %s4683 = sadd.s32 %s3882, 32
        %s4684 = smul.addr %s4683, 4
        %s4685 = scalar_lea.vmem [#allocation3], %s4684
        %v4686 = vld [vmem:[%s4685] sm:$0xf]
        %v4687 = vld [vmem:[%s4685 + $0x4] sm:$0xf]
        %v4688 = vld [vmem:[%s4685 + $0x8] sm:$0xf]
        %v4689 = vld [vmem:[%s4685 + $0xc] sm:$0xf]
        %v4690 = vld [vmem:[%s4685 + $0x10] sm:$0xf]
        %v4691 = vld [vmem:[%s4685 + $0x14] sm:$0xf]
        %v4692 = vld [vmem:[%s4685 + $0x18] sm:$0xf]
        %v4693 = vld [vmem:[%s4685 + $0x1c] sm:$0xf]
        %v4694 = vld [vmem:[%s4685 + $0x20] sm:$0xf]
        %v4695 = vld [vmem:[%s4685 + $0x24] sm:$0xf]
        %v4696 = vld [vmem:[%s4685 + $0x28] sm:$0xf]
        %v4697 = vld [vmem:[%s4685 + $0x2c] sm:$0xf]
        %v4698 = vld [vmem:[%s4685 + $0x30] sm:$0xf]
        %v4699 = vld [vmem:[%s4685 + $0x34] sm:$0xf]
        %v4700 = vld [vmem:[%s4685 + $0x38] sm:$0xf]
        %v4701 = vld [vmem:[%s4685 + $0x3c] sm:$0xf]
        %s4702 = smul.addr %s4683, 4
        %s4703 = scalar_lea.vmem [#allocation4], %s4702
        %v4704 = vld [vmem:[%s4703] sm:$0xf]
        %v4705 = vld [vmem:[%s4703 + $0x4] sm:$0xf]
        %v4706 = vld [vmem:[%s4703 + $0x8] sm:$0xf]
        %v4707 = vld [vmem:[%s4703 + $0xc] sm:$0xf]
        %v4708 = vld [vmem:[%s4703 + $0x10] sm:$0xf]
        %v4709 = vld [vmem:[%s4703 + $0x14] sm:$0xf]
        %v4710 = vld [vmem:[%s4703 + $0x18] sm:$0xf]
        %v4711 = vld [vmem:[%s4703 + $0x1c] sm:$0xf]
        %v4712 = vld [vmem:[%s4703 + $0x20] sm:$0xf]
        %v4713 = vld [vmem:[%s4703 + $0x24] sm:$0xf]
        %v4714 = vld [vmem:[%s4703 + $0x28] sm:$0xf]
        %v4715 = vld [vmem:[%s4703 + $0x2c] sm:$0xf]
        %v4716 = vld [vmem:[%s4703 + $0x30] sm:$0xf]
        %v4717 = vld [vmem:[%s4703 + $0x34] sm:$0xf]
        %v4718 = vld [vmem:[%s4703 + $0x38] sm:$0xf]
        %v4719 = vld [vmem:[%s4703 + $0x3c] sm:$0xf]
        %s4720 = scalar_lea.vmem [#allocation2], 64
        %v4721 = vld [vmem:[%s4720] sm:$0xf]
        %v4722 = vld [vmem:[%s4720 + $0x4] sm:$0xf]
        %v4723 = vld [vmem:[%s4720 + $0x8] sm:$0xf]
        %v4724 = vld [vmem:[%s4720 + $0xc] sm:$0xf]
        %v4725 = vld [vmem:[%s4720 + $0x10] sm:$0xf]
        %v4726 = vld [vmem:[%s4720 + $0x14] sm:$0xf]
        %v4727 = vld [vmem:[%s4720 + $0x18] sm:$0xf]
        %v4728 = vld [vmem:[%s4720 + $0x1c] sm:$0xf]
        %v4729 = vld [vmem:[%s4720 + $0x20] sm:$0xf]
        %v4730 = vld [vmem:[%s4720 + $0x24] sm:$0xf]
        %v4731 = vld [vmem:[%s4720 + $0x28] sm:$0xf]
        %v4732 = vld [vmem:[%s4720 + $0x2c] sm:$0xf]
        %v4733 = vld [vmem:[%s4720 + $0x30] sm:$0xf]
        %v4734 = vld [vmem:[%s4720 + $0x34] sm:$0xf]
        %v4735 = vld [vmem:[%s4720 + $0x38] sm:$0xf]
        %v4736 = vld [vmem:[%s4720 + $0x3c] sm:$0xf]
        %v4753 = vunpack.c.l.b16 %v4721
        %v4754 = vunpack.c.l.b16 %v4722
        %v4755 = vunpack.c.l.b16 %v4723
        %v4756 = vunpack.c.l.b16 %v4724
        %v4757 = vunpack.c.l.b16 %v4725
        %v4758 = vunpack.c.l.b16 %v4726
        %v4759 = vunpack.c.l.b16 %v4727
        %v4760 = vunpack.c.l.b16 %v4728
        %v4761 = vunpack.c.l.b16 %v4729
        %v4762 = vunpack.c.l.b16 %v4730
        %v4763 = vunpack.c.l.b16 %v4731
        %v4764 = vunpack.c.l.b16 %v4732
        %v4765 = vunpack.c.l.b16 %v4733
        %v4766 = vunpack.c.l.b16 %v4734
        %v4767 = vunpack.c.l.b16 %v4735
        %v4768 = vunpack.c.l.b16 %v4736
        %v4769 = vpack.c.b16 %v4754, %v4753
        %v4770 = vpack.c.b16 %v4756, %v4755
        %v4771 = vpack.c.b16 %v4758, %v4757
        %v4772 = vpack.c.b16 %v4760, %v4759
        %v4773 = vpack.c.b16 %v4762, %v4761
        %v4774 = vpack.c.b16 %v4764, %v4763
        %v4775 = vpack.c.b16 %v4766, %v4765
        %v4776 = vpack.c.b16 %v4768, %v4767
        %v4801 = vunpack.c.l.b16 %v4686
        %v4802 = vunpack.c.l.b16 %v4687
        %v4803 = vunpack.c.l.b16 %v4688
        %v4804 = vunpack.c.l.b16 %v4689
        %v4805 = vunpack.c.l.b16 %v4690
        %v4806 = vunpack.c.l.b16 %v4691
        %v4807 = vunpack.c.l.b16 %v4692
        %v4808 = vunpack.c.l.b16 %v4693
        %v4809 = vunpack.c.l.b16 %v4694
        %v4810 = vunpack.c.l.b16 %v4695
        %v4811 = vunpack.c.l.b16 %v4696
        %v4812 = vunpack.c.l.b16 %v4697
        %v4813 = vunpack.c.l.b16 %v4698
        %v4814 = vunpack.c.l.b16 %v4699
        %v4815 = vunpack.c.l.b16 %v4700
        %v4816 = vunpack.c.l.b16 %v4701
        %v4817 = vpack.c.b16 %v4802, %v4801
        %v4818 = vpack.c.b16 %v4804, %v4803
        %v4819 = vpack.c.b16 %v4806, %v4805
        %v4820 = vpack.c.b16 %v4808, %v4807
        %v4821 = vpack.c.b16 %v4810, %v4809
        %v4822 = vpack.c.b16 %v4812, %v4811
        %v4823 = vpack.c.b16 %v4814, %v4813
        %v4824 = vpack.c.b16 %v4816, %v4815
        %4833 = vmatpush.bf16.xpose.msra.mxu0 %v4824
        %4834 = vmatpush.bf16.xpose.msra.mxu0 %v4823
        %4835 = vmatpush.bf16.xpose.msra.mxu0 %v4822
        %4836 = vmatpush.bf16.xpose.msra.mxu0 %v4821
        %4837 = vmatpush.bf16.xpose.msra.mxu0 %v4820
        %4838 = vmatpush.bf16.xpose.msra.mxu0 %v4819
        %4839 = vmatpush.bf16.xpose.msra.mxu0 %v4818
        %4840 = vmatpush.bf16.xpose.msra.mxu0 %v4817
        %4841 = vmatmul.bf16.gmra.mxu0 %v4769
        %v4842 = vpop.f32.mrf.mxu0
        %v4843 = vadd.f32 0.0, %v4842
        %v4844 = vpop.f32.mrf.mxu0
        %v4845 = vadd.f32 0.0, %v4844
        %4846 = vmatmul.bf16.gmra.mxu0 %v4770
        %v4847 = vpop.f32.mrf.mxu0
        %v4848 = vadd.f32 0.0, %v4847
        %v4849 = vpop.f32.mrf.mxu0
        %v4850 = vadd.f32 0.0, %v4849
        %4851 = vmatmul.bf16.gmra.mxu0 %v4771
        %v4852 = vpop.f32.mrf.mxu0
        %v4853 = vadd.f32 0.0, %v4852
        %v4854 = vpop.f32.mrf.mxu0
        %v4855 = vadd.f32 0.0, %v4854
        %4856 = vmatmul.bf16.gmra.mxu0 %v4772
        %v4857 = vpop.f32.mrf.mxu0
        %v4858 = vadd.f32 0.0, %v4857
        %v4859 = vpop.f32.mrf.mxu0
        %v4860 = vadd.f32 0.0, %v4859
        %4861 = vmatmul.bf16.gmra.mxu0 %v4773
        %v4862 = vpop.f32.mrf.mxu0
        %v4863 = vadd.f32 0.0, %v4862
        %v4864 = vpop.f32.mrf.mxu0
        %v4865 = vadd.f32 0.0, %v4864
        %4866 = vmatmul.bf16.gmra.mxu0 %v4774
        %v4867 = vpop.f32.mrf.mxu0
        %v4868 = vadd.f32 0.0, %v4867
        %v4869 = vpop.f32.mrf.mxu0
        %v4870 = vadd.f32 0.0, %v4869
        %4871 = vmatmul.bf16.gmra.mxu0 %v4775
        %v4872 = vpop.f32.mrf.mxu0
        %v4873 = vadd.f32 0.0, %v4872
        %v4874 = vpop.f32.mrf.mxu0
        %v4875 = vadd.f32 0.0, %v4874
        %4876 = vmatmul.bf16.gmra.mxu0 %v4776
        %v4877 = vpop.f32.mrf.mxu0
        %v4878 = vadd.f32 0.0, %v4877
        %v4879 = vpop.f32.mrf.mxu0
        %v4880 = vadd.f32 0.0, %v4879
        %4881 = vdwg.mxu0
        %s4882 = scalar_lea.vmem [#allocation5], 128
        %v4883 = vld [vmem:[%s4882] sm:$0xff]
        %v4884 = vld [vmem:[%s4882 + $0x8] sm:$0xff]
        %v4885 = vld [vmem:[%s4882 + $0x10] sm:$0xff]
        %v4886 = vld [vmem:[%s4882 + $0x18] sm:$0xff]
        %v4887 = vld [vmem:[%s4882 + $0x20] sm:$0xff]
        %v4888 = vld [vmem:[%s4882 + $0x28] sm:$0xff]
        %v4889 = vld [vmem:[%s4882 + $0x30] sm:$0xff]
        %v4890 = vld [vmem:[%s4882 + $0x38] sm:$0xff]
        %v4891 = vld [vmem:[%s4882 + $0x40] sm:$0xff]
        %v4892 = vld [vmem:[%s4882 + $0x48] sm:$0xff]
        %v4893 = vld [vmem:[%s4882 + $0x50] sm:$0xff]
        %v4894 = vld [vmem:[%s4882 + $0x58] sm:$0xff]
        %v4895 = vld [vmem:[%s4882 + $0x60] sm:$0xff]
        %v4896 = vld [vmem:[%s4882 + $0x68] sm:$0xff]
        %v4897 = vld [vmem:[%s4882 + $0x70] sm:$0xff]
        %v4898 = vld [vmem:[%s4882 + $0x78] sm:$0xff]
        %4899 = vmax.xlane.f32.xlu0 %v4843
        %v4900 = vpop.xlane.xlu0 %4899
        %4901 = vmax.xlane.f32.xlu0 %v4845
        %v4902 = vpop.xlane.xlu0 %4901
        %4903 = vmax.xlane.f32.xlu0 %v4848
        %v4904 = vpop.xlane.xlu0 %4903
        %4905 = vmax.xlane.f32.xlu0 %v4850
        %v4906 = vpop.xlane.xlu0 %4905
        %4907 = vmax.xlane.f32.xlu0 %v4853
        %v4908 = vpop.xlane.xlu0 %4907
        %4909 = vmax.xlane.f32.xlu0 %v4855
        %v4910 = vpop.xlane.xlu0 %4909
        %4911 = vmax.xlane.f32.xlu0 %v4858
        %v4912 = vpop.xlane.xlu0 %4911
        %4913 = vmax.xlane.f32.xlu0 %v4860
        %v4914 = vpop.xlane.xlu0 %4913
        %4915 = vmax.xlane.f32.xlu0 %v4863
        %v4916 = vpop.xlane.xlu0 %4915
        %4917 = vmax.xlane.f32.xlu0 %v4865
        %v4918 = vpop.xlane.xlu0 %4917
        %4919 = vmax.xlane.f32.xlu0 %v4868
        %v4920 = vpop.xlane.xlu0 %4919
        %4921 = vmax.xlane.f32.xlu0 %v4870
        %v4922 = vpop.xlane.xlu0 %4921
        %4923 = vmax.xlane.f32.xlu0 %v4873
        %v4924 = vpop.xlane.xlu0 %4923
        %4925 = vmax.xlane.f32.xlu0 %v4875
        %v4926 = vpop.xlane.xlu0 %4925
        %4927 = vmax.xlane.f32.xlu0 %v4878
        %v4928 = vpop.xlane.xlu0 %4927
        %4929 = vmax.xlane.f32.xlu0 %v4880
        %v4930 = vpop.xlane.xlu0 %4929
        %v4931 = vmax.f32 %v4883, %v4900
        %v4932 = vmax.f32 %v4884, %v4902
        %v4933 = vmax.f32 %v4885, %v4904
        %v4934 = vmax.f32 %v4886, %v4906
        %v4935 = vmax.f32 %v4887, %v4908
        %v4936 = vmax.f32 %v4888, %v4910
        %v4937 = vmax.f32 %v4889, %v4912
        %v4938 = vmax.f32 %v4890, %v4914
        %v4939 = vmax.f32 %v4891, %v4916
        %v4940 = vmax.f32 %v4892, %v4918
        %v4941 = vmax.f32 %v4893, %v4920
        %v4942 = vmax.f32 %v4894, %v4922
        %v4943 = vmax.f32 %v4895, %v4924
        %v4944 = vmax.f32 %v4896, %v4926
        %v4945 = vmax.f32 %v4897, %v4928
        %v4946 = vmax.f32 %v4898, %v4930
        %v4947 = vsub.f32 %v4883, %v4931
        %v4948 = vsub.f32 %v4884, %v4932
        %v4949 = vsub.f32 %v4885, %v4933
        %v4950 = vsub.f32 %v4886, %v4934
        %v4951 = vsub.f32 %v4887, %v4935
        %v4952 = vsub.f32 %v4888, %v4936
        %v4953 = vsub.f32 %v4889, %v4937
        %v4954 = vsub.f32 %v4890, %v4938
        %v4955 = vsub.f32 %v4891, %v4939
        %v4956 = vsub.f32 %v4892, %v4940
        %v4957 = vsub.f32 %v4893, %v4941
        %v4958 = vsub.f32 %v4894, %v4942
        %v4959 = vsub.f32 %v4895, %v4943
        %v4960 = vsub.f32 %v4896, %v4944
        %v4961 = vsub.f32 %v4897, %v4945
        %v4962 = vsub.f32 %v4898, %v4946
        %v4963 = vmul.f32 %v4947, 1.442695
        %v4964 = vpow.pop %v4963
        %v4965 = vmul.f32 %v4948, 1.442695
        %v4966 = vpow.pop %v4965
        %v4967 = vmul.f32 %v4949, 1.442695
        %v4968 = vpow.pop %v4967
        %v4969 = vmul.f32 %v4950, 1.442695
        %v4970 = vpow.pop %v4969
        %v4971 = vmul.f32 %v4951, 1.442695
        %v4972 = vpow.pop %v4971
        %v4973 = vmul.f32 %v4952, 1.442695
        %v4974 = vpow.pop %v4973
        %v4975 = vmul.f32 %v4953, 1.442695
        %v4976 = vpow.pop %v4975
        %v4977 = vmul.f32 %v4954, 1.442695
        %v4978 = vpow.pop %v4977
        %v4979 = vmul.f32 %v4955, 1.442695
        %v4980 = vpow.pop %v4979
        %v4981 = vmul.f32 %v4956, 1.442695
        %v4982 = vpow.pop %v4981
        %v4983 = vmul.f32 %v4957, 1.442695
        %v4984 = vpow.pop %v4983
        %v4985 = vmul.f32 %v4958, 1.442695
        %v4986 = vpow.pop %v4985
        %v4987 = vmul.f32 %v4959, 1.442695
        %v4988 = vpow.pop %v4987
        %v4989 = vmul.f32 %v4960, 1.442695
        %v4990 = vpow.pop %v4989
        %v4991 = vmul.f32 %v4961, 1.442695
        %v4992 = vpow.pop %v4991
        %v4993 = vmul.f32 %v4962, 1.442695
        %v4994 = vpow.pop %v4993
        %4996 = vset.pattern.permute.xlu0 0
        %4997 = vperm.xlu0 %4996, %v4931
        %v4998 = vpop.permute.xlu0 %4997
        %5001 = vset.pattern.permute.xlu0 0
        %5002 = vperm.xlu0 %5001, %v4932
        %v5003 = vpop.permute.xlu0 %5002
        %5006 = vset.pattern.permute.xlu0 0
        %5007 = vperm.xlu0 %5006, %v4933
        %v5008 = vpop.permute.xlu0 %5007
        %5011 = vset.pattern.permute.xlu0 0
        %5012 = vperm.xlu0 %5011, %v4934
        %v5013 = vpop.permute.xlu0 %5012
        %5016 = vset.pattern.permute.xlu0 0
        %5017 = vperm.xlu0 %5016, %v4935
        %v5018 = vpop.permute.xlu0 %5017
        %5021 = vset.pattern.permute.xlu0 0
        %5022 = vperm.xlu0 %5021, %v4936
        %v5023 = vpop.permute.xlu0 %5022
        %5026 = vset.pattern.permute.xlu0 0
        %5027 = vperm.xlu0 %5026, %v4937
        %v5028 = vpop.permute.xlu0 %5027
        %5031 = vset.pattern.permute.xlu0 0
        %5032 = vperm.xlu0 %5031, %v4938
        %v5033 = vpop.permute.xlu0 %5032
        %5036 = vset.pattern.permute.xlu0 0
        %5037 = vperm.xlu0 %5036, %v4939
        %v5038 = vpop.permute.xlu0 %5037
        %5041 = vset.pattern.permute.xlu0 0
        %5042 = vperm.xlu0 %5041, %v4940
        %v5043 = vpop.permute.xlu0 %5042
        %5046 = vset.pattern.permute.xlu0 0
        %5047 = vperm.xlu0 %5046, %v4941
        %v5048 = vpop.permute.xlu0 %5047
        %5051 = vset.pattern.permute.xlu0 0
        %5052 = vperm.xlu0 %5051, %v4942
        %v5053 = vpop.permute.xlu0 %5052
        %5056 = vset.pattern.permute.xlu0 0
        %5057 = vperm.xlu0 %5056, %v4943
        %v5058 = vpop.permute.xlu0 %5057
        %5061 = vset.pattern.permute.xlu0 0
        %5062 = vperm.xlu0 %5061, %v4944
        %v5063 = vpop.permute.xlu0 %5062
        %5066 = vset.pattern.permute.xlu0 0
        %5067 = vperm.xlu0 %5066, %v4945
        %v5068 = vpop.permute.xlu0 %5067
        %5071 = vset.pattern.permute.xlu0 0
        %5072 = vperm.xlu0 %5071, %v4946
        %v5073 = vpop.permute.xlu0 %5072
        %v5075 = vsub.f32 %v4843, %v4998
        %v5076 = vsub.f32 %v4845, %v5003
        %v5077 = vsub.f32 %v4848, %v5008
        %v5078 = vsub.f32 %v4850, %v5013
        %v5079 = vsub.f32 %v4853, %v5018
        %v5080 = vsub.f32 %v4855, %v5023
        %v5081 = vsub.f32 %v4858, %v5028
        %v5082 = vsub.f32 %v4860, %v5033
        %v5083 = vsub.f32 %v4863, %v5038
        %v5084 = vsub.f32 %v4865, %v5043
        %v5085 = vsub.f32 %v4868, %v5048
        %v5086 = vsub.f32 %v4870, %v5053
        %v5087 = vsub.f32 %v4873, %v5058
        %v5088 = vsub.f32 %v4875, %v5063
        %v5089 = vsub.f32 %v4878, %v5068
        %v5090 = vsub.f32 %v4880, %v5073
        %v5091 = vmul.f32 %v5075, 1.442695
        %v5092 = vpow.pop %v5091
        %v5093 = vmul.f32 %v5076, 1.442695
        %v5094 = vpow.pop %v5093
        %v5095 = vmul.f32 %v5077, 1.442695
        %v5096 = vpow.pop %v5095
        %v5097 = vmul.f32 %v5078, 1.442695
        %v5098 = vpow.pop %v5097
        %v5099 = vmul.f32 %v5079, 1.442695
        %v5100 = vpow.pop %v5099
        %v5101 = vmul.f32 %v5080, 1.442695
        %v5102 = vpow.pop %v5101
        %v5103 = vmul.f32 %v5081, 1.442695
        %v5104 = vpow.pop %v5103
        %v5105 = vmul.f32 %v5082, 1.442695
        %v5106 = vpow.pop %v5105
        %v5107 = vmul.f32 %v5083, 1.442695
        %v5108 = vpow.pop %v5107
        %v5109 = vmul.f32 %v5084, 1.442695
        %v5110 = vpow.pop %v5109
        %v5111 = vmul.f32 %v5085, 1.442695
        %v5112 = vpow.pop %v5111
        %v5113 = vmul.f32 %v5086, 1.442695
        %v5114 = vpow.pop %v5113
        %v5115 = vmul.f32 %v5087, 1.442695
        %v5116 = vpow.pop %v5115
        %v5117 = vmul.f32 %v5088, 1.442695
        %v5118 = vpow.pop %v5117
        %v5119 = vmul.f32 %v5089, 1.442695
        %v5120 = vpow.pop %v5119
        %v5121 = vmul.f32 %v5090, 1.442695
        %v5122 = vpow.pop %v5121
        %s5123 = scalar_lea.vmem [#allocation6], 128
        %v5124 = vld [vmem:[%s5123] sm:$0xff]
        %v5125 = vld [vmem:[%s5123 + $0x8] sm:$0xff]
        %v5126 = vld [vmem:[%s5123 + $0x10] sm:$0xff]
        %v5127 = vld [vmem:[%s5123 + $0x18] sm:$0xff]
        %v5128 = vld [vmem:[%s5123 + $0x20] sm:$0xff]
        %v5129 = vld [vmem:[%s5123 + $0x28] sm:$0xff]
        %v5130 = vld [vmem:[%s5123 + $0x30] sm:$0xff]
        %v5131 = vld [vmem:[%s5123 + $0x38] sm:$0xff]
        %v5132 = vld [vmem:[%s5123 + $0x40] sm:$0xff]
        %v5133 = vld [vmem:[%s5123 + $0x48] sm:$0xff]
        %v5134 = vld [vmem:[%s5123 + $0x50] sm:$0xff]
        %v5135 = vld [vmem:[%s5123 + $0x58] sm:$0xff]
        %v5136 = vld [vmem:[%s5123 + $0x60] sm:$0xff]
        %v5137 = vld [vmem:[%s5123 + $0x68] sm:$0xff]
        %v5138 = vld [vmem:[%s5123 + $0x70] sm:$0xff]
        %v5139 = vld [vmem:[%s5123 + $0x78] sm:$0xff]
        %v5140 = vmul.f32 %v4964, %v5124
        %v5141 = vmul.f32 %v4966, %v5125
        %v5142 = vmul.f32 %v4968, %v5126
        %v5143 = vmul.f32 %v4970, %v5127
        %v5144 = vmul.f32 %v4972, %v5128
        %v5145 = vmul.f32 %v4974, %v5129
        %v5146 = vmul.f32 %v4976, %v5130
        %v5147 = vmul.f32 %v4978, %v5131
        %v5148 = vmul.f32 %v4980, %v5132
        %v5149 = vmul.f32 %v4982, %v5133
        %v5150 = vmul.f32 %v4984, %v5134
        %v5151 = vmul.f32 %v4986, %v5135
        %v5152 = vmul.f32 %v4988, %v5136
        %v5153 = vmul.f32 %v4990, %v5137
        %v5154 = vmul.f32 %v4992, %v5138
        %v5155 = vmul.f32 %v4994, %v5139
        %5156 = vadd.xlane.f32.xlu0 %v5092
        %v5157 = vpop.xlane.xlu0 %5156
        %5158 = vadd.xlane.f32.xlu0 %v5094
        %v5159 = vpop.xlane.xlu0 %5158
        %5160 = vadd.xlane.f32.xlu0 %v5096
        %v5161 = vpop.xlane.xlu0 %5160
        %5162 = vadd.xlane.f32.xlu0 %v5098
        %v5163 = vpop.xlane.xlu0 %5162
        %5164 = vadd.xlane.f32.xlu0 %v5100
        %v5165 = vpop.xlane.xlu0 %5164
        %5166 = vadd.xlane.f32.xlu0 %v5102
        %v5167 = vpop.xlane.xlu0 %5166
        %5168 = vadd.xlane.f32.xlu0 %v5104
        %v5169 = vpop.xlane.xlu0 %5168
        %5170 = vadd.xlane.f32.xlu0 %v5106
        %v5171 = vpop.xlane.xlu0 %5170
        %5172 = vadd.xlane.f32.xlu0 %v5108
        %v5173 = vpop.xlane.xlu0 %5172
        %5174 = vadd.xlane.f32.xlu0 %v5110
        %v5175 = vpop.xlane.xlu0 %5174
        %5176 = vadd.xlane.f32.xlu0 %v5112
        %v5177 = vpop.xlane.xlu0 %5176
        %5178 = vadd.xlane.f32.xlu0 %v5114
        %v5179 = vpop.xlane.xlu0 %5178
        %5180 = vadd.xlane.f32.xlu0 %v5116
        %v5181 = vpop.xlane.xlu0 %5180
        %5182 = vadd.xlane.f32.xlu0 %v5118
        %v5183 = vpop.xlane.xlu0 %5182
        %5184 = vadd.xlane.f32.xlu0 %v5120
        %v5185 = vpop.xlane.xlu0 %5184
        %5186 = vadd.xlane.f32.xlu0 %v5122
        %v5187 = vpop.xlane.xlu0 %5186
        %v5188 = vadd.f32 %v5140, %v5157
        %v5189 = vadd.f32 %v5141, %v5159
        %v5190 = vadd.f32 %v5142, %v5161
        %v5191 = vadd.f32 %v5143, %v5163
        %v5192 = vadd.f32 %v5144, %v5165
        %v5193 = vadd.f32 %v5145, %v5167
        %v5194 = vadd.f32 %v5146, %v5169
        %v5195 = vadd.f32 %v5147, %v5171
        %v5196 = vadd.f32 %v5148, %v5173
        %v5197 = vadd.f32 %v5149, %v5175
        %v5198 = vadd.f32 %v5150, %v5177
        %v5199 = vadd.f32 %v5151, %v5179
        %v5200 = vadd.f32 %v5152, %v5181
        %v5201 = vadd.f32 %v5153, %v5183
        %v5202 = vadd.f32 %v5154, %v5185
        %v5203 = vadd.f32 %v5155, %v5187
        %5204 = vst.msk [vmem:[%s5123] sm:$0xff] %vm4401, %v5188
        %5205 = vst.msk [vmem:[%s5123 + $0x8] sm:$0xff] %vm4401, %v5189
        %5206 = vst.msk [vmem:[%s5123 + $0x10] sm:$0xff] %vm4401, %v5190
        %5207 = vst.msk [vmem:[%s5123 + $0x18] sm:$0xff] %vm4401, %v5191
        %5208 = vst.msk [vmem:[%s5123 + $0x20] sm:$0xff] %vm4401, %v5192
        %5209 = vst.msk [vmem:[%s5123 + $0x28] sm:$0xff] %vm4401, %v5193
        %5210 = vst.msk [vmem:[%s5123 + $0x30] sm:$0xff] %vm4401, %v5194
        %5211 = vst.msk [vmem:[%s5123 + $0x38] sm:$0xff] %vm4401, %v5195
        %5212 = vst.msk [vmem:[%s5123 + $0x40] sm:$0xff] %vm4401, %v5196
        %5213 = vst.msk [vmem:[%s5123 + $0x48] sm:$0xff] %vm4401, %v5197
        %5214 = vst.msk [vmem:[%s5123 + $0x50] sm:$0xff] %vm4401, %v5198
        %5215 = vst.msk [vmem:[%s5123 + $0x58] sm:$0xff] %vm4401, %v5199
        %5216 = vst.msk [vmem:[%s5123 + $0x60] sm:$0xff] %vm4401, %v5200
        %5217 = vst.msk [vmem:[%s5123 + $0x68] sm:$0xff] %vm4401, %v5201
        %5218 = vst.msk [vmem:[%s5123 + $0x70] sm:$0xff] %vm4401, %v5202
        %5219 = vst.msk [vmem:[%s5123 + $0x78] sm:$0xff] %vm4401, %v5203
        %s5220 = scalar_lea.vmem [#allocation7], 128
        %v5221 = vld [vmem:[%s5220] sm:$0xff]
        %v5222 = vld [vmem:[%s5220 + $0x8] sm:$0xff]
        %v5223 = vld [vmem:[%s5220 + $0x10] sm:$0xff]
        %v5224 = vld [vmem:[%s5220 + $0x18] sm:$0xff]
        %v5225 = vld [vmem:[%s5220 + $0x20] sm:$0xff]
        %v5226 = vld [vmem:[%s5220 + $0x28] sm:$0xff]
        %v5227 = vld [vmem:[%s5220 + $0x30] sm:$0xff]
        %v5228 = vld [vmem:[%s5220 + $0x38] sm:$0xff]
        %v5229 = vld [vmem:[%s5220 + $0x40] sm:$0xff]
        %v5230 = vld [vmem:[%s5220 + $0x48] sm:$0xff]
        %v5231 = vld [vmem:[%s5220 + $0x50] sm:$0xff]
        %v5232 = vld [vmem:[%s5220 + $0x58] sm:$0xff]
        %v5233 = vld [vmem:[%s5220 + $0x60] sm:$0xff]
        %v5234 = vld [vmem:[%s5220 + $0x68] sm:$0xff]
        %v5235 = vld [vmem:[%s5220 + $0x70] sm:$0xff]
        %v5236 = vld [vmem:[%s5220 + $0x78] sm:$0xff]
        %5238 = vset.pattern.permute.xlu0 0
        %5239 = vperm.xlu0 %5238, %v4964
        %v5240 = vpop.permute.xlu0 %5239
        %5243 = vset.pattern.permute.xlu0 0
        %5244 = vperm.xlu0 %5243, %v4966
        %v5245 = vpop.permute.xlu0 %5244
        %5248 = vset.pattern.permute.xlu0 0
        %5249 = vperm.xlu0 %5248, %v4968
        %v5250 = vpop.permute.xlu0 %5249
        %5253 = vset.pattern.permute.xlu0 0
        %5254 = vperm.xlu0 %5253, %v4970
        %v5255 = vpop.permute.xlu0 %5254
        %5258 = vset.pattern.permute.xlu0 0
        %5259 = vperm.xlu0 %5258, %v4972
        %v5260 = vpop.permute.xlu0 %5259
        %5263 = vset.pattern.permute.xlu0 0
        %5264 = vperm.xlu0 %5263, %v4974
        %v5265 = vpop.permute.xlu0 %5264
        %5268 = vset.pattern.permute.xlu0 0
        %5269 = vperm.xlu0 %5268, %v4976
        %v5270 = vpop.permute.xlu0 %5269
        %5273 = vset.pattern.permute.xlu0 0
        %5274 = vperm.xlu0 %5273, %v4978
        %v5275 = vpop.permute.xlu0 %5274
        %5278 = vset.pattern.permute.xlu0 0
        %5279 = vperm.xlu0 %5278, %v4980
        %v5280 = vpop.permute.xlu0 %5279
        %5283 = vset.pattern.permute.xlu0 0
        %5284 = vperm.xlu0 %5283, %v4982
        %v5285 = vpop.permute.xlu0 %5284
        %5288 = vset.pattern.permute.xlu0 0
        %5289 = vperm.xlu0 %5288, %v4984
        %v5290 = vpop.permute.xlu0 %5289
        %5293 = vset.pattern.permute.xlu0 0
        %5294 = vperm.xlu0 %5293, %v4986
        %v5295 = vpop.permute.xlu0 %5294
        %5298 = vset.pattern.permute.xlu0 0
        %5299 = vperm.xlu0 %5298, %v4988
        %v5300 = vpop.permute.xlu0 %5299
        %5303 = vset.pattern.permute.xlu0 0
        %5304 = vperm.xlu0 %5303, %v4990
        %v5305 = vpop.permute.xlu0 %5304
        %5308 = vset.pattern.permute.xlu0 0
        %5309 = vperm.xlu0 %5308, %v4992
        %v5310 = vpop.permute.xlu0 %5309
        %5313 = vset.pattern.permute.xlu0 0
        %5314 = vperm.xlu0 %5313, %v4994
        %v5315 = vpop.permute.xlu0 %5314
        %v5317 = vmul.f32 %v5240, %v5221
        %v5318 = vmul.f32 %v5245, %v5222
        %v5319 = vmul.f32 %v5250, %v5223
        %v5320 = vmul.f32 %v5255, %v5224
        %v5321 = vmul.f32 %v5260, %v5225
        %v5322 = vmul.f32 %v5265, %v5226
        %v5323 = vmul.f32 %v5270, %v5227
        %v5324 = vmul.f32 %v5275, %v5228
        %v5325 = vmul.f32 %v5280, %v5229
        %v5326 = vmul.f32 %v5285, %v5230
        %v5327 = vmul.f32 %v5290, %v5231
        %v5328 = vmul.f32 %v5295, %v5232
        %v5329 = vmul.f32 %v5300, %v5233
        %v5330 = vmul.f32 %v5305, %v5234
        %v5331 = vmul.f32 %v5310, %v5235
        %v5332 = vmul.f32 %v5315, %v5236
        %v5333 = vpack.c.bf16 %v5094, %v5092
        %v5334 = vpack.c.bf16 %v5098, %v5096
        %v5335 = vpack.c.bf16 %v5102, %v5100
        %v5336 = vpack.c.bf16 %v5106, %v5104
        %v5337 = vpack.c.bf16 %v5110, %v5108
        %v5338 = vpack.c.bf16 %v5114, %v5112
        %v5339 = vpack.c.bf16 %v5118, %v5116
        %v5340 = vpack.c.bf16 %v5122, %v5120
        %v5357 = vunpack.c.l.b16 %v4704
        %v5358 = vunpack.c.l.b16 %v4705
        %v5359 = vunpack.c.l.b16 %v4706
        %v5360 = vunpack.c.l.b16 %v4707
        %v5361 = vunpack.c.l.b16 %v4708
        %v5362 = vunpack.c.l.b16 %v4709
        %v5363 = vunpack.c.l.b16 %v4710
        %v5364 = vunpack.c.l.b16 %v4711
        %v5365 = vunpack.c.l.b16 %v4712
        %v5366 = vunpack.c.l.b16 %v4713
        %v5367 = vunpack.c.l.b16 %v4714
        %v5368 = vunpack.c.l.b16 %v4715
        %v5369 = vunpack.c.l.b16 %v4716
        %v5370 = vunpack.c.l.b16 %v4717
        %v5371 = vunpack.c.l.b16 %v4718
        %v5372 = vunpack.c.l.b16 %v4719
        %v5373 = vpack.c.b16 %v5358, %v5357
        %v5374 = vpack.c.b16 %v5360, %v5359
        %v5375 = vpack.c.b16 %v5362, %v5361
        %v5376 = vpack.c.b16 %v5364, %v5363
        %v5377 = vpack.c.b16 %v5366, %v5365
        %v5378 = vpack.c.b16 %v5368, %v5367
        %v5379 = vpack.c.b16 %v5370, %v5369
        %v5380 = vpack.c.b16 %v5372, %v5371
        %5389 = vmatpush.bf16.msra.mxu0 %v5380
        %5390 = vmatpush.bf16.msra.mxu0 %v5379
        %5391 = vmatpush.bf16.msra.mxu0 %v5378
        %5392 = vmatpush.bf16.msra.mxu0 %v5377
        %5393 = vmatpush.bf16.msra.mxu0 %v5376
        %5394 = vmatpush.bf16.msra.mxu0 %v5375
        %5395 = vmatpush.bf16.msra.mxu0 %v5374
        %5396 = vmatpush.bf16.msra.mxu0 %v5373
        %5397 = vmatmul.bf16.gmra.mxu0 %v5333
        %v5398 = vpop.f32.mrf.mxu0
        %v5399 = vadd.f32 0.0, %v5398
        %v5400 = vpop.f32.mrf.mxu0
        %v5401 = vadd.f32 0.0, %v5400
        %5402 = vmatmul.bf16.gmra.mxu0 %v5334
        %v5403 = vpop.f32.mrf.mxu0
        %v5404 = vadd.f32 0.0, %v5403
        %v5405 = vpop.f32.mrf.mxu0
        %v5406 = vadd.f32 0.0, %v5405
        %5407 = vmatmul.bf16.gmra.mxu0 %v5335
        %v5408 = vpop.f32.mrf.mxu0
        %v5409 = vadd.f32 0.0, %v5408
        %v5410 = vpop.f32.mrf.mxu0
        %v5411 = vadd.f32 0.0, %v5410
        %5412 = vmatmul.bf16.gmra.mxu0 %v5336
        %v5413 = vpop.f32.mrf.mxu0
        %v5414 = vadd.f32 0.0, %v5413
        %v5415 = vpop.f32.mrf.mxu0
        %v5416 = vadd.f32 0.0, %v5415
        %5417 = vmatmul.bf16.gmra.mxu0 %v5337
        %v5418 = vpop.f32.mrf.mxu0
        %v5419 = vadd.f32 0.0, %v5418
        %v5420 = vpop.f32.mrf.mxu0
        %v5421 = vadd.f32 0.0, %v5420
        %5422 = vmatmul.bf16.gmra.mxu0 %v5338
        %v5423 = vpop.f32.mrf.mxu0
        %v5424 = vadd.f32 0.0, %v5423
        %v5425 = vpop.f32.mrf.mxu0
        %v5426 = vadd.f32 0.0, %v5425
        %5427 = vmatmul.bf16.gmra.mxu0 %v5339
        %v5428 = vpop.f32.mrf.mxu0
        %v5429 = vadd.f32 0.0, %v5428
        %v5430 = vpop.f32.mrf.mxu0
        %v5431 = vadd.f32 0.0, %v5430
        %5432 = vmatmul.bf16.gmra.mxu0 %v5340
        %v5433 = vpop.f32.mrf.mxu0
        %v5434 = vadd.f32 0.0, %v5433
        %v5435 = vpop.f32.mrf.mxu0
        %v5436 = vadd.f32 0.0, %v5435
        %5437 = vdwg.mxu0
        %v5438 = vadd.f32 %v5317, %v5399
        %v5439 = vadd.f32 %v5318, %v5401
        %v5440 = vadd.f32 %v5319, %v5404
        %v5441 = vadd.f32 %v5320, %v5406
        %v5442 = vadd.f32 %v5321, %v5409
        %v5443 = vadd.f32 %v5322, %v5411
        %v5444 = vadd.f32 %v5323, %v5414
        %v5445 = vadd.f32 %v5324, %v5416
        %v5446 = vadd.f32 %v5325, %v5419
        %v5447 = vadd.f32 %v5326, %v5421
        %v5448 = vadd.f32 %v5327, %v5424
        %v5449 = vadd.f32 %v5328, %v5426
        %v5450 = vadd.f32 %v5329, %v5429
        %v5451 = vadd.f32 %v5330, %v5431
        %v5452 = vadd.f32 %v5331, %v5434
        %v5453 = vadd.f32 %v5332, %v5436
        %5454 = vst [vmem:[%s5220] sm:$0xff] %v5438
        %5455 = vst [vmem:[%s5220 + $0x8] sm:$0xff] %v5439
        %5456 = vst [vmem:[%s5220 + $0x10] sm:$0xff] %v5440
        %5457 = vst [vmem:[%s5220 + $0x18] sm:$0xff] %v5441
        %5458 = vst [vmem:[%s5220 + $0x20] sm:$0xff] %v5442
        %5459 = vst [vmem:[%s5220 + $0x28] sm:$0xff] %v5443
        %5460 = vst [vmem:[%s5220 + $0x30] sm:$0xff] %v5444
        %5461 = vst [vmem:[%s5220 + $0x38] sm:$0xff] %v5445
        %5462 = vst [vmem:[%s5220 + $0x40] sm:$0xff] %v5446
        %5463 = vst [vmem:[%s5220 + $0x48] sm:$0xff] %v5447
        %5464 = vst [vmem:[%s5220 + $0x50] sm:$0xff] %v5448
        %5465 = vst [vmem:[%s5220 + $0x58] sm:$0xff] %v5449
        %5466 = vst [vmem:[%s5220 + $0x60] sm:$0xff] %v5450
        %5467 = vst [vmem:[%s5220 + $0x68] sm:$0xff] %v5451
        %5468 = vst [vmem:[%s5220 + $0x70] sm:$0xff] %v5452
        %5469 = vst [vmem:[%s5220 + $0x78] sm:$0xff] %v5453
        %5470 = vst.msk [vmem:[%s4882] sm:$0xff] %vm4401, %v4931
        %5471 = vst.msk [vmem:[%s4882 + $0x8] sm:$0xff] %vm4401, %v4932
        %5472 = vst.msk [vmem:[%s4882 + $0x10] sm:$0xff] %vm4401, %v4933
        %5473 = vst.msk [vmem:[%s4882 + $0x18] sm:$0xff] %vm4401, %v4934
        %5474 = vst.msk [vmem:[%s4882 + $0x20] sm:$0xff] %vm4401, %v4935
        %5475 = vst.msk [vmem:[%s4882 + $0x28] sm:$0xff] %vm4401, %v4936
        %5476 = vst.msk [vmem:[%s4882 + $0x30] sm:$0xff] %vm4401, %v4937
        %5477 = vst.msk [vmem:[%s4882 + $0x38] sm:$0xff] %vm4401, %v4938
        %5478 = vst.msk [vmem:[%s4882 + $0x40] sm:$0xff] %vm4401, %v4939
        %5479 = vst.msk [vmem:[%s4882 + $0x48] sm:$0xff] %vm4401, %v4940
        %5480 = vst.msk [vmem:[%s4882 + $0x50] sm:$0xff] %vm4401, %v4941
        %5481 = vst.msk [vmem:[%s4882 + $0x58] sm:$0xff] %vm4401, %v4942
        %5482 = vst.msk [vmem:[%s4882 + $0x60] sm:$0xff] %vm4401, %v4943
        %5483 = vst.msk [vmem:[%s4882 + $0x68] sm:$0xff] %vm4401, %v4944
        %5484 = vst.msk [vmem:[%s4882 + $0x70] sm:$0xff] %vm4401, %v4945
        %5485 = vst.msk [vmem:[%s4882 + $0x78] sm:$0xff] %vm4401, %v4946
        %p5486 = scmp.eq.s32.totalorder %s52, 1
        // Predicated region
        $region153: #{tpu_custom_call.1} parent=91 // pred_check
          %p5487 = pneg %p5486
        $region154: #{tpu_custom_call.1} parent=91 // pred_check_branch
          %5489 = sbr.rel (%p5487) target = $region156
        $region155: #{tpu_custom_call.1} parent=91 // pred_region
          %v5490 = vld [vmem:[#allocation6] sm:$0xff]
          %v5491 = vld [vmem:[#allocation6 + $0x8] sm:$0xff]
          %v5492 = vld [vmem:[#allocation6 + $0x10] sm:$0xff]
          %v5493 = vld [vmem:[#allocation6 + $0x18] sm:$0xff]
          %v5494 = vld [vmem:[#allocation6 + $0x20] sm:$0xff]
          %v5495 = vld [vmem:[#allocation6 + $0x28] sm:$0xff]
          %v5496 = vld [vmem:[#allocation6 + $0x30] sm:$0xff]
          %v5497 = vld [vmem:[#allocation6 + $0x38] sm:$0xff]
          %v5498 = vld [vmem:[#allocation6 + $0x40] sm:$0xff]
          %v5499 = vld [vmem:[#allocation6 + $0x48] sm:$0xff]
          %v5500 = vld [vmem:[#allocation6 + $0x50] sm:$0xff]
          %v5501 = vld [vmem:[#allocation6 + $0x58] sm:$0xff]
          %v5502 = vld [vmem:[#allocation6 + $0x60] sm:$0xff]
          %v5503 = vld [vmem:[#allocation6 + $0x68] sm:$0xff]
          %v5504 = vld [vmem:[#allocation6 + $0x70] sm:$0xff]
          %v5505 = vld [vmem:[#allocation6 + $0x78] sm:$0xff]
          %v5506 = vrcp.pop %v5490
          %v5507 = vrcp.pop %v5491
          %v5508 = vrcp.pop %v5492
          %v5509 = vrcp.pop %v5493
          %v5510 = vrcp.pop %v5494
          %v5511 = vrcp.pop %v5495
          %v5512 = vrcp.pop %v5496
          %v5513 = vrcp.pop %v5497
          %v5514 = vrcp.pop %v5498
          %v5515 = vrcp.pop %v5499
          %v5516 = vrcp.pop %v5500
          %v5517 = vrcp.pop %v5501
          %v5518 = vrcp.pop %v5502
          %v5519 = vrcp.pop %v5503
          %v5520 = vrcp.pop %v5504
          %v5521 = vrcp.pop %v5505
          %v5522 = vld [vmem:[#allocation7] sm:$0xff]
          %v5523 = vld [vmem:[#allocation7 + $0x8] sm:$0xff]
          %v5524 = vld [vmem:[#allocation7 + $0x10] sm:$0xff]
          %v5525 = vld [vmem:[#allocation7 + $0x18] sm:$0xff]
          %v5526 = vld [vmem:[#allocation7 + $0x20] sm:$0xff]
          %v5527 = vld [vmem:[#allocation7 + $0x28] sm:$0xff]
          %v5528 = vld [vmem:[#allocation7 + $0x30] sm:$0xff]
          %v5529 = vld [vmem:[#allocation7 + $0x38] sm:$0xff]
          %v5530 = vld [vmem:[#allocation7 + $0x40] sm:$0xff]
          %v5531 = vld [vmem:[#allocation7 + $0x48] sm:$0xff]
          %v5532 = vld [vmem:[#allocation7 + $0x50] sm:$0xff]
          %v5533 = vld [vmem:[#allocation7 + $0x58] sm:$0xff]
          %v5534 = vld [vmem:[#allocation7 + $0x60] sm:$0xff]
          %v5535 = vld [vmem:[#allocation7 + $0x68] sm:$0xff]
          %v5536 = vld [vmem:[#allocation7 + $0x70] sm:$0xff]
          %v5537 = vld [vmem:[#allocation7 + $0x78] sm:$0xff]
          %5539 = vset.pattern.permute.xlu0 0
          %5540 = vperm.xlu0 %5539, %v5506
          %v5541 = vpop.permute.xlu0 %5540
          %5544 = vset.pattern.permute.xlu0 0
          %5545 = vperm.xlu0 %5544, %v5507
          %v5546 = vpop.permute.xlu0 %5545
          %5549 = vset.pattern.permute.xlu0 0
          %5550 = vperm.xlu0 %5549, %v5508
          %v5551 = vpop.permute.xlu0 %5550
          %5554 = vset.pattern.permute.xlu0 0
          %5555 = vperm.xlu0 %5554, %v5509
          %v5556 = vpop.permute.xlu0 %5555
          %5559 = vset.pattern.permute.xlu0 0
          %5560 = vperm.xlu0 %5559, %v5510
          %v5561 = vpop.permute.xlu0 %5560
          %5564 = vset.pattern.permute.xlu0 0
          %5565 = vperm.xlu0 %5564, %v5511
          %v5566 = vpop.permute.xlu0 %5565
          %5569 = vset.pattern.permute.xlu0 0
          %5570 = vperm.xlu0 %5569, %v5512
          %v5571 = vpop.permute.xlu0 %5570
          %5574 = vset.pattern.permute.xlu0 0
          %5575 = vperm.xlu0 %5574, %v5513
          %v5576 = vpop.permute.xlu0 %5575
          %5579 = vset.pattern.permute.xlu0 0
          %5580 = vperm.xlu0 %5579, %v5514
          %v5581 = vpop.permute.xlu0 %5580
          %5584 = vset.pattern.permute.xlu0 0
          %5585 = vperm.xlu0 %5584, %v5515
          %v5586 = vpop.permute.xlu0 %5585
          %5589 = vset.pattern.permute.xlu0 0
          %5590 = vperm.xlu0 %5589, %v5516
          %v5591 = vpop.permute.xlu0 %5590
          %5594 = vset.pattern.permute.xlu0 0
          %5595 = vperm.xlu0 %5594, %v5517
          %v5596 = vpop.permute.xlu0 %5595
          %5599 = vset.pattern.permute.xlu0 0
          %5600 = vperm.xlu0 %5599, %v5518
          %v5601 = vpop.permute.xlu0 %5600
          %5604 = vset.pattern.permute.xlu0 0
          %5605 = vperm.xlu0 %5604, %v5519
          %v5606 = vpop.permute.xlu0 %5605
          %5609 = vset.pattern.permute.xlu0 0
          %5610 = vperm.xlu0 %5609, %v5520
          %v5611 = vpop.permute.xlu0 %5610
          %5614 = vset.pattern.permute.xlu0 0
          %5615 = vperm.xlu0 %5614, %v5521
          %v5616 = vpop.permute.xlu0 %5615
          %v5618 = vmul.f32 %v5522, %v5541
          %v5619 = vmul.f32 %v5523, %v5546
          %v5620 = vmul.f32 %v5524, %v5551
          %v5621 = vmul.f32 %v5525, %v5556
          %v5622 = vmul.f32 %v5526, %v5561
          %v5623 = vmul.f32 %v5527, %v5566
          %v5624 = vmul.f32 %v5528, %v5571
          %v5625 = vmul.f32 %v5529, %v5576
          %v5626 = vmul.f32 %v5530, %v5581
          %v5627 = vmul.f32 %v5531, %v5586
          %v5628 = vmul.f32 %v5532, %v5591
          %v5629 = vmul.f32 %v5533, %v5596
          %v5630 = vmul.f32 %v5534, %v5601
          %v5631 = vmul.f32 %v5535, %v5606
          %v5632 = vmul.f32 %v5536, %v5611
          %v5633 = vmul.f32 %v5537, %v5616
          %v5634 = vpack.c.bf16 %v5618, %v5618
          %v5635 = vpack.c.bf16 %v5619, %v5619
          %v5636 = vpack.c.bf16 %v5620, %v5620
          %v5637 = vpack.c.bf16 %v5621, %v5621
          %v5638 = vpack.c.bf16 %v5622, %v5622
          %v5639 = vpack.c.bf16 %v5623, %v5623
          %v5640 = vpack.c.bf16 %v5624, %v5624
          %v5641 = vpack.c.bf16 %v5625, %v5625
          %v5642 = vpack.c.bf16 %v5626, %v5626
          %v5643 = vpack.c.bf16 %v5627, %v5627
          %v5644 = vpack.c.bf16 %v5628, %v5628
          %v5645 = vpack.c.bf16 %v5629, %v5629
          %v5646 = vpack.c.bf16 %v5630, %v5630
          %v5647 = vpack.c.bf16 %v5631, %v5631
          %v5648 = vpack.c.bf16 %v5632, %v5632
          %v5649 = vpack.c.bf16 %v5633, %v5633
          %5650 = vst [vmem:[#allocation8] sm:$0xf] %v5634
          %5651 = vst [vmem:[#allocation8 + $0x8] sm:$0xf] %v5635
          %5652 = vst [vmem:[#allocation8 + $0x10] sm:$0xf] %v5636
          %5653 = vst [vmem:[#allocation8 + $0x18] sm:$0xf] %v5637
          %5654 = vst [vmem:[#allocation8 + $0x20] sm:$0xf] %v5638
          %5655 = vst [vmem:[#allocation8 + $0x28] sm:$0xf] %v5639
          %5656 = vst [vmem:[#allocation8 + $0x30] sm:$0xf] %v5640
          %5657 = vst [vmem:[#allocation8 + $0x38] sm:$0xf] %v5641
          %5658 = vst [vmem:[#allocation8 + $0x40] sm:$0xf] %v5642
          %5659 = vst [vmem:[#allocation8 + $0x48] sm:$0xf] %v5643
          %5660 = vst [vmem:[#allocation8 + $0x50] sm:$0xf] %v5644
          %5661 = vst [vmem:[#allocation8 + $0x58] sm:$0xf] %v5645
          %5662 = vst [vmem:[#allocation8 + $0x60] sm:$0xf] %v5646
          %5663 = vst [vmem:[#allocation8 + $0x68] sm:$0xf] %v5647
          %5664 = vst [vmem:[#allocation8 + $0x70] sm:$0xf] %v5648
          %5665 = vst [vmem:[#allocation8 + $0x78] sm:$0xf] %v5649
          %v5666 = vld [vmem:[%s5123] sm:$0xff]
          %v5667 = vld [vmem:[%s5123 + $0x8] sm:$0xff]
          %v5668 = vld [vmem:[%s5123 + $0x10] sm:$0xff]
          %v5669 = vld [vmem:[%s5123 + $0x18] sm:$0xff]
          %v5670 = vld [vmem:[%s5123 + $0x20] sm:$0xff]
          %v5671 = vld [vmem:[%s5123 + $0x28] sm:$0xff]
          %v5672 = vld [vmem:[%s5123 + $0x30] sm:$0xff]
          %v5673 = vld [vmem:[%s5123 + $0x38] sm:$0xff]
          %v5674 = vld [vmem:[%s5123 + $0x40] sm:$0xff]
          %v5675 = vld [vmem:[%s5123 + $0x48] sm:$0xff]
          %v5676 = vld [vmem:[%s5123 + $0x50] sm:$0xff]
          %v5677 = vld [vmem:[%s5123 + $0x58] sm:$0xff]
          %v5678 = vld [vmem:[%s5123 + $0x60] sm:$0xff]
          %v5679 = vld [vmem:[%s5123 + $0x68] sm:$0xff]
          %v5680 = vld [vmem:[%s5123 + $0x70] sm:$0xff]
          %v5681 = vld [vmem:[%s5123 + $0x78] sm:$0xff]
          %v5682 = vrcp.pop %v5666
          %v5683 = vrcp.pop %v5667
          %v5684 = vrcp.pop %v5668
          %v5685 = vrcp.pop %v5669
          %v5686 = vrcp.pop %v5670
          %v5687 = vrcp.pop %v5671
          %v5688 = vrcp.pop %v5672
          %v5689 = vrcp.pop %v5673
          %v5690 = vrcp.pop %v5674
          %v5691 = vrcp.pop %v5675
          %v5692 = vrcp.pop %v5676
          %v5693 = vrcp.pop %v5677
          %v5694 = vrcp.pop %v5678
          %v5695 = vrcp.pop %v5679
          %v5696 = vrcp.pop %v5680
          %v5697 = vrcp.pop %v5681
          %v5698 = vld [vmem:[%s5220] sm:$0xff]
          %v5699 = vld [vmem:[%s5220 + $0x8] sm:$0xff]
          %v5700 = vld [vmem:[%s5220 + $0x10] sm:$0xff]
          %v5701 = vld [vmem:[%s5220 + $0x18] sm:$0xff]
          %v5702 = vld [vmem:[%s5220 + $0x20] sm:$0xff]
          %v5703 = vld [vmem:[%s5220 + $0x28] sm:$0xff]
          %v5704 = vld [vmem:[%s5220 + $0x30] sm:$0xff]
          %v5705 = vld [vmem:[%s5220 + $0x38] sm:$0xff]
          %v5706 = vld [vmem:[%s5220 + $0x40] sm:$0xff]
          %v5707 = vld [vmem:[%s5220 + $0x48] sm:$0xff]
          %v5708 = vld [vmem:[%s5220 + $0x50] sm:$0xff]
          %v5709 = vld [vmem:[%s5220 + $0x58] sm:$0xff]
          %v5710 = vld [vmem:[%s5220 + $0x60] sm:$0xff]
          %v5711 = vld [vmem:[%s5220 + $0x68] sm:$0xff]
          %v5712 = vld [vmem:[%s5220 + $0x70] sm:$0xff]
          %v5713 = vld [vmem:[%s5220 + $0x78] sm:$0xff]
          %5715 = vset.pattern.permute.xlu0 0
          %5716 = vperm.xlu0 %5715, %v5682
          %v5717 = vpop.permute.xlu0 %5716
          %5720 = vset.pattern.permute.xlu0 0
          %5721 = vperm.xlu0 %5720, %v5683
          %v5722 = vpop.permute.xlu0 %5721
          %5725 = vset.pattern.permute.xlu0 0
          %5726 = vperm.xlu0 %5725, %v5684
          %v5727 = vpop.permute.xlu0 %5726
          %5730 = vset.pattern.permute.xlu0 0
          %5731 = vperm.xlu0 %5730, %v5685
          %v5732 = vpop.permute.xlu0 %5731
          %5735 = vset.pattern.permute.xlu0 0
          %5736 = vperm.xlu0 %5735, %v5686
          %v5737 = vpop.permute.xlu0 %5736
          %5740 = vset.pattern.permute.xlu0 0
          %5741 = vperm.xlu0 %5740, %v5687
          %v5742 = vpop.permute.xlu0 %5741
          %5745 = vset.pattern.permute.xlu0 0
          %5746 = vperm.xlu0 %5745, %v5688
          %v5747 = vpop.permute.xlu0 %5746
          %5750 = vset.pattern.permute.xlu0 0
          %5751 = vperm.xlu0 %5750, %v5689
          %v5752 = vpop.permute.xlu0 %5751
          %5755 = vset.pattern.permute.xlu0 0
          %5756 = vperm.xlu0 %5755, %v5690
          %v5757 = vpop.permute.xlu0 %5756
          %5760 = vset.pattern.permute.xlu0 0
          %5761 = vperm.xlu0 %5760, %v5691
          %v5762 = vpop.permute.xlu0 %5761
          %5765 = vset.pattern.permute.xlu0 0
          %5766 = vperm.xlu0 %5765, %v5692
          %v5767 = vpop.permute.xlu0 %5766
          %5770 = vset.pattern.permute.xlu0 0
          %5771 = vperm.xlu0 %5770, %v5693
          %v5772 = vpop.permute.xlu0 %5771
          %5775 = vset.pattern.permute.xlu0 0
          %5776 = vperm.xlu0 %5775, %v5694
          %v5777 = vpop.permute.xlu0 %5776
          %5780 = vset.pattern.permute.xlu0 0
          %5781 = vperm.xlu0 %5780, %v5695
          %v5782 = vpop.permute.xlu0 %5781
          %5785 = vset.pattern.permute.xlu0 0
          %5786 = vperm.xlu0 %5785, %v5696
          %v5787 = vpop.permute.xlu0 %5786
          %5790 = vset.pattern.permute.xlu0 0
          %5791 = vperm.xlu0 %5790, %v5697
          %v5792 = vpop.permute.xlu0 %5791
          %v5794 = vmul.f32 %v5698, %v5717
          %v5795 = vmul.f32 %v5699, %v5722
          %v5796 = vmul.f32 %v5700, %v5727
          %v5797 = vmul.f32 %v5701, %v5732
          %v5798 = vmul.f32 %v5702, %v5737
          %v5799 = vmul.f32 %v5703, %v5742
          %v5800 = vmul.f32 %v5704, %v5747
          %v5801 = vmul.f32 %v5705, %v5752
          %v5802 = vmul.f32 %v5706, %v5757
          %v5803 = vmul.f32 %v5707, %v5762
          %v5804 = vmul.f32 %v5708, %v5767
          %v5805 = vmul.f32 %v5709, %v5772
          %v5806 = vmul.f32 %v5710, %v5777
          %v5807 = vmul.f32 %v5711, %v5782
          %v5808 = vmul.f32 %v5712, %v5787
          %v5809 = vmul.f32 %v5713, %v5792
          %v5810 = vpack.c.bf16 %v5794, %v5794
          %v5811 = vpack.c.bf16 %v5795, %v5795
          %v5812 = vpack.c.bf16 %v5796, %v5796
          %v5813 = vpack.c.bf16 %v5797, %v5797
          %v5814 = vpack.c.bf16 %v5798, %v5798
          %v5815 = vpack.c.bf16 %v5799, %v5799
          %v5816 = vpack.c.bf16 %v5800, %v5800
          %v5817 = vpack.c.bf16 %v5801, %v5801
          %v5818 = vpack.c.bf16 %v5802, %v5802
          %v5819 = vpack.c.bf16 %v5803, %v5803
          %v5820 = vpack.c.bf16 %v5804, %v5804
          %v5821 = vpack.c.bf16 %v5805, %v5805
          %v5822 = vpack.c.bf16 %v5806, %v5806
          %v5823 = vpack.c.bf16 %v5807, %v5807
          %v5824 = vpack.c.bf16 %v5808, %v5808
          %v5825 = vpack.c.bf16 %v5809, %v5809
          %5826 = vst [vmem:[#allocation8 + $0x4] sm:$0xf] %v5810
          %5827 = vst [vmem:[#allocation8 + $0xc] sm:$0xf] %v5811
          %5828 = vst [vmem:[#allocation8 + $0x14] sm:$0xf] %v5812
          %5829 = vst [vmem:[#allocation8 + $0x1c] sm:$0xf] %v5813
          %5830 = vst [vmem:[#allocation8 + $0x24] sm:$0xf] %v5814
          %5831 = vst [vmem:[#allocation8 + $0x2c] sm:$0xf] %v5815
          %5832 = vst [vmem:[#allocation8 + $0x34] sm:$0xf] %v5816
          %5833 = vst [vmem:[#allocation8 + $0x3c] sm:$0xf] %v5817
          %5834 = vst [vmem:[#allocation8 + $0x44] sm:$0xf] %v5818
          %5835 = vst [vmem:[#allocation8 + $0x4c] sm:$0xf] %v5819
          %5836 = vst [vmem:[#allocation8 + $0x54] sm:$0xf] %v5820
          %5837 = vst [vmem:[#allocation8 + $0x5c] sm:$0xf] %v5821
          %5838 = vst [vmem:[#allocation8 + $0x64] sm:$0xf] %v5822
          %5839 = vst [vmem:[#allocation8 + $0x6c] sm:$0xf] %v5823
          %5840 = vst [vmem:[#allocation8 + $0x74] sm:$0xf] %v5824
          %5841 = vst [vmem:[#allocation8 + $0x7c] sm:$0xf] %v5825
          %v5842 = vld [vmem:[#allocation8] sm:$0xff]
          %v5843 = vld [vmem:[#allocation8 + $0x8] sm:$0xff]
          %v5844 = vld [vmem:[#allocation8 + $0x10] sm:$0xff]
          %v5845 = vld [vmem:[#allocation8 + $0x18] sm:$0xff]
          %v5846 = vld [vmem:[#allocation8 + $0x20] sm:$0xff]
          %v5847 = vld [vmem:[#allocation8 + $0x28] sm:$0xff]
          %v5848 = vld [vmem:[#allocation8 + $0x30] sm:$0xff]
          %v5849 = vld [vmem:[#allocation8 + $0x38] sm:$0xff]
          %v5850 = vld [vmem:[#allocation8 + $0x40] sm:$0xff]
          %v5851 = vld [vmem:[#allocation8 + $0x48] sm:$0xff]
          %v5852 = vld [vmem:[#allocation8 + $0x50] sm:$0xff]
          %v5853 = vld [vmem:[#allocation8 + $0x58] sm:$0xff]
          %v5854 = vld [vmem:[#allocation8 + $0x60] sm:$0xff]
          %v5855 = vld [vmem:[#allocation8 + $0x68] sm:$0xff]
          %v5856 = vld [vmem:[#allocation8 + $0x70] sm:$0xff]
          %v5857 = vld [vmem:[#allocation8 + $0x78] sm:$0xff]
          %v5858 = vld [vmem:[#allocation24] sm:$0xff]
          %v5859 = vld [vmem:[#allocation24 + $0x8] sm:$0xff]
          %v5860 = vld [vmem:[#allocation24 + $0x10] sm:$0xff]
          %v5861 = vld [vmem:[#allocation24 + $0x18] sm:$0xff]
          %v5862 = vld [vmem:[#allocation24 + $0x20] sm:$0xff]
          %v5863 = vld [vmem:[#allocation24 + $0x28] sm:$0xff]
          %v5864 = vld [vmem:[#allocation24 + $0x30] sm:$0xff]
          %v5865 = vld [vmem:[#allocation24 + $0x38] sm:$0xff]
          %v5866 = vld [vmem:[#allocation24 + $0x40] sm:$0xff]
          %v5867 = vld [vmem:[#allocation24 + $0x48] sm:$0xff]
          %v5868 = vld [vmem:[#allocation24 + $0x50] sm:$0xff]
          %v5869 = vld [vmem:[#allocation24 + $0x58] sm:$0xff]
          %v5870 = vld [vmem:[#allocation24 + $0x60] sm:$0xff]
          %v5871 = vld [vmem:[#allocation24 + $0x68] sm:$0xff]
          %v5872 = vld [vmem:[#allocation24 + $0x70] sm:$0xff]
          %v5873 = vld [vmem:[#allocation24 + $0x78] sm:$0xff]
          %v5874 = vld [vmem:[#allocation24 + $0x80] sm:$0xff]
          %v5875 = vld [vmem:[#allocation24 + $0x88] sm:$0xff]
          %v5876 = vld [vmem:[#allocation24 + $0x90] sm:$0xff]
          %v5877 = vld [vmem:[#allocation24 + $0x98] sm:$0xff]
          %v5878 = vld [vmem:[#allocation24 + $0xa0] sm:$0xff]
          %v5879 = vld [vmem:[#allocation24 + $0xa8] sm:$0xff]
          %v5880 = vld [vmem:[#allocation24 + $0xb0] sm:$0xff]
          %v5881 = vld [vmem:[#allocation24 + $0xb8] sm:$0xff]
          %v5882 = vld [vmem:[#allocation24 + $0xc0] sm:$0xff]
          %v5883 = vld [vmem:[#allocation24 + $0xc8] sm:$0xff]
          %v5884 = vld [vmem:[#allocation24 + $0xd0] sm:$0xff]
          %v5885 = vld [vmem:[#allocation24 + $0xd8] sm:$0xff]
          %v5886 = vld [vmem:[#allocation24 + $0xe0] sm:$0xff]
          %v5887 = vld [vmem:[#allocation24 + $0xe8] sm:$0xff]
          %v5888 = vld [vmem:[#allocation24 + $0xf0] sm:$0xff]
          %v5889 = vld [vmem:[#allocation24 + $0xf8] sm:$0xff]
          %v5890 = vld [vmem:[%s11] sm:$0x3]
          %v5892 = vperm.slane %v5890, 0
          %v5893 = vperm.slane %v5890, 1
          %v5912 = vunpack.c.l.b16 %v5842
          %v5913 = vunpack.c.h.b16 %v5842
          %v5914 = vunpack.c.l.b16 %v5843
          %v5915 = vunpack.c.h.b16 %v5843
          %v5916 = vunpack.c.l.b16 %v5844
          %v5917 = vunpack.c.h.b16 %v5844
          %v5918 = vunpack.c.l.b16 %v5845
          %v5919 = vunpack.c.h.b16 %v5845
          %v5920 = vunpack.c.l.b16 %v5846
          %v5921 = vunpack.c.h.b16 %v5846
          %v5922 = vunpack.c.l.b16 %v5847
          %v5923 = vunpack.c.h.b16 %v5847
          %v5924 = vunpack.c.l.b16 %v5848
          %v5925 = vunpack.c.h.b16 %v5848
          %v5926 = vunpack.c.l.b16 %v5849
          %v5927 = vunpack.c.h.b16 %v5849
          %v5928 = vunpack.c.l.b16 %v5850
          %v5929 = vunpack.c.h.b16 %v5850
          %v5930 = vunpack.c.l.b16 %v5851
          %v5931 = vunpack.c.h.b16 %v5851
          %v5932 = vunpack.c.l.b16 %v5852
          %v5933 = vunpack.c.h.b16 %v5852
          %v5934 = vunpack.c.l.b16 %v5853
          %v5935 = vunpack.c.h.b16 %v5853
          %v5936 = vunpack.c.l.b16 %v5854
          %v5937 = vunpack.c.h.b16 %v5854
          %v5938 = vunpack.c.l.b16 %v5855
          %v5939 = vunpack.c.h.b16 %v5855
          %v5940 = vunpack.c.l.b16 %v5856
          %v5941 = vunpack.c.h.b16 %v5856
          %v5942 = vunpack.c.l.b16 %v5857
          %v5943 = vunpack.c.h.b16 %v5857
          %v5944 = vpack.c.b16 %v5914, %v5912
          %v5945 = vpack.c.b16 %v5915, %v5913
          %v5946 = vpack.c.b16 %v5918, %v5916
          %v5947 = vpack.c.b16 %v5919, %v5917
          %v5948 = vpack.c.b16 %v5922, %v5920
          %v5949 = vpack.c.b16 %v5923, %v5921
          %v5950 = vpack.c.b16 %v5926, %v5924
          %v5951 = vpack.c.b16 %v5927, %v5925
          %v5952 = vpack.c.b16 %v5930, %v5928
          %v5953 = vpack.c.b16 %v5931, %v5929
          %v5954 = vpack.c.b16 %v5934, %v5932
          %v5955 = vpack.c.b16 %v5935, %v5933
          %v5956 = vpack.c.b16 %v5938, %v5936
          %v5957 = vpack.c.b16 %v5939, %v5937
          %v5958 = vpack.c.b16 %v5942, %v5940
          %v5959 = vpack.c.b16 %v5943, %v5941
          %v6008 = vunpack.c.l.b16 %v5858
          %v6009 = vunpack.c.h.b16 %v5858
          %v6010 = vunpack.c.l.b16 %v5859
          %v6011 = vunpack.c.h.b16 %v5859
          %v6012 = vunpack.c.l.b16 %v5860
          %v6013 = vunpack.c.h.b16 %v5860
          %v6014 = vunpack.c.l.b16 %v5861
          %v6015 = vunpack.c.h.b16 %v5861
          %v6016 = vunpack.c.l.b16 %v5862
          %v6017 = vunpack.c.h.b16 %v5862
          %v6018 = vunpack.c.l.b16 %v5863
          %v6019 = vunpack.c.h.b16 %v5863
          %v6020 = vunpack.c.l.b16 %v5864
          %v6021 = vunpack.c.h.b16 %v5864
          %v6022 = vunpack.c.l.b16 %v5865
          %v6023 = vunpack.c.h.b16 %v5865
          %v6024 = vunpack.c.l.b16 %v5866
          %v6025 = vunpack.c.h.b16 %v5866
          %v6026 = vunpack.c.l.b16 %v5867
          %v6027 = vunpack.c.h.b16 %v5867
          %v6028 = vunpack.c.l.b16 %v5868
          %v6029 = vunpack.c.h.b16 %v5868
          %v6030 = vunpack.c.l.b16 %v5869
          %v6031 = vunpack.c.h.b16 %v5869
          %v6032 = vunpack.c.l.b16 %v5870
          %v6033 = vunpack.c.h.b16 %v5870
          %v6034 = vunpack.c.l.b16 %v5871
          %v6035 = vunpack.c.h.b16 %v5871
          %v6036 = vunpack.c.l.b16 %v5872
          %v6037 = vunpack.c.h.b16 %v5872
          %v6038 = vunpack.c.l.b16 %v5873
          %v6039 = vunpack.c.h.b16 %v5873
          %v6040 = vunpack.c.l.b16 %v5874
          %v6041 = vunpack.c.h.b16 %v5874
          %v6042 = vunpack.c.l.b16 %v5875
          %v6043 = vunpack.c.h.b16 %v5875
          %v6044 = vunpack.c.l.b16 %v5876
          %v6045 = vunpack.c.h.b16 %v5876
          %v6046 = vunpack.c.l.b16 %v5877
          %v6047 = vunpack.c.h.b16 %v5877
          %v6048 = vunpack.c.l.b16 %v5878
          %v6049 = vunpack.c.h.b16 %v5878
          %v6050 = vunpack.c.l.b16 %v5879
          %v6051 = vunpack.c.h.b16 %v5879
          %v6052 = vunpack.c.l.b16 %v5880
          %v6053 = vunpack.c.h.b16 %v5880
          %v6054 = vunpack.c.l.b16 %v5881
          %v6055 = vunpack.c.h.b16 %v5881
          %v6056 = vunpack.c.l.b16 %v5882
          %v6057 = vunpack.c.h.b16 %v5882
          %v6058 = vunpack.c.l.b16 %v5883
          %v6059 = vunpack.c.h.b16 %v5883
          %v6060 = vunpack.c.l.b16 %v5884
          %v6061 = vunpack.c.h.b16 %v5884
          %v6062 = vunpack.c.l.b16 %v5885
          %v6063 = vunpack.c.h.b16 %v5885
          %v6064 = vunpack.c.l.b16 %v5886
          %v6065 = vunpack.c.h.b16 %v5886
          %v6066 = vunpack.c.l.b16 %v5887
          %v6067 = vunpack.c.h.b16 %v5887
          %v6068 = vunpack.c.l.b16 %v5888
          %v6069 = vunpack.c.h.b16 %v5888
          %v6070 = vunpack.c.l.b16 %v5889
          %v6071 = vunpack.c.h.b16 %v5889
          %v6072 = vpack.c.b16 %v6010, %v6008
          %v6073 = vpack.c.b16 %v6011, %v6009
          %v6074 = vpack.c.b16 %v6014, %v6012
          %v6075 = vpack.c.b16 %v6015, %v6013
          %v6076 = vpack.c.b16 %v6018, %v6016
          %v6077 = vpack.c.b16 %v6019, %v6017
          %v6078 = vpack.c.b16 %v6022, %v6020
          %v6079 = vpack.c.b16 %v6023, %v6021
          %v6080 = vpack.c.b16 %v6026, %v6024
          %v6081 = vpack.c.b16 %v6027, %v6025
          %v6082 = vpack.c.b16 %v6030, %v6028
          %v6083 = vpack.c.b16 %v6031, %v6029
          %v6084 = vpack.c.b16 %v6034, %v6032
          %v6085 = vpack.c.b16 %v6035, %v6033
          %v6086 = vpack.c.b16 %v6038, %v6036
          %v6087 = vpack.c.b16 %v6039, %v6037
          %v6088 = vpack.c.b16 %v6042, %v6040
          %v6089 = vpack.c.b16 %v6043, %v6041
          %v6090 = vpack.c.b16 %v6046, %v6044
          %v6091 = vpack.c.b16 %v6047, %v6045
          %v6092 = vpack.c.b16 %v6050, %v6048
          %v6093 = vpack.c.b16 %v6051, %v6049
          %v6094 = vpack.c.b16 %v6054, %v6052
          %v6095 = vpack.c.b16 %v6055, %v6053
          %v6096 = vpack.c.b16 %v6058, %v6056
          %v6097 = vpack.c.b16 %v6059, %v6057
          %v6098 = vpack.c.b16 %v6062, %v6060
          %v6099 = vpack.c.b16 %v6063, %v6061
          %v6100 = vpack.c.b16 %v6066, %v6064
          %v6101 = vpack.c.b16 %v6067, %v6065
          %v6102 = vpack.c.b16 %v6070, %v6068
          %v6103 = vpack.c.b16 %v6071, %v6069
          %6136 = vmatpush.bf16.msra.mxu0 %v6086
          %6137 = vmatpush.bf16.msra.mxu0 %v6084
          %6138 = vmatpush.bf16.msra.mxu0 %v6082
          %6139 = vmatpush.bf16.msra.mxu0 %v6080
          %6140 = vmatpush.bf16.msra.mxu0 %v6078
          %6141 = vmatpush.bf16.msra.mxu0 %v6076
          %6142 = vmatpush.bf16.msra.mxu0 %v6074
          %6143 = vmatpush.bf16.msra.mxu0 %v6072
          %6144 = vmatmul.bf16.gmra.mxu0 %v5944
          %v6145 = vpop.f32.mrf.mxu0
          %v6146 = vadd.f32 %v5892, %v6145
          %v6147 = vpop.f32.mrf.mxu0
          %v6148 = vadd.f32 %v5892, %v6147
          %6149 = vmatmul.bf16.gmra.mxu0 %v5946
          %v6150 = vpop.f32.mrf.mxu0
          %v6151 = vadd.f32 %v5892, %v6150
          %v6152 = vpop.f32.mrf.mxu0
          %v6153 = vadd.f32 %v5892, %v6152
          %6154 = vmatmul.bf16.gmra.mxu0 %v5948
          %v6155 = vpop.f32.mrf.mxu0
          %v6156 = vadd.f32 %v5892, %v6155
          %v6157 = vpop.f32.mrf.mxu0
          %v6158 = vadd.f32 %v5892, %v6157
          %6159 = vmatmul.bf16.gmra.mxu0 %v5950
          %v6160 = vpop.f32.mrf.mxu0
          %v6161 = vadd.f32 %v5892, %v6160
          %v6162 = vpop.f32.mrf.mxu0
          %v6163 = vadd.f32 %v5892, %v6162
          %6164 = vmatmul.bf16.gmra.mxu0 %v5952
          %v6165 = vpop.f32.mrf.mxu0
          %v6166 = vadd.f32 %v5892, %v6165
          %v6167 = vpop.f32.mrf.mxu0
          %v6168 = vadd.f32 %v5892, %v6167
          %6169 = vmatmul.bf16.gmra.mxu0 %v5954
          %v6170 = vpop.f32.mrf.mxu0
          %v6171 = vadd.f32 %v5892, %v6170
          %v6172 = vpop.f32.mrf.mxu0
          %v6173 = vadd.f32 %v5892, %v6172
          %6174 = vmatmul.bf16.gmra.mxu0 %v5956
          %v6175 = vpop.f32.mrf.mxu0
          %v6176 = vadd.f32 %v5892, %v6175
          %v6177 = vpop.f32.mrf.mxu0
          %v6178 = vadd.f32 %v5892, %v6177
          %6179 = vmatmul.bf16.gmra.mxu0 %v5958
          %v6180 = vpop.f32.mrf.mxu0
          %v6181 = vadd.f32 %v5892, %v6180
          %v6182 = vpop.f32.mrf.mxu0
          %v6183 = vadd.f32 %v5892, %v6182
          %6184 = vdwg.mxu0
          %6185 = vmatpush.bf16.msra.mxu0 %v6102
          %6186 = vmatpush.bf16.msra.mxu0 %v6100
          %6187 = vmatpush.bf16.msra.mxu0 %v6098
          %6188 = vmatpush.bf16.msra.mxu0 %v6096
          %6189 = vmatpush.bf16.msra.mxu0 %v6094
          %6190 = vmatpush.bf16.msra.mxu0 %v6092
          %6191 = vmatpush.bf16.msra.mxu0 %v6090
          %6192 = vmatpush.bf16.msra.mxu0 %v6088
          %6193 = vmatmul.bf16.gmra.mxu0 %v5945
          %v6194 = vpop.f32.mrf.mxu0
          %v6195 = vadd.f32 %v6146, %v6194
          %v6196 = vpop.f32.mrf.mxu0
          %v6197 = vadd.f32 %v6148, %v6196
          %6198 = vmatmul.bf16.gmra.mxu0 %v5947
          %v6199 = vpop.f32.mrf.mxu0
          %v6200 = vadd.f32 %v6151, %v6199
          %v6201 = vpop.f32.mrf.mxu0
          %v6202 = vadd.f32 %v6153, %v6201
          %6203 = vmatmul.bf16.gmra.mxu0 %v5949
          %v6204 = vpop.f32.mrf.mxu0
          %v6205 = vadd.f32 %v6156, %v6204
          %v6206 = vpop.f32.mrf.mxu0
          %v6207 = vadd.f32 %v6158, %v6206
          %6208 = vmatmul.bf16.gmra.mxu0 %v5951
          %v6209 = vpop.f32.mrf.mxu0
          %v6210 = vadd.f32 %v6161, %v6209
          %v6211 = vpop.f32.mrf.mxu0
          %v6212 = vadd.f32 %v6163, %v6211
          %6213 = vmatmul.bf16.gmra.mxu0 %v5953
          %v6214 = vpop.f32.mrf.mxu0
          %v6215 = vadd.f32 %v6166, %v6214
          %v6216 = vpop.f32.mrf.mxu0
          %v6217 = vadd.f32 %v6168, %v6216
          %6218 = vmatmul.bf16.gmra.mxu0 %v5955
          %v6219 = vpop.f32.mrf.mxu0
          %v6220 = vadd.f32 %v6171, %v6219
          %v6221 = vpop.f32.mrf.mxu0
          %v6222 = vadd.f32 %v6173, %v6221
          %6223 = vmatmul.bf16.gmra.mxu0 %v5957
          %v6224 = vpop.f32.mrf.mxu0
          %v6225 = vadd.f32 %v6176, %v6224
          %v6226 = vpop.f32.mrf.mxu0
          %v6227 = vadd.f32 %v6178, %v6226
          %6228 = vmatmul.bf16.gmra.mxu0 %v5959
          %v6229 = vpop.f32.mrf.mxu0
          %v6230 = vadd.f32 %v6181, %v6229
          %v6231 = vpop.f32.mrf.mxu0
          %v6232 = vadd.f32 %v6183, %v6231
          %6233 = vdwg.mxu0
          %6234 = vmatpush.bf16.msra.mxu0 %v6087
          %6235 = vmatpush.bf16.msra.mxu0 %v6085
          %6236 = vmatpush.bf16.msra.mxu0 %v6083
          %6237 = vmatpush.bf16.msra.mxu0 %v6081
          %6238 = vmatpush.bf16.msra.mxu0 %v6079
          %6239 = vmatpush.bf16.msra.mxu0 %v6077
          %6240 = vmatpush.bf16.msra.mxu0 %v6075
          %6241 = vmatpush.bf16.msra.mxu0 %v6073
          %6242 = vmatmul.bf16.gmra.mxu0 %v5944
          %v6243 = vpop.f32.mrf.mxu0
          %v6244 = vadd.f32 %v5893, %v6243
          %v6245 = vpop.f32.mrf.mxu0
          %v6246 = vadd.f32 %v5893, %v6245
          %6247 = vmatmul.bf16.gmra.mxu0 %v5946
          %v6248 = vpop.f32.mrf.mxu0
          %v6249 = vadd.f32 %v5893, %v6248
          %v6250 = vpop.f32.mrf.mxu0
          %v6251 = vadd.f32 %v5893, %v6250
          %6252 = vmatmul.bf16.gmra.mxu0 %v5948
          %v6253 = vpop.f32.mrf.mxu0
          %v6254 = vadd.f32 %v5893, %v6253
          %v6255 = vpop.f32.mrf.mxu0
          %v6256 = vadd.f32 %v5893, %v6255
          %6257 = vmatmul.bf16.gmra.mxu0 %v5950
          %v6258 = vpop.f32.mrf.mxu0
          %v6259 = vadd.f32 %v5893, %v6258
          %v6260 = vpop.f32.mrf.mxu0
          %v6261 = vadd.f32 %v5893, %v6260
          %6262 = vmatmul.bf16.gmra.mxu0 %v5952
          %v6263 = vpop.f32.mrf.mxu0
          %v6264 = vadd.f32 %v5893, %v6263
          %v6265 = vpop.f32.mrf.mxu0
          %v6266 = vadd.f32 %v5893, %v6265
          %6267 = vmatmul.bf16.gmra.mxu0 %v5954
          %v6268 = vpop.f32.mrf.mxu0
          %v6269 = vadd.f32 %v5893, %v6268
          %v6270 = vpop.f32.mrf.mxu0
          %v6271 = vadd.f32 %v5893, %v6270
          %6272 = vmatmul.bf16.gmra.mxu0 %v5956
          %v6273 = vpop.f32.mrf.mxu0
          %v6274 = vadd.f32 %v5893, %v6273
          %v6275 = vpop.f32.mrf.mxu0
          %v6276 = vadd.f32 %v5893, %v6275
          %6277 = vmatmul.bf16.gmra.mxu0 %v5958
          %v6278 = vpop.f32.mrf.mxu0
          %v6279 = vadd.f32 %v5893, %v6278
          %v6280 = vpop.f32.mrf.mxu0
          %v6281 = vadd.f32 %v5893, %v6280
          %6282 = vdwg.mxu0
          %6283 = vmatpush.bf16.msra.mxu0 %v6103
          %6284 = vmatpush.bf16.msra.mxu0 %v6101
          %6285 = vmatpush.bf16.msra.mxu0 %v6099
          %6286 = vmatpush.bf16.msra.mxu0 %v6097
          %6287 = vmatpush.bf16.msra.mxu0 %v6095
          %6288 = vmatpush.bf16.msra.mxu0 %v6093
          %6289 = vmatpush.bf16.msra.mxu0 %v6091
          %6290 = vmatpush.bf16.msra.mxu0 %v6089
          %6291 = vmatmul.bf16.gmra.mxu0 %v5945
          %v6292 = vpop.f32.mrf.mxu0
          %v6293 = vadd.f32 %v6244, %v6292
          %v6294 = vpop.f32.mrf.mxu0
          %v6295 = vadd.f32 %v6246, %v6294
          %6296 = vmatmul.bf16.gmra.mxu0 %v5947
          %v6297 = vpop.f32.mrf.mxu0
          %v6298 = vadd.f32 %v6249, %v6297
          %v6299 = vpop.f32.mrf.mxu0
          %v6300 = vadd.f32 %v6251, %v6299
          %6301 = vmatmul.bf16.gmra.mxu0 %v5949
          %v6302 = vpop.f32.mrf.mxu0
          %v6303 = vadd.f32 %v6254, %v6302
          %v6304 = vpop.f32.mrf.mxu0
          %v6305 = vadd.f32 %v6256, %v6304
          %6306 = vmatmul.bf16.gmra.mxu0 %v5951
          %v6307 = vpop.f32.mrf.mxu0
          %v6308 = vadd.f32 %v6259, %v6307
          %v6309 = vpop.f32.mrf.mxu0
          %v6310 = vadd.f32 %v6261, %v6309
          %6311 = vmatmul.bf16.gmra.mxu0 %v5953
          %v6312 = vpop.f32.mrf.mxu0
          %v6313 = vadd.f32 %v6264, %v6312
          %v6314 = vpop.f32.mrf.mxu0
          %v6315 = vadd.f32 %v6266, %v6314
          %6316 = vmatmul.bf16.gmra.mxu0 %v5955
          %v6317 = vpop.f32.mrf.mxu0
          %v6318 = vadd.f32 %v6269, %v6317
          %v6319 = vpop.f32.mrf.mxu0
          %v6320 = vadd.f32 %v6271, %v6319
          %6321 = vmatmul.bf16.gmra.mxu0 %v5957
          %v6322 = vpop.f32.mrf.mxu0
          %v6323 = vadd.f32 %v6274, %v6322
          %v6324 = vpop.f32.mrf.mxu0
          %v6325 = vadd.f32 %v6276, %v6324
          %6326 = vmatmul.bf16.gmra.mxu0 %v5959
          %v6327 = vpop.f32.mrf.mxu0
          %v6328 = vadd.f32 %v6279, %v6327
          %v6329 = vpop.f32.mrf.mxu0
          %v6330 = vadd.f32 %v6281, %v6329
          %6331 = vdwg.mxu0
          %v6332 = vld [vmem:[%s760] sm:$0xff]
          %v6333 = vld [vmem:[%s760 + $0x8] sm:$0xff]
          %v6334 = vld [vmem:[%s760 + $0x10] sm:$0xff]
          %v6335 = vld [vmem:[%s760 + $0x18] sm:$0xff]
          %v6336 = vld [vmem:[%s760 + $0x20] sm:$0xff]
          %v6337 = vld [vmem:[%s760 + $0x28] sm:$0xff]
          %v6338 = vld [vmem:[%s760 + $0x30] sm:$0xff]
          %v6339 = vld [vmem:[%s760 + $0x38] sm:$0xff]
          %v6340 = vld [vmem:[%s760 + $0x40] sm:$0xff]
          %v6341 = vld [vmem:[%s760 + $0x48] sm:$0xff]
          %v6342 = vld [vmem:[%s760 + $0x50] sm:$0xff]
          %v6343 = vld [vmem:[%s760 + $0x58] sm:$0xff]
          %v6344 = vld [vmem:[%s760 + $0x60] sm:$0xff]
          %v6345 = vld [vmem:[%s760 + $0x68] sm:$0xff]
          %v6346 = vld [vmem:[%s760 + $0x70] sm:$0xff]
          %v6347 = vld [vmem:[%s760 + $0x78] sm:$0xff]
          %v6348 = vld [vmem:[%s760 + $0x80] sm:$0xff]
          %v6349 = vld [vmem:[%s760 + $0x88] sm:$0xff]
          %v6350 = vld [vmem:[%s760 + $0x90] sm:$0xff]
          %v6351 = vld [vmem:[%s760 + $0x98] sm:$0xff]
          %v6352 = vld [vmem:[%s760 + $0xa0] sm:$0xff]
          %v6353 = vld [vmem:[%s760 + $0xa8] sm:$0xff]
          %v6354 = vld [vmem:[%s760 + $0xb0] sm:$0xff]
          %v6355 = vld [vmem:[%s760 + $0xb8] sm:$0xff]
          %v6356 = vld [vmem:[%s760 + $0xc0] sm:$0xff]
          %v6357 = vld [vmem:[%s760 + $0xc8] sm:$0xff]
          %v6358 = vld [vmem:[%s760 + $0xd0] sm:$0xff]
          %v6359 = vld [vmem:[%s760 + $0xd8] sm:$0xff]
          %v6360 = vld [vmem:[%s760 + $0xe0] sm:$0xff]
          %v6361 = vld [vmem:[%s760 + $0xe8] sm:$0xff]
          %v6362 = vld [vmem:[%s760 + $0xf0] sm:$0xff]
          %v6363 = vld [vmem:[%s760 + $0xf8] sm:$0xff]
          %v6364 = vadd.f32 %v6332, %v6195
          %v6365 = vadd.f32 %v6333, %v6293
          %v6366 = vadd.f32 %v6334, %v6197
          %v6367 = vadd.f32 %v6335, %v6295
          %v6368 = vadd.f32 %v6336, %v6200
          %v6369 = vadd.f32 %v6337, %v6298
          %v6370 = vadd.f32 %v6338, %v6202
          %v6371 = vadd.f32 %v6339, %v6300
          %v6372 = vadd.f32 %v6340, %v6205
          %v6373 = vadd.f32 %v6341, %v6303
          %v6374 = vadd.f32 %v6342, %v6207
          %v6375 = vadd.f32 %v6343, %v6305
          %v6376 = vadd.f32 %v6344, %v6210
          %v6377 = vadd.f32 %v6345, %v6308
          %v6378 = vadd.f32 %v6346, %v6212
          %v6379 = vadd.f32 %v6347, %v6310
          %v6380 = vadd.f32 %v6348, %v6215
          %v6381 = vadd.f32 %v6349, %v6313
          %v6382 = vadd.f32 %v6350, %v6217
          %v6383 = vadd.f32 %v6351, %v6315
          %v6384 = vadd.f32 %v6352, %v6220
          %v6385 = vadd.f32 %v6353, %v6318
          %v6386 = vadd.f32 %v6354, %v6222
          %v6387 = vadd.f32 %v6355, %v6320
          %v6388 = vadd.f32 %v6356, %v6225
          %v6389 = vadd.f32 %v6357, %v6323
          %v6390 = vadd.f32 %v6358, %v6227
          %v6391 = vadd.f32 %v6359, %v6325
          %v6392 = vadd.f32 %v6360, %v6230
          %v6393 = vadd.f32 %v6361, %v6328
          %v6394 = vadd.f32 %v6362, %v6232
          %v6395 = vadd.f32 %v6363, %v6330
          %v6396 = vld [vmem:[#allocation26] sm:$0x3]
          %v6397 = vld [vmem:[%s13] sm:$0x3]
          %v6398 = vadd.f32 %v6364, %v6365
          %6399 = vadd.xlane.f32.xlu0 %v6398
          %v6400 = vpop.xlane.xlu0 %6399
          %v6401 = vadd.f32 %v6366, %v6367
          %6402 = vadd.xlane.f32.xlu0 %v6401
          %v6403 = vpop.xlane.xlu0 %6402
          %v6404 = vadd.f32 %v6368, %v6369
          %6405 = vadd.xlane.f32.xlu0 %v6404
          %v6406 = vpop.xlane.xlu0 %6405
          %v6407 = vadd.f32 %v6370, %v6371
          %6408 = vadd.xlane.f32.xlu0 %v6407
          %v6409 = vpop.xlane.xlu0 %6408
          %v6410 = vadd.f32 %v6372, %v6373
          %6411 = vadd.xlane.f32.xlu0 %v6410
          %v6412 = vpop.xlane.xlu0 %6411
          %v6413 = vadd.f32 %v6374, %v6375
          %6414 = vadd.xlane.f32.xlu0 %v6413
          %v6415 = vpop.xlane.xlu0 %6414
          %v6416 = vadd.f32 %v6376, %v6377
          %6417 = vadd.xlane.f32.xlu0 %v6416
          %v6418 = vpop.xlane.xlu0 %6417
          %v6419 = vadd.f32 %v6378, %v6379
          %6420 = vadd.xlane.f32.xlu0 %v6419
          %v6421 = vpop.xlane.xlu0 %6420
          %v6422 = vadd.f32 %v6380, %v6381
          %6423 = vadd.xlane.f32.xlu0 %v6422
          %v6424 = vpop.xlane.xlu0 %6423
          %v6425 = vadd.f32 %v6382, %v6383
          %6426 = vadd.xlane.f32.xlu0 %v6425
          %v6427 = vpop.xlane.xlu0 %6426
          %v6428 = vadd.f32 %v6384, %v6385
          %6429 = vadd.xlane.f32.xlu0 %v6428
          %v6430 = vpop.xlane.xlu0 %6429
          %v6431 = vadd.f32 %v6386, %v6387
          %6432 = vadd.xlane.f32.xlu0 %v6431
          %v6433 = vpop.xlane.xlu0 %6432
          %v6434 = vadd.f32 %v6388, %v6389
          %6435 = vadd.xlane.f32.xlu0 %v6434
          %v6436 = vpop.xlane.xlu0 %6435
          %v6437 = vadd.f32 %v6390, %v6391
          %6438 = vadd.xlane.f32.xlu0 %v6437
          %v6439 = vpop.xlane.xlu0 %6438
          %v6440 = vadd.f32 %v6392, %v6393
          %6441 = vadd.xlane.f32.xlu0 %v6440
          %v6442 = vpop.xlane.xlu0 %6441
          %v6443 = vadd.f32 %v6394, %v6395
          %6444 = vadd.xlane.f32.xlu0 %v6443
          %v6445 = vpop.xlane.xlu0 %6444
          %v6446 = vrcp.pop 256.0
          %v6447 = vmul.f32 256.0, %v6446
          %v6448 = vsub.f32 1.0, %v6447
          %v6449 = vmul.f32 %v6446, %v6448
          %v6450 = vadd.f32 %v6446, %v6449
          %vm6451 = vweird.f32 %v6446
          %v6452 = vsel %vm6451, %v6446, %v6450
          %v6453 = vmul.f32 %v6400, %v6452
          %v6454 = vmul.f32 %v6403, %v6452
          %v6455 = vmul.f32 %v6406, %v6452
          %v6456 = vmul.f32 %v6409, %v6452
          %v6457 = vmul.f32 %v6412, %v6452
          %v6458 = vmul.f32 %v6415, %v6452
          %v6459 = vmul.f32 %v6418, %v6452
          %v6460 = vmul.f32 %v6421, %v6452
          %v6461 = vmul.f32 %v6424, %v6452
          %v6462 = vmul.f32 %v6427, %v6452
          %v6463 = vmul.f32 %v6430, %v6452
          %v6464 = vmul.f32 %v6433, %v6452
          %v6465 = vmul.f32 %v6436, %v6452
          %v6466 = vmul.f32 %v6439, %v6452
          %v6467 = vmul.f32 %v6442, %v6452
          %v6468 = vmul.f32 %v6445, %v6452
          %v6469 = vsub.f32 %v6364, %v6453
          %v6470 = vsub.f32 %v6365, %v6453
          %v6471 = vsub.f32 %v6366, %v6454
          %v6472 = vsub.f32 %v6367, %v6454
          %v6473 = vsub.f32 %v6368, %v6455
          %v6474 = vsub.f32 %v6369, %v6455
          %v6475 = vsub.f32 %v6370, %v6456
          %v6476 = vsub.f32 %v6371, %v6456
          %v6477 = vsub.f32 %v6372, %v6457
          %v6478 = vsub.f32 %v6373, %v6457
          %v6479 = vsub.f32 %v6374, %v6458
          %v6480 = vsub.f32 %v6375, %v6458
          %v6481 = vsub.f32 %v6376, %v6459
          %v6482 = vsub.f32 %v6377, %v6459
          %v6483 = vsub.f32 %v6378, %v6460
          %v6484 = vsub.f32 %v6379, %v6460
          %v6485 = vsub.f32 %v6380, %v6461
          %v6486 = vsub.f32 %v6381, %v6461
          %v6487 = vsub.f32 %v6382, %v6462
          %v6488 = vsub.f32 %v6383, %v6462
          %v6489 = vsub.f32 %v6384, %v6463
          %v6490 = vsub.f32 %v6385, %v6463
          %v6491 = vsub.f32 %v6386, %v6464
          %v6492 = vsub.f32 %v6387, %v6464
          %v6493 = vsub.f32 %v6388, %v6465
          %v6494 = vsub.f32 %v6389, %v6465
          %v6495 = vsub.f32 %v6390, %v6466
          %v6496 = vsub.f32 %v6391, %v6466
          %v6497 = vsub.f32 %v6392, %v6467
          %v6498 = vsub.f32 %v6393, %v6467
          %v6499 = vsub.f32 %v6394, %v6468
          %v6500 = vsub.f32 %v6395, %v6468
          %v6501 = vmul.f32 %v6469, %v6469
          %v6502 = vmul.f32 %v6470, %v6470
          %v6503 = vmul.f32 %v6471, %v6471
          %v6504 = vmul.f32 %v6472, %v6472
          %v6505 = vmul.f32 %v6473, %v6473
          %v6506 = vmul.f32 %v6474, %v6474
          %v6507 = vmul.f32 %v6475, %v6475
          %v6508 = vmul.f32 %v6476, %v6476
          %v6509 = vmul.f32 %v6477, %v6477
          %v6510 = vmul.f32 %v6478, %v6478
          %v6511 = vmul.f32 %v6479, %v6479
          %v6512 = vmul.f32 %v6480, %v6480
          %v6513 = vmul.f32 %v6481, %v6481
          %v6514 = vmul.f32 %v6482, %v6482
          %v6515 = vmul.f32 %v6483, %v6483
          %v6516 = vmul.f32 %v6484, %v6484
          %v6517 = vmul.f32 %v6485, %v6485
          %v6518 = vmul.f32 %v6486, %v6486
          %v6519 = vmul.f32 %v6487, %v6487
          %v6520 = vmul.f32 %v6488, %v6488
          %v6521 = vmul.f32 %v6489, %v6489
          %v6522 = vmul.f32 %v6490, %v6490
          %v6523 = vmul.f32 %v6491, %v6491
          %v6524 = vmul.f32 %v6492, %v6492
          %v6525 = vmul.f32 %v6493, %v6493
          %v6526 = vmul.f32 %v6494, %v6494
          %v6527 = vmul.f32 %v6495, %v6495
          %v6528 = vmul.f32 %v6496, %v6496
          %v6529 = vmul.f32 %v6497, %v6497
          %v6530 = vmul.f32 %v6498, %v6498
          %v6531 = vmul.f32 %v6499, %v6499
          %v6532 = vmul.f32 %v6500, %v6500
          %v6533 = vadd.f32 %v6501, %v6502
          %6534 = vadd.xlane.f32.xlu0 %v6533
          %v6535 = vpop.xlane.xlu0 %6534
          %v6536 = vadd.f32 %v6503, %v6504
          %6537 = vadd.xlane.f32.xlu0 %v6536
          %v6538 = vpop.xlane.xlu0 %6537
          %v6539 = vadd.f32 %v6505, %v6506
          %6540 = vadd.xlane.f32.xlu0 %v6539
          %v6541 = vpop.xlane.xlu0 %6540
          %v6542 = vadd.f32 %v6507, %v6508
          %6543 = vadd.xlane.f32.xlu0 %v6542
          %v6544 = vpop.xlane.xlu0 %6543
          %v6545 = vadd.f32 %v6509, %v6510
          %6546 = vadd.xlane.f32.xlu0 %v6545
          %v6547 = vpop.xlane.xlu0 %6546
          %v6548 = vadd.f32 %v6511, %v6512
          %6549 = vadd.xlane.f32.xlu0 %v6548
          %v6550 = vpop.xlane.xlu0 %6549
          %v6551 = vadd.f32 %v6513, %v6514
          %6552 = vadd.xlane.f32.xlu0 %v6551
          %v6553 = vpop.xlane.xlu0 %6552
          %v6554 = vadd.f32 %v6515, %v6516
          %6555 = vadd.xlane.f32.xlu0 %v6554
          %v6556 = vpop.xlane.xlu0 %6555
          %v6557 = vadd.f32 %v6517, %v6518
          %6558 = vadd.xlane.f32.xlu0 %v6557
          %v6559 = vpop.xlane.xlu0 %6558
          %v6560 = vadd.f32 %v6519, %v6520
          %6561 = vadd.xlane.f32.xlu0 %v6560
          %v6562 = vpop.xlane.xlu0 %6561
          %v6563 = vadd.f32 %v6521, %v6522
          %6564 = vadd.xlane.f32.xlu0 %v6563
          %v6565 = vpop.xlane.xlu0 %6564
          %v6566 = vadd.f32 %v6523, %v6524
          %6567 = vadd.xlane.f32.xlu0 %v6566
          %v6568 = vpop.xlane.xlu0 %6567
          %v6569 = vadd.f32 %v6525, %v6526
          %6570 = vadd.xlane.f32.xlu0 %v6569
          %v6571 = vpop.xlane.xlu0 %6570
          %v6572 = vadd.f32 %v6527, %v6528
          %6573 = vadd.xlane.f32.xlu0 %v6572
          %v6574 = vpop.xlane.xlu0 %6573
          %v6575 = vadd.f32 %v6529, %v6530
          %6576 = vadd.xlane.f32.xlu0 %v6575
          %v6577 = vpop.xlane.xlu0 %6576
          %v6578 = vadd.f32 %v6531, %v6532
          %6579 = vadd.xlane.f32.xlu0 %v6578
          %v6580 = vpop.xlane.xlu0 %6579
          %v6581 = vmul.f32 %v6535, %v6452
          %v6582 = vmul.f32 %v6538, %v6452
          %v6583 = vmul.f32 %v6541, %v6452
          %v6584 = vmul.f32 %v6544, %v6452
          %v6585 = vmul.f32 %v6547, %v6452
          %v6586 = vmul.f32 %v6550, %v6452
          %v6587 = vmul.f32 %v6553, %v6452
          %v6588 = vmul.f32 %v6556, %v6452
          %v6589 = vmul.f32 %v6559, %v6452
          %v6590 = vmul.f32 %v6562, %v6452
          %v6591 = vmul.f32 %v6565, %v6452
          %v6592 = vmul.f32 %v6568, %v6452
          %v6593 = vmul.f32 %v6571, %v6452
          %v6594 = vmul.f32 %v6574, %v6452
          %v6595 = vmul.f32 %v6577, %v6452
          %v6596 = vmul.f32 %v6580, %v6452
          %v6597 = vadd.f32 %v6581, 1e-05
          %v6598 = vadd.f32 %v6582, 1e-05
          %v6599 = vadd.f32 %v6583, 1e-05
          %v6600 = vadd.f32 %v6584, 1e-05
          %v6601 = vadd.f32 %v6585, 1e-05
          %v6602 = vadd.f32 %v6586, 1e-05
          %v6603 = vadd.f32 %v6587, 1e-05
          %v6604 = vadd.f32 %v6588, 1e-05
          %v6605 = vadd.f32 %v6589, 1e-05
          %v6606 = vadd.f32 %v6590, 1e-05
          %v6607 = vadd.f32 %v6591, 1e-05
          %v6608 = vadd.f32 %v6592, 1e-05
          %v6609 = vadd.f32 %v6593, 1e-05
          %v6610 = vadd.f32 %v6594, 1e-05
          %v6611 = vadd.f32 %v6595, 1e-05
          %v6612 = vadd.f32 %v6596, 1e-05
          %v6613 = vrsqrt.pop %v6597
          %v6614 = vmul.f32 %v6613, %v6597
          %v6615 = vmul.f32 %v6614, %v6613
          %v6616 = vmul.f32 0.5, %v6615
          %v6617 = vsub.f32 1.5, %v6616
          %v6618 = vmul.f32 %v6613, %v6617
          %vm6619 = vweird.f32 %v6597
          %vm6620 = vweird.f32 %v6613
          %vm6621 = vmor %vm6619, %vm6620
          %v6622 = vsel %vm6621, %v6613, %v6618
          %v6623 = vrsqrt.pop %v6598
          %v6624 = vmul.f32 %v6623, %v6598
          %v6625 = vmul.f32 %v6624, %v6623
          %v6626 = vmul.f32 0.5, %v6625
          %v6627 = vsub.f32 1.5, %v6626
          %v6628 = vmul.f32 %v6623, %v6627
          %vm6629 = vweird.f32 %v6598
          %vm6630 = vweird.f32 %v6623
          %vm6631 = vmor %vm6629, %vm6630
          %v6632 = vsel %vm6631, %v6623, %v6628
          %v6633 = vrsqrt.pop %v6599
          %v6634 = vmul.f32 %v6633, %v6599
          %v6635 = vmul.f32 %v6634, %v6633
          %v6636 = vmul.f32 0.5, %v6635
          %v6637 = vsub.f32 1.5, %v6636
          %v6638 = vmul.f32 %v6633, %v6637
          %vm6639 = vweird.f32 %v6599
          %vm6640 = vweird.f32 %v6633
          %vm6641 = vmor %vm6639, %vm6640
          %v6642 = vsel %vm6641, %v6633, %v6638
          %v6643 = vrsqrt.pop %v6600
          %v6644 = vmul.f32 %v6643, %v6600
          %v6645 = vmul.f32 %v6644, %v6643
          %v6646 = vmul.f32 0.5, %v6645
          %v6647 = vsub.f32 1.5, %v6646
          %v6648 = vmul.f32 %v6643, %v6647
          %vm6649 = vweird.f32 %v6600
          %vm6650 = vweird.f32 %v6643
          %vm6651 = vmor %vm6649, %vm6650
          %v6652 = vsel %vm6651, %v6643, %v6648
          %v6653 = vrsqrt.pop %v6601
          %v6654 = vmul.f32 %v6653, %v6601
          %v6655 = vmul.f32 %v6654, %v6653
          %v6656 = vmul.f32 0.5, %v6655
          %v6657 = vsub.f32 1.5, %v6656
          %v6658 = vmul.f32 %v6653, %v6657
          %vm6659 = vweird.f32 %v6601
          %vm6660 = vweird.f32 %v6653
          %vm6661 = vmor %vm6659, %vm6660
          %v6662 = vsel %vm6661, %v6653, %v6658
          %v6663 = vrsqrt.pop %v6602
          %v6664 = vmul.f32 %v6663, %v6602
          %v6665 = vmul.f32 %v6664, %v6663
          %v6666 = vmul.f32 0.5, %v6665
          %v6667 = vsub.f32 1.5, %v6666
          %v6668 = vmul.f32 %v6663, %v6667
          %vm6669 = vweird.f32 %v6602
          %vm6670 = vweird.f32 %v6663
          %vm6671 = vmor %vm6669, %vm6670
          %v6672 = vsel %vm6671, %v6663, %v6668
          %v6673 = vrsqrt.pop %v6603
          %v6674 = vmul.f32 %v6673, %v6603
          %v6675 = vmul.f32 %v6674, %v6673
          %v6676 = vmul.f32 0.5, %v6675
          %v6677 = vsub.f32 1.5, %v6676
          %v6678 = vmul.f32 %v6673, %v6677
          %vm6679 = vweird.f32 %v6603
          %vm6680 = vweird.f32 %v6673
          %vm6681 = vmor %vm6679, %vm6680
          %v6682 = vsel %vm6681, %v6673, %v6678
          %v6683 = vrsqrt.pop %v6604
          %v6684 = vmul.f32 %v6683, %v6604
          %v6685 = vmul.f32 %v6684, %v6683
          %v6686 = vmul.f32 0.5, %v6685
          %v6687 = vsub.f32 1.5, %v6686
          %v6688 = vmul.f32 %v6683, %v6687
          %vm6689 = vweird.f32 %v6604
          %vm6690 = vweird.f32 %v6683
          %vm6691 = vmor %vm6689, %vm6690
          %v6692 = vsel %vm6691, %v6683, %v6688
          %v6693 = vrsqrt.pop %v6605
          %v6694 = vmul.f32 %v6693, %v6605
          %v6695 = vmul.f32 %v6694, %v6693
          %v6696 = vmul.f32 0.5, %v6695
          %v6697 = vsub.f32 1.5, %v6696
          %v6698 = vmul.f32 %v6693, %v6697
          %vm6699 = vweird.f32 %v6605
          %vm6700 = vweird.f32 %v6693
          %vm6701 = vmor %vm6699, %vm6700
          %v6702 = vsel %vm6701, %v6693, %v6698
          %v6703 = vrsqrt.pop %v6606
          %v6704 = vmul.f32 %v6703, %v6606
          %v6705 = vmul.f32 %v6704, %v6703
          %v6706 = vmul.f32 0.5, %v6705
          %v6707 = vsub.f32 1.5, %v6706
          %v6708 = vmul.f32 %v6703, %v6707
          %vm6709 = vweird.f32 %v6606
          %vm6710 = vweird.f32 %v6703
          %vm6711 = vmor %vm6709, %vm6710
          %v6712 = vsel %vm6711, %v6703, %v6708
          %v6713 = vrsqrt.pop %v6607
          %v6714 = vmul.f32 %v6713, %v6607
          %v6715 = vmul.f32 %v6714, %v6713
          %v6716 = vmul.f32 0.5, %v6715
          %v6717 = vsub.f32 1.5, %v6716
          %v6718 = vmul.f32 %v6713, %v6717
          %vm6719 = vweird.f32 %v6607
          %vm6720 = vweird.f32 %v6713
          %vm6721 = vmor %vm6719, %vm6720
          %v6722 = vsel %vm6721, %v6713, %v6718
          %v6723 = vrsqrt.pop %v6608
          %v6724 = vmul.f32 %v6723, %v6608
          %v6725 = vmul.f32 %v6724, %v6723
          %v6726 = vmul.f32 0.5, %v6725
          %v6727 = vsub.f32 1.5, %v6726
          %v6728 = vmul.f32 %v6723, %v6727
          %vm6729 = vweird.f32 %v6608
          %vm6730 = vweird.f32 %v6723
          %vm6731 = vmor %vm6729, %vm6730
          %v6732 = vsel %vm6731, %v6723, %v6728
          %v6733 = vrsqrt.pop %v6609
          %v6734 = vmul.f32 %v6733, %v6609
          %v6735 = vmul.f32 %v6734, %v6733
          %v6736 = vmul.f32 0.5, %v6735
          %v6737 = vsub.f32 1.5, %v6736
          %v6738 = vmul.f32 %v6733, %v6737
          %vm6739 = vweird.f32 %v6609
          %vm6740 = vweird.f32 %v6733
          %vm6741 = vmor %vm6739, %vm6740
          %v6742 = vsel %vm6741, %v6733, %v6738
          %v6743 = vrsqrt.pop %v6610
          %v6744 = vmul.f32 %v6743, %v6610
          %v6745 = vmul.f32 %v6744, %v6743
          %v6746 = vmul.f32 0.5, %v6745
          %v6747 = vsub.f32 1.5, %v6746
          %v6748 = vmul.f32 %v6743, %v6747
          %vm6749 = vweird.f32 %v6610
          %vm6750 = vweird.f32 %v6743
          %vm6751 = vmor %vm6749, %vm6750
          %v6752 = vsel %vm6751, %v6743, %v6748
          %v6753 = vrsqrt.pop %v6611
          %v6754 = vmul.f32 %v6753, %v6611
          %v6755 = vmul.f32 %v6754, %v6753
          %v6756 = vmul.f32 0.5, %v6755
          %v6757 = vsub.f32 1.5, %v6756
          %v6758 = vmul.f32 %v6753, %v6757
          %vm6759 = vweird.f32 %v6611
          %vm6760 = vweird.f32 %v6753
          %vm6761 = vmor %vm6759, %vm6760
          %v6762 = vsel %vm6761, %v6753, %v6758
          %v6763 = vrsqrt.pop %v6612
          %v6764 = vmul.f32 %v6763, %v6612
          %v6765 = vmul.f32 %v6764, %v6763
          %v6766 = vmul.f32 0.5, %v6765
          %v6767 = vsub.f32 1.5, %v6766
          %v6768 = vmul.f32 %v6763, %v6767
          %vm6769 = vweird.f32 %v6612
          %vm6770 = vweird.f32 %v6763
          %vm6771 = vmor %vm6769, %vm6770
          %v6772 = vsel %vm6771, %v6763, %v6768
          %v6773 = vmul.f32 %v6469, %v6622
          %v6774 = vmul.f32 %v6470, %v6622
          %v6775 = vmul.f32 %v6471, %v6632
          %v6776 = vmul.f32 %v6472, %v6632
          %v6777 = vmul.f32 %v6473, %v6642
          %v6778 = vmul.f32 %v6474, %v6642
          %v6779 = vmul.f32 %v6475, %v6652
          %v6780 = vmul.f32 %v6476, %v6652
          %v6781 = vmul.f32 %v6477, %v6662
          %v6782 = vmul.f32 %v6478, %v6662
          %v6783 = vmul.f32 %v6479, %v6672
          %v6784 = vmul.f32 %v6480, %v6672
          %v6785 = vmul.f32 %v6481, %v6682
          %v6786 = vmul.f32 %v6482, %v6682
          %v6787 = vmul.f32 %v6483, %v6692
          %v6788 = vmul.f32 %v6484, %v6692
          %v6789 = vmul.f32 %v6485, %v6702
          %v6790 = vmul.f32 %v6486, %v6702
          %v6791 = vmul.f32 %v6487, %v6712
          %v6792 = vmul.f32 %v6488, %v6712
          %v6793 = vmul.f32 %v6489, %v6722
          %v6794 = vmul.f32 %v6490, %v6722
          %v6795 = vmul.f32 %v6491, %v6732
          %v6796 = vmul.f32 %v6492, %v6732
          %v6797 = vmul.f32 %v6493, %v6742
          %v6798 = vmul.f32 %v6494, %v6742
          %v6799 = vmul.f32 %v6495, %v6752
          %v6800 = vmul.f32 %v6496, %v6752
          %v6801 = vmul.f32 %v6497, %v6762
          %v6802 = vmul.f32 %v6498, %v6762
          %v6803 = vmul.f32 %v6499, %v6772
          %v6804 = vmul.f32 %v6500, %v6772
          %v6806 = vperm.slane %v6396, 0
          %v6807 = vperm.slane %v6396, 1
          %v6810 = vmul.f32 %v6773, %v6806
          %v6811 = vmul.f32 %v6774, %v6807
          %v6812 = vmul.f32 %v6775, %v6806
          %v6813 = vmul.f32 %v6776, %v6807
          %v6814 = vmul.f32 %v6777, %v6806
          %v6815 = vmul.f32 %v6778, %v6807
          %v6816 = vmul.f32 %v6779, %v6806
          %v6817 = vmul.f32 %v6780, %v6807
          %v6818 = vmul.f32 %v6781, %v6806
          %v6819 = vmul.f32 %v6782, %v6807
          %v6820 = vmul.f32 %v6783, %v6806
          %v6821 = vmul.f32 %v6784, %v6807
          %v6822 = vmul.f32 %v6785, %v6806
          %v6823 = vmul.f32 %v6786, %v6807
          %v6824 = vmul.f32 %v6787, %v6806
          %v6825 = vmul.f32 %v6788, %v6807
          %v6826 = vmul.f32 %v6789, %v6806
          %v6827 = vmul.f32 %v6790, %v6807
          %v6828 = vmul.f32 %v6791, %v6806
          %v6829 = vmul.f32 %v6792, %v6807
          %v6830 = vmul.f32 %v6793, %v6806
          %v6831 = vmul.f32 %v6794, %v6807
          %v6832 = vmul.f32 %v6795, %v6806
          %v6833 = vmul.f32 %v6796, %v6807
          %v6834 = vmul.f32 %v6797, %v6806
          %v6835 = vmul.f32 %v6798, %v6807
          %v6836 = vmul.f32 %v6799, %v6806
          %v6837 = vmul.f32 %v6800, %v6807
          %v6838 = vmul.f32 %v6801, %v6806
          %v6839 = vmul.f32 %v6802, %v6807
          %v6840 = vmul.f32 %v6803, %v6806
          %v6841 = vmul.f32 %v6804, %v6807
          %v6843 = vperm.slane %v6397, 0
          %v6844 = vperm.slane %v6397, 1
          %v6847 = vadd.f32 %v6810, %v6843
          %v6848 = vadd.f32 %v6811, %v6844
          %v6849 = vadd.f32 %v6812, %v6843
          %v6850 = vadd.f32 %v6813, %v6844
          %v6851 = vadd.f32 %v6814, %v6843
          %v6852 = vadd.f32 %v6815, %v6844
          %v6853 = vadd.f32 %v6816, %v6843
          %v6854 = vadd.f32 %v6817, %v6844
          %v6855 = vadd.f32 %v6818, %v6843
          %v6856 = vadd.f32 %v6819, %v6844
          %v6857 = vadd.f32 %v6820, %v6843
          %v6858 = vadd.f32 %v6821, %v6844
          %v6859 = vadd.f32 %v6822, %v6843
          %v6860 = vadd.f32 %v6823, %v6844
          %v6861 = vadd.f32 %v6824, %v6843
          %v6862 = vadd.f32 %v6825, %v6844
          %v6863 = vadd.f32 %v6826, %v6843
          %v6864 = vadd.f32 %v6827, %v6844
          %v6865 = vadd.f32 %v6828, %v6843
          %v6866 = vadd.f32 %v6829, %v6844
          %v6867 = vadd.f32 %v6830, %v6843
          %v6868 = vadd.f32 %v6831, %v6844
          %v6869 = vadd.f32 %v6832, %v6843
          %v6870 = vadd.f32 %v6833, %v6844
          %v6871 = vadd.f32 %v6834, %v6843
          %v6872 = vadd.f32 %v6835, %v6844
          %v6873 = vadd.f32 %v6836, %v6843
          %v6874 = vadd.f32 %v6837, %v6844
          %v6875 = vadd.f32 %v6838, %v6843
          %v6876 = vadd.f32 %v6839, %v6844
          %v6877 = vadd.f32 %v6840, %v6843
          %v6878 = vadd.f32 %v6841, %v6844
          %v6879 = vpack.c.bf16 %v6849, %v6847
          %v6880 = vpack.c.bf16 %v6850, %v6848
          %v6881 = vpack.c.bf16 %v6853, %v6851
          %v6882 = vpack.c.bf16 %v6854, %v6852
          %v6883 = vpack.c.bf16 %v6857, %v6855
          %v6884 = vpack.c.bf16 %v6858, %v6856
          %v6885 = vpack.c.bf16 %v6861, %v6859
          %v6886 = vpack.c.bf16 %v6862, %v6860
          %v6887 = vpack.c.bf16 %v6865, %v6863
          %v6888 = vpack.c.bf16 %v6866, %v6864
          %v6889 = vpack.c.bf16 %v6869, %v6867
          %v6890 = vpack.c.bf16 %v6870, %v6868
          %v6891 = vpack.c.bf16 %v6873, %v6871
          %v6892 = vpack.c.bf16 %v6874, %v6872
          %v6893 = vpack.c.bf16 %v6877, %v6875
          %v6894 = vpack.c.bf16 %v6878, %v6876
          %v6895 = vld [vmem:[#allocation27] sm:$0xff]
          %v6896 = vld [vmem:[#allocation27 + $0x8] sm:$0xff]
          %v6897 = vld [vmem:[#allocation27 + $0x10] sm:$0xff]
          %v6898 = vld [vmem:[#allocation27 + $0x18] sm:$0xff]
          %v6899 = vld [vmem:[#allocation27 + $0x20] sm:$0xff]
          %v6900 = vld [vmem:[#allocation27 + $0x28] sm:$0xff]
          %v6901 = vld [vmem:[#allocation27 + $0x30] sm:$0xff]
          %v6902 = vld [vmem:[#allocation27 + $0x38] sm:$0xff]
          %v6903 = vld [vmem:[#allocation27 + $0x40] sm:$0xff]
          %v6904 = vld [vmem:[#allocation27 + $0x48] sm:$0xff]
          %v6905 = vld [vmem:[#allocation27 + $0x50] sm:$0xff]
          %v6906 = vld [vmem:[#allocation27 + $0x58] sm:$0xff]
          %v6907 = vld [vmem:[#allocation27 + $0x60] sm:$0xff]
          %v6908 = vld [vmem:[#allocation27 + $0x68] sm:$0xff]
          %v6909 = vld [vmem:[#allocation27 + $0x70] sm:$0xff]
          %v6910 = vld [vmem:[#allocation27 + $0x78] sm:$0xff]
          %v6911 = vld [vmem:[#allocation27 + $0x80] sm:$0xff]
          %v6912 = vld [vmem:[#allocation27 + $0x88] sm:$0xff]
          %v6913 = vld [vmem:[#allocation27 + $0x90] sm:$0xff]
          %v6914 = vld [vmem:[#allocation27 + $0x98] sm:$0xff]
          %v6915 = vld [vmem:[#allocation27 + $0xa0] sm:$0xff]
          %v6916 = vld [vmem:[#allocation27 + $0xa8] sm:$0xff]
          %v6917 = vld [vmem:[#allocation27 + $0xb0] sm:$0xff]
          %v6918 = vld [vmem:[#allocation27 + $0xb8] sm:$0xff]
          %v6919 = vld [vmem:[#allocation27 + $0xc0] sm:$0xff]
          %v6920 = vld [vmem:[#allocation27 + $0xc8] sm:$0xff]
          %v6921 = vld [vmem:[#allocation27 + $0xd0] sm:$0xff]
          %v6922 = vld [vmem:[#allocation27 + $0xd8] sm:$0xff]
          %v6923 = vld [vmem:[#allocation27 + $0xe0] sm:$0xff]
          %v6924 = vld [vmem:[#allocation27 + $0xe8] sm:$0xff]
          %v6925 = vld [vmem:[#allocation27 + $0xf0] sm:$0xff]
          %v6926 = vld [vmem:[#allocation27 + $0xf8] sm:$0xff]
          %v6927 = vld [vmem:[#allocation27 + $0x100] sm:$0xff]
          %v6928 = vld [vmem:[#allocation27 + $0x108] sm:$0xff]
          %v6929 = vld [vmem:[#allocation27 + $0x110] sm:$0xff]
          %v6930 = vld [vmem:[#allocation27 + $0x118] sm:$0xff]
          %v6931 = vld [vmem:[#allocation27 + $0x120] sm:$0xff]
          %v6932 = vld [vmem:[#allocation27 + $0x128] sm:$0xff]
          %v6933 = vld [vmem:[#allocation27 + $0x130] sm:$0xff]
          %v6934 = vld [vmem:[#allocation27 + $0x138] sm:$0xff]
          %v6935 = vld [vmem:[#allocation27 + $0x140] sm:$0xff]
          %v6936 = vld [vmem:[#allocation27 + $0x148] sm:$0xff]
          %v6937 = vld [vmem:[#allocation27 + $0x150] sm:$0xff]
          %v6938 = vld [vmem:[#allocation27 + $0x158] sm:$0xff]
          %v6939 = vld [vmem:[#allocation27 + $0x160] sm:$0xff]
          %v6940 = vld [vmem:[#allocation27 + $0x168] sm:$0xff]
          %v6941 = vld [vmem:[#allocation27 + $0x170] sm:$0xff]
          %v6942 = vld [vmem:[#allocation27 + $0x178] sm:$0xff]
          %v6943 = vld [vmem:[#allocation27 + $0x180] sm:$0xff]
          %v6944 = vld [vmem:[#allocation27 + $0x188] sm:$0xff]
          %v6945 = vld [vmem:[#allocation27 + $0x190] sm:$0xff]
          %v6946 = vld [vmem:[#allocation27 + $0x198] sm:$0xff]
          %v6947 = vld [vmem:[#allocation27 + $0x1a0] sm:$0xff]
          %v6948 = vld [vmem:[#allocation27 + $0x1a8] sm:$0xff]
          %v6949 = vld [vmem:[#allocation27 + $0x1b0] sm:$0xff]
          %v6950 = vld [vmem:[#allocation27 + $0x1b8] sm:$0xff]
          %v6951 = vld [vmem:[#allocation27 + $0x1c0] sm:$0xff]
          %v6952 = vld [vmem:[#allocation27 + $0x1c8] sm:$0xff]
          %v6953 = vld [vmem:[#allocation27 + $0x1d0] sm:$0xff]
          %v6954 = vld [vmem:[#allocation27 + $0x1d8] sm:$0xff]
          %v6955 = vld [vmem:[#allocation27 + $0x1e0] sm:$0xff]
          %v6956 = vld [vmem:[#allocation27 + $0x1e8] sm:$0xff]
          %v6957 = vld [vmem:[#allocation27 + $0x1f0] sm:$0xff]
          %v6958 = vld [vmem:[#allocation27 + $0x1f8] sm:$0xff]
          %v6959 = vld [vmem:[%s15] sm:$0xf]
          %v6961 = vperm.slane %v6959, 0
          %v6962 = vperm.slane %v6959, 1
          %v6963 = vperm.slane %v6959, 2
          %v6964 = vperm.slane %v6959, 3
          %v7033 = vunpack.c.l.b16 %v6895
          %v7034 = vunpack.c.h.b16 %v6895
          %v7035 = vunpack.c.l.b16 %v6896
          %v7036 = vunpack.c.h.b16 %v6896
          %v7037 = vunpack.c.l.b16 %v6897
          %v7038 = vunpack.c.h.b16 %v6897
          %v7039 = vunpack.c.l.b16 %v6898
          %v7040 = vunpack.c.h.b16 %v6898
          %v7041 = vunpack.c.l.b16 %v6899
          %v7042 = vunpack.c.h.b16 %v6899
          %v7043 = vunpack.c.l.b16 %v6900
          %v7044 = vunpack.c.h.b16 %v6900
          %v7045 = vunpack.c.l.b16 %v6901
          %v7046 = vunpack.c.h.b16 %v6901
          %v7047 = vunpack.c.l.b16 %v6902
          %v7048 = vunpack.c.h.b16 %v6902
          %v7049 = vunpack.c.l.b16 %v6903
          %v7050 = vunpack.c.h.b16 %v6903
          %v7051 = vunpack.c.l.b16 %v6904
          %v7052 = vunpack.c.h.b16 %v6904
          %v7053 = vunpack.c.l.b16 %v6905
          %v7054 = vunpack.c.h.b16 %v6905
          %v7055 = vunpack.c.l.b16 %v6906
          %v7056 = vunpack.c.h.b16 %v6906
          %v7057 = vunpack.c.l.b16 %v6907
          %v7058 = vunpack.c.h.b16 %v6907
          %v7059 = vunpack.c.l.b16 %v6908
          %v7060 = vunpack.c.h.b16 %v6908
          %v7061 = vunpack.c.l.b16 %v6909
          %v7062 = vunpack.c.h.b16 %v6909
          %v7063 = vunpack.c.l.b16 %v6910
          %v7064 = vunpack.c.h.b16 %v6910
          %v7065 = vunpack.c.l.b16 %v6911
          %v7066 = vunpack.c.h.b16 %v6911
          %v7067 = vunpack.c.l.b16 %v6912
          %v7068 = vunpack.c.h.b16 %v6912
          %v7069 = vunpack.c.l.b16 %v6913
          %v7070 = vunpack.c.h.b16 %v6913
          %v7071 = vunpack.c.l.b16 %v6914
          %v7072 = vunpack.c.h.b16 %v6914
          %v7073 = vunpack.c.l.b16 %v6915
          %v7074 = vunpack.c.h.b16 %v6915
          %v7075 = vunpack.c.l.b16 %v6916
          %v7076 = vunpack.c.h.b16 %v6916
          %v7077 = vunpack.c.l.b16 %v6917
          %v7078 = vunpack.c.h.b16 %v6917
          %v7079 = vunpack.c.l.b16 %v6918
          %v7080 = vunpack.c.h.b16 %v6918
          %v7081 = vunpack.c.l.b16 %v6919
          %v7082 = vunpack.c.h.b16 %v6919
          %v7083 = vunpack.c.l.b16 %v6920
          %v7084 = vunpack.c.h.b16 %v6920
          %v7085 = vunpack.c.l.b16 %v6921
          %v7086 = vunpack.c.h.b16 %v6921
          %v7087 = vunpack.c.l.b16 %v6922
          %v7088 = vunpack.c.h.b16 %v6922
          %v7089 = vunpack.c.l.b16 %v6923
          %v7090 = vunpack.c.h.b16 %v6923
          %v7091 = vunpack.c.l.b16 %v6924
          %v7092 = vunpack.c.h.b16 %v6924
          %v7093 = vunpack.c.l.b16 %v6925
          %v7094 = vunpack.c.h.b16 %v6925
          %v7095 = vunpack.c.l.b16 %v6926
          %v7096 = vunpack.c.h.b16 %v6926
          %v7097 = vunpack.c.l.b16 %v6927
          %v7098 = vunpack.c.h.b16 %v6927
          %v7099 = vunpack.c.l.b16 %v6928
          %v7100 = vunpack.c.h.b16 %v6928
          %v7101 = vunpack.c.l.b16 %v6929
          %v7102 = vunpack.c.h.b16 %v6929
          %v7103 = vunpack.c.l.b16 %v6930
          %v7104 = vunpack.c.h.b16 %v6930
          %v7105 = vunpack.c.l.b16 %v6931
          %v7106 = vunpack.c.h.b16 %v6931
          %v7107 = vunpack.c.l.b16 %v6932
          %v7108 = vunpack.c.h.b16 %v6932
          %v7109 = vunpack.c.l.b16 %v6933
          %v7110 = vunpack.c.h.b16 %v6933
          %v7111 = vunpack.c.l.b16 %v6934
          %v7112 = vunpack.c.h.b16 %v6934
          %v7113 = vunpack.c.l.b16 %v6935
          %v7114 = vunpack.c.h.b16 %v6935
          %v7115 = vunpack.c.l.b16 %v6936
          %v7116 = vunpack.c.h.b16 %v6936
          %v7117 = vunpack.c.l.b16 %v6937
          %v7118 = vunpack.c.h.b16 %v6937
          %v7119 = vunpack.c.l.b16 %v6938
          %v7120 = vunpack.c.h.b16 %v6938
          %v7121 = vunpack.c.l.b16 %v6939
          %v7122 = vunpack.c.h.b16 %v6939
          %v7123 = vunpack.c.l.b16 %v6940
          %v7124 = vunpack.c.h.b16 %v6940
          %v7125 = vunpack.c.l.b16 %v6941
          %v7126 = vunpack.c.h.b16 %v6941
          %v7127 = vunpack.c.l.b16 %v6942
          %v7128 = vunpack.c.h.b16 %v6942
          %v7129 = vunpack.c.l.b16 %v6943
          %v7130 = vunpack.c.h.b16 %v6943
          %v7131 = vunpack.c.l.b16 %v6944
          %v7132 = vunpack.c.h.b16 %v6944
          %v7133 = vunpack.c.l.b16 %v6945
          %v7134 = vunpack.c.h.b16 %v6945
          %v7135 = vunpack.c.l.b16 %v6946
          %v7136 = vunpack.c.h.b16 %v6946
          %v7137 = vunpack.c.l.b16 %v6947
          %v7138 = vunpack.c.h.b16 %v6947
          %v7139 = vunpack.c.l.b16 %v6948
          %v7140 = vunpack.c.h.b16 %v6948
          %v7141 = vunpack.c.l.b16 %v6949
          %v7142 = vunpack.c.h.b16 %v6949
          %v7143 = vunpack.c.l.b16 %v6950
          %v7144 = vunpack.c.h.b16 %v6950
          %v7145 = vunpack.c.l.b16 %v6951
          %v7146 = vunpack.c.h.b16 %v6951
          %v7147 = vunpack.c.l.b16 %v6952
          %v7148 = vunpack.c.h.b16 %v6952
          %v7149 = vunpack.c.l.b16 %v6953
          %v7150 = vunpack.c.h.b16 %v6953
          %v7151 = vunpack.c.l.b16 %v6954
          %v7152 = vunpack.c.h.b16 %v6954
          %v7153 = vunpack.c.l.b16 %v6955
          %v7154 = vunpack.c.h.b16 %v6955
          %v7155 = vunpack.c.l.b16 %v6956
          %v7156 = vunpack.c.h.b16 %v6956
          %v7157 = vunpack.c.l.b16 %v6957
          %v7158 = vunpack.c.h.b16 %v6957
          %v7159 = vunpack.c.l.b16 %v6958
          %v7160 = vunpack.c.h.b16 %v6958
          %v7161 = vpack.c.b16 %v7037, %v7033
          %v7162 = vpack.c.b16 %v7038, %v7034
          %v7163 = vpack.c.b16 %v7039, %v7035
          %v7164 = vpack.c.b16 %v7040, %v7036
          %v7165 = vpack.c.b16 %v7045, %v7041
          %v7166 = vpack.c.b16 %v7046, %v7042
          %v7167 = vpack.c.b16 %v7047, %v7043
          %v7168 = vpack.c.b16 %v7048, %v7044
          %v7169 = vpack.c.b16 %v7053, %v7049
          %v7170 = vpack.c.b16 %v7054, %v7050
          %v7171 = vpack.c.b16 %v7055, %v7051
          %v7172 = vpack.c.b16 %v7056, %v7052
          %v7173 = vpack.c.b16 %v7061, %v7057
          %v7174 = vpack.c.b16 %v7062, %v7058
          %v7175 = vpack.c.b16 %v7063, %v7059
          %v7176 = vpack.c.b16 %v7064, %v7060
          %v7177 = vpack.c.b16 %v7069, %v7065
          %v7178 = vpack.c.b16 %v7070, %v7066
          %v7179 = vpack.c.b16 %v7071, %v7067
          %v7180 = vpack.c.b16 %v7072, %v7068
          %v7181 = vpack.c.b16 %v7077, %v7073
          %v7182 = vpack.c.b16 %v7078, %v7074
          %v7183 = vpack.c.b16 %v7079, %v7075
          %v7184 = vpack.c.b16 %v7080, %v7076
          %v7185 = vpack.c.b16 %v7085, %v7081
          %v7186 = vpack.c.b16 %v7086, %v7082
          %v7187 = vpack.c.b16 %v7087, %v7083
          %v7188 = vpack.c.b16 %v7088, %v7084
          %v7189 = vpack.c.b16 %v7093, %v7089
          %v7190 = vpack.c.b16 %v7094, %v7090
          %v7191 = vpack.c.b16 %v7095, %v7091
          %v7192 = vpack.c.b16 %v7096, %v7092
          %v7193 = vpack.c.b16 %v7101, %v7097
          %v7194 = vpack.c.b16 %v7102, %v7098
          %v7195 = vpack.c.b16 %v7103, %v7099
          %v7196 = vpack.c.b16 %v7104, %v7100
          %v7197 = vpack.c.b16 %v7109, %v7105
          %v7198 = vpack.c.b16 %v7110, %v7106
          %v7199 = vpack.c.b16 %v7111, %v7107
          %v7200 = vpack.c.b16 %v7112, %v7108
          %v7201 = vpack.c.b16 %v7117, %v7113
          %v7202 = vpack.c.b16 %v7118, %v7114
          %v7203 = vpack.c.b16 %v7119, %v7115
          %v7204 = vpack.c.b16 %v7120, %v7116
          %v7205 = vpack.c.b16 %v7125, %v7121
          %v7206 = vpack.c.b16 %v7126, %v7122
          %v7207 = vpack.c.b16 %v7127, %v7123
          %v7208 = vpack.c.b16 %v7128, %v7124
          %v7209 = vpack.c.b16 %v7133, %v7129
          %v7210 = vpack.c.b16 %v7134, %v7130
          %v7211 = vpack.c.b16 %v7135, %v7131
          %v7212 = vpack.c.b16 %v7136, %v7132
          %v7213 = vpack.c.b16 %v7141, %v7137
          %v7214 = vpack.c.b16 %v7142, %v7138
          %v7215 = vpack.c.b16 %v7143, %v7139
          %v7216 = vpack.c.b16 %v7144, %v7140
          %v7217 = vpack.c.b16 %v7149, %v7145
          %v7218 = vpack.c.b16 %v7150, %v7146
          %v7219 = vpack.c.b16 %v7151, %v7147
          %v7220 = vpack.c.b16 %v7152, %v7148
          %v7221 = vpack.c.b16 %v7157, %v7153
          %v7222 = vpack.c.b16 %v7158, %v7154
          %v7223 = vpack.c.b16 %v7159, %v7155
          %v7224 = vpack.c.b16 %v7160, %v7156
          %7289 = vmatpush.bf16.msra.mxu0 %v7189
          %7290 = vmatpush.bf16.msra.mxu0 %v7185
          %7291 = vmatpush.bf16.msra.mxu0 %v7181
          %7292 = vmatpush.bf16.msra.mxu0 %v7177
          %7293 = vmatpush.bf16.msra.mxu0 %v7173
          %7294 = vmatpush.bf16.msra.mxu0 %v7169
          %7295 = vmatpush.bf16.msra.mxu0 %v7165
          %7296 = vmatpush.bf16.msra.mxu0 %v7161
          %7297 = vmatmul.bf16.gmra.mxu0 %v6879
          %v7298 = vpop.f32.mrf.mxu0
          %v7299 = vadd.f32 %v6961, %v7298
          %v7300 = vpop.f32.mrf.mxu0
          %v7301 = vadd.f32 %v6961, %v7300
          %7302 = vmatmul.bf16.gmra.mxu0 %v6881
          %v7303 = vpop.f32.mrf.mxu0
          %v7304 = vadd.f32 %v6961, %v7303
          %v7305 = vpop.f32.mrf.mxu0
          %v7306 = vadd.f32 %v6961, %v7305
          %7307 = vmatmul.bf16.gmra.mxu0 %v6883
          %v7308 = vpop.f32.mrf.mxu0
          %v7309 = vadd.f32 %v6961, %v7308
          %v7310 = vpop.f32.mrf.mxu0
          %v7311 = vadd.f32 %v6961, %v7310
          %7312 = vmatmul.bf16.gmra.mxu0 %v6885
          %v7313 = vpop.f32.mrf.mxu0
          %v7314 = vadd.f32 %v6961, %v7313
          %v7315 = vpop.f32.mrf.mxu0
          %v7316 = vadd.f32 %v6961, %v7315
          %7317 = vmatmul.bf16.gmra.mxu0 %v6887
          %v7318 = vpop.f32.mrf.mxu0
          %v7319 = vadd.f32 %v6961, %v7318
          %v7320 = vpop.f32.mrf.mxu0
          %v7321 = vadd.f32 %v6961, %v7320
          %7322 = vmatmul.bf16.gmra.mxu0 %v6889
          %v7323 = vpop.f32.mrf.mxu0
          %v7324 = vadd.f32 %v6961, %v7323
          %v7325 = vpop.f32.mrf.mxu0
          %v7326 = vadd.f32 %v6961, %v7325
          %7327 = vmatmul.bf16.gmra.mxu0 %v6891
          %v7328 = vpop.f32.mrf.mxu0
          %v7329 = vadd.f32 %v6961, %v7328
          %v7330 = vpop.f32.mrf.mxu0
          %v7331 = vadd.f32 %v6961, %v7330
          %7332 = vmatmul.bf16.gmra.mxu0 %v6893
          %v7333 = vpop.f32.mrf.mxu0
          %v7334 = vadd.f32 %v6961, %v7333
          %v7335 = vpop.f32.mrf.mxu0
          %v7336 = vadd.f32 %v6961, %v7335
          %7337 = vdwg.mxu0
          %7338 = vmatpush.bf16.msra.mxu0 %v7221
          %7339 = vmatpush.bf16.msra.mxu0 %v7217
          %7340 = vmatpush.bf16.msra.mxu0 %v7213
          %7341 = vmatpush.bf16.msra.mxu0 %v7209
          %7342 = vmatpush.bf16.msra.mxu0 %v7205
          %7343 = vmatpush.bf16.msra.mxu0 %v7201
          %7344 = vmatpush.bf16.msra.mxu0 %v7197
          %7345 = vmatpush.bf16.msra.mxu0 %v7193
          %7346 = vmatmul.bf16.gmra.mxu0 %v6880
          %v7347 = vpop.f32.mrf.mxu0
          %v7348 = vadd.f32 %v7299, %v7347
          %v7349 = vpop.f32.mrf.mxu0
          %v7350 = vadd.f32 %v7301, %v7349
          %7351 = vmatmul.bf16.gmra.mxu0 %v6882
          %v7352 = vpop.f32.mrf.mxu0
          %v7353 = vadd.f32 %v7304, %v7352
          %v7354 = vpop.f32.mrf.mxu0
          %v7355 = vadd.f32 %v7306, %v7354
          %7356 = vmatmul.bf16.gmra.mxu0 %v6884
          %v7357 = vpop.f32.mrf.mxu0
          %v7358 = vadd.f32 %v7309, %v7357
          %v7359 = vpop.f32.mrf.mxu0
          %v7360 = vadd.f32 %v7311, %v7359
          %7361 = vmatmul.bf16.gmra.mxu0 %v6886
          %v7362 = vpop.f32.mrf.mxu0
          %v7363 = vadd.f32 %v7314, %v7362
          %v7364 = vpop.f32.mrf.mxu0
          %v7365 = vadd.f32 %v7316, %v7364
          %7366 = vmatmul.bf16.gmra.mxu0 %v6888
          %v7367 = vpop.f32.mrf.mxu0
          %v7368 = vadd.f32 %v7319, %v7367
          %v7369 = vpop.f32.mrf.mxu0
          %v7370 = vadd.f32 %v7321, %v7369
          %7371 = vmatmul.bf16.gmra.mxu0 %v6890
          %v7372 = vpop.f32.mrf.mxu0
          %v7373 = vadd.f32 %v7324, %v7372
          %v7374 = vpop.f32.mrf.mxu0
          %v7375 = vadd.f32 %v7326, %v7374
          %7376 = vmatmul.bf16.gmra.mxu0 %v6892
          %v7377 = vpop.f32.mrf.mxu0
          %v7378 = vadd.f32 %v7329, %v7377
          %v7379 = vpop.f32.mrf.mxu0
          %v7380 = vadd.f32 %v7331, %v7379
          %7381 = vmatmul.bf16.gmra.mxu0 %v6894
          %v7382 = vpop.f32.mrf.mxu0
          %v7383 = vadd.f32 %v7334, %v7382
          %v7384 = vpop.f32.mrf.mxu0
          %v7385 = vadd.f32 %v7336, %v7384
          %7386 = vdwg.mxu0
          %7387 = vmatpush.bf16.msra.mxu0 %v7190
          %7388 = vmatpush.bf16.msra.mxu0 %v7186
          %7389 = vmatpush.bf16.msra.mxu0 %v7182
          %7390 = vmatpush.bf16.msra.mxu0 %v7178
          %7391 = vmatpush.bf16.msra.mxu0 %v7174
          %7392 = vmatpush.bf16.msra.mxu0 %v7170
          %7393 = vmatpush.bf16.msra.mxu0 %v7166
          %7394 = vmatpush.bf16.msra.mxu0 %v7162
          %7395 = vmatmul.bf16.gmra.mxu0 %v6879
          %v7396 = vpop.f32.mrf.mxu0
          %v7397 = vadd.f32 %v6962, %v7396
          %v7398 = vpop.f32.mrf.mxu0
          %v7399 = vadd.f32 %v6962, %v7398
          %7400 = vmatmul.bf16.gmra.mxu0 %v6881
          %v7401 = vpop.f32.mrf.mxu0
          %v7402 = vadd.f32 %v6962, %v7401
          %v7403 = vpop.f32.mrf.mxu0
          %v7404 = vadd.f32 %v6962, %v7403
          %7405 = vmatmul.bf16.gmra.mxu0 %v6883
          %v7406 = vpop.f32.mrf.mxu0
          %v7407 = vadd.f32 %v6962, %v7406
          %v7408 = vpop.f32.mrf.mxu0
          %v7409 = vadd.f32 %v6962, %v7408
          %7410 = vmatmul.bf16.gmra.mxu0 %v6885
          %v7411 = vpop.f32.mrf.mxu0
          %v7412 = vadd.f32 %v6962, %v7411
          %v7413 = vpop.f32.mrf.mxu0
          %v7414 = vadd.f32 %v6962, %v7413
          %7415 = vmatmul.bf16.gmra.mxu0 %v6887
          %v7416 = vpop.f32.mrf.mxu0
          %v7417 = vadd.f32 %v6962, %v7416
          %v7418 = vpop.f32.mrf.mxu0
          %v7419 = vadd.f32 %v6962, %v7418
          %7420 = vmatmul.bf16.gmra.mxu0 %v6889
          %v7421 = vpop.f32.mrf.mxu0
          %v7422 = vadd.f32 %v6962, %v7421
          %v7423 = vpop.f32.mrf.mxu0
          %v7424 = vadd.f32 %v6962, %v7423
          %7425 = vmatmul.bf16.gmra.mxu0 %v6891
          %v7426 = vpop.f32.mrf.mxu0
          %v7427 = vadd.f32 %v6962, %v7426
          %v7428 = vpop.f32.mrf.mxu0
          %v7429 = vadd.f32 %v6962, %v7428
          %7430 = vmatmul.bf16.gmra.mxu0 %v6893
          %v7431 = vpop.f32.mrf.mxu0
          %v7432 = vadd.f32 %v6962, %v7431
          %v7433 = vpop.f32.mrf.mxu0
          %v7434 = vadd.f32 %v6962, %v7433
          %7435 = vdwg.mxu0
          %7436 = vmatpush.bf16.msra.mxu0 %v7222
          %7437 = vmatpush.bf16.msra.mxu0 %v7218
          %7438 = vmatpush.bf16.msra.mxu0 %v7214
          %7439 = vmatpush.bf16.msra.mxu0 %v7210
          %7440 = vmatpush.bf16.msra.mxu0 %v7206
          %7441 = vmatpush.bf16.msra.mxu0 %v7202
          %7442 = vmatpush.bf16.msra.mxu0 %v7198
          %7443 = vmatpush.bf16.msra.mxu0 %v7194
          %7444 = vmatmul.bf16.gmra.mxu0 %v6880
          %v7445 = vpop.f32.mrf.mxu0
          %v7446 = vadd.f32 %v7397, %v7445
          %v7447 = vpop.f32.mrf.mxu0
          %v7448 = vadd.f32 %v7399, %v7447
          %7449 = vmatmul.bf16.gmra.mxu0 %v6882
          %v7450 = vpop.f32.mrf.mxu0
          %v7451 = vadd.f32 %v7402, %v7450
          %v7452 = vpop.f32.mrf.mxu0
          %v7453 = vadd.f32 %v7404, %v7452
          %7454 = vmatmul.bf16.gmra.mxu0 %v6884
          %v7455 = vpop.f32.mrf.mxu0
          %v7456 = vadd.f32 %v7407, %v7455
          %v7457 = vpop.f32.mrf.mxu0
          %v7458 = vadd.f32 %v7409, %v7457
          %7459 = vmatmul.bf16.gmra.mxu0 %v6886
          %v7460 = vpop.f32.mrf.mxu0
          %v7461 = vadd.f32 %v7412, %v7460
          %v7462 = vpop.f32.mrf.mxu0
          %v7463 = vadd.f32 %v7414, %v7462
          %7464 = vmatmul.bf16.gmra.mxu0 %v6888
          %v7465 = vpop.f32.mrf.mxu0
          %v7466 = vadd.f32 %v7417, %v7465
          %v7467 = vpop.f32.mrf.mxu0
          %v7468 = vadd.f32 %v7419, %v7467
          %7469 = vmatmul.bf16.gmra.mxu0 %v6890
          %v7470 = vpop.f32.mrf.mxu0
          %v7471 = vadd.f32 %v7422, %v7470
          %v7472 = vpop.f32.mrf.mxu0
          %v7473 = vadd.f32 %v7424, %v7472
          %7474 = vmatmul.bf16.gmra.mxu0 %v6892
          %v7475 = vpop.f32.mrf.mxu0
          %v7476 = vadd.f32 %v7427, %v7475
          %v7477 = vpop.f32.mrf.mxu0
          %v7478 = vadd.f32 %v7429, %v7477
          %7479 = vmatmul.bf16.gmra.mxu0 %v6894
          %v7480 = vpop.f32.mrf.mxu0
          %v7481 = vadd.f32 %v7432, %v7480
          %v7482 = vpop.f32.mrf.mxu0
          %v7483 = vadd.f32 %v7434, %v7482
          %7484 = vdwg.mxu0
          %7485 = vmatpush.bf16.msra.mxu0 %v7191
          %7486 = vmatpush.bf16.msra.mxu0 %v7187
          %7487 = vmatpush.bf16.msra.mxu0 %v7183
          %7488 = vmatpush.bf16.msra.mxu0 %v7179
          %7489 = vmatpush.bf16.msra.mxu0 %v7175
          %7490 = vmatpush.bf16.msra.mxu0 %v7171
          %7491 = vmatpush.bf16.msra.mxu0 %v7167
          %7492 = vmatpush.bf16.msra.mxu0 %v7163
          %7493 = vmatmul.bf16.gmra.mxu0 %v6879
          %v7494 = vpop.f32.mrf.mxu0
          %v7495 = vadd.f32 %v6963, %v7494
          %v7496 = vpop.f32.mrf.mxu0
          %v7497 = vadd.f32 %v6963, %v7496
          %7498 = vmatmul.bf16.gmra.mxu0 %v6881
          %v7499 = vpop.f32.mrf.mxu0
          %v7500 = vadd.f32 %v6963, %v7499
          %v7501 = vpop.f32.mrf.mxu0
          %v7502 = vadd.f32 %v6963, %v7501
          %7503 = vmatmul.bf16.gmra.mxu0 %v6883
          %v7504 = vpop.f32.mrf.mxu0
          %v7505 = vadd.f32 %v6963, %v7504
          %v7506 = vpop.f32.mrf.mxu0
          %v7507 = vadd.f32 %v6963, %v7506
          %7508 = vmatmul.bf16.gmra.mxu0 %v6885
          %v7509 = vpop.f32.mrf.mxu0
          %v7510 = vadd.f32 %v6963, %v7509
          %v7511 = vpop.f32.mrf.mxu0
          %v7512 = vadd.f32 %v6963, %v7511
          %7513 = vmatmul.bf16.gmra.mxu0 %v6887
          %v7514 = vpop.f32.mrf.mxu0
          %v7515 = vadd.f32 %v6963, %v7514
          %v7516 = vpop.f32.mrf.mxu0
          %v7517 = vadd.f32 %v6963, %v7516
          %7518 = vmatmul.bf16.gmra.mxu0 %v6889
          %v7519 = vpop.f32.mrf.mxu0
          %v7520 = vadd.f32 %v6963, %v7519
          %v7521 = vpop.f32.mrf.mxu0
          %v7522 = vadd.f32 %v6963, %v7521
          %7523 = vmatmul.bf16.gmra.mxu0 %v6891
          %v7524 = vpop.f32.mrf.mxu0
          %v7525 = vadd.f32 %v6963, %v7524
          %v7526 = vpop.f32.mrf.mxu0
          %v7527 = vadd.f32 %v6963, %v7526
          %7528 = vmatmul.bf16.gmra.mxu0 %v6893
          %v7529 = vpop.f32.mrf.mxu0
          %v7530 = vadd.f32 %v6963, %v7529
          %v7531 = vpop.f32.mrf.mxu0
          %v7532 = vadd.f32 %v6963, %v7531
          %7533 = vdwg.mxu0
          %7534 = vmatpush.bf16.msra.mxu0 %v7223
          %7535 = vmatpush.bf16.msra.mxu0 %v7219
          %7536 = vmatpush.bf16.msra.mxu0 %v7215
          %7537 = vmatpush.bf16.msra.mxu0 %v7211
          %7538 = vmatpush.bf16.msra.mxu0 %v7207
          %7539 = vmatpush.bf16.msra.mxu0 %v7203
          %7540 = vmatpush.bf16.msra.mxu0 %v7199
          %7541 = vmatpush.bf16.msra.mxu0 %v7195
          %7542 = vmatmul.bf16.gmra.mxu0 %v6880
          %v7543 = vpop.f32.mrf.mxu0
          %v7544 = vadd.f32 %v7495, %v7543
          %v7545 = vpop.f32.mrf.mxu0
          %v7546 = vadd.f32 %v7497, %v7545
          %7547 = vmatmul.bf16.gmra.mxu0 %v6882
          %v7548 = vpop.f32.mrf.mxu0
          %v7549 = vadd.f32 %v7500, %v7548
          %v7550 = vpop.f32.mrf.mxu0
          %v7551 = vadd.f32 %v7502, %v7550
          %7552 = vmatmul.bf16.gmra.mxu0 %v6884
          %v7553 = vpop.f32.mrf.mxu0
          %v7554 = vadd.f32 %v7505, %v7553
          %v7555 = vpop.f32.mrf.mxu0
          %v7556 = vadd.f32 %v7507, %v7555
          %7557 = vmatmul.bf16.gmra.mxu0 %v6886
          %v7558 = vpop.f32.mrf.mxu0
          %v7559 = vadd.f32 %v7510, %v7558
          %v7560 = vpop.f32.mrf.mxu0
          %v7561 = vadd.f32 %v7512, %v7560
          %7562 = vmatmul.bf16.gmra.mxu0 %v6888
          %v7563 = vpop.f32.mrf.mxu0
          %v7564 = vadd.f32 %v7515, %v7563
          %v7565 = vpop.f32.mrf.mxu0
          %v7566 = vadd.f32 %v7517, %v7565
          %7567 = vmatmul.bf16.gmra.mxu0 %v6890
          %v7568 = vpop.f32.mrf.mxu0
          %v7569 = vadd.f32 %v7520, %v7568
          %v7570 = vpop.f32.mrf.mxu0
          %v7571 = vadd.f32 %v7522, %v7570
          %7572 = vmatmul.bf16.gmra.mxu0 %v6892
          %v7573 = vpop.f32.mrf.mxu0
          %v7574 = vadd.f32 %v7525, %v7573
          %v7575 = vpop.f32.mrf.mxu0
          %v7576 = vadd.f32 %v7527, %v7575
          %7577 = vmatmul.bf16.gmra.mxu0 %v6894
          %v7578 = vpop.f32.mrf.mxu0
          %v7579 = vadd.f32 %v7530, %v7578
          %v7580 = vpop.f32.mrf.mxu0
          %v7581 = vadd.f32 %v7532, %v7580
          %7582 = vdwg.mxu0
          %7583 = vmatpush.bf16.msra.mxu0 %v7192
          %7584 = vmatpush.bf16.msra.mxu0 %v7188
          %7585 = vmatpush.bf16.msra.mxu0 %v7184
          %7586 = vmatpush.bf16.msra.mxu0 %v7180
          %7587 = vmatpush.bf16.msra.mxu0 %v7176
          %7588 = vmatpush.bf16.msra.mxu0 %v7172
          %7589 = vmatpush.bf16.msra.mxu0 %v7168
          %7590 = vmatpush.bf16.msra.mxu0 %v7164
          %7591 = vmatmul.bf16.gmra.mxu0 %v6879
          %v7592 = vpop.f32.mrf.mxu0
          %v7593 = vadd.f32 %v6964, %v7592
          %v7594 = vpop.f32.mrf.mxu0
          %v7595 = vadd.f32 %v6964, %v7594
          %7596 = vmatmul.bf16.gmra.mxu0 %v6881
          %v7597 = vpop.f32.mrf.mxu0
          %v7598 = vadd.f32 %v6964, %v7597
          %v7599 = vpop.f32.mrf.mxu0
          %v7600 = vadd.f32 %v6964, %v7599
          %7601 = vmatmul.bf16.gmra.mxu0 %v6883
          %v7602 = vpop.f32.mrf.mxu0
          %v7603 = vadd.f32 %v6964, %v7602
          %v7604 = vpop.f32.mrf.mxu0
          %v7605 = vadd.f32 %v6964, %v7604
          %7606 = vmatmul.bf16.gmra.mxu0 %v6885
          %v7607 = vpop.f32.mrf.mxu0
          %v7608 = vadd.f32 %v6964, %v7607
          %v7609 = vpop.f32.mrf.mxu0
          %v7610 = vadd.f32 %v6964, %v7609
          %7611 = vmatmul.bf16.gmra.mxu0 %v6887
          %v7612 = vpop.f32.mrf.mxu0
          %v7613 = vadd.f32 %v6964, %v7612
          %v7614 = vpop.f32.mrf.mxu0
          %v7615 = vadd.f32 %v6964, %v7614
          %7616 = vmatmul.bf16.gmra.mxu0 %v6889
          %v7617 = vpop.f32.mrf.mxu0
          %v7618 = vadd.f32 %v6964, %v7617
          %v7619 = vpop.f32.mrf.mxu0
          %v7620 = vadd.f32 %v6964, %v7619
          %7621 = vmatmul.bf16.gmra.mxu0 %v6891
          %v7622 = vpop.f32.mrf.mxu0
          %v7623 = vadd.f32 %v6964, %v7622
          %v7624 = vpop.f32.mrf.mxu0
          %v7625 = vadd.f32 %v6964, %v7624
          %7626 = vmatmul.bf16.gmra.mxu0 %v6893
          %v7627 = vpop.f32.mrf.mxu0
          %v7628 = vadd.f32 %v6964, %v7627
          %v7629 = vpop.f32.mrf.mxu0
          %v7630 = vadd.f32 %v6964, %v7629
          %7631 = vdwg.mxu0
          %7632 = vmatpush.bf16.msra.mxu0 %v7224
          %7633 = vmatpush.bf16.msra.mxu0 %v7220
          %7634 = vmatpush.bf16.msra.mxu0 %v7216
          %7635 = vmatpush.bf16.msra.mxu0 %v7212
          %7636 = vmatpush.bf16.msra.mxu0 %v7208
          %7637 = vmatpush.bf16.msra.mxu0 %v7204
          %7638 = vmatpush.bf16.msra.mxu0 %v7200
          %7639 = vmatpush.bf16.msra.mxu0 %v7196
          %7640 = vmatmul.bf16.gmra.mxu0 %v6880
          %v7641 = vpop.f32.mrf.mxu0
          %v7642 = vadd.f32 %v7593, %v7641
          %v7643 = vpop.f32.mrf.mxu0
          %v7644 = vadd.f32 %v7595, %v7643
          %7645 = vmatmul.bf16.gmra.mxu0 %v6882
          %v7646 = vpop.f32.mrf.mxu0
          %v7647 = vadd.f32 %v7598, %v7646
          %v7648 = vpop.f32.mrf.mxu0
          %v7649 = vadd.f32 %v7600, %v7648
          %7650 = vmatmul.bf16.gmra.mxu0 %v6884
          %v7651 = vpop.f32.mrf.mxu0
          %v7652 = vadd.f32 %v7603, %v7651
          %v7653 = vpop.f32.mrf.mxu0
          %v7654 = vadd.f32 %v7605, %v7653
          %7655 = vmatmul.bf16.gmra.mxu0 %v6886
          %v7656 = vpop.f32.mrf.mxu0
          %v7657 = vadd.f32 %v7608, %v7656
          %v7658 = vpop.f32.mrf.mxu0
          %v7659 = vadd.f32 %v7610, %v7658
          %7660 = vmatmul.bf16.gmra.mxu0 %v6888
          %v7661 = vpop.f32.mrf.mxu0
          %v7662 = vadd.f32 %v7613, %v7661
          %v7663 = vpop.f32.mrf.mxu0
          %v7664 = vadd.f32 %v7615, %v7663
          %7665 = vmatmul.bf16.gmra.mxu0 %v6890
          %v7666 = vpop.f32.mrf.mxu0
          %v7667 = vadd.f32 %v7618, %v7666
          %v7668 = vpop.f32.mrf.mxu0
          %v7669 = vadd.f32 %v7620, %v7668
          %7670 = vmatmul.bf16.gmra.mxu0 %v6892
          %v7671 = vpop.f32.mrf.mxu0
          %v7672 = vadd.f32 %v7623, %v7671
          %v7673 = vpop.f32.mrf.mxu0
          %v7674 = vadd.f32 %v7625, %v7673
          %7675 = vmatmul.bf16.gmra.mxu0 %v6894
          %v7676 = vpop.f32.mrf.mxu0
          %v7677 = vadd.f32 %v7628, %v7676
          %v7678 = vpop.f32.mrf.mxu0
          %v7679 = vadd.f32 %v7630, %v7678
          %7680 = vdwg.mxu0
          %v7681 = vmul.f32 %v7348, 0.5
          %v7682 = vmul.f32 %v7446, 0.5
          %v7683 = vmul.f32 %v7544, 0.5
          %v7684 = vmul.f32 %v7642, 0.5
          %v7685 = vmul.f32 %v7350, 0.5
          %v7686 = vmul.f32 %v7448, 0.5
          %v7687 = vmul.f32 %v7546, 0.5
          %v7688 = vmul.f32 %v7644, 0.5
          %v7689 = vmul.f32 %v7353, 0.5
          %v7690 = vmul.f32 %v7451, 0.5
          %v7691 = vmul.f32 %v7549, 0.5
          %v7692 = vmul.f32 %v7647, 0.5
          %v7693 = vmul.f32 %v7355, 0.5
          %v7694 = vmul.f32 %v7453, 0.5
          %v7695 = vmul.f32 %v7551, 0.5
          %v7696 = vmul.f32 %v7649, 0.5
          %v7697 = vmul.f32 %v7358, 0.5
          %v7698 = vmul.f32 %v7456, 0.5
          %v7699 = vmul.f32 %v7554, 0.5
          %v7700 = vmul.f32 %v7652, 0.5
          %v7701 = vmul.f32 %v7360, 0.5
          %v7702 = vmul.f32 %v7458, 0.5
          %v7703 = vmul.f32 %v7556, 0.5
          %v7704 = vmul.f32 %v7654, 0.5
          %v7705 = vmul.f32 %v7363, 0.5
          %v7706 = vmul.f32 %v7461, 0.5
          %v7707 = vmul.f32 %v7559, 0.5
          %v7708 = vmul.f32 %v7657, 0.5
          %v7709 = vmul.f32 %v7365, 0.5
          %v7710 = vmul.f32 %v7463, 0.5
          %v7711 = vmul.f32 %v7561, 0.5
          %v7712 = vmul.f32 %v7659, 0.5
          %v7713 = vmul.f32 %v7368, 0.5
          %v7714 = vmul.f32 %v7466, 0.5
          %v7715 = vmul.f32 %v7564, 0.5
          %v7716 = vmul.f32 %v7662, 0.5
          %v7717 = vmul.f32 %v7370, 0.5
          %v7718 = vmul.f32 %v7468, 0.5
          %v7719 = vmul.f32 %v7566, 0.5
          %v7720 = vmul.f32 %v7664, 0.5
          %v7721 = vmul.f32 %v7373, 0.5
          %v7722 = vmul.f32 %v7471, 0.5
          %v7723 = vmul.f32 %v7569, 0.5
          %v7724 = vmul.f32 %v7667, 0.5
          %v7725 = vmul.f32 %v7375, 0.5
          %v7726 = vmul.f32 %v7473, 0.5
          %v7727 = vmul.f32 %v7571, 0.5
          %v7728 = vmul.f32 %v7669, 0.5
          %v7729 = vmul.f32 %v7378, 0.5
          %v7730 = vmul.f32 %v7476, 0.5
          %v7731 = vmul.f32 %v7574, 0.5
          %v7732 = vmul.f32 %v7672, 0.5
          %v7733 = vmul.f32 %v7380, 0.5
          %v7734 = vmul.f32 %v7478, 0.5
          %v7735 = vmul.f32 %v7576, 0.5
          %v7736 = vmul.f32 %v7674, 0.5
          %v7737 = vmul.f32 %v7383, 0.5
          %v7738 = vmul.f32 %v7481, 0.5
          %v7739 = vmul.f32 %v7579, 0.5
          %v7740 = vmul.f32 %v7677, 0.5
          %v7741 = vmul.f32 %v7385, 0.5
          %v7742 = vmul.f32 %v7483, 0.5
          %v7743 = vmul.f32 %v7581, 0.5
          %v7744 = vmul.f32 %v7679, 0.5
          %v7745 = vmul.f32 %v7348, 0.70710677
          %v7746 = vmul.f32 %v7446, 0.70710677
          %v7747 = vmul.f32 %v7544, 0.70710677
          %v7748 = vmul.f32 %v7642, 0.70710677
          %v7749 = vmul.f32 %v7350, 0.70710677
          %v7750 = vmul.f32 %v7448, 0.70710677
          %v7751 = vmul.f32 %v7546, 0.70710677
          %v7752 = vmul.f32 %v7644, 0.70710677
          %v7753 = vmul.f32 %v7353, 0.70710677
          %v7754 = vmul.f32 %v7451, 0.70710677
          %v7755 = vmul.f32 %v7549, 0.70710677
          %v7756 = vmul.f32 %v7647, 0.70710677
          %v7757 = vmul.f32 %v7355, 0.70710677
          %v7758 = vmul.f32 %v7453, 0.70710677
          %v7759 = vmul.f32 %v7551, 0.70710677
          %v7760 = vmul.f32 %v7649, 0.70710677
          %v7761 = vmul.f32 %v7358, 0.70710677
          %v7762 = vmul.f32 %v7456, 0.70710677
          %v7763 = vmul.f32 %v7554, 0.70710677
          %v7764 = vmul.f32 %v7652, 0.70710677
          %v7765 = vmul.f32 %v7360, 0.70710677
          %v7766 = vmul.f32 %v7458, 0.70710677
          %v7767 = vmul.f32 %v7556, 0.70710677
          %v7768 = vmul.f32 %v7654, 0.70710677
          %v7769 = vmul.f32 %v7363, 0.70710677
          %v7770 = vmul.f32 %v7461, 0.70710677
          %v7771 = vmul.f32 %v7559, 0.70710677
          %v7772 = vmul.f32 %v7657, 0.70710677
          %v7773 = vmul.f32 %v7365, 0.70710677
          %v7774 = vmul.f32 %v7463, 0.70710677
          %v7775 = vmul.f32 %v7561, 0.70710677
          %v7776 = vmul.f32 %v7659, 0.70710677
          %v7777 = vmul.f32 %v7368, 0.70710677
          %v7778 = vmul.f32 %v7466, 0.70710677
          %v7779 = vmul.f32 %v7564, 0.70710677
          %v7780 = vmul.f32 %v7662, 0.70710677
          %v7781 = vmul.f32 %v7370, 0.70710677
          %v7782 = vmul.f32 %v7468, 0.70710677
          %v7783 = vmul.f32 %v7566, 0.70710677
          %v7784 = vmul.f32 %v7664, 0.70710677
          %v7785 = vmul.f32 %v7373, 0.70710677
          %v7786 = vmul.f32 %v7471, 0.70710677
          %v7787 = vmul.f32 %v7569, 0.70710677
          %v7788 = vmul.f32 %v7667, 0.70710677
          %v7789 = vmul.f32 %v7375, 0.70710677
          %v7790 = vmul.f32 %v7473, 0.70710677
          %v7791 = vmul.f32 %v7571, 0.70710677
          %v7792 = vmul.f32 %v7669, 0.70710677
          %v7793 = vmul.f32 %v7378, 0.70710677
          %v7794 = vmul.f32 %v7476, 0.70710677
          %v7795 = vmul.f32 %v7574, 0.70710677
          %v7796 = vmul.f32 %v7672, 0.70710677
          %v7797 = vmul.f32 %v7380, 0.70710677
          %v7798 = vmul.f32 %v7478, 0.70710677
          %v7799 = vmul.f32 %v7576, 0.70710677
          %v7800 = vmul.f32 %v7674, 0.70710677
          %v7801 = vmul.f32 %v7383, 0.70710677
          %v7802 = vmul.f32 %v7481, 0.70710677
          %v7803 = vmul.f32 %v7579, 0.70710677
          %v7804 = vmul.f32 %v7677, 0.70710677
          %v7805 = vmul.f32 %v7385, 0.70710677
          %v7806 = vmul.f32 %v7483, 0.70710677
          %v7807 = vmul.f32 %v7581, 0.70710677
          %v7808 = vmul.f32 %v7679, 0.70710677
          %vm7809 = vcmp.lt.f32.partialorder %v7745, 0.0
          %vm7810 = vcmp.lt.f32.partialorder %v7746, 0.0
          %vm7811 = vcmp.lt.f32.partialorder %v7747, 0.0
          %vm7812 = vcmp.lt.f32.partialorder %v7748, 0.0
          %vm7813 = vcmp.lt.f32.partialorder %v7749, 0.0
          %vm7814 = vcmp.lt.f32.partialorder %v7750, 0.0
          %vm7815 = vcmp.lt.f32.partialorder %v7751, 0.0
          %vm7816 = vcmp.lt.f32.partialorder %v7752, 0.0
          %vm7817 = vcmp.lt.f32.partialorder %v7753, 0.0
          %vm7818 = vcmp.lt.f32.partialorder %v7754, 0.0
          %vm7819 = vcmp.lt.f32.partialorder %v7755, 0.0
          %vm7820 = vcmp.lt.f32.partialorder %v7756, 0.0
          %vm7821 = vcmp.lt.f32.partialorder %v7757, 0.0
          %vm7822 = vcmp.lt.f32.partialorder %v7758, 0.0
          %vm7823 = vcmp.lt.f32.partialorder %v7759, 0.0
          %vm7824 = vcmp.lt.f32.partialorder %v7760, 0.0
          %vm7825 = vcmp.lt.f32.partialorder %v7761, 0.0
          %vm7826 = vcmp.lt.f32.partialorder %v7762, 0.0
          %vm7827 = vcmp.lt.f32.partialorder %v7763, 0.0
          %vm7828 = vcmp.lt.f32.partialorder %v7764, 0.0
          %vm7829 = vcmp.lt.f32.partialorder %v7765, 0.0
          %vm7830 = vcmp.lt.f32.partialorder %v7766, 0.0
          %vm7831 = vcmp.lt.f32.partialorder %v7767, 0.0
          %vm7832 = vcmp.lt.f32.partialorder %v7768, 0.0
          %vm7833 = vcmp.lt.f32.partialorder %v7769, 0.0
          %vm7834 = vcmp.lt.f32.partialorder %v7770, 0.0
          %vm7835 = vcmp.lt.f32.partialorder %v7771, 0.0
          %vm7836 = vcmp.lt.f32.partialorder %v7772, 0.0
          %vm7837 = vcmp.lt.f32.partialorder %v7773, 0.0
          %vm7838 = vcmp.lt.f32.partialorder %v7774, 0.0
          %vm7839 = vcmp.lt.f32.partialorder %v7775, 0.0
          %vm7840 = vcmp.lt.f32.partialorder %v7776, 0.0
          %vm7841 = vcmp.lt.f32.partialorder %v7777, 0.0
          %vm7842 = vcmp.lt.f32.partialorder %v7778, 0.0
          %vm7843 = vcmp.lt.f32.partialorder %v7779, 0.0
          %vm7844 = vcmp.lt.f32.partialorder %v7780, 0.0
          %vm7845 = vcmp.lt.f32.partialorder %v7781, 0.0
          %vm7846 = vcmp.lt.f32.partialorder %v7782, 0.0
          %vm7847 = vcmp.lt.f32.partialorder %v7783, 0.0
          %vm7848 = vcmp.lt.f32.partialorder %v7784, 0.0
          %vm7849 = vcmp.lt.f32.partialorder %v7785, 0.0
          %vm7850 = vcmp.lt.f32.partialorder %v7786, 0.0
          %vm7851 = vcmp.lt.f32.partialorder %v7787, 0.0
          %vm7852 = vcmp.lt.f32.partialorder %v7788, 0.0
          %vm7853 = vcmp.lt.f32.partialorder %v7789, 0.0
          %vm7854 = vcmp.lt.f32.partialorder %v7790, 0.0
          %vm7855 = vcmp.lt.f32.partialorder %v7791, 0.0
          %vm7856 = vcmp.lt.f32.partialorder %v7792, 0.0
          %vm7857 = vcmp.lt.f32.partialorder %v7793, 0.0
          %vm7858 = vcmp.lt.f32.partialorder %v7794, 0.0
          %vm7859 = vcmp.lt.f32.partialorder %v7795, 0.0
          %vm7860 = vcmp.lt.f32.partialorder %v7796, 0.0
          %vm7861 = vcmp.lt.f32.partialorder %v7797, 0.0
          %vm7862 = vcmp.lt.f32.partialorder %v7798, 0.0
          %vm7863 = vcmp.lt.f32.partialorder %v7799, 0.0
          %vm7864 = vcmp.lt.f32.partialorder %v7800, 0.0
          %vm7865 = vcmp.lt.f32.partialorder %v7801, 0.0
          %vm7866 = vcmp.lt.f32.partialorder %v7802, 0.0
          %vm7867 = vcmp.lt.f32.partialorder %v7803, 0.0
          %vm7868 = vcmp.lt.f32.partialorder %v7804, 0.0
          %vm7869 = vcmp.lt.f32.partialorder %v7805, 0.0
          %vm7870 = vcmp.lt.f32.partialorder %v7806, 0.0
          %vm7871 = vcmp.lt.f32.partialorder %v7807, 0.0
          %vm7872 = vcmp.lt.f32.partialorder %v7808, 0.0
          %v7873 = vsel %vm7809, -1.0, 1.0
          %v7874 = vsel %vm7810, -1.0, 1.0
          %v7875 = vsel %vm7811, -1.0, 1.0
          %v7876 = vsel %vm7812, -1.0, 1.0
          %v7877 = vsel %vm7813, -1.0, 1.0
          %v7878 = vsel %vm7814, -1.0, 1.0
          %v7879 = vsel %vm7815, -1.0, 1.0
          %v7880 = vsel %vm7816, -1.0, 1.0
          %v7881 = vsel %vm7817, -1.0, 1.0
          %v7882 = vsel %vm7818, -1.0, 1.0
          %v7883 = vsel %vm7819, -1.0, 1.0
          %v7884 = vsel %vm7820, -1.0, 1.0
          %v7885 = vsel %vm7821, -1.0, 1.0
          %v7886 = vsel %vm7822, -1.0, 1.0
          %v7887 = vsel %vm7823, -1.0, 1.0
          %v7888 = vsel %vm7824, -1.0, 1.0
          %v7889 = vsel %vm7825, -1.0, 1.0
          %v7890 = vsel %vm7826, -1.0, 1.0
          %v7891 = vsel %vm7827, -1.0, 1.0
          %v7892 = vsel %vm7828, -1.0, 1.0
          %v7893 = vsel %vm7829, -1.0, 1.0
          %v7894 = vsel %vm7830, -1.0, 1.0
          %v7895 = vsel %vm7831, -1.0, 1.0
          %v7896 = vsel %vm7832, -1.0, 1.0
          %v7897 = vsel %vm7833, -1.0, 1.0
          %v7898 = vsel %vm7834, -1.0, 1.0
          %v7899 = vsel %vm7835, -1.0, 1.0
          %v7900 = vsel %vm7836, -1.0, 1.0
          %v7901 = vsel %vm7837, -1.0, 1.0
          %v7902 = vsel %vm7838, -1.0, 1.0
          %v7903 = vsel %vm7839, -1.0, 1.0
          %v7904 = vsel %vm7840, -1.0, 1.0
          %v7905 = vsel %vm7841, -1.0, 1.0
          %v7906 = vsel %vm7842, -1.0, 1.0
          %v7907 = vsel %vm7843, -1.0, 1.0
          %v7908 = vsel %vm7844, -1.0, 1.0
          %v7909 = vsel %vm7845, -1.0, 1.0
          %v7910 = vsel %vm7846, -1.0, 1.0
          %v7911 = vsel %vm7847, -1.0, 1.0
          %v7912 = vsel %vm7848, -1.0, 1.0
          %v7913 = vsel %vm7849, -1.0, 1.0
          %v7914 = vsel %vm7850, -1.0, 1.0
          %v7915 = vsel %vm7851, -1.0, 1.0
          %v7916 = vsel %vm7852, -1.0, 1.0
          %v7917 = vsel %vm7853, -1.0, 1.0
          %v7918 = vsel %vm7854, -1.0, 1.0
          %v7919 = vsel %vm7855, -1.0, 1.0
          %v7920 = vsel %vm7856, -1.0, 1.0
          %v7921 = vsel %vm7857, -1.0, 1.0
          %v7922 = vsel %vm7858, -1.0, 1.0
          %v7923 = vsel %vm7859, -1.0, 1.0
          %v7924 = vsel %vm7860, -1.0, 1.0
          %v7925 = vsel %vm7861, -1.0, 1.0
          %v7926 = vsel %vm7862, -1.0, 1.0
          %v7927 = vsel %vm7863, -1.0, 1.0
          %v7928 = vsel %vm7864, -1.0, 1.0
          %v7929 = vsel %vm7865, -1.0, 1.0
          %v7930 = vsel %vm7866, -1.0, 1.0
          %v7931 = vsel %vm7867, -1.0, 1.0
          %v7932 = vsel %vm7868, -1.0, 1.0
          %v7933 = vsel %vm7869, -1.0, 1.0
          %v7934 = vsel %vm7870, -1.0, 1.0
          %v7935 = vsel %vm7871, -1.0, 1.0
          %v7936 = vsel %vm7872, -1.0, 1.0
          %v7937 = vand.u32 2147483647, %v7745
          %v7938 = vand.u32 2147483647, %v7746
          %v7939 = vand.u32 2147483647, %v7747
          %v7940 = vand.u32 2147483647, %v7748
          %v7941 = vand.u32 2147483647, %v7749
          %v7942 = vand.u32 2147483647, %v7750
          %v7943 = vand.u32 2147483647, %v7751
          %v7944 = vand.u32 2147483647, %v7752
          %v7945 = vand.u32 2147483647, %v7753
          %v7946 = vand.u32 2147483647, %v7754
          %v7947 = vand.u32 2147483647, %v7755
          %v7948 = vand.u32 2147483647, %v7756
          %v7949 = vand.u32 2147483647, %v7757
          %v7950 = vand.u32 2147483647, %v7758
          %v7951 = vand.u32 2147483647, %v7759
          %v7952 = vand.u32 2147483647, %v7760
          %v7953 = vand.u32 2147483647, %v7761
          %v7954 = vand.u32 2147483647, %v7762
          %v7955 = vand.u32 2147483647, %v7763
          %v7956 = vand.u32 2147483647, %v7764
          %v7957 = vand.u32 2147483647, %v7765
          %v7958 = vand.u32 2147483647, %v7766
          %v7959 = vand.u32 2147483647, %v7767
          %v7960 = vand.u32 2147483647, %v7768
          %v7961 = vand.u32 2147483647, %v7769
          %v7962 = vand.u32 2147483647, %v7770
          %v7963 = vand.u32 2147483647, %v7771
          %v7964 = vand.u32 2147483647, %v7772
          %v7965 = vand.u32 2147483647, %v7773
          %v7966 = vand.u32 2147483647, %v7774
          %v7967 = vand.u32 2147483647, %v7775
          %v7968 = vand.u32 2147483647, %v7776
          %v7969 = vand.u32 2147483647, %v7777
          %v7970 = vand.u32 2147483647, %v7778
          %v7971 = vand.u32 2147483647, %v7779
          %v7972 = vand.u32 2147483647, %v7780
          %v7973 = vand.u32 2147483647, %v7781
          %v7974 = vand.u32 2147483647, %v7782
          %v7975 = vand.u32 2147483647, %v7783
          %v7976 = vand.u32 2147483647, %v7784
          %v7977 = vand.u32 2147483647, %v7785
          %v7978 = vand.u32 2147483647, %v7786
          %v7979 = vand.u32 2147483647, %v7787
          %v7980 = vand.u32 2147483647, %v7788
          %v7981 = vand.u32 2147483647, %v7789
          %v7982 = vand.u32 2147483647, %v7790
          %v7983 = vand.u32 2147483647, %v7791
          %v7984 = vand.u32 2147483647, %v7792
          %v7985 = vand.u32 2147483647, %v7793
          %v7986 = vand.u32 2147483647, %v7794
          %v7987 = vand.u32 2147483647, %v7795
          %v7988 = vand.u32 2147483647, %v7796
          %v7989 = vand.u32 2147483647, %v7797
          %v7990 = vand.u32 2147483647, %v7798
          %v7991 = vand.u32 2147483647, %v7799
          %v7992 = vand.u32 2147483647, %v7800
          %v7993 = vand.u32 2147483647, %v7801
          %v7994 = vand.u32 2147483647, %v7802
          %v7995 = vand.u32 2147483647, %v7803
          %v7996 = vand.u32 2147483647, %v7804
          %v7997 = vand.u32 2147483647, %v7805
          %v7998 = vand.u32 2147483647, %v7806
          %v7999 = vand.u32 2147483647, %v7807
          %v8000 = vand.u32 2147483647, %v7808
          %v8001 = vmul.f32 %v7937, 0.3275911
          %v8002 = vmul.f32 %v7938, 0.3275911
          %v8003 = vmul.f32 %v7939, 0.3275911
          %v8004 = vmul.f32 %v7940, 0.3275911
          %v8005 = vmul.f32 %v7941, 0.3275911
          %v8006 = vmul.f32 %v7942, 0.3275911
          %v8007 = vmul.f32 %v7943, 0.3275911
          %v8008 = vmul.f32 %v7944, 0.3275911
          %v8009 = vmul.f32 %v7945, 0.3275911
          %v8010 = vmul.f32 %v7946, 0.3275911
          %v8011 = vmul.f32 %v7947, 0.3275911
          %v8012 = vmul.f32 %v7948, 0.3275911
          %v8013 = vmul.f32 %v7949, 0.3275911
          %v8014 = vmul.f32 %v7950, 0.3275911
          %v8015 = vmul.f32 %v7951, 0.3275911
          %v8016 = vmul.f32 %v7952, 0.3275911
          %v8017 = vmul.f32 %v7953, 0.3275911
          %v8018 = vmul.f32 %v7954, 0.3275911
          %v8019 = vmul.f32 %v7955, 0.3275911
          %v8020 = vmul.f32 %v7956, 0.3275911
          %v8021 = vmul.f32 %v7957, 0.3275911
          %v8022 = vmul.f32 %v7958, 0.3275911
          %v8023 = vmul.f32 %v7959, 0.3275911
          %v8024 = vmul.f32 %v7960, 0.3275911
          %v8025 = vmul.f32 %v7961, 0.3275911
          %v8026 = vmul.f32 %v7962, 0.3275911
          %v8027 = vmul.f32 %v7963, 0.3275911
          %v8028 = vmul.f32 %v7964, 0.3275911
          %v8029 = vmul.f32 %v7965, 0.3275911
          %v8030 = vmul.f32 %v7966, 0.3275911
          %v8031 = vmul.f32 %v7967, 0.3275911
          %v8032 = vmul.f32 %v7968, 0.3275911
          %v8033 = vmul.f32 %v7969, 0.3275911
          %v8034 = vmul.f32 %v7970, 0.3275911
          %v8035 = vmul.f32 %v7971, 0.3275911
          %v8036 = vmul.f32 %v7972, 0.3275911
          %v8037 = vmul.f32 %v7973, 0.3275911
          %v8038 = vmul.f32 %v7974, 0.3275911
          %v8039 = vmul.f32 %v7975, 0.3275911
          %v8040 = vmul.f32 %v7976, 0.3275911
          %v8041 = vmul.f32 %v7977, 0.3275911
          %v8042 = vmul.f32 %v7978, 0.3275911
          %v8043 = vmul.f32 %v7979, 0.3275911
          %v8044 = vmul.f32 %v7980, 0.3275911
          %v8045 = vmul.f32 %v7981, 0.3275911
          %v8046 = vmul.f32 %v7982, 0.3275911
          %v8047 = vmul.f32 %v7983, 0.3275911
          %v8048 = vmul.f32 %v7984, 0.3275911
          %v8049 = vmul.f32 %v7985, 0.3275911
          %v8050 = vmul.f32 %v7986, 0.3275911
          %v8051 = vmul.f32 %v7987, 0.3275911
          %v8052 = vmul.f32 %v7988, 0.3275911
          %v8053 = vmul.f32 %v7989, 0.3275911
          %v8054 = vmul.f32 %v7990, 0.3275911
          %v8055 = vmul.f32 %v7991, 0.3275911
          %v8056 = vmul.f32 %v7992, 0.3275911
          %v8057 = vmul.f32 %v7993, 0.3275911
          %v8058 = vmul.f32 %v7994, 0.3275911
          %v8059 = vmul.f32 %v7995, 0.3275911
          %v8060 = vmul.f32 %v7996, 0.3275911
          %v8061 = vmul.f32 %v7997, 0.3275911
          %v8062 = vmul.f32 %v7998, 0.3275911
          %v8063 = vmul.f32 %v7999, 0.3275911
          %v8064 = vmul.f32 %v8000, 0.3275911
          %v8065 = vadd.f32 %v8001, 1.0
          %v8066 = vadd.f32 %v8002, 1.0
          %v8067 = vadd.f32 %v8003, 1.0
          %v8068 = vadd.f32 %v8004, 1.0
          %v8069 = vadd.f32 %v8005, 1.0
          %v8070 = vadd.f32 %v8006, 1.0
          %v8071 = vadd.f32 %v8007, 1.0
          %v8072 = vadd.f32 %v8008, 1.0
          %v8073 = vadd.f32 %v8009, 1.0
          %v8074 = vadd.f32 %v8010, 1.0
          %v8075 = vadd.f32 %v8011, 1.0
          %v8076 = vadd.f32 %v8012, 1.0
          %v8077 = vadd.f32 %v8013, 1.0
          %v8078 = vadd.f32 %v8014, 1.0
          %v8079 = vadd.f32 %v8015, 1.0
          %v8080 = vadd.f32 %v8016, 1.0
          %v8081 = vadd.f32 %v8017, 1.0
          %v8082 = vadd.f32 %v8018, 1.0
          %v8083 = vadd.f32 %v8019, 1.0
          %v8084 = vadd.f32 %v8020, 1.0
          %v8085 = vadd.f32 %v8021, 1.0
          %v8086 = vadd.f32 %v8022, 1.0
          %v8087 = vadd.f32 %v8023, 1.0
          %v8088 = vadd.f32 %v8024, 1.0
          %v8089 = vadd.f32 %v8025, 1.0
          %v8090 = vadd.f32 %v8026, 1.0
          %v8091 = vadd.f32 %v8027, 1.0
          %v8092 = vadd.f32 %v8028, 1.0
          %v8093 = vadd.f32 %v8029, 1.0
          %v8094 = vadd.f32 %v8030, 1.0
          %v8095 = vadd.f32 %v8031, 1.0
          %v8096 = vadd.f32 %v8032, 1.0
          %v8097 = vadd.f32 %v8033, 1.0
          %v8098 = vadd.f32 %v8034, 1.0
          %v8099 = vadd.f32 %v8035, 1.0
          %v8100 = vadd.f32 %v8036, 1.0
          %v8101 = vadd.f32 %v8037, 1.0
          %v8102 = vadd.f32 %v8038, 1.0
          %v8103 = vadd.f32 %v8039, 1.0
          %v8104 = vadd.f32 %v8040, 1.0
          %v8105 = vadd.f32 %v8041, 1.0
          %v8106 = vadd.f32 %v8042, 1.0
          %v8107 = vadd.f32 %v8043, 1.0
          %v8108 = vadd.f32 %v8044, 1.0
          %v8109 = vadd.f32 %v8045, 1.0
          %v8110 = vadd.f32 %v8046, 1.0
          %v8111 = vadd.f32 %v8047, 1.0
          %v8112 = vadd.f32 %v8048, 1.0
          %v8113 = vadd.f32 %v8049, 1.0
          %v8114 = vadd.f32 %v8050, 1.0
          %v8115 = vadd.f32 %v8051, 1.0
          %v8116 = vadd.f32 %v8052, 1.0
          %v8117 = vadd.f32 %v8053, 1.0
          %v8118 = vadd.f32 %v8054, 1.0
          %v8119 = vadd.f32 %v8055, 1.0
          %v8120 = vadd.f32 %v8056, 1.0
          %v8121 = vadd.f32 %v8057, 1.0
          %v8122 = vadd.f32 %v8058, 1.0
          %v8123 = vadd.f32 %v8059, 1.0
          %v8124 = vadd.f32 %v8060, 1.0
          %v8125 = vadd.f32 %v8061, 1.0
          %v8126 = vadd.f32 %v8062, 1.0
          %v8127 = vadd.f32 %v8063, 1.0
          %v8128 = vadd.f32 %v8064, 1.0
          %v8129 = vrcp.pop %v8065
          %v8130 = vrcp.pop %v8066
          %v8131 = vrcp.pop %v8067
          %v8132 = vrcp.pop %v8068
          %v8133 = vrcp.pop %v8069
          %v8134 = vrcp.pop %v8070
          %v8135 = vrcp.pop %v8071
          %v8136 = vrcp.pop %v8072
          %v8137 = vrcp.pop %v8073
          %v8138 = vrcp.pop %v8074
          %v8139 = vrcp.pop %v8075
          %v8140 = vrcp.pop %v8076
          %v8141 = vrcp.pop %v8077
          %v8142 = vrcp.pop %v8078
          %v8143 = vrcp.pop %v8079
          %v8144 = vrcp.pop %v8080
          %v8145 = vrcp.pop %v8081
          %v8146 = vrcp.pop %v8082
          %v8147 = vrcp.pop %v8083
          %v8148 = vrcp.pop %v8084
          %v8149 = vrcp.pop %v8085
          %v8150 = vrcp.pop %v8086
          %v8151 = vrcp.pop %v8087
          %v8152 = vrcp.pop %v8088
          %v8153 = vrcp.pop %v8089
          %v8154 = vrcp.pop %v8090
          %v8155 = vrcp.pop %v8091
          %v8156 = vrcp.pop %v8092
          %v8157 = vrcp.pop %v8093
          %v8158 = vrcp.pop %v8094
          %v8159 = vrcp.pop %v8095
          %v8160 = vrcp.pop %v8096
          %v8161 = vrcp.pop %v8097
          %v8162 = vrcp.pop %v8098
          %v8163 = vrcp.pop %v8099
          %v8164 = vrcp.pop %v8100
          %v8165 = vrcp.pop %v8101
          %v8166 = vrcp.pop %v8102
          %v8167 = vrcp.pop %v8103
          %v8168 = vrcp.pop %v8104
          %v8169 = vrcp.pop %v8105
          %v8170 = vrcp.pop %v8106
          %v8171 = vrcp.pop %v8107
          %v8172 = vrcp.pop %v8108
          %v8173 = vrcp.pop %v8109
          %v8174 = vrcp.pop %v8110
          %v8175 = vrcp.pop %v8111
          %v8176 = vrcp.pop %v8112
          %v8177 = vrcp.pop %v8113
          %v8178 = vrcp.pop %v8114
          %v8179 = vrcp.pop %v8115
          %v8180 = vrcp.pop %v8116
          %v8181 = vrcp.pop %v8117
          %v8182 = vrcp.pop %v8118
          %v8183 = vrcp.pop %v8119
          %v8184 = vrcp.pop %v8120
          %v8185 = vrcp.pop %v8121
          %v8186 = vrcp.pop %v8122
          %v8187 = vrcp.pop %v8123
          %v8188 = vrcp.pop %v8124
          %v8189 = vrcp.pop %v8125
          %v8190 = vrcp.pop %v8126
          %v8191 = vrcp.pop %v8127
          %v8192 = vrcp.pop %v8128
          %v8193 = vmul.f32 %v8129, 1.0614054
          %v8194 = vmul.f32 %v8130, 1.0614054
          %v8195 = vmul.f32 %v8131, 1.0614054
          %v8196 = vmul.f32 %v8132, 1.0614054
          %v8197 = vmul.f32 %v8133, 1.0614054
          %v8198 = vmul.f32 %v8134, 1.0614054
          %v8199 = vmul.f32 %v8135, 1.0614054
          %v8200 = vmul.f32 %v8136, 1.0614054
          %v8201 = vmul.f32 %v8137, 1.0614054
          %v8202 = vmul.f32 %v8138, 1.0614054
          %v8203 = vmul.f32 %v8139, 1.0614054
          %v8204 = vmul.f32 %v8140, 1.0614054
          %v8205 = vmul.f32 %v8141, 1.0614054
          %v8206 = vmul.f32 %v8142, 1.0614054
          %v8207 = vmul.f32 %v8143, 1.0614054
          %v8208 = vmul.f32 %v8144, 1.0614054
          %v8209 = vmul.f32 %v8145, 1.0614054
          %v8210 = vmul.f32 %v8146, 1.0614054
          %v8211 = vmul.f32 %v8147, 1.0614054
          %v8212 = vmul.f32 %v8148, 1.0614054
          %v8213 = vmul.f32 %v8149, 1.0614054
          %v8214 = vmul.f32 %v8150, 1.0614054
          %v8215 = vmul.f32 %v8151, 1.0614054
          %v8216 = vmul.f32 %v8152, 1.0614054
          %v8217 = vmul.f32 %v8153, 1.0614054
          %v8218 = vmul.f32 %v8154, 1.0614054
          %v8219 = vmul.f32 %v8155, 1.0614054
          %v8220 = vmul.f32 %v8156, 1.0614054
          %v8221 = vmul.f32 %v8157, 1.0614054
          %v8222 = vmul.f32 %v8158, 1.0614054
          %v8223 = vmul.f32 %v8159, 1.0614054
          %v8224 = vmul.f32 %v8160, 1.0614054
          %v8225 = vmul.f32 %v8161, 1.0614054
          %v8226 = vmul.f32 %v8162, 1.0614054
          %v8227 = vmul.f32 %v8163, 1.0614054
          %v8228 = vmul.f32 %v8164, 1.0614054
          %v8229 = vmul.f32 %v8165, 1.0614054
          %v8230 = vmul.f32 %v8166, 1.0614054
          %v8231 = vmul.f32 %v8167, 1.0614054
          %v8232 = vmul.f32 %v8168, 1.0614054
          %v8233 = vmul.f32 %v8169, 1.0614054
          %v8234 = vmul.f32 %v8170, 1.0614054
          %v8235 = vmul.f32 %v8171, 1.0614054
          %v8236 = vmul.f32 %v8172, 1.0614054
          %v8237 = vmul.f32 %v8173, 1.0614054
          %v8238 = vmul.f32 %v8174, 1.0614054
          %v8239 = vmul.f32 %v8175, 1.0614054
          %v8240 = vmul.f32 %v8176, 1.0614054
          %v8241 = vmul.f32 %v8177, 1.0614054
          %v8242 = vmul.f32 %v8178, 1.0614054
          %v8243 = vmul.f32 %v8179, 1.0614054
          %v8244 = vmul.f32 %v8180, 1.0614054
          %v8245 = vmul.f32 %v8181, 1.0614054
          %v8246 = vmul.f32 %v8182, 1.0614054
          %v8247 = vmul.f32 %v8183, 1.0614054
          %v8248 = vmul.f32 %v8184, 1.0614054
          %v8249 = vmul.f32 %v8185, 1.0614054
          %v8250 = vmul.f32 %v8186, 1.0614054
          %v8251 = vmul.f32 %v8187, 1.0614054
          %v8252 = vmul.f32 %v8188, 1.0614054
          %v8253 = vmul.f32 %v8189, 1.0614054
          %v8254 = vmul.f32 %v8190, 1.0614054
          %v8255 = vmul.f32 %v8191, 1.0614054
          %v8256 = vmul.f32 %v8192, 1.0614054
          %v8257 = vadd.f32 %v8193, -1.4531521
          %v8258 = vadd.f32 %v8194, -1.4531521
          %v8259 = vadd.f32 %v8195, -1.4531521
          %v8260 = vadd.f32 %v8196, -1.4531521
          %v8261 = vadd.f32 %v8197, -1.4531521
          %v8262 = vadd.f32 %v8198, -1.4531521
          %v8263 = vadd.f32 %v8199, -1.4531521
          %v8264 = vadd.f32 %v8200, -1.4531521
          %v8265 = vadd.f32 %v8201, -1.4531521
          %v8266 = vadd.f32 %v8202, -1.4531521
          %v8267 = vadd.f32 %v8203, -1.4531521
          %v8268 = vadd.f32 %v8204, -1.4531521
          %v8269 = vadd.f32 %v8205, -1.4531521
          %v8270 = vadd.f32 %v8206, -1.4531521
          %v8271 = vadd.f32 %v8207, -1.4531521
          %v8272 = vadd.f32 %v8208, -1.4531521
          %v8273 = vadd.f32 %v8209, -1.4531521
          %v8274 = vadd.f32 %v8210, -1.4531521
          %v8275 = vadd.f32 %v8211, -1.4531521
          %v8276 = vadd.f32 %v8212, -1.4531521
          %v8277 = vadd.f32 %v8213, -1.4531521
          %v8278 = vadd.f32 %v8214, -1.4531521
          %v8279 = vadd.f32 %v8215, -1.4531521
          %v8280 = vadd.f32 %v8216, -1.4531521
          %v8281 = vadd.f32 %v8217, -1.4531521
          %v8282 = vadd.f32 %v8218, -1.4531521
          %v8283 = vadd.f32 %v8219, -1.4531521
          %v8284 = vadd.f32 %v8220, -1.4531521
          %v8285 = vadd.f32 %v8221, -1.4531521
          %v8286 = vadd.f32 %v8222, -1.4531521
          %v8287 = vadd.f32 %v8223, -1.4531521
          %v8288 = vadd.f32 %v8224, -1.4531521
          %v8289 = vadd.f32 %v8225, -1.4531521
          %v8290 = vadd.f32 %v8226, -1.4531521
          %v8291 = vadd.f32 %v8227, -1.4531521
          %v8292 = vadd.f32 %v8228, -1.4531521
          %v8293 = vadd.f32 %v8229, -1.4531521
          %v8294 = vadd.f32 %v8230, -1.4531521
          %v8295 = vadd.f32 %v8231, -1.4531521
          %v8296 = vadd.f32 %v8232, -1.4531521
          %v8297 = vadd.f32 %v8233, -1.4531521
          %v8298 = vadd.f32 %v8234, -1.4531521
          %v8299 = vadd.f32 %v8235, -1.4531521
          %v8300 = vadd.f32 %v8236, -1.4531521
          %v8301 = vadd.f32 %v8237, -1.4531521
          %v8302 = vadd.f32 %v8238, -1.4531521
          %v8303 = vadd.f32 %v8239, -1.4531521
          %v8304 = vadd.f32 %v8240, -1.4531521
          %v8305 = vadd.f32 %v8241, -1.4531521
          %v8306 = vadd.f32 %v8242, -1.4531521
          %v8307 = vadd.f32 %v8243, -1.4531521
          %v8308 = vadd.f32 %v8244, -1.4531521
          %v8309 = vadd.f32 %v8245, -1.4531521
          %v8310 = vadd.f32 %v8246, -1.4531521
          %v8311 = vadd.f32 %v8247, -1.4531521
          %v8312 = vadd.f32 %v8248, -1.4531521
          %v8313 = vadd.f32 %v8249, -1.4531521
          %v8314 = vadd.f32 %v8250, -1.4531521
          %v8315 = vadd.f32 %v8251, -1.4531521
          %v8316 = vadd.f32 %v8252, -1.4531521
          %v8317 = vadd.f32 %v8253, -1.4531521
          %v8318 = vadd.f32 %v8254, -1.4531521
          %v8319 = vadd.f32 %v8255, -1.4531521
          %v8320 = vadd.f32 %v8256, -1.4531521
          %v8321 = vmul.f32 %v8257, %v8129
          %v8322 = vmul.f32 %v8258, %v8130
          %v8323 = vmul.f32 %v8259, %v8131
          %v8324 = vmul.f32 %v8260, %v8132
          %v8325 = vmul.f32 %v8261, %v8133
          %v8326 = vmul.f32 %v8262, %v8134
          %v8327 = vmul.f32 %v8263, %v8135
          %v8328 = vmul.f32 %v8264, %v8136
          %v8329 = vmul.f32 %v8265, %v8137
          %v8330 = vmul.f32 %v8266, %v8138
          %v8331 = vmul.f32 %v8267, %v8139
          %v8332 = vmul.f32 %v8268, %v8140
          %v8333 = vmul.f32 %v8269, %v8141
          %v8334 = vmul.f32 %v8270, %v8142
          %v8335 = vmul.f32 %v8271, %v8143
          %v8336 = vmul.f32 %v8272, %v8144
          %v8337 = vmul.f32 %v8273, %v8145
          %v8338 = vmul.f32 %v8274, %v8146
          %v8339 = vmul.f32 %v8275, %v8147
          %v8340 = vmul.f32 %v8276, %v8148
          %v8341 = vmul.f32 %v8277, %v8149
          %v8342 = vmul.f32 %v8278, %v8150
          %v8343 = vmul.f32 %v8279, %v8151
          %v8344 = vmul.f32 %v8280, %v8152
          %v8345 = vmul.f32 %v8281, %v8153
          %v8346 = vmul.f32 %v8282, %v8154
          %v8347 = vmul.f32 %v8283, %v8155
          %v8348 = vmul.f32 %v8284, %v8156
          %v8349 = vmul.f32 %v8285, %v8157
          %v8350 = vmul.f32 %v8286, %v8158
          %v8351 = vmul.f32 %v8287, %v8159
          %v8352 = vmul.f32 %v8288, %v8160
          %v8353 = vmul.f32 %v8289, %v8161
          %v8354 = vmul.f32 %v8290, %v8162
          %v8355 = vmul.f32 %v8291, %v8163
          %v8356 = vmul.f32 %v8292, %v8164
          %v8357 = vmul.f32 %v8293, %v8165
          %v8358 = vmul.f32 %v8294, %v8166
          %v8359 = vmul.f32 %v8295, %v8167
          %v8360 = vmul.f32 %v8296, %v8168
          %v8361 = vmul.f32 %v8297, %v8169
          %v8362 = vmul.f32 %v8298, %v8170
          %v8363 = vmul.f32 %v8299, %v8171
          %v8364 = vmul.f32 %v8300, %v8172
          %v8365 = vmul.f32 %v8301, %v8173
          %v8366 = vmul.f32 %v8302, %v8174
          %v8367 = vmul.f32 %v8303, %v8175
          %v8368 = vmul.f32 %v8304, %v8176
          %v8369 = vmul.f32 %v8305, %v8177
          %v8370 = vmul.f32 %v8306, %v8178
          %v8371 = vmul.f32 %v8307, %v8179
          %v8372 = vmul.f32 %v8308, %v8180
          %v8373 = vmul.f32 %v8309, %v8181
          %v8374 = vmul.f32 %v8310, %v8182
          %v8375 = vmul.f32 %v8311, %v8183
          %v8376 = vmul.f32 %v8312, %v8184
          %v8377 = vmul.f32 %v8313, %v8185
          %v8378 = vmul.f32 %v8314, %v8186
          %v8379 = vmul.f32 %v8315, %v8187
          %v8380 = vmul.f32 %v8316, %v8188
          %v8381 = vmul.f32 %v8317, %v8189
          %v8382 = vmul.f32 %v8318, %v8190
          %v8383 = vmul.f32 %v8319, %v8191
          %v8384 = vmul.f32 %v8320, %v8192
          %v8385 = vadd.f32 %v8321, 1.4214138
          %v8386 = vadd.f32 %v8322, 1.4214138
          %v8387 = vadd.f32 %v8323, 1.4214138
          %v8388 = vadd.f32 %v8324, 1.4214138
          %v8389 = vadd.f32 %v8325, 1.4214138
          %v8390 = vadd.f32 %v8326, 1.4214138
          %v8391 = vadd.f32 %v8327, 1.4214138
          %v8392 = vadd.f32 %v8328, 1.4214138
          %v8393 = vadd.f32 %v8329, 1.4214138
          %v8394 = vadd.f32 %v8330, 1.4214138
          %v8395 = vadd.f32 %v8331, 1.4214138
          %v8396 = vadd.f32 %v8332, 1.4214138
          %v8397 = vadd.f32 %v8333, 1.4214138
          %v8398 = vadd.f32 %v8334, 1.4214138
          %v8399 = vadd.f32 %v8335, 1.4214138
          %v8400 = vadd.f32 %v8336, 1.4214138
          %v8401 = vadd.f32 %v8337, 1.4214138
          %v8402 = vadd.f32 %v8338, 1.4214138
          %v8403 = vadd.f32 %v8339, 1.4214138
          %v8404 = vadd.f32 %v8340, 1.4214138
          %v8405 = vadd.f32 %v8341, 1.4214138
          %v8406 = vadd.f32 %v8342, 1.4214138
          %v8407 = vadd.f32 %v8343, 1.4214138
          %v8408 = vadd.f32 %v8344, 1.4214138
          %v8409 = vadd.f32 %v8345, 1.4214138
          %v8410 = vadd.f32 %v8346, 1.4214138
          %v8411 = vadd.f32 %v8347, 1.4214138
          %v8412 = vadd.f32 %v8348, 1.4214138
          %v8413 = vadd.f32 %v8349, 1.4214138
          %v8414 = vadd.f32 %v8350, 1.4214138
          %v8415 = vadd.f32 %v8351, 1.4214138
          %v8416 = vadd.f32 %v8352, 1.4214138
          %v8417 = vadd.f32 %v8353, 1.4214138
          %v8418 = vadd.f32 %v8354, 1.4214138
          %v8419 = vadd.f32 %v8355, 1.4214138
          %v8420 = vadd.f32 %v8356, 1.4214138
          %v8421 = vadd.f32 %v8357, 1.4214138
          %v8422 = vadd.f32 %v8358, 1.4214138
          %v8423 = vadd.f32 %v8359, 1.4214138
          %v8424 = vadd.f32 %v8360, 1.4214138
          %v8425 = vadd.f32 %v8361, 1.4214138
          %v8426 = vadd.f32 %v8362, 1.4214138
          %v8427 = vadd.f32 %v8363, 1.4214138
          %v8428 = vadd.f32 %v8364, 1.4214138
          %v8429 = vadd.f32 %v8365, 1.4214138
          %v8430 = vadd.f32 %v8366, 1.4214138
          %v8431 = vadd.f32 %v8367, 1.4214138
          %v8432 = vadd.f32 %v8368, 1.4214138
          %v8433 = vadd.f32 %v8369, 1.4214138
          %v8434 = vadd.f32 %v8370, 1.4214138
          %v8435 = vadd.f32 %v8371, 1.4214138
          %v8436 = vadd.f32 %v8372, 1.4214138
          %v8437 = vadd.f32 %v8373, 1.4214138
          %v8438 = vadd.f32 %v8374, 1.4214138
          %v8439 = vadd.f32 %v8375, 1.4214138
          %v8440 = vadd.f32 %v8376, 1.4214138
          %v8441 = vadd.f32 %v8377, 1.4214138
          %v8442 = vadd.f32 %v8378, 1.4214138
          %v8443 = vadd.f32 %v8379, 1.4214138
          %v8444 = vadd.f32 %v8380, 1.4214138
          %v8445 = vadd.f32 %v8381, 1.4214138
          %v8446 = vadd.f32 %v8382, 1.4214138
          %v8447 = vadd.f32 %v8383, 1.4214138
          %v8448 = vadd.f32 %v8384, 1.4214138
          %v8449 = vmul.f32 %v8385, %v8129
          %v8450 = vmul.f32 %v8386, %v8130
          %v8451 = vmul.f32 %v8387, %v8131
          %v8452 = vmul.f32 %v8388, %v8132
          %v8453 = vmul.f32 %v8389, %v8133
          %v8454 = vmul.f32 %v8390, %v8134
          %v8455 = vmul.f32 %v8391, %v8135
          %v8456 = vmul.f32 %v8392, %v8136
          %v8457 = vmul.f32 %v8393, %v8137
          %v8458 = vmul.f32 %v8394, %v8138
          %v8459 = vmul.f32 %v8395, %v8139
          %v8460 = vmul.f32 %v8396, %v8140
          %v8461 = vmul.f32 %v8397, %v8141
          %v8462 = vmul.f32 %v8398, %v8142
          %v8463 = vmul.f32 %v8399, %v8143
          %v8464 = vmul.f32 %v8400, %v8144
          %v8465 = vmul.f32 %v8401, %v8145
          %v8466 = vmul.f32 %v8402, %v8146
          %v8467 = vmul.f32 %v8403, %v8147
          %v8468 = vmul.f32 %v8404, %v8148
          %v8469 = vmul.f32 %v8405, %v8149
          %v8470 = vmul.f32 %v8406, %v8150
          %v8471 = vmul.f32 %v8407, %v8151
          %v8472 = vmul.f32 %v8408, %v8152
          %v8473 = vmul.f32 %v8409, %v8153
          %v8474 = vmul.f32 %v8410, %v8154
          %v8475 = vmul.f32 %v8411, %v8155
          %v8476 = vmul.f32 %v8412, %v8156
          %v8477 = vmul.f32 %v8413, %v8157
          %v8478 = vmul.f32 %v8414, %v8158
          %v8479 = vmul.f32 %v8415, %v8159
          %v8480 = vmul.f32 %v8416, %v8160
          %v8481 = vmul.f32 %v8417, %v8161
          %v8482 = vmul.f32 %v8418, %v8162
          %v8483 = vmul.f32 %v8419, %v8163
          %v8484 = vmul.f32 %v8420, %v8164
          %v8485 = vmul.f32 %v8421, %v8165
          %v8486 = vmul.f32 %v8422, %v8166
          %v8487 = vmul.f32 %v8423, %v8167
          %v8488 = vmul.f32 %v8424, %v8168
          %v8489 = vmul.f32 %v8425, %v8169
          %v8490 = vmul.f32 %v8426, %v8170
          %v8491 = vmul.f32 %v8427, %v8171
          %v8492 = vmul.f32 %v8428, %v8172
          %v8493 = vmul.f32 %v8429, %v8173
          %v8494 = vmul.f32 %v8430, %v8174
          %v8495 = vmul.f32 %v8431, %v8175
          %v8496 = vmul.f32 %v8432, %v8176
          %v8497 = vmul.f32 %v8433, %v8177
          %v8498 = vmul.f32 %v8434, %v8178
          %v8499 = vmul.f32 %v8435, %v8179
          %v8500 = vmul.f32 %v8436, %v8180
          %v8501 = vmul.f32 %v8437, %v8181
          %v8502 = vmul.f32 %v8438, %v8182
          %v8503 = vmul.f32 %v8439, %v8183
          %v8504 = vmul.f32 %v8440, %v8184
          %v8505 = vmul.f32 %v8441, %v8185
          %v8506 = vmul.f32 %v8442, %v8186
          %v8507 = vmul.f32 %v8443, %v8187
          %v8508 = vmul.f32 %v8444, %v8188
          %v8509 = vmul.f32 %v8445, %v8189
          %v8510 = vmul.f32 %v8446, %v8190
          %v8511 = vmul.f32 %v8447, %v8191
          %v8512 = vmul.f32 %v8448, %v8192
          %v8513 = vadd.f32 %v8449, -0.28449672
          %v8514 = vadd.f32 %v8450, -0.28449672
          %v8515 = vadd.f32 %v8451, -0.28449672
          %v8516 = vadd.f32 %v8452, -0.28449672
          %v8517 = vadd.f32 %v8453, -0.28449672
          %v8518 = vadd.f32 %v8454, -0.28449672
          %v8519 = vadd.f32 %v8455, -0.28449672
          %v8520 = vadd.f32 %v8456, -0.28449672
          %v8521 = vadd.f32 %v8457, -0.28449672
          %v8522 = vadd.f32 %v8458, -0.28449672
          %v8523 = vadd.f32 %v8459, -0.28449672
          %v8524 = vadd.f32 %v8460, -0.28449672
          %v8525 = vadd.f32 %v8461, -0.28449672
          %v8526 = vadd.f32 %v8462, -0.28449672
          %v8527 = vadd.f32 %v8463, -0.28449672
          %v8528 = vadd.f32 %v8464, -0.28449672
          %v8529 = vadd.f32 %v8465, -0.28449672
          %v8530 = vadd.f32 %v8466, -0.28449672
          %v8531 = vadd.f32 %v8467, -0.28449672
          %v8532 = vadd.f32 %v8468, -0.28449672
          %v8533 = vadd.f32 %v8469, -0.28449672
          %v8534 = vadd.f32 %v8470, -0.28449672
          %v8535 = vadd.f32 %v8471, -0.28449672
          %v8536 = vadd.f32 %v8472, -0.28449672
          %v8537 = vadd.f32 %v8473, -0.28449672
          %v8538 = vadd.f32 %v8474, -0.28449672
          %v8539 = vadd.f32 %v8475, -0.28449672
          %v8540 = vadd.f32 %v8476, -0.28449672
          %v8541 = vadd.f32 %v8477, -0.28449672
          %v8542 = vadd.f32 %v8478, -0.28449672
          %v8543 = vadd.f32 %v8479, -0.28449672
          %v8544 = vadd.f32 %v8480, -0.28449672
          %v8545 = vadd.f32 %v8481, -0.28449672
          %v8546 = vadd.f32 %v8482, -0.28449672
          %v8547 = vadd.f32 %v8483, -0.28449672
          %v8548 = vadd.f32 %v8484, -0.28449672
          %v8549 = vadd.f32 %v8485, -0.28449672
          %v8550 = vadd.f32 %v8486, -0.28449672
          %v8551 = vadd.f32 %v8487, -0.28449672
          %v8552 = vadd.f32 %v8488, -0.28449672
          %v8553 = vadd.f32 %v8489, -0.28449672
          %v8554 = vadd.f32 %v8490, -0.28449672
          %v8555 = vadd.f32 %v8491, -0.28449672
          %v8556 = vadd.f32 %v8492, -0.28449672
          %v8557 = vadd.f32 %v8493, -0.28449672
          %v8558 = vadd.f32 %v8494, -0.28449672
          %v8559 = vadd.f32 %v8495, -0.28449672
          %v8560 = vadd.f32 %v8496, -0.28449672
          %v8561 = vadd.f32 %v8497, -0.28449672
          %v8562 = vadd.f32 %v8498, -0.28449672
          %v8563 = vadd.f32 %v8499, -0.28449672
          %v8564 = vadd.f32 %v8500, -0.28449672
          %v8565 = vadd.f32 %v8501, -0.28449672
          %v8566 = vadd.f32 %v8502, -0.28449672
          %v8567 = vadd.f32 %v8503, -0.28449672
          %v8568 = vadd.f32 %v8504, -0.28449672
          %v8569 = vadd.f32 %v8505, -0.28449672
          %v8570 = vadd.f32 %v8506, -0.28449672
          %v8571 = vadd.f32 %v8507, -0.28449672
          %v8572 = vadd.f32 %v8508, -0.28449672
          %v8573 = vadd.f32 %v8509, -0.28449672
          %v8574 = vadd.f32 %v8510, -0.28449672
          %v8575 = vadd.f32 %v8511, -0.28449672
          %v8576 = vadd.f32 %v8512, -0.28449672
          %v8577 = vmul.f32 %v8513, %v8129
          %v8578 = vmul.f32 %v8514, %v8130
          %v8579 = vmul.f32 %v8515, %v8131
          %v8580 = vmul.f32 %v8516, %v8132
          %v8581 = vmul.f32 %v8517, %v8133
          %v8582 = vmul.f32 %v8518, %v8134
          %v8583 = vmul.f32 %v8519, %v8135
          %v8584 = vmul.f32 %v8520, %v8136
          %v8585 = vmul.f32 %v8521, %v8137
          %v8586 = vmul.f32 %v8522, %v8138
          %v8587 = vmul.f32 %v8523, %v8139
          %v8588 = vmul.f32 %v8524, %v8140
          %v8589 = vmul.f32 %v8525, %v8141
          %v8590 = vmul.f32 %v8526, %v8142
          %v8591 = vmul.f32 %v8527, %v8143
          %v8592 = vmul.f32 %v8528, %v8144
          %v8593 = vmul.f32 %v8529, %v8145
          %v8594 = vmul.f32 %v8530, %v8146
          %v8595 = vmul.f32 %v8531, %v8147
          %v8596 = vmul.f32 %v8532, %v8148
          %v8597 = vmul.f32 %v8533, %v8149
          %v8598 = vmul.f32 %v8534, %v8150
          %v8599 = vmul.f32 %v8535, %v8151
          %v8600 = vmul.f32 %v8536, %v8152
          %v8601 = vmul.f32 %v8537, %v8153
          %v8602 = vmul.f32 %v8538, %v8154
          %v8603 = vmul.f32 %v8539, %v8155
          %v8604 = vmul.f32 %v8540, %v8156
          %v8605 = vmul.f32 %v8541, %v8157
          %v8606 = vmul.f32 %v8542, %v8158
          %v8607 = vmul.f32 %v8543, %v8159
          %v8608 = vmul.f32 %v8544, %v8160
          %v8609 = vmul.f32 %v8545, %v8161
          %v8610 = vmul.f32 %v8546, %v8162
          %v8611 = vmul.f32 %v8547, %v8163
          %v8612 = vmul.f32 %v8548, %v8164
          %v8613 = vmul.f32 %v8549, %v8165
          %v8614 = vmul.f32 %v8550, %v8166
          %v8615 = vmul.f32 %v8551, %v8167
          %v8616 = vmul.f32 %v8552, %v8168
          %v8617 = vmul.f32 %v8553, %v8169
          %v8618 = vmul.f32 %v8554, %v8170
          %v8619 = vmul.f32 %v8555, %v8171
          %v8620 = vmul.f32 %v8556, %v8172
          %v8621 = vmul.f32 %v8557, %v8173
          %v8622 = vmul.f32 %v8558, %v8174
          %v8623 = vmul.f32 %v8559, %v8175
          %v8624 = vmul.f32 %v8560, %v8176
          %v8625 = vmul.f32 %v8561, %v8177
          %v8626 = vmul.f32 %v8562, %v8178
          %v8627 = vmul.f32 %v8563, %v8179
          %v8628 = vmul.f32 %v8564, %v8180
          %v8629 = vmul.f32 %v8565, %v8181
          %v8630 = vmul.f32 %v8566, %v8182
          %v8631 = vmul.f32 %v8567, %v8183
          %v8632 = vmul.f32 %v8568, %v8184
          %v8633 = vmul.f32 %v8569, %v8185
          %v8634 = vmul.f32 %v8570, %v8186
          %v8635 = vmul.f32 %v8571, %v8187
          %v8636 = vmul.f32 %v8572, %v8188
          %v8637 = vmul.f32 %v8573, %v8189
          %v8638 = vmul.f32 %v8574, %v8190
          %v8639 = vmul.f32 %v8575, %v8191
          %v8640 = vmul.f32 %v8576, %v8192
          %v8641 = vadd.f32 %v8577, 0.2548296
          %v8642 = vadd.f32 %v8578, 0.2548296
          %v8643 = vadd.f32 %v8579, 0.2548296
          %v8644 = vadd.f32 %v8580, 0.2548296
          %v8645 = vadd.f32 %v8581, 0.2548296
          %v8646 = vadd.f32 %v8582, 0.2548296
          %v8647 = vadd.f32 %v8583, 0.2548296
          %v8648 = vadd.f32 %v8584, 0.2548296
          %v8649 = vadd.f32 %v8585, 0.2548296
          %v8650 = vadd.f32 %v8586, 0.2548296
          %v8651 = vadd.f32 %v8587, 0.2548296
          %v8652 = vadd.f32 %v8588, 0.2548296
          %v8653 = vadd.f32 %v8589, 0.2548296
          %v8654 = vadd.f32 %v8590, 0.2548296
          %v8655 = vadd.f32 %v8591, 0.2548296
          %v8656 = vadd.f32 %v8592, 0.2548296
          %v8657 = vadd.f32 %v8593, 0.2548296
          %v8658 = vadd.f32 %v8594, 0.2548296
          %v8659 = vadd.f32 %v8595, 0.2548296
          %v8660 = vadd.f32 %v8596, 0.2548296
          %v8661 = vadd.f32 %v8597, 0.2548296
          %v8662 = vadd.f32 %v8598, 0.2548296
          %v8663 = vadd.f32 %v8599, 0.2548296
          %v8664 = vadd.f32 %v8600, 0.2548296
          %v8665 = vadd.f32 %v8601, 0.2548296
          %v8666 = vadd.f32 %v8602, 0.2548296
          %v8667 = vadd.f32 %v8603, 0.2548296
          %v8668 = vadd.f32 %v8604, 0.2548296
          %v8669 = vadd.f32 %v8605, 0.2548296
          %v8670 = vadd.f32 %v8606, 0.2548296
          %v8671 = vadd.f32 %v8607, 0.2548296
          %v8672 = vadd.f32 %v8608, 0.2548296
          %v8673 = vadd.f32 %v8609, 0.2548296
          %v8674 = vadd.f32 %v8610, 0.2548296
          %v8675 = vadd.f32 %v8611, 0.2548296
          %v8676 = vadd.f32 %v8612, 0.2548296
          %v8677 = vadd.f32 %v8613, 0.2548296
          %v8678 = vadd.f32 %v8614, 0.2548296
          %v8679 = vadd.f32 %v8615, 0.2548296
          %v8680 = vadd.f32 %v8616, 0.2548296
          %v8681 = vadd.f32 %v8617, 0.2548296
          %v8682 = vadd.f32 %v8618, 0.2548296
          %v8683 = vadd.f32 %v8619, 0.2548296
          %v8684 = vadd.f32 %v8620, 0.2548296
          %v8685 = vadd.f32 %v8621, 0.2548296
          %v8686 = vadd.f32 %v8622, 0.2548296
          %v8687 = vadd.f32 %v8623, 0.2548296
          %v8688 = vadd.f32 %v8624, 0.2548296
          %v8689 = vadd.f32 %v8625, 0.2548296
          %v8690 = vadd.f32 %v8626, 0.2548296
          %v8691 = vadd.f32 %v8627, 0.2548296
          %v8692 = vadd.f32 %v8628, 0.2548296
          %v8693 = vadd.f32 %v8629, 0.2548296
          %v8694 = vadd.f32 %v8630, 0.2548296
          %v8695 = vadd.f32 %v8631, 0.2548296
          %v8696 = vadd.f32 %v8632, 0.2548296
          %v8697 = vadd.f32 %v8633, 0.2548296
          %v8698 = vadd.f32 %v8634, 0.2548296
          %v8699 = vadd.f32 %v8635, 0.2548296
          %v8700 = vadd.f32 %v8636, 0.2548296
          %v8701 = vadd.f32 %v8637, 0.2548296
          %v8702 = vadd.f32 %v8638, 0.2548296
          %v8703 = vadd.f32 %v8639, 0.2548296
          %v8704 = vadd.f32 %v8640, 0.2548296
          %v8705 = vmul.f32 %v8641, %v8129
          %v8706 = vmul.f32 %v8642, %v8130
          %v8707 = vmul.f32 %v8643, %v8131
          %v8708 = vmul.f32 %v8644, %v8132
          %v8709 = vmul.f32 %v8645, %v8133
          %v8710 = vmul.f32 %v8646, %v8134
          %v8711 = vmul.f32 %v8647, %v8135
          %v8712 = vmul.f32 %v8648, %v8136
          %v8713 = vmul.f32 %v8649, %v8137
          %v8714 = vmul.f32 %v8650, %v8138
          %v8715 = vmul.f32 %v8651, %v8139
          %v8716 = vmul.f32 %v8652, %v8140
          %v8717 = vmul.f32 %v8653, %v8141
          %v8718 = vmul.f32 %v8654, %v8142
          %v8719 = vmul.f32 %v8655, %v8143
          %v8720 = vmul.f32 %v8656, %v8144
          %v8721 = vmul.f32 %v8657, %v8145
          %v8722 = vmul.f32 %v8658, %v8146
          %v8723 = vmul.f32 %v8659, %v8147
          %v8724 = vmul.f32 %v8660, %v8148
          %v8725 = vmul.f32 %v8661, %v8149
          %v8726 = vmul.f32 %v8662, %v8150
          %v8727 = vmul.f32 %v8663, %v8151
          %v8728 = vmul.f32 %v8664, %v8152
          %v8729 = vmul.f32 %v8665, %v8153
          %v8730 = vmul.f32 %v8666, %v8154
          %v8731 = vmul.f32 %v8667, %v8155
          %v8732 = vmul.f32 %v8668, %v8156
          %v8733 = vmul.f32 %v8669, %v8157
          %v8734 = vmul.f32 %v8670, %v8158
          %v8735 = vmul.f32 %v8671, %v8159
          %v8736 = vmul.f32 %v8672, %v8160
          %v8737 = vmul.f32 %v8673, %v8161
          %v8738 = vmul.f32 %v8674, %v8162
          %v8739 = vmul.f32 %v8675, %v8163
          %v8740 = vmul.f32 %v8676, %v8164
          %v8741 = vmul.f32 %v8677, %v8165
          %v8742 = vmul.f32 %v8678, %v8166
          %v8743 = vmul.f32 %v8679, %v8167
          %v8744 = vmul.f32 %v8680, %v8168
          %v8745 = vmul.f32 %v8681, %v8169
          %v8746 = vmul.f32 %v8682, %v8170
          %v8747 = vmul.f32 %v8683, %v8171
          %v8748 = vmul.f32 %v8684, %v8172
          %v8749 = vmul.f32 %v8685, %v8173
          %v8750 = vmul.f32 %v8686, %v8174
          %v8751 = vmul.f32 %v8687, %v8175
          %v8752 = vmul.f32 %v8688, %v8176
          %v8753 = vmul.f32 %v8689, %v8177
          %v8754 = vmul.f32 %v8690, %v8178
          %v8755 = vmul.f32 %v8691, %v8179
          %v8756 = vmul.f32 %v8692, %v8180
          %v8757 = vmul.f32 %v8693, %v8181
          %v8758 = vmul.f32 %v8694, %v8182
          %v8759 = vmul.f32 %v8695, %v8183
          %v8760 = vmul.f32 %v8696, %v8184
          %v8761 = vmul.f32 %v8697, %v8185
          %v8762 = vmul.f32 %v8698, %v8186
          %v8763 = vmul.f32 %v8699, %v8187
          %v8764 = vmul.f32 %v8700, %v8188
          %v8765 = vmul.f32 %v8701, %v8189
          %v8766 = vmul.f32 %v8702, %v8190
          %v8767 = vmul.f32 %v8703, %v8191
          %v8768 = vmul.f32 %v8704, %v8192
          %v8769 = vsub.f32 0.0, %v7937
          %v8770 = vsub.f32 0.0, %v7938
          %v8771 = vsub.f32 0.0, %v7939
          %v8772 = vsub.f32 0.0, %v7940
          %v8773 = vsub.f32 0.0, %v7941
          %v8774 = vsub.f32 0.0, %v7942
          %v8775 = vsub.f32 0.0, %v7943
          %v8776 = vsub.f32 0.0, %v7944
          %v8777 = vsub.f32 0.0, %v7945
          %v8778 = vsub.f32 0.0, %v7946
          %v8779 = vsub.f32 0.0, %v7947
          %v8780 = vsub.f32 0.0, %v7948
          %v8781 = vsub.f32 0.0, %v7949
          %v8782 = vsub.f32 0.0, %v7950
          %v8783 = vsub.f32 0.0, %v7951
          %v8784 = vsub.f32 0.0, %v7952
          %v8785 = vsub.f32 0.0, %v7953
          %v8786 = vsub.f32 0.0, %v7954
          %v8787 = vsub.f32 0.0, %v7955
          %v8788 = vsub.f32 0.0, %v7956
          %v8789 = vsub.f32 0.0, %v7957
          %v8790 = vsub.f32 0.0, %v7958
          %v8791 = vsub.f32 0.0, %v7959
          %v8792 = vsub.f32 0.0, %v7960
          %v8793 = vsub.f32 0.0, %v7961
          %v8794 = vsub.f32 0.0, %v7962
          %v8795 = vsub.f32 0.0, %v7963
          %v8796 = vsub.f32 0.0, %v7964
          %v8797 = vsub.f32 0.0, %v7965
          %v8798 = vsub.f32 0.0, %v7966
          %v8799 = vsub.f32 0.0, %v7967
          %v8800 = vsub.f32 0.0, %v7968
          %v8801 = vsub.f32 0.0, %v7969
          %v8802 = vsub.f32 0.0, %v7970
          %v8803 = vsub.f32 0.0, %v7971
          %v8804 = vsub.f32 0.0, %v7972
          %v8805 = vsub.f32 0.0, %v7973
          %v8806 = vsub.f32 0.0, %v7974
          %v8807 = vsub.f32 0.0, %v7975
          %v8808 = vsub.f32 0.0, %v7976
          %v8809 = vsub.f32 0.0, %v7977
          %v8810 = vsub.f32 0.0, %v7978
          %v8811 = vsub.f32 0.0, %v7979
          %v8812 = vsub.f32 0.0, %v7980
          %v8813 = vsub.f32 0.0, %v7981
          %v8814 = vsub.f32 0.0, %v7982
          %v8815 = vsub.f32 0.0, %v7983
          %v8816 = vsub.f32 0.0, %v7984
          %v8817 = vsub.f32 0.0, %v7985
          %v8818 = vsub.f32 0.0, %v7986
          %v8819 = vsub.f32 0.0, %v7987
          %v8820 = vsub.f32 0.0, %v7988
          %v8821 = vsub.f32 0.0, %v7989
          %v8822 = vsub.f32 0.0, %v7990
          %v8823 = vsub.f32 0.0, %v7991
          %v8824 = vsub.f32 0.0, %v7992
          %v8825 = vsub.f32 0.0, %v7993
          %v8826 = vsub.f32 0.0, %v7994
          %v8827 = vsub.f32 0.0, %v7995
          %v8828 = vsub.f32 0.0, %v7996
          %v8829 = vsub.f32 0.0, %v7997
          %v8830 = vsub.f32 0.0, %v7998
          %v8831 = vsub.f32 0.0, %v7999
          %v8832 = vsub.f32 0.0, %v8000
          %v8833 = vmul.f32 %v8769, %v7937
          %v8834 = vmul.f32 %v8770, %v7938
          %v8835 = vmul.f32 %v8771, %v7939
          %v8836 = vmul.f32 %v8772, %v7940
          %v8837 = vmul.f32 %v8773, %v7941
          %v8838 = vmul.f32 %v8774, %v7942
          %v8839 = vmul.f32 %v8775, %v7943
          %v8840 = vmul.f32 %v8776, %v7944
          %v8841 = vmul.f32 %v8777, %v7945
          %v8842 = vmul.f32 %v8778, %v7946
          %v8843 = vmul.f32 %v8779, %v7947
          %v8844 = vmul.f32 %v8780, %v7948
          %v8845 = vmul.f32 %v8781, %v7949
          %v8846 = vmul.f32 %v8782, %v7950
          %v8847 = vmul.f32 %v8783, %v7951
          %v8848 = vmul.f32 %v8784, %v7952
          %v8849 = vmul.f32 %v8785, %v7953
          %v8850 = vmul.f32 %v8786, %v7954
          %v8851 = vmul.f32 %v8787, %v7955
          %v8852 = vmul.f32 %v8788, %v7956
          %v8853 = vmul.f32 %v8789, %v7957
          %v8854 = vmul.f32 %v8790, %v7958
          %v8855 = vmul.f32 %v8791, %v7959
          %v8856 = vmul.f32 %v8792, %v7960
          %v8857 = vmul.f32 %v8793, %v7961
          %v8858 = vmul.f32 %v8794, %v7962
          %v8859 = vmul.f32 %v8795, %v7963
          %v8860 = vmul.f32 %v8796, %v7964
          %v8861 = vmul.f32 %v8797, %v7965
          %v8862 = vmul.f32 %v8798, %v7966
          %v8863 = vmul.f32 %v8799, %v7967
          %v8864 = vmul.f32 %v8800, %v7968
          %v8865 = vmul.f32 %v8801, %v7969
          %v8866 = vmul.f32 %v8802, %v7970
          %v8867 = vmul.f32 %v8803, %v7971
          %v8868 = vmul.f32 %v8804, %v7972
          %v8869 = vmul.f32 %v8805, %v7973
          %v8870 = vmul.f32 %v8806, %v7974
          %v8871 = vmul.f32 %v8807, %v7975
          %v8872 = vmul.f32 %v8808, %v7976
          %v8873 = vmul.f32 %v8809, %v7977
          %v8874 = vmul.f32 %v8810, %v7978
          %v8875 = vmul.f32 %v8811, %v7979
          %v8876 = vmul.f32 %v8812, %v7980
          %v8877 = vmul.f32 %v8813, %v7981
          %v8878 = vmul.f32 %v8814, %v7982
          %v8879 = vmul.f32 %v8815, %v7983
          %v8880 = vmul.f32 %v8816, %v7984
          %v8881 = vmul.f32 %v8817, %v7985
          %v8882 = vmul.f32 %v8818, %v7986
          %v8883 = vmul.f32 %v8819, %v7987
          %v8884 = vmul.f32 %v8820, %v7988
          %v8885 = vmul.f32 %v8821, %v7989
          %v8886 = vmul.f32 %v8822, %v7990
          %v8887 = vmul.f32 %v8823, %v7991
          %v8888 = vmul.f32 %v8824, %v7992
          %v8889 = vmul.f32 %v8825, %v7993
          %v8890 = vmul.f32 %v8826, %v7994
          %v8891 = vmul.f32 %v8827, %v7995
          %v8892 = vmul.f32 %v8828, %v7996
          %v8893 = vmul.f32 %v8829, %v7997
          %v8894 = vmul.f32 %v8830, %v7998
          %v8895 = vmul.f32 %v8831, %v7999
          %v8896 = vmul.f32 %v8832, %v8000
          %v8897 = vmul.f32 %v8833, 1.442695
          %v8898 = vpow.pop %v8897
          %v8899 = vmul.f32 %v8834, 1.442695
          %v8900 = vpow.pop %v8899
          %v8901 = vmul.f32 %v8835, 1.442695
          %v8902 = vpow.pop %v8901
          %v8903 = vmul.f32 %v8836, 1.442695
          %v8904 = vpow.pop %v8903
          %v8905 = vmul.f32 %v8837, 1.442695
          %v8906 = vpow.pop %v8905
          %v8907 = vmul.f32 %v8838, 1.442695
          %v8908 = vpow.pop %v8907
          %v8909 = vmul.f32 %v8839, 1.442695
          %v8910 = vpow.pop %v8909
          %v8911 = vmul.f32 %v8840, 1.442695
          %v8912 = vpow.pop %v8911
          %v8913 = vmul.f32 %v8841, 1.442695
          %v8914 = vpow.pop %v8913
          %v8915 = vmul.f32 %v8842, 1.442695
          %v8916 = vpow.pop %v8915
          %v8917 = vmul.f32 %v8843, 1.442695
          %v8918 = vpow.pop %v8917
          %v8919 = vmul.f32 %v8844, 1.442695
          %v8920 = vpow.pop %v8919
          %v8921 = vmul.f32 %v8845, 1.442695
          %v8922 = vpow.pop %v8921
          %v8923 = vmul.f32 %v8846, 1.442695
          %v8924 = vpow.pop %v8923
          %v8925 = vmul.f32 %v8847, 1.442695
          %v8926 = vpow.pop %v8925
          %v8927 = vmul.f32 %v8848, 1.442695
          %v8928 = vpow.pop %v8927
          %v8929 = vmul.f32 %v8849, 1.442695
          %v8930 = vpow.pop %v8929
          %v8931 = vmul.f32 %v8850, 1.442695
          %v8932 = vpow.pop %v8931
          %v8933 = vmul.f32 %v8851, 1.442695
          %v8934 = vpow.pop %v8933
          %v8935 = vmul.f32 %v8852, 1.442695
          %v8936 = vpow.pop %v8935
          %v8937 = vmul.f32 %v8853, 1.442695
          %v8938 = vpow.pop %v8937
          %v8939 = vmul.f32 %v8854, 1.442695
          %v8940 = vpow.pop %v8939
          %v8941 = vmul.f32 %v8855, 1.442695
          %v8942 = vpow.pop %v8941
          %v8943 = vmul.f32 %v8856, 1.442695
          %v8944 = vpow.pop %v8943
          %v8945 = vmul.f32 %v8857, 1.442695
          %v8946 = vpow.pop %v8945
          %v8947 = vmul.f32 %v8858, 1.442695
          %v8948 = vpow.pop %v8947
          %v8949 = vmul.f32 %v8859, 1.442695
          %v8950 = vpow.pop %v8949
          %v8951 = vmul.f32 %v8860, 1.442695
          %v8952 = vpow.pop %v8951
          %v8953 = vmul.f32 %v8861, 1.442695
          %v8954 = vpow.pop %v8953
          %v8955 = vmul.f32 %v8862, 1.442695
          %v8956 = vpow.pop %v8955
          %v8957 = vmul.f32 %v8863, 1.442695
          %v8958 = vpow.pop %v8957
          %v8959 = vmul.f32 %v8864, 1.442695
          %v8960 = vpow.pop %v8959
          %v8961 = vmul.f32 %v8865, 1.442695
          %v8962 = vpow.pop %v8961
          %v8963 = vmul.f32 %v8866, 1.442695
          %v8964 = vpow.pop %v8963
          %v8965 = vmul.f32 %v8867, 1.442695
          %v8966 = vpow.pop %v8965
          %v8967 = vmul.f32 %v8868, 1.442695
          %v8968 = vpow.pop %v8967
          %v8969 = vmul.f32 %v8869, 1.442695
          %v8970 = vpow.pop %v8969
          %v8971 = vmul.f32 %v8870, 1.442695
          %v8972 = vpow.pop %v8971
          %v8973 = vmul.f32 %v8871, 1.442695
          %v8974 = vpow.pop %v8973
          %v8975 = vmul.f32 %v8872, 1.442695
          %v8976 = vpow.pop %v8975
          %v8977 = vmul.f32 %v8873, 1.442695
          %v8978 = vpow.pop %v8977
          %v8979 = vmul.f32 %v8874, 1.442695
          %v8980 = vpow.pop %v8979
          %v8981 = vmul.f32 %v8875, 1.442695
          %v8982 = vpow.pop %v8981
          %v8983 = vmul.f32 %v8876, 1.442695
          %v8984 = vpow.pop %v8983
          %v8985 = vmul.f32 %v8877, 1.442695
          %v8986 = vpow.pop %v8985
          %v8987 = vmul.f32 %v8878, 1.442695
          %v8988 = vpow.pop %v8987
          %v8989 = vmul.f32 %v8879, 1.442695
          %v8990 = vpow.pop %v8989
          %v8991 = vmul.f32 %v8880, 1.442695
          %v8992 = vpow.pop %v8991
          %v8993 = vmul.f32 %v8881, 1.442695
          %v8994 = vpow.pop %v8993
          %v8995 = vmul.f32 %v8882, 1.442695
          %v8996 = vpow.pop %v8995
          %v8997 = vmul.f32 %v8883, 1.442695
          %v8998 = vpow.pop %v8997
          %v8999 = vmul.f32 %v8884, 1.442695
          %v9000 = vpow.pop %v8999
          %v9001 = vmul.f32 %v8885, 1.442695
          %v9002 = vpow.pop %v9001
          %v9003 = vmul.f32 %v8886, 1.442695
          %v9004 = vpow.pop %v9003
          %v9005 = vmul.f32 %v8887, 1.442695
          %v9006 = vpow.pop %v9005
          %v9007 = vmul.f32 %v8888, 1.442695
          %v9008 = vpow.pop %v9007
          %v9009 = vmul.f32 %v8889, 1.442695
          %v9010 = vpow.pop %v9009
          %v9011 = vmul.f32 %v8890, 1.442695
          %v9012 = vpow.pop %v9011
          %v9013 = vmul.f32 %v8891, 1.442695
          %v9014 = vpow.pop %v9013
          %v9015 = vmul.f32 %v8892, 1.442695
          %v9016 = vpow.pop %v9015
          %v9017 = vmul.f32 %v8893, 1.442695
          %v9018 = vpow.pop %v9017
          %v9019 = vmul.f32 %v8894, 1.442695
          %v9020 = vpow.pop %v9019
          %v9021 = vmul.f32 %v8895, 1.442695
          %v9022 = vpow.pop %v9021
          %v9023 = vmul.f32 %v8896, 1.442695
          %v9024 = vpow.pop %v9023
          %v9025 = vmul.f32 %v8705, %v8898
          %v9026 = vmul.f32 %v8706, %v8900
          %v9027 = vmul.f32 %v8707, %v8902
          %v9028 = vmul.f32 %v8708, %v8904
          %v9029 = vmul.f32 %v8709, %v8906
          %v9030 = vmul.f32 %v8710, %v8908
          %v9031 = vmul.f32 %v8711, %v8910
          %v9032 = vmul.f32 %v8712, %v8912
          %v9033 = vmul.f32 %v8713, %v8914
          %v9034 = vmul.f32 %v8714, %v8916
          %v9035 = vmul.f32 %v8715, %v8918
          %v9036 = vmul.f32 %v8716, %v8920
          %v9037 = vmul.f32 %v8717, %v8922
          %v9038 = vmul.f32 %v8718, %v8924
          %v9039 = vmul.f32 %v8719, %v8926
          %v9040 = vmul.f32 %v8720, %v8928
          %v9041 = vmul.f32 %v8721, %v8930
          %v9042 = vmul.f32 %v8722, %v8932
          %v9043 = vmul.f32 %v8723, %v8934
          %v9044 = vmul.f32 %v8724, %v8936
          %v9045 = vmul.f32 %v8725, %v8938
          %v9046 = vmul.f32 %v8726, %v8940
          %v9047 = vmul.f32 %v8727, %v8942
          %v9048 = vmul.f32 %v8728, %v8944
          %v9049 = vmul.f32 %v8729, %v8946
          %v9050 = vmul.f32 %v8730, %v8948
          %v9051 = vmul.f32 %v8731, %v8950
          %v9052 = vmul.f32 %v8732, %v8952
          %v9053 = vmul.f32 %v8733, %v8954
          %v9054 = vmul.f32 %v8734, %v8956
          %v9055 = vmul.f32 %v8735, %v8958
          %v9056 = vmul.f32 %v8736, %v8960
          %v9057 = vmul.f32 %v8737, %v8962
          %v9058 = vmul.f32 %v8738, %v8964
          %v9059 = vmul.f32 %v8739, %v8966
          %v9060 = vmul.f32 %v8740, %v8968
          %v9061 = vmul.f32 %v8741, %v8970
          %v9062 = vmul.f32 %v8742, %v8972
          %v9063 = vmul.f32 %v8743, %v8974
          %v9064 = vmul.f32 %v8744, %v8976
          %v9065 = vmul.f32 %v8745, %v8978
          %v9066 = vmul.f32 %v8746, %v8980
          %v9067 = vmul.f32 %v8747, %v8982
          %v9068 = vmul.f32 %v8748, %v8984
          %v9069 = vmul.f32 %v8749, %v8986
          %v9070 = vmul.f32 %v8750, %v8988
          %v9071 = vmul.f32 %v8751, %v8990
          %v9072 = vmul.f32 %v8752, %v8992
          %v9073 = vmul.f32 %v8753, %v8994
          %v9074 = vmul.f32 %v8754, %v8996
          %v9075 = vmul.f32 %v8755, %v8998
          %v9076 = vmul.f32 %v8756, %v9000
          %v9077 = vmul.f32 %v8757, %v9002
          %v9078 = vmul.f32 %v8758, %v9004
          %v9079 = vmul.f32 %v8759, %v9006
          %v9080 = vmul.f32 %v8760, %v9008
          %v9081 = vmul.f32 %v8761, %v9010
          %v9082 = vmul.f32 %v8762, %v9012
          %v9083 = vmul.f32 %v8763, %v9014
          %v9084 = vmul.f32 %v8764, %v9016
          %v9085 = vmul.f32 %v8765, %v9018
          %v9086 = vmul.f32 %v8766, %v9020
          %v9087 = vmul.f32 %v8767, %v9022
          %v9088 = vmul.f32 %v8768, %v9024
          %v9089 = vsub.f32 1.0, %v9025
          %v9090 = vsub.f32 1.0, %v9026
          %v9091 = vsub.f32 1.0, %v9027
          %v9092 = vsub.f32 1.0, %v9028
          %v9093 = vsub.f32 1.0, %v9029
          %v9094 = vsub.f32 1.0, %v9030
          %v9095 = vsub.f32 1.0, %v9031
          %v9096 = vsub.f32 1.0, %v9032
          %v9097 = vsub.f32 1.0, %v9033
          %v9098 = vsub.f32 1.0, %v9034
          %v9099 = vsub.f32 1.0, %v9035
          %v9100 = vsub.f32 1.0, %v9036
          %v9101 = vsub.f32 1.0, %v9037
          %v9102 = vsub.f32 1.0, %v9038
          %v9103 = vsub.f32 1.0, %v9039
          %v9104 = vsub.f32 1.0, %v9040
          %v9105 = vsub.f32 1.0, %v9041
          %v9106 = vsub.f32 1.0, %v9042
          %v9107 = vsub.f32 1.0, %v9043
          %v9108 = vsub.f32 1.0, %v9044
          %v9109 = vsub.f32 1.0, %v9045
          %v9110 = vsub.f32 1.0, %v9046
          %v9111 = vsub.f32 1.0, %v9047
          %v9112 = vsub.f32 1.0, %v9048
          %v9113 = vsub.f32 1.0, %v9049
          %v9114 = vsub.f32 1.0, %v9050
          %v9115 = vsub.f32 1.0, %v9051
          %v9116 = vsub.f32 1.0, %v9052
          %v9117 = vsub.f32 1.0, %v9053
          %v9118 = vsub.f32 1.0, %v9054
          %v9119 = vsub.f32 1.0, %v9055
          %v9120 = vsub.f32 1.0, %v9056
          %v9121 = vsub.f32 1.0, %v9057
          %v9122 = vsub.f32 1.0, %v9058
          %v9123 = vsub.f32 1.0, %v9059
          %v9124 = vsub.f32 1.0, %v9060
          %v9125 = vsub.f32 1.0, %v9061
          %v9126 = vsub.f32 1.0, %v9062
          %v9127 = vsub.f32 1.0, %v9063
          %v9128 = vsub.f32 1.0, %v9064
          %v9129 = vsub.f32 1.0, %v9065
          %v9130 = vsub.f32 1.0, %v9066
          %v9131 = vsub.f32 1.0, %v9067
          %v9132 = vsub.f32 1.0, %v9068
          %v9133 = vsub.f32 1.0, %v9069
          %v9134 = vsub.f32 1.0, %v9070
          %v9135 = vsub.f32 1.0, %v9071
          %v9136 = vsub.f32 1.0, %v9072
          %v9137 = vsub.f32 1.0, %v9073
          %v9138 = vsub.f32 1.0, %v9074
          %v9139 = vsub.f32 1.0, %v9075
          %v9140 = vsub.f32 1.0, %v9076
          %v9141 = vsub.f32 1.0, %v9077
          %v9142 = vsub.f32 1.0, %v9078
          %v9143 = vsub.f32 1.0, %v9079
          %v9144 = vsub.f32 1.0, %v9080
          %v9145 = vsub.f32 1.0, %v9081
          %v9146 = vsub.f32 1.0, %v9082
          %v9147 = vsub.f32 1.0, %v9083
          %v9148 = vsub.f32 1.0, %v9084
          %v9149 = vsub.f32 1.0, %v9085
          %v9150 = vsub.f32 1.0, %v9086
          %v9151 = vsub.f32 1.0, %v9087
          %v9152 = vsub.f32 1.0, %v9088
          %v9153 = vmul.f32 %v7873, %v9089
          %v9154 = vmul.f32 %v7874, %v9090
          %v9155 = vmul.f32 %v7875, %v9091
          %v9156 = vmul.f32 %v7876, %v9092
          %v9157 = vmul.f32 %v7877, %v9093
          %v9158 = vmul.f32 %v7878, %v9094
          %v9159 = vmul.f32 %v7879, %v9095
          %v9160 = vmul.f32 %v7880, %v9096
          %v9161 = vmul.f32 %v7881, %v9097
          %v9162 = vmul.f32 %v7882, %v9098
          %v9163 = vmul.f32 %v7883, %v9099
          %v9164 = vmul.f32 %v7884, %v9100
          %v9165 = vmul.f32 %v7885, %v9101
          %v9166 = vmul.f32 %v7886, %v9102
          %v9167 = vmul.f32 %v7887, %v9103
          %v9168 = vmul.f32 %v7888, %v9104
          %v9169 = vmul.f32 %v7889, %v9105
          %v9170 = vmul.f32 %v7890, %v9106
          %v9171 = vmul.f32 %v7891, %v9107
          %v9172 = vmul.f32 %v7892, %v9108
          %v9173 = vmul.f32 %v7893, %v9109
          %v9174 = vmul.f32 %v7894, %v9110
          %v9175 = vmul.f32 %v7895, %v9111
          %v9176 = vmul.f32 %v7896, %v9112
          %v9177 = vmul.f32 %v7897, %v9113
          %v9178 = vmul.f32 %v7898, %v9114
          %v9179 = vmul.f32 %v7899, %v9115
          %v9180 = vmul.f32 %v7900, %v9116
          %v9181 = vmul.f32 %v7901, %v9117
          %v9182 = vmul.f32 %v7902, %v9118
          %v9183 = vmul.f32 %v7903, %v9119
          %v9184 = vmul.f32 %v7904, %v9120
          %v9185 = vmul.f32 %v7905, %v9121
          %v9186 = vmul.f32 %v7906, %v9122
          %v9187 = vmul.f32 %v7907, %v9123
          %v9188 = vmul.f32 %v7908, %v9124
          %v9189 = vmul.f32 %v7909, %v9125
          %v9190 = vmul.f32 %v7910, %v9126
          %v9191 = vmul.f32 %v7911, %v9127
          %v9192 = vmul.f32 %v7912, %v9128
          %v9193 = vmul.f32 %v7913, %v9129
          %v9194 = vmul.f32 %v7914, %v9130
          %v9195 = vmul.f32 %v7915, %v9131
          %v9196 = vmul.f32 %v7916, %v9132
          %v9197 = vmul.f32 %v7917, %v9133
          %v9198 = vmul.f32 %v7918, %v9134
          %v9199 = vmul.f32 %v7919, %v9135
          %v9200 = vmul.f32 %v7920, %v9136
          %v9201 = vmul.f32 %v7921, %v9137
          %v9202 = vmul.f32 %v7922, %v9138
          %v9203 = vmul.f32 %v7923, %v9139
          %v9204 = vmul.f32 %v7924, %v9140
          %v9205 = vmul.f32 %v7925, %v9141
          %v9206 = vmul.f32 %v7926, %v9142
          %v9207 = vmul.f32 %v7927, %v9143
          %v9208 = vmul.f32 %v7928, %v9144
          %v9209 = vmul.f32 %v7929, %v9145
          %v9210 = vmul.f32 %v7930, %v9146
          %v9211 = vmul.f32 %v7931, %v9147
          %v9212 = vmul.f32 %v7932, %v9148
          %v9213 = vmul.f32 %v7933, %v9149
          %v9214 = vmul.f32 %v7934, %v9150
          %v9215 = vmul.f32 %v7935, %v9151
          %v9216 = vmul.f32 %v7936, %v9152
          %v9217 = vadd.f32 %v9153, 1.0
          %v9218 = vadd.f32 %v9154, 1.0
          %v9219 = vadd.f32 %v9155, 1.0
          %v9220 = vadd.f32 %v9156, 1.0
          %v9221 = vadd.f32 %v9157, 1.0
          %v9222 = vadd.f32 %v9158, 1.0
          %v9223 = vadd.f32 %v9159, 1.0
          %v9224 = vadd.f32 %v9160, 1.0
          %v9225 = vadd.f32 %v9161, 1.0
          %v9226 = vadd.f32 %v9162, 1.0
          %v9227 = vadd.f32 %v9163, 1.0
          %v9228 = vadd.f32 %v9164, 1.0
          %v9229 = vadd.f32 %v9165, 1.0
          %v9230 = vadd.f32 %v9166, 1.0
          %v9231 = vadd.f32 %v9167, 1.0
          %v9232 = vadd.f32 %v9168, 1.0
          %v9233 = vadd.f32 %v9169, 1.0
          %v9234 = vadd.f32 %v9170, 1.0
          %v9235 = vadd.f32 %v9171, 1.0
          %v9236 = vadd.f32 %v9172, 1.0
          %v9237 = vadd.f32 %v9173, 1.0
          %v9238 = vadd.f32 %v9174, 1.0
          %v9239 = vadd.f32 %v9175, 1.0
          %v9240 = vadd.f32 %v9176, 1.0
          %v9241 = vadd.f32 %v9177, 1.0
          %v9242 = vadd.f32 %v9178, 1.0
          %v9243 = vadd.f32 %v9179, 1.0
          %v9244 = vadd.f32 %v9180, 1.0
          %v9245 = vadd.f32 %v9181, 1.0
          %v9246 = vadd.f32 %v9182, 1.0
          %v9247 = vadd.f32 %v9183, 1.0
          %v9248 = vadd.f32 %v9184, 1.0
          %v9249 = vadd.f32 %v9185, 1.0
          %v9250 = vadd.f32 %v9186, 1.0
          %v9251 = vadd.f32 %v9187, 1.0
          %v9252 = vadd.f32 %v9188, 1.0
          %v9253 = vadd.f32 %v9189, 1.0
          %v9254 = vadd.f32 %v9190, 1.0
          %v9255 = vadd.f32 %v9191, 1.0
          %v9256 = vadd.f32 %v9192, 1.0
          %v9257 = vadd.f32 %v9193, 1.0
          %v9258 = vadd.f32 %v9194, 1.0
          %v9259 = vadd.f32 %v9195, 1.0
          %v9260 = vadd.f32 %v9196, 1.0
          %v9261 = vadd.f32 %v9197, 1.0
          %v9262 = vadd.f32 %v9198, 1.0
          %v9263 = vadd.f32 %v9199, 1.0
          %v9264 = vadd.f32 %v9200, 1.0
          %v9265 = vadd.f32 %v9201, 1.0
          %v9266 = vadd.f32 %v9202, 1.0
          %v9267 = vadd.f32 %v9203, 1.0
          %v9268 = vadd.f32 %v9204, 1.0
          %v9269 = vadd.f32 %v9205, 1.0
          %v9270 = vadd.f32 %v9206, 1.0
          %v9271 = vadd.f32 %v9207, 1.0
          %v9272 = vadd.f32 %v9208, 1.0
          %v9273 = vadd.f32 %v9209, 1.0
          %v9274 = vadd.f32 %v9210, 1.0
          %v9275 = vadd.f32 %v9211, 1.0
          %v9276 = vadd.f32 %v9212, 1.0
          %v9277 = vadd.f32 %v9213, 1.0
          %v9278 = vadd.f32 %v9214, 1.0
          %v9279 = vadd.f32 %v9215, 1.0
          %v9280 = vadd.f32 %v9216, 1.0
          %v9281 = vmul.f32 %v7681, %v9217
          %v9282 = vmul.f32 %v7682, %v9218
          %v9283 = vmul.f32 %v7683, %v9219
          %v9284 = vmul.f32 %v7684, %v9220
          %v9285 = vmul.f32 %v7685, %v9221
          %v9286 = vmul.f32 %v7686, %v9222
          %v9287 = vmul.f32 %v7687, %v9223
          %v9288 = vmul.f32 %v7688, %v9224
          %v9289 = vmul.f32 %v7689, %v9225
          %v9290 = vmul.f32 %v7690, %v9226
          %v9291 = vmul.f32 %v7691, %v9227
          %v9292 = vmul.f32 %v7692, %v9228
          %v9293 = vmul.f32 %v7693, %v9229
          %v9294 = vmul.f32 %v7694, %v9230
          %v9295 = vmul.f32 %v7695, %v9231
          %v9296 = vmul.f32 %v7696, %v9232
          %v9297 = vmul.f32 %v7697, %v9233
          %v9298 = vmul.f32 %v7698, %v9234
          %v9299 = vmul.f32 %v7699, %v9235
          %v9300 = vmul.f32 %v7700, %v9236
          %v9301 = vmul.f32 %v7701, %v9237
          %v9302 = vmul.f32 %v7702, %v9238
          %v9303 = vmul.f32 %v7703, %v9239
          %v9304 = vmul.f32 %v7704, %v9240
          %v9305 = vmul.f32 %v7705, %v9241
          %v9306 = vmul.f32 %v7706, %v9242
          %v9307 = vmul.f32 %v7707, %v9243
          %v9308 = vmul.f32 %v7708, %v9244
          %v9309 = vmul.f32 %v7709, %v9245
          %v9310 = vmul.f32 %v7710, %v9246
          %v9311 = vmul.f32 %v7711, %v9247
          %v9312 = vmul.f32 %v7712, %v9248
          %v9313 = vmul.f32 %v7713, %v9249
          %v9314 = vmul.f32 %v7714, %v9250
          %v9315 = vmul.f32 %v7715, %v9251
          %v9316 = vmul.f32 %v7716, %v9252
          %v9317 = vmul.f32 %v7717, %v9253
          %v9318 = vmul.f32 %v7718, %v9254
          %v9319 = vmul.f32 %v7719, %v9255
          %v9320 = vmul.f32 %v7720, %v9256
          %v9321 = vmul.f32 %v7721, %v9257
          %v9322 = vmul.f32 %v7722, %v9258
          %v9323 = vmul.f32 %v7723, %v9259
          %v9324 = vmul.f32 %v7724, %v9260
          %v9325 = vmul.f32 %v7725, %v9261
          %v9326 = vmul.f32 %v7726, %v9262
          %v9327 = vmul.f32 %v7727, %v9263
          %v9328 = vmul.f32 %v7728, %v9264
          %v9329 = vmul.f32 %v7729, %v9265
          %v9330 = vmul.f32 %v7730, %v9266
          %v9331 = vmul.f32 %v7731, %v9267
          %v9332 = vmul.f32 %v7732, %v9268
          %v9333 = vmul.f32 %v7733, %v9269
          %v9334 = vmul.f32 %v7734, %v9270
          %v9335 = vmul.f32 %v7735, %v9271
          %v9336 = vmul.f32 %v7736, %v9272
          %v9337 = vmul.f32 %v7737, %v9273
          %v9338 = vmul.f32 %v7738, %v9274
          %v9339 = vmul.f32 %v7739, %v9275
          %v9340 = vmul.f32 %v7740, %v9276
          %v9341 = vmul.f32 %v7741, %v9277
          %v9342 = vmul.f32 %v7742, %v9278
          %v9343 = vmul.f32 %v7743, %v9279
          %v9344 = vmul.f32 %v7744, %v9280
          %v9345 = vpack.c.bf16 %v9285, %v9281
          %v9346 = vpack.c.bf16 %v9286, %v9282
          %v9347 = vpack.c.bf16 %v9287, %v9283
          %v9348 = vpack.c.bf16 %v9288, %v9284
          %v9349 = vpack.c.bf16 %v9293, %v9289
          %v9350 = vpack.c.bf16 %v9294, %v9290
          %v9351 = vpack.c.bf16 %v9295, %v9291
          %v9352 = vpack.c.bf16 %v9296, %v9292
          %v9353 = vpack.c.bf16 %v9301, %v9297
          %v9354 = vpack.c.bf16 %v9302, %v9298
          %v9355 = vpack.c.bf16 %v9303, %v9299
          %v9356 = vpack.c.bf16 %v9304, %v9300
          %v9357 = vpack.c.bf16 %v9309, %v9305
          %v9358 = vpack.c.bf16 %v9310, %v9306
          %v9359 = vpack.c.bf16 %v9311, %v9307
          %v9360 = vpack.c.bf16 %v9312, %v9308
          %v9361 = vpack.c.bf16 %v9317, %v9313
          %v9362 = vpack.c.bf16 %v9318, %v9314
          %v9363 = vpack.c.bf16 %v9319, %v9315
          %v9364 = vpack.c.bf16 %v9320, %v9316
          %v9365 = vpack.c.bf16 %v9325, %v9321
          %v9366 = vpack.c.bf16 %v9326, %v9322
          %v9367 = vpack.c.bf16 %v9327, %v9323
          %v9368 = vpack.c.bf16 %v9328, %v9324
          %v9369 = vpack.c.bf16 %v9333, %v9329
          %v9370 = vpack.c.bf16 %v9334, %v9330
          %v9371 = vpack.c.bf16 %v9335, %v9331
          %v9372 = vpack.c.bf16 %v9336, %v9332
          %v9373 = vpack.c.bf16 %v9341, %v9337
          %v9374 = vpack.c.bf16 %v9342, %v9338
          %v9375 = vpack.c.bf16 %v9343, %v9339
          %v9376 = vpack.c.bf16 %v9344, %v9340
          %v9377 = vld [vmem:[#allocation29] sm:$0xff]
          %v9378 = vld [vmem:[#allocation29 + $0x8] sm:$0xff]
          %v9379 = vld [vmem:[#allocation29 + $0x10] sm:$0xff]
          %v9380 = vld [vmem:[#allocation29 + $0x18] sm:$0xff]
          %v9381 = vld [vmem:[#allocation29 + $0x20] sm:$0xff]
          %v9382 = vld [vmem:[#allocation29 + $0x28] sm:$0xff]
          %v9383 = vld [vmem:[#allocation29 + $0x30] sm:$0xff]
          %v9384 = vld [vmem:[#allocation29 + $0x38] sm:$0xff]
          %v9385 = vld [vmem:[#allocation29 + $0x40] sm:$0xff]
          %v9386 = vld [vmem:[#allocation29 + $0x48] sm:$0xff]
          %v9387 = vld [vmem:[#allocation29 + $0x50] sm:$0xff]
          %v9388 = vld [vmem:[#allocation29 + $0x58] sm:$0xff]
          %v9389 = vld [vmem:[#allocation29 + $0x60] sm:$0xff]
          %v9390 = vld [vmem:[#allocation29 + $0x68] sm:$0xff]
          %v9391 = vld [vmem:[#allocation29 + $0x70] sm:$0xff]
          %v9392 = vld [vmem:[#allocation29 + $0x78] sm:$0xff]
          %v9393 = vld [vmem:[#allocation29 + $0x80] sm:$0xff]
          %v9394 = vld [vmem:[#allocation29 + $0x88] sm:$0xff]
          %v9395 = vld [vmem:[#allocation29 + $0x90] sm:$0xff]
          %v9396 = vld [vmem:[#allocation29 + $0x98] sm:$0xff]
          %v9397 = vld [vmem:[#allocation29 + $0xa0] sm:$0xff]
          %v9398 = vld [vmem:[#allocation29 + $0xa8] sm:$0xff]
          %v9399 = vld [vmem:[#allocation29 + $0xb0] sm:$0xff]
          %v9400 = vld [vmem:[#allocation29 + $0xb8] sm:$0xff]
          %v9401 = vld [vmem:[#allocation29 + $0xc0] sm:$0xff]
          %v9402 = vld [vmem:[#allocation29 + $0xc8] sm:$0xff]
          %v9403 = vld [vmem:[#allocation29 + $0xd0] sm:$0xff]
          %v9404 = vld [vmem:[#allocation29 + $0xd8] sm:$0xff]
          %v9405 = vld [vmem:[#allocation29 + $0xe0] sm:$0xff]
          %v9406 = vld [vmem:[#allocation29 + $0xe8] sm:$0xff]
          %v9407 = vld [vmem:[#allocation29 + $0xf0] sm:$0xff]
          %v9408 = vld [vmem:[#allocation29 + $0xf8] sm:$0xff]
          %v9409 = vld [vmem:[#allocation29 + $0x100] sm:$0xff]
          %v9410 = vld [vmem:[#allocation29 + $0x108] sm:$0xff]
          %v9411 = vld [vmem:[#allocation29 + $0x110] sm:$0xff]
          %v9412 = vld [vmem:[#allocation29 + $0x118] sm:$0xff]
          %v9413 = vld [vmem:[#allocation29 + $0x120] sm:$0xff]
          %v9414 = vld [vmem:[#allocation29 + $0x128] sm:$0xff]
          %v9415 = vld [vmem:[#allocation29 + $0x130] sm:$0xff]
          %v9416 = vld [vmem:[#allocation29 + $0x138] sm:$0xff]
          %v9417 = vld [vmem:[#allocation29 + $0x140] sm:$0xff]
          %v9418 = vld [vmem:[#allocation29 + $0x148] sm:$0xff]
          %v9419 = vld [vmem:[#allocation29 + $0x150] sm:$0xff]
          %v9420 = vld [vmem:[#allocation29 + $0x158] sm:$0xff]
          %v9421 = vld [vmem:[#allocation29 + $0x160] sm:$0xff]
          %v9422 = vld [vmem:[#allocation29 + $0x168] sm:$0xff]
          %v9423 = vld [vmem:[#allocation29 + $0x170] sm:$0xff]
          %v9424 = vld [vmem:[#allocation29 + $0x178] sm:$0xff]
          %v9425 = vld [vmem:[#allocation29 + $0x180] sm:$0xff]
          %v9426 = vld [vmem:[#allocation29 + $0x188] sm:$0xff]
          %v9427 = vld [vmem:[#allocation29 + $0x190] sm:$0xff]
          %v9428 = vld [vmem:[#allocation29 + $0x198] sm:$0xff]
          %v9429 = vld [vmem:[#allocation29 + $0x1a0] sm:$0xff]
          %v9430 = vld [vmem:[#allocation29 + $0x1a8] sm:$0xff]
          %v9431 = vld [vmem:[#allocation29 + $0x1b0] sm:$0xff]
          %v9432 = vld [vmem:[#allocation29 + $0x1b8] sm:$0xff]
          %v9433 = vld [vmem:[#allocation29 + $0x1c0] sm:$0xff]
          %v9434 = vld [vmem:[#allocation29 + $0x1c8] sm:$0xff]
          %v9435 = vld [vmem:[#allocation29 + $0x1d0] sm:$0xff]
          %v9436 = vld [vmem:[#allocation29 + $0x1d8] sm:$0xff]
          %v9437 = vld [vmem:[#allocation29 + $0x1e0] sm:$0xff]
          %v9438 = vld [vmem:[#allocation29 + $0x1e8] sm:$0xff]
          %v9439 = vld [vmem:[#allocation29 + $0x1f0] sm:$0xff]
          %v9440 = vld [vmem:[#allocation29 + $0x1f8] sm:$0xff]
          %v9441 = vld [vmem:[%s17] sm:$0x3]
          %v9443 = vperm.slane %v9441, 0
          %v9444 = vperm.slane %v9441, 1
          %v9511 = vunpack.c.l.b16 %v9377
          %v9512 = vunpack.c.h.b16 %v9377
          %v9513 = vunpack.c.l.b16 %v9378
          %v9514 = vunpack.c.h.b16 %v9378
          %v9515 = vunpack.c.l.b16 %v9379
          %v9516 = vunpack.c.h.b16 %v9379
          %v9517 = vunpack.c.l.b16 %v9380
          %v9518 = vunpack.c.h.b16 %v9380
          %v9519 = vunpack.c.l.b16 %v9381
          %v9520 = vunpack.c.h.b16 %v9381
          %v9521 = vunpack.c.l.b16 %v9382
          %v9522 = vunpack.c.h.b16 %v9382
          %v9523 = vunpack.c.l.b16 %v9383
          %v9524 = vunpack.c.h.b16 %v9383
          %v9525 = vunpack.c.l.b16 %v9384
          %v9526 = vunpack.c.h.b16 %v9384
          %v9527 = vunpack.c.l.b16 %v9385
          %v9528 = vunpack.c.h.b16 %v9385
          %v9529 = vunpack.c.l.b16 %v9386
          %v9530 = vunpack.c.h.b16 %v9386
          %v9531 = vunpack.c.l.b16 %v9387
          %v9532 = vunpack.c.h.b16 %v9387
          %v9533 = vunpack.c.l.b16 %v9388
          %v9534 = vunpack.c.h.b16 %v9388
          %v9535 = vunpack.c.l.b16 %v9389
          %v9536 = vunpack.c.h.b16 %v9389
          %v9537 = vunpack.c.l.b16 %v9390
          %v9538 = vunpack.c.h.b16 %v9390
          %v9539 = vunpack.c.l.b16 %v9391
          %v9540 = vunpack.c.h.b16 %v9391
          %v9541 = vunpack.c.l.b16 %v9392
          %v9542 = vunpack.c.h.b16 %v9392
          %v9543 = vunpack.c.l.b16 %v9393
          %v9544 = vunpack.c.h.b16 %v9393
          %v9545 = vunpack.c.l.b16 %v9394
          %v9546 = vunpack.c.h.b16 %v9394
          %v9547 = vunpack.c.l.b16 %v9395
          %v9548 = vunpack.c.h.b16 %v9395
          %v9549 = vunpack.c.l.b16 %v9396
          %v9550 = vunpack.c.h.b16 %v9396
          %v9551 = vunpack.c.l.b16 %v9397
          %v9552 = vunpack.c.h.b16 %v9397
          %v9553 = vunpack.c.l.b16 %v9398
          %v9554 = vunpack.c.h.b16 %v9398
          %v9555 = vunpack.c.l.b16 %v9399
          %v9556 = vunpack.c.h.b16 %v9399
          %v9557 = vunpack.c.l.b16 %v9400
          %v9558 = vunpack.c.h.b16 %v9400
          %v9559 = vunpack.c.l.b16 %v9401
          %v9560 = vunpack.c.h.b16 %v9401
          %v9561 = vunpack.c.l.b16 %v9402
          %v9562 = vunpack.c.h.b16 %v9402
          %v9563 = vunpack.c.l.b16 %v9403
          %v9564 = vunpack.c.h.b16 %v9403
          %v9565 = vunpack.c.l.b16 %v9404
          %v9566 = vunpack.c.h.b16 %v9404
          %v9567 = vunpack.c.l.b16 %v9405
          %v9568 = vunpack.c.h.b16 %v9405
          %v9569 = vunpack.c.l.b16 %v9406
          %v9570 = vunpack.c.h.b16 %v9406
          %v9571 = vunpack.c.l.b16 %v9407
          %v9572 = vunpack.c.h.b16 %v9407
          %v9573 = vunpack.c.l.b16 %v9408
          %v9574 = vunpack.c.h.b16 %v9408
          %v9575 = vunpack.c.l.b16 %v9409
          %v9576 = vunpack.c.h.b16 %v9409
          %v9577 = vunpack.c.l.b16 %v9410
          %v9578 = vunpack.c.h.b16 %v9410
          %v9579 = vunpack.c.l.b16 %v9411
          %v9580 = vunpack.c.h.b16 %v9411
          %v9581 = vunpack.c.l.b16 %v9412
          %v9582 = vunpack.c.h.b16 %v9412
          %v9583 = vunpack.c.l.b16 %v9413
          %v9584 = vunpack.c.h.b16 %v9413
          %v9585 = vunpack.c.l.b16 %v9414
          %v9586 = vunpack.c.h.b16 %v9414
          %v9587 = vunpack.c.l.b16 %v9415
          %v9588 = vunpack.c.h.b16 %v9415
          %v9589 = vunpack.c.l.b16 %v9416
          %v9590 = vunpack.c.h.b16 %v9416
          %v9591 = vunpack.c.l.b16 %v9417
          %v9592 = vunpack.c.h.b16 %v9417
          %v9593 = vunpack.c.l.b16 %v9418
          %v9594 = vunpack.c.h.b16 %v9418
          %v9595 = vunpack.c.l.b16 %v9419
          %v9596 = vunpack.c.h.b16 %v9419
          %v9597 = vunpack.c.l.b16 %v9420
          %v9598 = vunpack.c.h.b16 %v9420
          %v9599 = vunpack.c.l.b16 %v9421
          %v9600 = vunpack.c.h.b16 %v9421
          %v9601 = vunpack.c.l.b16 %v9422
          %v9602 = vunpack.c.h.b16 %v9422
          %v9603 = vunpack.c.l.b16 %v9423
          %v9604 = vunpack.c.h.b16 %v9423
          %v9605 = vunpack.c.l.b16 %v9424
          %v9606 = vunpack.c.h.b16 %v9424
          %v9607 = vunpack.c.l.b16 %v9425
          %v9608 = vunpack.c.h.b16 %v9425
          %v9609 = vunpack.c.l.b16 %v9426
          %v9610 = vunpack.c.h.b16 %v9426
          %v9611 = vunpack.c.l.b16 %v9427
          %v9612 = vunpack.c.h.b16 %v9427
          %v9613 = vunpack.c.l.b16 %v9428
          %v9614 = vunpack.c.h.b16 %v9428
          %v9615 = vunpack.c.l.b16 %v9429
          %v9616 = vunpack.c.h.b16 %v9429
          %v9617 = vunpack.c.l.b16 %v9430
          %v9618 = vunpack.c.h.b16 %v9430
          %v9619 = vunpack.c.l.b16 %v9431
          %v9620 = vunpack.c.h.b16 %v9431
          %v9621 = vunpack.c.l.b16 %v9432
          %v9622 = vunpack.c.h.b16 %v9432
          %v9623 = vunpack.c.l.b16 %v9433
          %v9624 = vunpack.c.h.b16 %v9433
          %v9625 = vunpack.c.l.b16 %v9434
          %v9626 = vunpack.c.h.b16 %v9434
          %v9627 = vunpack.c.l.b16 %v9435
          %v9628 = vunpack.c.h.b16 %v9435
          %v9629 = vunpack.c.l.b16 %v9436
          %v9630 = vunpack.c.h.b16 %v9436
          %v9631 = vunpack.c.l.b16 %v9437
          %v9632 = vunpack.c.h.b16 %v9437
          %v9633 = vunpack.c.l.b16 %v9438
          %v9634 = vunpack.c.h.b16 %v9438
          %v9635 = vunpack.c.l.b16 %v9439
          %v9636 = vunpack.c.h.b16 %v9439
          %v9637 = vunpack.c.l.b16 %v9440
          %v9638 = vunpack.c.h.b16 %v9440
          %v9639 = vpack.c.b16 %v9513, %v9511
          %v9640 = vpack.c.b16 %v9514, %v9512
          %v9641 = vpack.c.b16 %v9517, %v9515
          %v9642 = vpack.c.b16 %v9518, %v9516
          %v9643 = vpack.c.b16 %v9521, %v9519
          %v9644 = vpack.c.b16 %v9522, %v9520
          %v9645 = vpack.c.b16 %v9525, %v9523
          %v9646 = vpack.c.b16 %v9526, %v9524
          %v9647 = vpack.c.b16 %v9529, %v9527
          %v9648 = vpack.c.b16 %v9530, %v9528
          %v9649 = vpack.c.b16 %v9533, %v9531
          %v9650 = vpack.c.b16 %v9534, %v9532
          %v9651 = vpack.c.b16 %v9537, %v9535
          %v9652 = vpack.c.b16 %v9538, %v9536
          %v9653 = vpack.c.b16 %v9541, %v9539
          %v9654 = vpack.c.b16 %v9542, %v9540
          %v9655 = vpack.c.b16 %v9545, %v9543
          %v9656 = vpack.c.b16 %v9546, %v9544
          %v9657 = vpack.c.b16 %v9549, %v9547
          %v9658 = vpack.c.b16 %v9550, %v9548
          %v9659 = vpack.c.b16 %v9553, %v9551
          %v9660 = vpack.c.b16 %v9554, %v9552
          %v9661 = vpack.c.b16 %v9557, %v9555
          %v9662 = vpack.c.b16 %v9558, %v9556
          %v9663 = vpack.c.b16 %v9561, %v9559
          %v9664 = vpack.c.b16 %v9562, %v9560
          %v9665 = vpack.c.b16 %v9565, %v9563
          %v9666 = vpack.c.b16 %v9566, %v9564
          %v9667 = vpack.c.b16 %v9569, %v9567
          %v9668 = vpack.c.b16 %v9570, %v9568
          %v9669 = vpack.c.b16 %v9573, %v9571
          %v9670 = vpack.c.b16 %v9574, %v9572
          %v9671 = vpack.c.b16 %v9577, %v9575
          %v9672 = vpack.c.b16 %v9578, %v9576
          %v9673 = vpack.c.b16 %v9581, %v9579
          %v9674 = vpack.c.b16 %v9582, %v9580
          %v9675 = vpack.c.b16 %v9585, %v9583
          %v9676 = vpack.c.b16 %v9586, %v9584
          %v9677 = vpack.c.b16 %v9589, %v9587
          %v9678 = vpack.c.b16 %v9590, %v9588
          %v9679 = vpack.c.b16 %v9593, %v9591
          %v9680 = vpack.c.b16 %v9594, %v9592
          %v9681 = vpack.c.b16 %v9597, %v9595
          %v9682 = vpack.c.b16 %v9598, %v9596
          %v9683 = vpack.c.b16 %v9601, %v9599
          %v9684 = vpack.c.b16 %v9602, %v9600
          %v9685 = vpack.c.b16 %v9605, %v9603
          %v9686 = vpack.c.b16 %v9606, %v9604
          %v9687 = vpack.c.b16 %v9609, %v9607
          %v9688 = vpack.c.b16 %v9610, %v9608
          %v9689 = vpack.c.b16 %v9613, %v9611
          %v9690 = vpack.c.b16 %v9614, %v9612
          %v9691 = vpack.c.b16 %v9617, %v9615
          %v9692 = vpack.c.b16 %v9618, %v9616
          %v9693 = vpack.c.b16 %v9621, %v9619
          %v9694 = vpack.c.b16 %v9622, %v9620
          %v9695 = vpack.c.b16 %v9625, %v9623
          %v9696 = vpack.c.b16 %v9626, %v9624
          %v9697 = vpack.c.b16 %v9629, %v9627
          %v9698 = vpack.c.b16 %v9630, %v9628
          %v9699 = vpack.c.b16 %v9633, %v9631
          %v9700 = vpack.c.b16 %v9634, %v9632
          %v9701 = vpack.c.b16 %v9637, %v9635
          %v9702 = vpack.c.b16 %v9638, %v9636
          %9767 = vmatpush.bf16.msra.mxu0 %v9653
          %9768 = vmatpush.bf16.msra.mxu0 %v9651
          %9769 = vmatpush.bf16.msra.mxu0 %v9649
          %9770 = vmatpush.bf16.msra.mxu0 %v9647
          %9771 = vmatpush.bf16.msra.mxu0 %v9645
          %9772 = vmatpush.bf16.msra.mxu0 %v9643
          %9773 = vmatpush.bf16.msra.mxu0 %v9641
          %9774 = vmatpush.bf16.msra.mxu0 %v9639
          %9775 = vmatmul.bf16.gmra.mxu0 %v9345
          %v9776 = vpop.f32.mrf.mxu0
          %v9777 = vadd.f32 %v9443, %v9776
          %v9778 = vpop.f32.mrf.mxu0
          %v9779 = vadd.f32 %v9443, %v9778
          %9780 = vmatmul.bf16.gmra.mxu0 %v9349
          %v9781 = vpop.f32.mrf.mxu0
          %v9782 = vadd.f32 %v9443, %v9781
          %v9783 = vpop.f32.mrf.mxu0
          %v9784 = vadd.f32 %v9443, %v9783
          %9785 = vmatmul.bf16.gmra.mxu0 %v9353
          %v9786 = vpop.f32.mrf.mxu0
          %v9787 = vadd.f32 %v9443, %v9786
          %v9788 = vpop.f32.mrf.mxu0
          %v9789 = vadd.f32 %v9443, %v9788
          %9790 = vmatmul.bf16.gmra.mxu0 %v9357
          %v9791 = vpop.f32.mrf.mxu0
          %v9792 = vadd.f32 %v9443, %v9791
          %v9793 = vpop.f32.mrf.mxu0
          %v9794 = vadd.f32 %v9443, %v9793
          %9795 = vmatmul.bf16.gmra.mxu0 %v9361
          %v9796 = vpop.f32.mrf.mxu0
          %v9797 = vadd.f32 %v9443, %v9796
          %v9798 = vpop.f32.mrf.mxu0
          %v9799 = vadd.f32 %v9443, %v9798
          %9800 = vmatmul.bf16.gmra.mxu0 %v9365
          %v9801 = vpop.f32.mrf.mxu0
          %v9802 = vadd.f32 %v9443, %v9801
          %v9803 = vpop.f32.mrf.mxu0
          %v9804 = vadd.f32 %v9443, %v9803
          %9805 = vmatmul.bf16.gmra.mxu0 %v9369
          %v9806 = vpop.f32.mrf.mxu0
          %v9807 = vadd.f32 %v9443, %v9806
          %v9808 = vpop.f32.mrf.mxu0
          %v9809 = vadd.f32 %v9443, %v9808
          %9810 = vmatmul.bf16.gmra.mxu0 %v9373
          %v9811 = vpop.f32.mrf.mxu0
          %v9812 = vadd.f32 %v9443, %v9811
          %v9813 = vpop.f32.mrf.mxu0
          %v9814 = vadd.f32 %v9443, %v9813
          %9815 = vdwg.mxu0
          %9816 = vmatpush.bf16.msra.mxu0 %v9669
          %9817 = vmatpush.bf16.msra.mxu0 %v9667
          %9818 = vmatpush.bf16.msra.mxu0 %v9665
          %9819 = vmatpush.bf16.msra.mxu0 %v9663
          %9820 = vmatpush.bf16.msra.mxu0 %v9661
          %9821 = vmatpush.bf16.msra.mxu0 %v9659
          %9822 = vmatpush.bf16.msra.mxu0 %v9657
          %9823 = vmatpush.bf16.msra.mxu0 %v9655
          %9824 = vmatmul.bf16.gmra.mxu0 %v9346
          %v9825 = vpop.f32.mrf.mxu0
          %v9826 = vadd.f32 %v9777, %v9825
          %v9827 = vpop.f32.mrf.mxu0
          %v9828 = vadd.f32 %v9779, %v9827
          %9829 = vmatmul.bf16.gmra.mxu0 %v9350
          %v9830 = vpop.f32.mrf.mxu0
          %v9831 = vadd.f32 %v9782, %v9830
          %v9832 = vpop.f32.mrf.mxu0
          %v9833 = vadd.f32 %v9784, %v9832
          %9834 = vmatmul.bf16.gmra.mxu0 %v9354
          %v9835 = vpop.f32.mrf.mxu0
          %v9836 = vadd.f32 %v9787, %v9835
          %v9837 = vpop.f32.mrf.mxu0
          %v9838 = vadd.f32 %v9789, %v9837
          %9839 = vmatmul.bf16.gmra.mxu0 %v9358
          %v9840 = vpop.f32.mrf.mxu0
          %v9841 = vadd.f32 %v9792, %v9840
          %v9842 = vpop.f32.mrf.mxu0
          %v9843 = vadd.f32 %v9794, %v9842
          %9844 = vmatmul.bf16.gmra.mxu0 %v9362
          %v9845 = vpop.f32.mrf.mxu0
          %v9846 = vadd.f32 %v9797, %v9845
          %v9847 = vpop.f32.mrf.mxu0
          %v9848 = vadd.f32 %v9799, %v9847
          %9849 = vmatmul.bf16.gmra.mxu0 %v9366
          %v9850 = vpop.f32.mrf.mxu0
          %v9851 = vadd.f32 %v9802, %v9850
          %v9852 = vpop.f32.mrf.mxu0
          %v9853 = vadd.f32 %v9804, %v9852
          %9854 = vmatmul.bf16.gmra.mxu0 %v9370
          %v9855 = vpop.f32.mrf.mxu0
          %v9856 = vadd.f32 %v9807, %v9855
          %v9857 = vpop.f32.mrf.mxu0
          %v9858 = vadd.f32 %v9809, %v9857
          %9859 = vmatmul.bf16.gmra.mxu0 %v9374
          %v9860 = vpop.f32.mrf.mxu0
          %v9861 = vadd.f32 %v9812, %v9860
          %v9862 = vpop.f32.mrf.mxu0
          %v9863 = vadd.f32 %v9814, %v9862
          %9864 = vdwg.mxu0
          %9865 = vmatpush.bf16.msra.mxu0 %v9685
          %9866 = vmatpush.bf16.msra.mxu0 %v9683
          %9867 = vmatpush.bf16.msra.mxu0 %v9681
          %9868 = vmatpush.bf16.msra.mxu0 %v9679
          %9869 = vmatpush.bf16.msra.mxu0 %v9677
          %9870 = vmatpush.bf16.msra.mxu0 %v9675
          %9871 = vmatpush.bf16.msra.mxu0 %v9673
          %9872 = vmatpush.bf16.msra.mxu0 %v9671
          %9873 = vmatmul.bf16.gmra.mxu0 %v9347
          %v9874 = vpop.f32.mrf.mxu0
          %v9875 = vadd.f32 %v9826, %v9874
          %v9876 = vpop.f32.mrf.mxu0
          %v9877 = vadd.f32 %v9828, %v9876
          %9878 = vmatmul.bf16.gmra.mxu0 %v9351
          %v9879 = vpop.f32.mrf.mxu0
          %v9880 = vadd.f32 %v9831, %v9879
          %v9881 = vpop.f32.mrf.mxu0
          %v9882 = vadd.f32 %v9833, %v9881
          %9883 = vmatmul.bf16.gmra.mxu0 %v9355
          %v9884 = vpop.f32.mrf.mxu0
          %v9885 = vadd.f32 %v9836, %v9884
          %v9886 = vpop.f32.mrf.mxu0
          %v9887 = vadd.f32 %v9838, %v9886
          %9888 = vmatmul.bf16.gmra.mxu0 %v9359
          %v9889 = vpop.f32.mrf.mxu0
          %v9890 = vadd.f32 %v9841, %v9889
          %v9891 = vpop.f32.mrf.mxu0
          %v9892 = vadd.f32 %v9843, %v9891
          %9893 = vmatmul.bf16.gmra.mxu0 %v9363
          %v9894 = vpop.f32.mrf.mxu0
          %v9895 = vadd.f32 %v9846, %v9894
          %v9896 = vpop.f32.mrf.mxu0
          %v9897 = vadd.f32 %v9848, %v9896
          %9898 = vmatmul.bf16.gmra.mxu0 %v9367
          %v9899 = vpop.f32.mrf.mxu0
          %v9900 = vadd.f32 %v9851, %v9899
          %v9901 = vpop.f32.mrf.mxu0
          %v9902 = vadd.f32 %v9853, %v9901
          %9903 = vmatmul.bf16.gmra.mxu0 %v9371
          %v9904 = vpop.f32.mrf.mxu0
          %v9905 = vadd.f32 %v9856, %v9904
          %v9906 = vpop.f32.mrf.mxu0
          %v9907 = vadd.f32 %v9858, %v9906
          %9908 = vmatmul.bf16.gmra.mxu0 %v9375
          %v9909 = vpop.f32.mrf.mxu0
          %v9910 = vadd.f32 %v9861, %v9909
          %v9911 = vpop.f32.mrf.mxu0
          %v9912 = vadd.f32 %v9863, %v9911
          %9913 = vdwg.mxu0
          %9914 = vmatpush.bf16.msra.mxu0 %v9701
          %9915 = vmatpush.bf16.msra.mxu0 %v9699
          %9916 = vmatpush.bf16.msra.mxu0 %v9697
          %9917 = vmatpush.bf16.msra.mxu0 %v9695
          %9918 = vmatpush.bf16.msra.mxu0 %v9693
          %9919 = vmatpush.bf16.msra.mxu0 %v9691
          %9920 = vmatpush.bf16.msra.mxu0 %v9689
          %9921 = vmatpush.bf16.msra.mxu0 %v9687
          %9922 = vmatmul.bf16.gmra.mxu0 %v9348
          %v9923 = vpop.f32.mrf.mxu0
          %v9924 = vadd.f32 %v9875, %v9923
          %v9925 = vpop.f32.mrf.mxu0
          %v9926 = vadd.f32 %v9877, %v9925
          %9927 = vmatmul.bf16.gmra.mxu0 %v9352
          %v9928 = vpop.f32.mrf.mxu0
          %v9929 = vadd.f32 %v9880, %v9928
          %v9930 = vpop.f32.mrf.mxu0
          %v9931 = vadd.f32 %v9882, %v9930
          %9932 = vmatmul.bf16.gmra.mxu0 %v9356
          %v9933 = vpop.f32.mrf.mxu0
          %v9934 = vadd.f32 %v9885, %v9933
          %v9935 = vpop.f32.mrf.mxu0
          %v9936 = vadd.f32 %v9887, %v9935
          %9937 = vmatmul.bf16.gmra.mxu0 %v9360
          %v9938 = vpop.f32.mrf.mxu0
          %v9939 = vadd.f32 %v9890, %v9938
          %v9940 = vpop.f32.mrf.mxu0
          %v9941 = vadd.f32 %v9892, %v9940
          %9942 = vmatmul.bf16.gmra.mxu0 %v9364
          %v9943 = vpop.f32.mrf.mxu0
          %v9944 = vadd.f32 %v9895, %v9943
          %v9945 = vpop.f32.mrf.mxu0
          %v9946 = vadd.f32 %v9897, %v9945
          %9947 = vmatmul.bf16.gmra.mxu0 %v9368
          %v9948 = vpop.f32.mrf.mxu0
          %v9949 = vadd.f32 %v9900, %v9948
          %v9950 = vpop.f32.mrf.mxu0
          %v9951 = vadd.f32 %v9902, %v9950
          %9952 = vmatmul.bf16.gmra.mxu0 %v9372
          %v9953 = vpop.f32.mrf.mxu0
          %v9954 = vadd.f32 %v9905, %v9953
          %v9955 = vpop.f32.mrf.mxu0
          %v9956 = vadd.f32 %v9907, %v9955
          %9957 = vmatmul.bf16.gmra.mxu0 %v9376
          %v9958 = vpop.f32.mrf.mxu0
          %v9959 = vadd.f32 %v9910, %v9958
          %v9960 = vpop.f32.mrf.mxu0
          %v9961 = vadd.f32 %v9912, %v9960
          %9962 = vdwg.mxu0
          %9963 = vmatpush.bf16.msra.mxu0 %v9654
          %9964 = vmatpush.bf16.msra.mxu0 %v9652
          %9965 = vmatpush.bf16.msra.mxu0 %v9650
          %9966 = vmatpush.bf16.msra.mxu0 %v9648
          %9967 = vmatpush.bf16.msra.mxu0 %v9646
          %9968 = vmatpush.bf16.msra.mxu0 %v9644
          %9969 = vmatpush.bf16.msra.mxu0 %v9642
          %9970 = vmatpush.bf16.msra.mxu0 %v9640
          %9971 = vmatmul.bf16.gmra.mxu0 %v9345
          %v9972 = vpop.f32.mrf.mxu0
          %v9973 = vadd.f32 %v9444, %v9972
          %v9974 = vpop.f32.mrf.mxu0
          %v9975 = vadd.f32 %v9444, %v9974
          %9976 = vmatmul.bf16.gmra.mxu0 %v9349
          %v9977 = vpop.f32.mrf.mxu0
          %v9978 = vadd.f32 %v9444, %v9977
          %v9979 = vpop.f32.mrf.mxu0
          %v9980 = vadd.f32 %v9444, %v9979
          %9981 = vmatmul.bf16.gmra.mxu0 %v9353
          %v9982 = vpop.f32.mrf.mxu0
          %v9983 = vadd.f32 %v9444, %v9982
          %v9984 = vpop.f32.mrf.mxu0
          %v9985 = vadd.f32 %v9444, %v9984
          %9986 = vmatmul.bf16.gmra.mxu0 %v9357
          %v9987 = vpop.f32.mrf.mxu0
          %v9988 = vadd.f32 %v9444, %v9987
          %v9989 = vpop.f32.mrf.mxu0
          %v9990 = vadd.f32 %v9444, %v9989
          %9991 = vmatmul.bf16.gmra.mxu0 %v9361
          %v9992 = vpop.f32.mrf.mxu0
          %v9993 = vadd.f32 %v9444, %v9992
          %v9994 = vpop.f32.mrf.mxu0
          %v9995 = vadd.f32 %v9444, %v9994
          %9996 = vmatmul.bf16.gmra.mxu0 %v9365
          %v9997 = vpop.f32.mrf.mxu0
          %v9998 = vadd.f32 %v9444, %v9997
          %v9999 = vpop.f32.mrf.mxu0
          %v10000 = vadd.f32 %v9444, %v9999
          %10001 = vmatmul.bf16.gmra.mxu0 %v9369
          %v10002 = vpop.f32.mrf.mxu0
          %v10003 = vadd.f32 %v9444, %v10002
          %v10004 = vpop.f32.mrf.mxu0
          %v10005 = vadd.f32 %v9444, %v10004
          %10006 = vmatmul.bf16.gmra.mxu0 %v9373
          %v10007 = vpop.f32.mrf.mxu0
          %v10008 = vadd.f32 %v9444, %v10007
          %v10009 = vpop.f32.mrf.mxu0
          %v10010 = vadd.f32 %v9444, %v10009
          %10011 = vdwg.mxu0
          %10012 = vmatpush.bf16.msra.mxu0 %v9670
          %10013 = vmatpush.bf16.msra.mxu0 %v9668
          %10014 = vmatpush.bf16.msra.mxu0 %v9666
          %10015 = vmatpush.bf16.msra.mxu0 %v9664
          %10016 = vmatpush.bf16.msra.mxu0 %v9662
          %10017 = vmatpush.bf16.msra.mxu0 %v9660
          %10018 = vmatpush.bf16.msra.mxu0 %v9658
          %10019 = vmatpush.bf16.msra.mxu0 %v9656
          %10020 = vmatmul.bf16.gmra.mxu0 %v9346
          %v10021 = vpop.f32.mrf.mxu0
          %v10022 = vadd.f32 %v9973, %v10021
          %v10023 = vpop.f32.mrf.mxu0
          %v10024 = vadd.f32 %v9975, %v10023
          %10025 = vmatmul.bf16.gmra.mxu0 %v9350
          %v10026 = vpop.f32.mrf.mxu0
          %v10027 = vadd.f32 %v9978, %v10026
          %v10028 = vpop.f32.mrf.mxu0
          %v10029 = vadd.f32 %v9980, %v10028
          %10030 = vmatmul.bf16.gmra.mxu0 %v9354
          %v10031 = vpop.f32.mrf.mxu0
          %v10032 = vadd.f32 %v9983, %v10031
          %v10033 = vpop.f32.mrf.mxu0
          %v10034 = vadd.f32 %v9985, %v10033
          %10035 = vmatmul.bf16.gmra.mxu0 %v9358
          %v10036 = vpop.f32.mrf.mxu0
          %v10037 = vadd.f32 %v9988, %v10036
          %v10038 = vpop.f32.mrf.mxu0
          %v10039 = vadd.f32 %v9990, %v10038
          %10040 = vmatmul.bf16.gmra.mxu0 %v9362
          %v10041 = vpop.f32.mrf.mxu0
          %v10042 = vadd.f32 %v9993, %v10041
          %v10043 = vpop.f32.mrf.mxu0
          %v10044 = vadd.f32 %v9995, %v10043
          %10045 = vmatmul.bf16.gmra.mxu0 %v9366
          %v10046 = vpop.f32.mrf.mxu0
          %v10047 = vadd.f32 %v9998, %v10046
          %v10048 = vpop.f32.mrf.mxu0
          %v10049 = vadd.f32 %v10000, %v10048
          %10050 = vmatmul.bf16.gmra.mxu0 %v9370
          %v10051 = vpop.f32.mrf.mxu0
          %v10052 = vadd.f32 %v10003, %v10051
          %v10053 = vpop.f32.mrf.mxu0
          %v10054 = vadd.f32 %v10005, %v10053
          %10055 = vmatmul.bf16.gmra.mxu0 %v9374
          %v10056 = vpop.f32.mrf.mxu0
          %v10057 = vadd.f32 %v10008, %v10056
          %v10058 = vpop.f32.mrf.mxu0
          %v10059 = vadd.f32 %v10010, %v10058
          %10060 = vdwg.mxu0
          %10061 = vmatpush.bf16.msra.mxu0 %v9686
          %10062 = vmatpush.bf16.msra.mxu0 %v9684
          %10063 = vmatpush.bf16.msra.mxu0 %v9682
          %10064 = vmatpush.bf16.msra.mxu0 %v9680
          %10065 = vmatpush.bf16.msra.mxu0 %v9678
          %10066 = vmatpush.bf16.msra.mxu0 %v9676
          %10067 = vmatpush.bf16.msra.mxu0 %v9674
          %10068 = vmatpush.bf16.msra.mxu0 %v9672
          %10069 = vmatmul.bf16.gmra.mxu0 %v9347
          %v10070 = vpop.f32.mrf.mxu0
          %v10071 = vadd.f32 %v10022, %v10070
          %v10072 = vpop.f32.mrf.mxu0
          %v10073 = vadd.f32 %v10024, %v10072
          %10074 = vmatmul.bf16.gmra.mxu0 %v9351
          %v10075 = vpop.f32.mrf.mxu0
          %v10076 = vadd.f32 %v10027, %v10075
          %v10077 = vpop.f32.mrf.mxu0
          %v10078 = vadd.f32 %v10029, %v10077
          %10079 = vmatmul.bf16.gmra.mxu0 %v9355
          %v10080 = vpop.f32.mrf.mxu0
          %v10081 = vadd.f32 %v10032, %v10080
          %v10082 = vpop.f32.mrf.mxu0
          %v10083 = vadd.f32 %v10034, %v10082
          %10084 = vmatmul.bf16.gmra.mxu0 %v9359
          %v10085 = vpop.f32.mrf.mxu0
          %v10086 = vadd.f32 %v10037, %v10085
          %v10087 = vpop.f32.mrf.mxu0
          %v10088 = vadd.f32 %v10039, %v10087
          %10089 = vmatmul.bf16.gmra.mxu0 %v9363
          %v10090 = vpop.f32.mrf.mxu0
          %v10091 = vadd.f32 %v10042, %v10090
          %v10092 = vpop.f32.mrf.mxu0
          %v10093 = vadd.f32 %v10044, %v10092
          %10094 = vmatmul.bf16.gmra.mxu0 %v9367
          %v10095 = vpop.f32.mrf.mxu0
          %v10096 = vadd.f32 %v10047, %v10095
          %v10097 = vpop.f32.mrf.mxu0
          %v10098 = vadd.f32 %v10049, %v10097
          %10099 = vmatmul.bf16.gmra.mxu0 %v9371
          %v10100 = vpop.f32.mrf.mxu0
          %v10101 = vadd.f32 %v10052, %v10100
          %v10102 = vpop.f32.mrf.mxu0
          %v10103 = vadd.f32 %v10054, %v10102
          %10104 = vmatmul.bf16.gmra.mxu0 %v9375
          %v10105 = vpop.f32.mrf.mxu0
          %v10106 = vadd.f32 %v10057, %v10105
          %v10107 = vpop.f32.mrf.mxu0
          %v10108 = vadd.f32 %v10059, %v10107
          %10109 = vdwg.mxu0
          %10110 = vmatpush.bf16.msra.mxu0 %v9702
          %10111 = vmatpush.bf16.msra.mxu0 %v9700
          %10112 = vmatpush.bf16.msra.mxu0 %v9698
          %10113 = vmatpush.bf16.msra.mxu0 %v9696
          %10114 = vmatpush.bf16.msra.mxu0 %v9694
          %10115 = vmatpush.bf16.msra.mxu0 %v9692
          %10116 = vmatpush.bf16.msra.mxu0 %v9690
          %10117 = vmatpush.bf16.msra.mxu0 %v9688
          %10118 = vmatmul.bf16.gmra.mxu0 %v9348
          %v10119 = vpop.f32.mrf.mxu0
          %v10120 = vadd.f32 %v10071, %v10119
          %v10121 = vpop.f32.mrf.mxu0
          %v10122 = vadd.f32 %v10073, %v10121
          %10123 = vmatmul.bf16.gmra.mxu0 %v9352
          %v10124 = vpop.f32.mrf.mxu0
          %v10125 = vadd.f32 %v10076, %v10124
          %v10126 = vpop.f32.mrf.mxu0
          %v10127 = vadd.f32 %v10078, %v10126
          %10128 = vmatmul.bf16.gmra.mxu0 %v9356
          %v10129 = vpop.f32.mrf.mxu0
          %v10130 = vadd.f32 %v10081, %v10129
          %v10131 = vpop.f32.mrf.mxu0
          %v10132 = vadd.f32 %v10083, %v10131
          %10133 = vmatmul.bf16.gmra.mxu0 %v9360
          %v10134 = vpop.f32.mrf.mxu0
          %v10135 = vadd.f32 %v10086, %v10134
          %v10136 = vpop.f32.mrf.mxu0
          %v10137 = vadd.f32 %v10088, %v10136
          %10138 = vmatmul.bf16.gmra.mxu0 %v9364
          %v10139 = vpop.f32.mrf.mxu0
          %v10140 = vadd.f32 %v10091, %v10139
          %v10141 = vpop.f32.mrf.mxu0
          %v10142 = vadd.f32 %v10093, %v10141
          %10143 = vmatmul.bf16.gmra.mxu0 %v9368
          %v10144 = vpop.f32.mrf.mxu0
          %v10145 = vadd.f32 %v10096, %v10144
          %v10146 = vpop.f32.mrf.mxu0
          %v10147 = vadd.f32 %v10098, %v10146
          %10148 = vmatmul.bf16.gmra.mxu0 %v9372
          %v10149 = vpop.f32.mrf.mxu0
          %v10150 = vadd.f32 %v10101, %v10149
          %v10151 = vpop.f32.mrf.mxu0
          %v10152 = vadd.f32 %v10103, %v10151
          %10153 = vmatmul.bf16.gmra.mxu0 %v9376
          %v10154 = vpop.f32.mrf.mxu0
          %v10155 = vadd.f32 %v10106, %v10154
          %v10156 = vpop.f32.mrf.mxu0
          %v10157 = vadd.f32 %v10108, %v10156
          %10158 = vdwg.mxu0
          %v10159 = vadd.f32 %v6364, %v9924
          %v10160 = vadd.f32 %v6365, %v10120
          %v10161 = vadd.f32 %v6366, %v9926
          %v10162 = vadd.f32 %v6367, %v10122
          %v10163 = vadd.f32 %v6368, %v9929
          %v10164 = vadd.f32 %v6369, %v10125
          %v10165 = vadd.f32 %v6370, %v9931
          %v10166 = vadd.f32 %v6371, %v10127
          %v10167 = vadd.f32 %v6372, %v9934
          %v10168 = vadd.f32 %v6373, %v10130
          %v10169 = vadd.f32 %v6374, %v9936
          %v10170 = vadd.f32 %v6375, %v10132
          %v10171 = vadd.f32 %v6376, %v9939
          %v10172 = vadd.f32 %v6377, %v10135
          %v10173 = vadd.f32 %v6378, %v9941
          %v10174 = vadd.f32 %v6379, %v10137
          %v10175 = vadd.f32 %v6380, %v9944
          %v10176 = vadd.f32 %v6381, %v10140
          %v10177 = vadd.f32 %v6382, %v9946
          %v10178 = vadd.f32 %v6383, %v10142
          %v10179 = vadd.f32 %v6384, %v9949
          %v10180 = vadd.f32 %v6385, %v10145
          %v10181 = vadd.f32 %v6386, %v9951
          %v10182 = vadd.f32 %v6387, %v10147
          %v10183 = vadd.f32 %v6388, %v9954
          %v10184 = vadd.f32 %v6389, %v10150
          %v10185 = vadd.f32 %v6390, %v9956
          %v10186 = vadd.f32 %v6391, %v10152
          %v10187 = vadd.f32 %v6392, %v9959
          %v10188 = vadd.f32 %v6393, %v10155
          %v10189 = vadd.f32 %v6394, %v9961
          %v10190 = vadd.f32 %v6395, %v10157
          %10191 = vst [vmem:[%s903] sm:$0xff] %v10159
          %10192 = vst [vmem:[%s903 + $0x8] sm:$0xff] %v10160
          %10193 = vst [vmem:[%s903 + $0x10] sm:$0xff] %v10161
          %10194 = vst [vmem:[%s903 + $0x18] sm:$0xff] %v10162
          %10195 = vst [vmem:[%s903 + $0x20] sm:$0xff] %v10163
          %10196 = vst [vmem:[%s903 + $0x28] sm:$0xff] %v10164
          %10197 = vst [vmem:[%s903 + $0x30] sm:$0xff] %v10165
          %10198 = vst [vmem:[%s903 + $0x38] sm:$0xff] %v10166
          %10199 = vst [vmem:[%s903 + $0x40] sm:$0xff] %v10167
          %10200 = vst [vmem:[%s903 + $0x48] sm:$0xff] %v10168
          %10201 = vst [vmem:[%s903 + $0x50] sm:$0xff] %v10169
          %10202 = vst [vmem:[%s903 + $0x58] sm:$0xff] %v10170
          %10203 = vst [vmem:[%s903 + $0x60] sm:$0xff] %v10171
          %10204 = vst [vmem:[%s903 + $0x68] sm:$0xff] %v10172
          %10205 = vst [vmem:[%s903 + $0x70] sm:$0xff] %v10173
          %10206 = vst [vmem:[%s903 + $0x78] sm:$0xff] %v10174
          %10207 = vst [vmem:[%s903 + $0x80] sm:$0xff] %v10175
          %10208 = vst [vmem:[%s903 + $0x88] sm:$0xff] %v10176
          %10209 = vst [vmem:[%s903 + $0x90] sm:$0xff] %v10177
          %10210 = vst [vmem:[%s903 + $0x98] sm:$0xff] %v10178
          %10211 = vst [vmem:[%s903 + $0xa0] sm:$0xff] %v10179
          %10212 = vst [vmem:[%s903 + $0xa8] sm:$0xff] %v10180
          %10213 = vst [vmem:[%s903 + $0xb0] sm:$0xff] %v10181
          %10214 = vst [vmem:[%s903 + $0xb8] sm:$0xff] %v10182
          %10215 = vst [vmem:[%s903 + $0xc0] sm:$0xff] %v10183
          %10216 = vst [vmem:[%s903 + $0xc8] sm:$0xff] %v10184
          %10217 = vst [vmem:[%s903 + $0xd0] sm:$0xff] %v10185
          %10218 = vst [vmem:[%s903 + $0xd8] sm:$0xff] %v10186
          %10219 = vst [vmem:[%s903 + $0xe0] sm:$0xff] %v10187
          %10220 = vst [vmem:[%s903 + $0xe8] sm:$0xff] %v10188
          %10221 = vst [vmem:[%s903 + $0xf0] sm:$0xff] %v10189
          %10222 = vst [vmem:[%s903 + $0xf8] sm:$0xff] %v10190
        $region156: #{tpu_custom_call.1} parent=91 // pred_fallthru
          _
        %s10223 = sand.u32 %s484, 1
        %s10224 = scalar_lea.sflag [#allocation11], %s10223
        %s10225 = sand.u32 %s484, 1
        %s10226 = smul.addr %s10225, 256
        %s10227 = scalar_lea.vmem [#allocation30], %s10226
        // Predicated region
        $region157: #{tpu_custom_call.1} parent=91 // pred_check
          %p10228 = pneg %p494
        $region158: #{tpu_custom_call.1} parent=91 // pred_check_branch
          %10230 = sbr.rel (%p10228) target = $region160
        $region159: #{tpu_custom_call.1} parent=91 // pred_region
          %s10231 = smul.u32 16, %s51
          %10233 = vsyncadd %s10224, 0
          %s10234 = smul.addr %s10231, 2
          %s10235 = smul.addr %s50, 64
          %s10236 = sadd.s32 %s10234, %s10235
          %s10237 = smul.addr %s10236, 8
          %s10238 = scalar_lea.hbm %s18, %s10237
          %s10239 = sshll.u32 %s10227, 4
          %s10240 = int_to_ptr.vmem [resolvable:$true] %s10239
          %s10241 = sshll.u32 %s10238, 4
          %s10242 = int_to_ptr.hbm [resolvable:$true] %s10241
          %10247 = dma.vmem_to_hbm [thread:$0]  %s10240, 4096, %s10242, %s10224, 256, 256, 16
        $region160: #{tpu_custom_call.1} parent=91 // pred_fallthru
          _
      $region92: #{tpu_custom_call.1} parent=5 // pred_fallthru
        _
      %p10248 = scmp.le.s32.totalorder 2, %s40
      // Predicated region
      $region161: #{tpu_custom_call.1} parent=5 // pred_check
        %p10249 = pneg %p10248
      $region162: #{tpu_custom_call.1} parent=5 // pred_check_branch
        %10251 = sbr.rel (%p10249) target = $region164
      $region163: #{tpu_custom_call.1} parent=5 // pred_region
        %s10252 = ssub.s32 %s40, 2
        // Predicated region
        $region165: #{tpu_custom_call.1} parent=163 // pred_check
          %p10253 = pneg %p500
        $region166: #{tpu_custom_call.1} parent=163 // pred_check_branch
          %10255 = sbr.rel (%p10253) target = $region168
        $region167: #{tpu_custom_call.1} parent=163 // pred_region
          %s10256 = sand.u32 %s485, 1
          %s10257 = scalar_lea.sflag [#allocation11], %s10256
          %s10258 = sand.u32 %s485, 1
          %s10259 = smul.addr %s10258, 256
          %s10260 = scalar_lea.vmem [#allocation30], %s10259
          %10262 = dma.done %s10257, 4096
        $region168: #{tpu_custom_call.1} parent=163 // pred_fallthru
          _
      $region164: #{tpu_custom_call.1} parent=5 // pred_fallthru
        _
    $region6: #{tpu_custom_call.1} parent=1 // loop_footer
      %s44 = sadd.s32 1, %s40
    $region7: #{tpu_custom_call.1} parent=1 // loop_footer_branch
      %39 = sbr.rel target = $region3
    $region8: #{tpu_custom_call.1} parent=1 // loop_exit
      _
    %10263 = vsyncpa [#allocation10], 1
    %s10264 = scalar_lea.sflag [#allocation10], 1
    %10265 = vsyncpa %s10264, 1
    %10266 = vsyncpa [#allocation13], 1
    %s10267 = scalar_lea.sflag [#allocation13], 1
    %10268 = vsyncpa %s10267, 1
    %10269 = vsyncpa [#allocation16], 1
    %s10270 = scalar_lea.sflag [#allocation16], 1
    %10271 = vsyncpa %s10270, 1
    %10272 = vsyncpa [#allocation19], 1
    %10273 = vsyncpa [#allocation22], 1
    %10274 = vsyncpa [#allocation25], 1
    %10275 = vsyncpa [#allocation28], 1
    %10276 = vsyncpa [#allocation11], 1
    %s10277 = scalar_lea.sflag [#allocation11], 1
    %10278 = vsyncpa %s10277, 1

</llo_original>
